<compile_context>
chip_gen: v5e
topology: v5e:2x2
jax: 0.10.0
libtpu: 0.0.40
codegen_flags: <defaults>
</compile_context>

<pallas_src>
import functools

import jax
import jax.numpy as jnp
from jax.experimental import pallas as pl
from jax.experimental.pallas import tpu as pltpu

EPS = 1e-5
_MIB = 1024 * 1024
# Budget used by the tile picker for Pass-1 VMEM buffers (leaves headroom on v7x 64 MiB).
_PASS1_BUDGET = 40 * _MIB


def _pass1_vmem_bytes(TH, W, Cin, Cout):
    """Estimated Pass-1 VMEM footprint (double-buffered I/O + single im2col scratch)."""
    x_tile = (TH + 2) * (W + 2) * Cin * 2          # bf16 halo'd input tile
    w_buf = 9 * Cin * Cout * 2                     # bf16 fused-K weights
    b_buf = Cout * 4                               # f32 conv bias
    o_tile = TH * W * Cout * 2                     # bf16 conv-out tile
    stats = 2 * Cout * 4                           # f32 per-tile sum / sumsq
    scratch = TH * W * 9 * Cin * 2                 # bf16 im2col scratch (single buffer)
    return 2 * (x_tile + w_buf + b_buf + o_tile + stats) + scratch


def _pick_row_tile(H, W, Cin, Cout, budget=_PASS1_BUDGET):
    """Largest divisor TH of H whose Pass-1 buffers fit the VMEM budget (prefers TH=H)."""
    for th in sorted((d for d in range(1, H + 1) if H % d == 0), reverse=True):
        if _pass1_vmem_bytes(th, W, Cin, Cout) <= budget:
            return th
    return 1


def _pick_m_tile(M):
    """Largest divisor of M that is a multiple of 8 and <= 1024 (Pass-2 streaming chunk)."""
    best = M
    for d in range(1, M + 1):
        if M % d == 0 and d % 8 == 0 and d <= 1024:
            best = d
    return best


# ----------------------------------------------------------------------------
# Pass 1: fused ReLU + 3x3 conv (single fused-K MXU matmul) + per-tile BN partials
# ----------------------------------------------------------------------------
def conv_stats_kernel(x_ref, w_ref, b_ref, o_ref, sum_ref, sq_ref, p_ref,
                      *, TH, W, Cin, Cout):
    """
    x_ref  : (1, TH+2, W+2, Cin)  bf16  halo'd, zero-padded input tile (pre-ReLU)
    w_ref  : (9*Cin, Cout)        bf16  conv weights, rows ordered (dy, dx, cin)
    b_ref  : (1, Cout)            f32   conv bias
    o_ref  : (1, TH*W, Cout)      bf16  conv output tile (pre-BN, halved HBM traffic)
    sum_ref: (1, 1, Cout)         f32   per-tile per-channel sum of y
    sq_ref : (1, 1, Cout)         f32   per-tile per-channel sum of y*y
    p_ref  : (TH, W, 9*Cin)       bf16  VMEM scratch: im2col patch matrix
    """
    # ReLU hoisted out of the tap loop; relu(0)=0 keeps the zero halo correct.
    xb = jnp.maximum(x_ref[0], 0)                       # (TH+2, W+2, Cin) bf16

    # im2col: 3 sublane-shifted slices (one per dx); dy shift is a leading-dim view.
    for dx in range(3):
        xdx = xb[:, dx:dx + W, :]                       # (TH+2, W, Cin)
        for dy in range(3):
            tap = dy * 3 + dx
            p_ref[:, :, tap * Cin:(tap + 1) * Cin] = xdx[dy:dy + TH]

    # Single fused-K MXU matmul: (TH*W, 9*Cin) x (9*Cin, Cout), f32 accumulation.
    # (Requires W % 8 == 0 so the reshape is sublane-layout compatible.)
    p2d = p_ref[...].reshape(TH * W, 9 * Cin)
    y = jnp.dot(p2d, w_ref[...], preferred_element_type=jnp.float32)   # (TH*W, Cout) f32
    y = y + b_ref[...]                                  # conv bias

    o_ref[0] = y.astype(o_ref.dtype)                    # bf16 store (stats stay f32)
    sum_ref[0] = jnp.sum(y, axis=0, keepdims=True)      # (1, Cout)
    sq_ref[0] = jnp.sum(y * y, axis=0, keepdims=True)   # (1, Cout)


# ----------------------------------------------------------------------------
# Pass 2: pure streaming BatchNorm apply  (scale/shift folded once in the wrapper)
# ----------------------------------------------------------------------------
def bn_apply_kernel(y_ref, scale_ref, shift_ref, o_ref):
    """
    y_ref    : (1, MT, Cout) bf16  conv-output chunk
    scale_ref: (1, Cout)     f32   gamma / sqrt(var + eps)
    shift_ref: (1, Cout)     f32   beta - mean * scale
    o_ref    : (1, MT, Cout) f32   normalized output chunk
    """
    o_ref[0] = y_ref[0].astype(jnp.float32) * scale_ref[...] + shift_ref[...]


# ----------------------------------------------------------------------------
# Wrapper: NCHW in / NCHW out (like PyTorch); layout glue in plain JAX.
# ----------------------------------------------------------------------------
@jax.jit
def relu_conv_bn(x_nchw, w_oihw, bias, gamma, beta):
    N, Cin, H, W = x_nchw.shape
    Cout = w_oihw.shape[0]
    # TODO(synk): pad W to a multiple of 8 for stages like 14x14 instead of asserting.
    assert W % 8 == 0, "kernel assumes W % 8 == 0 (sublane-compatible im2col reshape)"

    TH = _pick_row_tile(H, W, Cin, Cout)     # output rows per tile (TH == H here)
    T = H // TH                              # row tiles per image
    NT = N * T                               # total Pass-1 grid steps

    # --- layout glue (boundary transposes / zero pad); no halo duplication when T==1 ---
    x_nhwc = jnp.transpose(x_nchw, (0, 2, 3, 1)).astype(jnp.bfloat16)
    x_pad = jnp.pad(x_nhwc, ((0, 0), (1, 1), (1, 1), (0, 0)))          # (N, H+2, W+2, Cin)
    if T == 1:
        x_tiles = x_pad                                                # no copy needed
    else:
        # TODO(synk): replace with pl.Element-indexed halo reads straight from x_pad;
        # this fallback is never taken for the VGG shapes (full image fits VMEM budget).
        x_tiles = jnp.stack([x_pad[:, t * TH:t * TH + TH + 2] for t in range(T)], axis=1)
        x_tiles = x_tiles.reshape(NT, TH + 2, W + 2, Cin)

    # weights: OIHW -> (kh, kw, Cin, Cout) -> (9*Cin, Cout), rows ordered (dy, dx, cin)
    w_mat = jnp.transpose(w_oihw, (2, 3, 1, 0)).reshape(9 * Cin, Cout).astype(jnp.bfloat16)
    b2 = bias.reshape(1, Cout).astype(jnp.float32)

    vmem1 = min(int(_pass1_vmem_bytes(TH, W, Cin, Cout) * 1.5) + 8 * _MIB, 60 * _MIB)

    # ---------------- Pass 1: conv + partial stats ----------------
    conv_out, ysum, ysq = pl.pallas_call(
        functools.partial(conv_stats_kernel, TH=TH, W=W, Cin=Cin, Cout=Cout),
        out_shape=(
            jax.ShapeDtypeStruct((NT, TH * W, Cout), jnp.bfloat16),
            jax.ShapeDtypeStruct((NT, 1, Cout), jnp.float32),
            jax.ShapeDtypeStruct((NT, 1, Cout), jnp.float32),
        ),
        grid_spec=pltpu.PrefetchScalarGridSpec(
            num_scalar_prefetch=0,
            grid=(NT,),
            in_specs=[
                pl.BlockSpec((1, TH + 2, W + 2, Cin), lambda t: (t, 0, 0, 0)),
                pl.BlockSpec((9 * Cin, Cout), lambda t: (0, 0)),       # weights, resident
                pl.BlockSpec((1, Cout), lambda t: (0, 0)),             # bias, resident
            ],
            out_specs=[
                pl.BlockSpec((1, TH * W, Cout), lambda t: (t, 0, 0)),
                pl.BlockSpec((1, 1, Cout), lambda t: (t, 0, 0)),
                pl.BlockSpec((1, 1, Cout), lambda t: (t, 0, 0)),
            ],
            scratch_shapes=[pltpu.VMEM((TH, W, 9 * Cin), jnp.bfloat16)],   # im2col scratch
        ),
        compiler_params=pltpu.CompilerParams(
            dimension_semantics=("parallel",),
            vmem_limit_bytes=vmem1,
        ),
    )(x_tiles, w_mat, b2)

    # ---- fold BN stats once in plain JAX (tiny (NT,1,Cout) partials -> scale/shift) ----
    count = jnp.float32(N * H * W)
    mean = jnp.sum(ysum, axis=0) / count                 # (1, Cout)
    msq = jnp.sum(ysq, axis=0) / count                   # (1, Cout)
    var = msq - mean * mean                              # biased batch variance
    scale = gamma.reshape(1, Cout).astype(jnp.float32) * jax.lax.rsqrt(var + EPS)
    shift = beta.reshape(1, Cout).astype(jnp.float32) - mean * scale

    # ---------------- Pass 2: streaming normalize + affine ----------------
    M = TH * W
    MT = _pick_m_tile(M)
    nM = M // MT
    vmem2 = min(int(2 * (MT * Cout * 2 + MT * Cout * 4 + 2 * Cout * 4) * 1.5)
                + 8 * _MIB, 60 * _MIB)

    out_tiles = pl.pallas_call(
        bn_apply_kernel,
        out_shape=jax.ShapeDtypeStruct((NT, M, Cout), jnp.float32),
        grid_spec=pltpu.PrefetchScalarGridSpec(
            num_scalar_prefetch=0,
            grid=(NT, nM),
            in_specs=[
                pl.BlockSpec((1, MT, Cout), lambda t, m: (t, m, 0)),   # conv-out chunk
                pl.BlockSpec((1, Cout), lambda t, m: (0, 0)),          # scale, resident
                pl.BlockSpec((1, Cout), lambda t, m: (0, 0)),          # shift, resident
            ],
            out_specs=pl.BlockSpec((1, MT, Cout), lambda t, m: (t, m, 0)),
        ),
        compiler_params=pltpu.CompilerParams(
            dimension_semantics=("parallel", "parallel"),
            vmem_limit_bytes=vmem2,
        ),
    )(conv_out, scale, shift)

    out_nhwc = out_tiles.reshape(N, T, TH, W, Cout).reshape(N, H, W, Cout)
    # TODO(synk): if the downstream consumer accepts NHWC, drop this transpose (and the
    #             input NCHW->NHWC one) to save two full HBM passes of the activation.
    return jnp.transpose(out_nhwc, (0, 3, 1, 2))                        # back to NCHW


# ----------------------------------------------------------------------------
# Pure-JAX reference mirroring the PyTorch forward (conv fed bf16 inputs to match
# the kernel's deliberate bf16-MXU / f32-accumulate numerics).
# ----------------------------------------------------------------------------
def reference(x_nchw, w_oihw, bias, gamma, beta):
    xr = jnp.maximum(x_nchw, 0.0)
    y = jax.lax.conv_general_dilated(
        xr.astype(jnp.bfloat16), w_oihw.astype(jnp.bfloat16),
        window_strides=(1, 1), padding=((1, 1), (1, 1)),
        dimension_numbers=("NCHW", "OIHW", "NCHW"),
        preferred_element_type=jnp.float32)
    y = y + bias.reshape(1, -1, 1, 1)
    mean = jnp.mean(y, axis=(0, 2, 3), keepdims=True)
    var = jnp.mean((y - mean) ** 2, axis=(0, 2, 3), keepdims=True)
    return (y - mean) * jax.lax.rsqrt(var + EPS) * gamma.reshape(1, -1, 1, 1) \
        + beta.reshape(1, -1, 1, 1)


if __name__ == "__main__":
    # Channels fixed at 256 by the module; small batch/spatial for the demo.
    N, C, H, W = 2, 256, 16, 16
    key = jax.random.PRNGKey(0)
    k1, k2, k3, k4, k5 = jax.random.split(key, 5)

    x = jax.random.normal(k1, (N, C, H, W), jnp.float32)
    w = jax.random.normal(k2, (256, 256, 3, 3), jnp.float32) * 0.05      # Conv2d weight (OIHW)
    b = jax.random.normal(k3, (256,), jnp.float32) * 0.1                 # Conv2d bias
    gamma = 1.0 + 0.1 * jax.random.normal(k4, (256,), jnp.float32)       # BN weight
    beta = 0.1 * jax.random.normal(k5, (256,), jnp.float32)              # BN bias

    out = jax.block_until_ready(relu_conv_bn(x, w, b, gamma, beta))
    ref = jax.block_until_ready(reference(x, w, b, gamma, beta))

    assert out.shape == (N, 256, H, W), out.shape
    max_err = float(jnp.max(jnp.abs(out - ref)))
    # Tolerance accounts for the intentional bf16 storage of the conv intermediate.
    assert jnp.allclose(out, ref, atol=3e-2, rtol=3e-2), max_err

    print("KERNEL_OK")
</pallas_src>

<mosaic_0001>
module attributes {stable_mosaic.version = 11 : i64} {
  func.func @conv_stats_kernel(%arg0: i32, %arg1: memref<1x18x18x256xbf16, #tpu.memory_space<vmem>>, %arg2: memref<2304x256xbf16, #tpu.memory_space<vmem>>, %arg3: memref<1x256xf32, #tpu.memory_space<vmem>>, %arg4: memref<1x256x256xbf16, #tpu.memory_space<vmem>>, %arg5: memref<1x1x256xf32, #tpu.memory_space<vmem>>, %arg6: memref<1x1x256xf32, #tpu.memory_space<vmem>>, %arg7: memref<16x16x2304xbf16, #tpu.memory_space<vmem>>) attributes {dimension_semantics = [#tpu.dimension_semantics<parallel>], iteration_bounds = array<i64: 2>, scalar_prefetch = 0 : i64, scratch_operands = 1 : i64, tpu.core_type = #tpu.core_type<tc>, window_params = [{transform_indices = @transform_0, window_bounds = array<i64: 1, 18, 18, 256>}, {pipeline_mode = #tpu.pipeline_mode<synchronous>, transform_indices = @transform_1, window_bounds = array<i64: 2304, 256>}, {pipeline_mode = #tpu.pipeline_mode<synchronous>, transform_indices = @transform_2, window_bounds = array<i64: 1, 256>}, {transform_indices = @transform_3, window_bounds = array<i64: 1, 256, 256>}, {transform_indices = @transform_4, window_bounds = array<i64: 1, 1, 256>}, {transform_indices = @transform_5, window_bounds = array<i64: 1, 1, 256>}]} {
    %c0 = arith.constant 0 : index
    %c0_0 = arith.constant 0 : index
    %c0_1 = arith.constant 0 : index
    %c0_2 = arith.constant 0 : index
    %0 = vector.load %arg1[%c0, %c0_0, %c0_1, %c0_2] : memref<1x18x18x256xbf16, #tpu.memory_space<vmem>>, vector<1x18x18x256xbf16>
    %1 = vector.shape_cast %0 : vector<1x18x18x256xbf16> to vector<18x18x256xbf16>
    %cst = arith.constant 0.000000e+00 : bf16
    %2 = vector.broadcast %cst : bf16 to vector<18x18x256xbf16>
    %3 = arith.maximumf %1, %2 : vector<18x18x256xbf16>
    %4 = vector.extract_strided_slice %3 {offsets = [0, 0, 0], sizes = [18, 16, 256], strides = [1, 1, 1]} : vector<18x18x256xbf16> to vector<18x16x256xbf16>
    %5 = vector.extract_strided_slice %4 {offsets = [0, 0, 0], sizes = [16, 16, 256], strides = [1, 1, 1]} : vector<18x16x256xbf16> to vector<16x16x256xbf16>
    %c0_3 = arith.constant 0 : index
    %c0_4 = arith.constant 0 : index
    %c0_5 = arith.constant 0 : index
    %6 = vector.load %arg7[%c0_3, %c0_4, %c0_5] : memref<16x16x2304xbf16, #tpu.memory_space<vmem>>, vector<16x16x256xbf16>
    tpu.vector_store %arg7[%c0_3, %c0_4, %c0_5], %5 {strides = array<i32>} : memref<16x16x2304xbf16, #tpu.memory_space<vmem>>, vector<16x16x256xbf16>,
    %7 = vector.extract_strided_slice %4 {offsets = [1, 0, 0], sizes = [16, 16, 256], strides = [1, 1, 1]} : vector<18x16x256xbf16> to vector<16x16x256xbf16>
    %c0_6 = arith.constant 0 : index
    %c0_7 = arith.constant 0 : index
    %c768 = arith.constant 768 : index
    %8 = vector.load %arg7[%c0_6, %c0_7, %c768] : memref<16x16x2304xbf16, #tpu.memory_space<vmem>>, vector<16x16x256xbf16>
    tpu.vector_store %arg7[%c0_6, %c0_7, %c768], %7 {strides = array<i32>} : memref<16x16x2304xbf16, #tpu.memory_space<vmem>>, vector<16x16x256xbf16>,
    %9 = vector.extract_strided_slice %4 {offsets = [2, 0, 0], sizes = [16, 16, 256], strides = [1, 1, 1]} : vector<18x16x256xbf16> to vector<16x16x256xbf16>
    %c0_8 = arith.constant 0 : index
    %c0_9 = arith.constant 0 : index
    %c1536 = arith.constant 1536 : index
    %10 = vector.load %arg7[%c0_8, %c0_9, %c1536] : memref<16x16x2304xbf16, #tpu.memory_space<vmem>>, vector<16x16x256xbf16>
    tpu.vector_store %arg7[%c0_8, %c0_9, %c1536], %9 {strides = array<i32>} : memref<16x16x2304xbf16, #tpu.memory_space<vmem>>, vector<16x16x256xbf16>,
    %11 = vector.extract_strided_slice %3 {offsets = [0, 1, 0], sizes = [18, 16, 256], strides = [1, 1, 1]} : vector<18x18x256xbf16> to vector<18x16x256xbf16>
    %12 = vector.extract_strided_slice %11 {offsets = [0, 0, 0], sizes = [16, 16, 256], strides = [1, 1, 1]} : vector<18x16x256xbf16> to vector<16x16x256xbf16>
    %c0_10 = arith.constant 0 : index
    %c0_11 = arith.constant 0 : index
    %c256 = arith.constant 256 : index
    %13 = vector.load %arg7[%c0_10, %c0_11, %c256] : memref<16x16x2304xbf16, #tpu.memory_space<vmem>>, vector<16x16x256xbf16>
    tpu.vector_store %arg7[%c0_10, %c0_11, %c256], %12 {strides = array<i32>} : memref<16x16x2304xbf16, #tpu.memory_space<vmem>>, vector<16x16x256xbf16>,
    %14 = vector.extract_strided_slice %11 {offsets = [1, 0, 0], sizes = [16, 16, 256], strides = [1, 1, 1]} : vector<18x16x256xbf16> to vector<16x16x256xbf16>
    %c0_12 = arith.constant 0 : index
    %c0_13 = arith.constant 0 : index
    %c1024 = arith.constant 1024 : index
    %15 = vector.load %arg7[%c0_12, %c0_13, %c1024] : memref<16x16x2304xbf16, #tpu.memory_space<vmem>>, vector<16x16x256xbf16>
    tpu.vector_store %arg7[%c0_12, %c0_13, %c1024], %14 {strides = array<i32>} : memref<16x16x2304xbf16, #tpu.memory_space<vmem>>, vector<16x16x256xbf16>,
    %16 = vector.extract_strided_slice %11 {offsets = [2, 0, 0], sizes = [16, 16, 256], strides = [1, 1, 1]} : vector<18x16x256xbf16> to vector<16x16x256xbf16>
    %c0_14 = arith.constant 0 : index
    %c0_15 = arith.constant 0 : index
    %c1792 = arith.constant 1792 : index
    %17 = vector.load %arg7[%c0_14, %c0_15, %c1792] : memref<16x16x2304xbf16, #tpu.memory_space<vmem>>, vector<16x16x256xbf16>
    tpu.vector_store %arg7[%c0_14, %c0_15, %c1792], %16 {strides = array<i32>} : memref<16x16x2304xbf16, #tpu.memory_space<vmem>>, vector<16x16x256xbf16>,
    %18 = vector.extract_strided_slice %3 {offsets = [0, 2, 0], sizes = [18, 16, 256], strides = [1, 1, 1]} : vector<18x18x256xbf16> to vector<18x16x256xbf16>
    %19 = vector.extract_strided_slice %18 {offsets = [0, 0, 0], sizes = [16, 16, 256], strides = [1, 1, 1]} : vector<18x16x256xbf16> to vector<16x16x256xbf16>
    %c0_16 = arith.constant 0 : index
    %c0_17 = arith.constant 0 : index
    %c512 = arith.constant 512 : index
    %20 = vector.load %arg7[%c0_16, %c0_17, %c512] : memref<16x16x2304xbf16, #tpu.memory_space<vmem>>, vector<16x16x256xbf16>
    tpu.vector_store %arg7[%c0_16, %c0_17, %c512], %19 {strides = array<i32>} : memref<16x16x2304xbf16, #tpu.memory_space<vmem>>, vector<16x16x256xbf16>,
    %21 = vector.extract_strided_slice %18 {offsets = [1, 0, 0], sizes = [16, 16, 256], strides = [1, 1, 1]} : vector<18x16x256xbf16> to vector<16x16x256xbf16>
    %c0_18 = arith.constant 0 : index
    %c0_19 = arith.constant 0 : index
    %c1280 = arith.constant 1280 : index
    %22 = vector.load %arg7[%c0_18, %c0_19, %c1280] : memref<16x16x2304xbf16, #tpu.memory_space<vmem>>, vector<16x16x256xbf16>
    tpu.vector_store %arg7[%c0_18, %c0_19, %c1280], %21 {strides = array<i32>} : memref<16x16x2304xbf16, #tpu.memory_space<vmem>>, vector<16x16x256xbf16>,
    %23 = vector.extract_strided_slice %18 {offsets = [2, 0, 0], sizes = [16, 16, 256], strides = [1, 1, 1]} : vector<18x16x256xbf16> to vector<16x16x256xbf16>
    %c0_20 = arith.constant 0 : index
    %c0_21 = arith.constant 0 : index
    %c2048 = arith.constant 2048 : index
    %24 = vector.load %arg7[%c0_20, %c0_21, %c2048] : memref<16x16x2304xbf16, #tpu.memory_space<vmem>>, vector<16x16x256xbf16>
    tpu.vector_store %arg7[%c0_20, %c0_21, %c2048], %23 {strides = array<i32>} : memref<16x16x2304xbf16, #tpu.memory_space<vmem>>, vector<16x16x256xbf16>,
    %c0_22 = arith.constant 0 : index
    %c0_23 = arith.constant 0 : index
    %c0_24 = arith.constant 0 : index
    %25 = vector.load %arg7[%c0_22, %c0_23, %c0_24] : memref<16x16x2304xbf16, #tpu.memory_space<vmem>>, vector<16x16x2304xbf16>
    %26 = vector.shape_cast %25 : vector<16x16x2304xbf16> to vector<256x2304xbf16>
    %c0_25 = arith.constant 0 : index
    %c0_26 = arith.constant 0 : index
    %27 = vector.load %arg2[%c0_25, %c0_26] : memref<2304x256xbf16, #tpu.memory_space<vmem>>, vector<2304x256xbf16>
    %cst_27 = arith.constant dense<0.000000e+00> : vector<256x256xf32>
    %28 = tpu.matmul %26, %27, %cst_27 {dimension_numbers = #tpu.dot_dimension_numbers<[1], [0], [0], [1], [0, 0, 1, 1], [], []>} : vector<256x2304xbf16>, vector<2304x256xbf16>, vector<256x256xf32> -> vector<256x256xf32>
    %c0_28 = arith.constant 0 : index
    %c0_29 = arith.constant 0 : index
    %29 = vector.load %arg3[%c0_28, %c0_29] : memref<1x256xf32, #tpu.memory_space<vmem>>, vector<1x256xf32>
    %30 = vector.broadcast %29 : vector<1x256xf32> to vector<256x256xf32>
    %31 = arith.addf %28, %30 : vector<256x256xf32>
    %32 = arith.truncf %31 : vector<256x256xf32> to vector<256x256xbf16>
    %c0_30 = arith.constant 0 : index
    %c0_31 = arith.constant 0 : index
    %c0_32 = arith.constant 0 : index
    %33 = vector.load %arg4[%c0_30, %c0_31, %c0_32] : memref<1x256x256xbf16, #tpu.memory_space<vmem>>, vector<1x256x256xbf16>
    %34 = vector.shape_cast %33 : vector<1x256x256xbf16> to vector<256x256xbf16>
    %35 = vector.shape_cast %32 : vector<256x256xbf16> to vector<1x256x256xbf16>
    tpu.vector_store %arg4[%c0_30, %c0_31, %c0_32], %35 {strides = array<i32>} : memref<1x256x256xbf16, #tpu.memory_space<vmem>>, vector<1x256x256xbf16>,
    %cst_33 = arith.constant dense<0.000000e+00> : vector<256xf32>
    %36 = vector.multi_reduction <add>, %31, %cst_33 [0] : vector<256x256xf32> to vector<256xf32>
    %37 = vector.shape_cast %36 : vector<256xf32> to vector<1x256xf32>
    %c0_34 = arith.constant 0 : index
    %c0_35 = arith.constant 0 : index
    %c0_36 = arith.constant 0 : index
    %38 = vector.load %arg5[%c0_34, %c0_35, %c0_36] : memref<1x1x256xf32, #tpu.memory_space<vmem>>, vector<1x1x256xf32>
    %39 = vector.shape_cast %38 : vector<1x1x256xf32> to vector<1x256xf32>
    %40 = vector.shape_cast %37 : vector<1x256xf32> to vector<1x1x256xf32>
    tpu.vector_store %arg5[%c0_34, %c0_35, %c0_36], %40 {strides = array<i32>} : memref<1x1x256xf32, #tpu.memory_space<vmem>>, vector<1x1x256xf32>,
    %41 = arith.mulf %31, %31 : vector<256x256xf32>
    %cst_37 = arith.constant dense<0.000000e+00> : vector<256xf32>
    %42 = vector.multi_reduction <add>, %41, %cst_37 [0] : vector<256x256xf32> to vector<256xf32>
    %43 = vector.shape_cast %42 : vector<256xf32> to vector<1x256xf32>
    %c0_38 = arith.constant 0 : index
    %c0_39 = arith.constant 0 : index
    %c0_40 = arith.constant 0 : index
    %44 = vector.load %arg6[%c0_38, %c0_39, %c0_40] : memref<1x1x256xf32, #tpu.memory_space<vmem>>, vector<1x1x256xf32>
    %45 = vector.shape_cast %44 : vector<1x1x256xf32> to vector<1x256xf32>
    %46 = vector.shape_cast %43 : vector<1x256xf32> to vector<1x1x256xf32>
    tpu.vector_store %arg6[%c0_38, %c0_39, %c0_40], %46 {strides = array<i32>} : memref<1x1x256xf32, #tpu.memory_space<vmem>>, vector<1x1x256xf32>,
    return
  }
  func.func @transform_0(%arg0: i32) -> (i32, i32, i32, i32) {
    %c0_i32 = arith.constant 0 : i32
    %c0_i32_0 = arith.constant 0 : i32
    %c0_i32_1 = arith.constant 0 : i32
    %c0_i32_2 = arith.constant 0 : i32
    return %arg0, %c0_i32, %c0_i32_0, %c0_i32_1 : i32, i32, i32, i32
  }
  func.func @transform_1(%arg0: i32) -> (i32, i32) {
    %c0_i32 = arith.constant 0 : i32
    %c0_i32_0 = arith.constant 0 : i32
    %c0_i32_1 = arith.constant 0 : i32
    return %c0_i32, %c0_i32_0 : i32, i32
  }
  func.func @transform_2(%arg0: i32) -> (i32, i32) {
    %c0_i32 = arith.constant 0 : i32
    %c0_i32_0 = arith.constant 0 : i32
    %c0_i32_1 = arith.constant 0 : i32
    return %c0_i32, %c0_i32_0 : i32, i32
  }
  func.func @transform_3(%arg0: i32) -> (i32, i32, i32) {
    %c0_i32 = arith.constant 0 : i32
    %c0_i32_0 = arith.constant 0 : i32
    %c0_i32_1 = arith.constant 0 : i32
    return %arg0, %c0_i32, %c0_i32_0 : i32, i32, i32
  }
  func.func @transform_4(%arg0: i32) -> (i32, i32, i32) {
    %c0_i32 = arith.constant 0 : i32
    %c0_i32_0 = arith.constant 0 : i32
    %c0_i32_1 = arith.constant 0 : i32
    return %arg0, %c0_i32, %c0_i32_0 : i32, i32, i32
  }
  func.func @transform_5(%arg0: i32) -> (i32, i32, i32) {
    %c0_i32 = arith.constant 0 : i32
    %c0_i32_0 = arith.constant 0 : i32
    %c0_i32_1 = arith.constant 0 : i32
    return %arg0, %c0_i32, %c0_i32_0 : i32, i32, i32
  }
}

module attributes {stable_mosaic.version = 11 : i64} {
  func.func @bn_apply_kernel(%arg0: i32, %arg1: i32, %arg2: memref<1x256x256xbf16, #tpu.memory_space<vmem>>, %arg3: memref<1x256xf32, #tpu.memory_space<vmem>>, %arg4: memref<1x256xf32, #tpu.memory_space<vmem>>, %arg5: memref<1x256x256xf32, #tpu.memory_space<vmem>>) attributes {dimension_semantics = [#tpu.dimension_semantics<parallel>, #tpu.dimension_semantics<parallel>], iteration_bounds = array<i64: 2, 1>, scalar_prefetch = 0 : i64, scratch_operands = 0 : i64, tpu.core_type = #tpu.core_type<tc>, window_params = [{transform_indices = @transform_0, window_bounds = array<i64: 1, 256, 256>}, {pipeline_mode = #tpu.pipeline_mode<synchronous>, transform_indices = @transform_1, window_bounds = array<i64: 1, 256>}, {pipeline_mode = #tpu.pipeline_mode<synchronous>, transform_indices = @transform_2, window_bounds = array<i64: 1, 256>}, {transform_indices = @transform_3, window_bounds = array<i64: 1, 256, 256>}]} {
    %c0 = arith.constant 0 : index
    %c0_0 = arith.constant 0 : index
    %c0_1 = arith.constant 0 : index
    %0 = vector.load %arg2[%c0, %c0_0, %c0_1] : memref<1x256x256xbf16, #tpu.memory_space<vmem>>, vector<1x256x256xbf16>
    %1 = vector.shape_cast %0 : vector<1x256x256xbf16> to vector<256x256xbf16>
    %2 = arith.extf %1 : vector<256x256xbf16> to vector<256x256xf32>
    %c0_2 = arith.constant 0 : index
    %c0_3 = arith.constant 0 : index
    %3 = vector.load %arg3[%c0_2, %c0_3] : memref<1x256xf32, #tpu.memory_space<vmem>>, vector<1x256xf32>
    %4 = vector.broadcast %3 : vector<1x256xf32> to vector<256x256xf32>
    %5 = arith.mulf %2, %4 : vector<256x256xf32>
    %c0_4 = arith.constant 0 : index
    %c0_5 = arith.constant 0 : index
    %6 = vector.load %arg4[%c0_4, %c0_5] : memref<1x256xf32, #tpu.memory_space<vmem>>, vector<1x256xf32>
    %7 = vector.broadcast %6 : vector<1x256xf32> to vector<256x256xf32>
    %8 = arith.addf %5, %7 : vector<256x256xf32>
    %c0_6 = arith.constant 0 : index
    %c0_7 = arith.constant 0 : index
    %c0_8 = arith.constant 0 : index
    %9 = vector.load %arg5[%c0_6, %c0_7, %c0_8] : memref<1x256x256xf32, #tpu.memory_space<vmem>>, vector<1x256x256xf32>
    %10 = vector.shape_cast %9 : vector<1x256x256xf32> to vector<256x256xf32>
    %11 = vector.shape_cast %8 : vector<256x256xf32> to vector<1x256x256xf32>
    tpu.vector_store %arg5[%c0_6, %c0_7, %c0_8], %11 {strides = array<i32>} : memref<1x256x256xf32, #tpu.memory_space<vmem>>, vector<1x256x256xf32>,
    return
  }
  func.func @transform_0(%arg0: i32, %arg1: i32) -> (i32, i32, i32) {
    %c0_i32 = arith.constant 0 : i32
    %c0_i32_0 = arith.constant 0 : i32
    return %arg0, %arg1, %c0_i32 : i32, i32, i32
  }
  func.func @transform_1(%arg0: i32, %arg1: i32) -> (i32, i32) {
    %c0_i32 = arith.constant 0 : i32
    %c0_i32_0 = arith.constant 0 : i32
    %c0_i32_1 = arith.constant 0 : i32
    return %c0_i32, %c0_i32_0 : i32, i32
  }
  func.func @transform_2(%arg0: i32, %arg1: i32) -> (i32, i32) {
    %c0_i32 = arith.constant 0 : i32
    %c0_i32_0 = arith.constant 0 : i32
    %c0_i32_1 = arith.constant 0 : i32
    return %c0_i32, %c0_i32_0 : i32, i32
  }
  func.func @transform_3(%arg0: i32, %arg1: i32) -> (i32, i32, i32) {
    %c0_i32 = arith.constant 0 : i32
    %c0_i32_0 = arith.constant 0 : i32
    return %arg0, %arg1, %c0_i32 : i32, i32, i32
  }
}

</mosaic_0001>

<llo_original>
// kernel: relu_conv_bn.3
$region0: #{relu_conv_bn.3}
  #allocation0 [shape = 'u32[]', space=smem, size = 0x4, offset = 0x4, fixed_abs, tag = 'smem constant byte address 0x4 - core index']
  #allocation1 [shape = 'u32[72,128]{1,0:T(1,128)}', space=vmem, size = 0x9000, scoped, tag = 'internal scratch']
  %s0 = inlined_call_operand.vmem [shape: bf16[2,256,256], index: 0, kind: input, shape index: {}]
  %s1 = inlined_call_operand.vmem [shape: f32[1,256], index: 1, kind: input, shape index: {}]
  %s2 = inlined_call_operand.vmem [shape: f32[1,256], index: 2, kind: input, shape index: {}]
  %s3 = inlined_call_operand.hbm [shape: f32[2,256,256], index: 3, kind: output, shape index: {}]
  %s4 = sld [smem:[#allocation0]]
  $region45: #{relu_conv_bn.3} parent=0
    _
  %s6 = ssub.s32 1, %s4
  %s7 = scalar_select 0, %s6, %s4
  $region1: #{relu_conv_bn.3} parent=0
    #allocation2 [shape = 'u8[524288]{0}', space=vmem, size = 0x80000, scoped, tag = 'output window, operand 0']
    #allocation3 [shape = 's32[2]{0}', space=sflag, size = 0x8, scoped, tag = 'scoped memory for relu_conv_bn.3']
    %8 = vsyncpa [#allocation3], 0
    %s9 = scalar_lea.sflag [#allocation3], 1
    %10 = vsyncpa %s9, 0
    loop: start=0, step=1, limit=4
    $region2: #{relu_conv_bn.3} parent=1 // loop_pre_header
      _
    $region3: #{relu_conv_bn.3} parent=1 // loop_header
      %s12 = sphi 0, %s16
      %p13 = scmp.ge.s32.totalorder %s12, 4
      %s19 = sphi 0, %s31
      %s20 = sphi 0, %s27
      %s21 = sphi 0, %s19
      %s22 = sphi 0, %s20
      %s23 = sphi 0, %s21
      %s24 = sphi 0, %s22
      %s36 = sphi 0, %s38
      %s39 = sphi 0, %s36
      %s40 = sphi 0, %s39
      %s56 = sphi 0, %s40
      %s60 = sphi 0, %s60
      %s62 = sphi 0, %s60
      %s63 = sphi 0, %s62
      %s77 = sphi 0, %s63
      %s81 = sphi 0, %s81
      %s83 = sphi 0, %s81
      %s84 = sphi 0, %s83
      %s98 = sphi 0, %s84
      %s106 = sphi 0, %s108
      %s109 = sphi 0, %s106
      %s110 = sphi 0, %s109
      %s126 = sphi 0, %s110
    $region4: #{relu_conv_bn.3} parent=1 // loop_header_branch
      %15 = sbr.rel (%p13) target = $region8
    $region5: #{relu_conv_bn.3} parent=1 // loop_body
      %s17 = ssub.s32 %s12, 1
      %s18 = ssub.s32 %s12, 2
      %s25 = sadd.s32 1, %s20
      %p26 = scmp.ge.s32.totalorder %s25, 1
      %s27 = scalar_select %p26, 0, %s25
      %s28 = sadd.s32 1, %s19
      %s29 = scalar_select %p26, %s28, %s19
      %p30 = scmp.ge.s32.totalorder %s29, 2
      %s31 = scalar_select %p30, 0, %s29
      %s32 = ssub.s32 %s19, %s31
      %s33 = ssub.s32 %s20, %s27
      %s34 = sor.u32 %s32, %s33
      %p35 = scmp.eq.s32.totalorder %s34, 0
      %s37 = sadd.s32 %s36, 1
      %s38 = scalar_select %p35, %s36, %s37
      %p41 = pneg %p35
      %p42 = scmp.eq.s32.totalorder %s12, 1
      %p43 = por %p41, %p42
      %p44 = scmp.ne.s32.totalorder %s36, %s39
      %p45 = scmp.eq.s32.totalorder %s12, 0
      %p46 = por %p44, %p45
      %p47 = scmp.ne.s32.totalorder %s36, %s39
      %p48 = scmp.eq.s32.totalorder %s17, 1
      %p49 = por %p47, %p48
      %p50 = scmp.ne.s32.totalorder %s39, %s40
      %p51 = scmp.eq.s32.totalorder %s17, 0
      %p52 = por %p50, %p51
      %p53 = scmp.ne.s32.totalorder %s39, %s40
      %p54 = scmp.eq.s32.totalorder %s18, 1
      %p55 = por %p53, %p54
      %p57 = scmp.ne.s32.totalorder %s40, %s56
      %p58 = scmp.eq.s32.totalorder %s18, 0
      %p59 = por %p57, %p58
      %s61 = sadd.s32 %s60, 1
      %p64 = scmp.eq.s32.totalorder %s12, 1
      %p65 = scmp.ne.s32.totalorder %s60, %s62
      %p66 = scmp.eq.s32.totalorder %s12, 0
      %p67 = por %p65, %p66
      %p68 = scmp.ne.s32.totalorder %s60, %s62
      %p69 = scmp.eq.s32.totalorder %s17, 1
      %p70 = por %p68, %p69
      %p71 = scmp.ne.s32.totalorder %s62, %s63
      %p72 = scmp.eq.s32.totalorder %s17, 0
      %p73 = por %p71, %p72
      %p74 = scmp.ne.s32.totalorder %s62, %s63
      %p75 = scmp.eq.s32.totalorder %s18, 1
      %p76 = por %p74, %p75
      %p78 = scmp.ne.s32.totalorder %s63, %s77
      %p79 = scmp.eq.s32.totalorder %s18, 0
      %p80 = por %p78, %p79
      %s82 = sadd.s32 %s81, 1
      %p85 = scmp.eq.s32.totalorder %s12, 1
      %p86 = scmp.ne.s32.totalorder %s81, %s83
      %p87 = scmp.eq.s32.totalorder %s12, 0
      %p88 = por %p86, %p87
      %p89 = scmp.ne.s32.totalorder %s81, %s83
      %p90 = scmp.eq.s32.totalorder %s17, 1
      %p91 = por %p89, %p90
      %p92 = scmp.ne.s32.totalorder %s83, %s84
      %p93 = scmp.eq.s32.totalorder %s17, 0
      %p94 = por %p92, %p93
      %p95 = scmp.ne.s32.totalorder %s83, %s84
      %p96 = scmp.eq.s32.totalorder %s18, 1
      %p97 = por %p95, %p96
      %p99 = scmp.ne.s32.totalorder %s84, %s98
      %p100 = scmp.eq.s32.totalorder %s18, 0
      %p101 = por %p99, %p100
      %s102 = ssub.s32 %s19, %s31
      %s103 = ssub.s32 %s20, %s27
      %s104 = sor.u32 %s102, %s103
      %p105 = scmp.eq.s32.totalorder %s104, 0
      %s107 = sadd.s32 %s106, 1
      %s108 = scalar_select %p105, %s106, %s107
      %p111 = pneg %p105
      %p112 = scmp.eq.s32.totalorder %s12, 1
      %p113 = por %p111, %p112
      %p114 = scmp.ne.s32.totalorder %s106, %s109
      %p115 = scmp.eq.s32.totalorder %s12, 0
      %p116 = por %p114, %p115
      %p117 = scmp.ne.s32.totalorder %s106, %s109
      %p118 = scmp.eq.s32.totalorder %s17, 1
      %p119 = por %p117, %p118
      %p120 = scmp.ne.s32.totalorder %s109, %s110
      %p121 = scmp.eq.s32.totalorder %s17, 0
      %p122 = por %p120, %p121
      %p123 = scmp.ne.s32.totalorder %s109, %s110
      %p124 = scmp.eq.s32.totalorder %s18, 1
      %p125 = por %p123, %p124
      %p127 = scmp.ne.s32.totalorder %s110, %s126
      %p128 = scmp.eq.s32.totalorder %s18, 0
      %p129 = por %p127, %p128
      %p130 = scmp.le.s32.totalorder 1, %s12
      %p131 = scmp.lt.s32.totalorder %s12, 3
      %p132 = pnand %p130, %p131
      %p133 = pneg %p132
      // Predicated region
      $region9: #{relu_conv_bn.3} parent=5 // pred_check
        _
      $region10: #{relu_conv_bn.3} parent=5 // pred_check_branch
        %135 = sbr.rel (%p132) target = $region12
      $region11: #{relu_conv_bn.3} parent=5 // pred_region
        %s136 = ssub.s32 %s12, 1
        // Predicated region
        $region13: #{relu_conv_bn.3} parent=11 // pred_check
          %p137 = pneg %p73
        $region14: #{relu_conv_bn.3} parent=11 // pred_check_branch
          %139 = sbr.rel (%p137) target = $region16
        $region15: #{relu_conv_bn.3} parent=11 // pred_region
          _
        $region16: #{relu_conv_bn.3} parent=11 // pred_fallthru
          _
        // Predicated region
        $region17: #{relu_conv_bn.3} parent=11 // pred_check
          %p140 = pneg %p94
        $region18: #{relu_conv_bn.3} parent=11 // pred_check_branch
          %142 = sbr.rel (%p140) target = $region20
        $region19: #{relu_conv_bn.3} parent=11 // pred_region
          _
        $region20: #{relu_conv_bn.3} parent=11 // pred_fallthru
          _
      $region12: #{relu_conv_bn.3} parent=5 // pred_fallthru
        _
      %p143 = scmp.lt.s32.totalorder %s12, 2
      // Predicated region
      $region21: #{relu_conv_bn.3} parent=5 // pred_check
        %p144 = pneg %p143
      $region22: #{relu_conv_bn.3} parent=5 // pred_check_branch
        %146 = sbr.rel (%p144) target = $region24
      $region23: #{relu_conv_bn.3} parent=5 // pred_region
        // Predicated region
        $region25: #{relu_conv_bn.3} parent=23 // pred_check
          %p147 = pneg %p46
        $region26: #{relu_conv_bn.3} parent=23 // pred_check_branch
          %149 = sbr.rel (%p147) target = $region28
        $region27: #{relu_conv_bn.3} parent=23 // pred_region
          %s150 = smul.u32 32, %s20
          %p151 = scmp.lt.s32.totalorder %s19, 1
          %s152 = scalar_select %p151, %s19, 1
          %p153 = scmp.lt.s32.totalorder %s150, 31
          %s154 = scalar_select %p153, %s150, 31
          %s155 = smul.addr %s154, 2
          %s156 = smul.addr %s152, 64
          %s157 = sadd.s32 %s155, %s156
          %s158 = smul.addr %s157, 4
          %s159 = scalar_lea.vmem %s0, %s158
          %s160 = smul.u32 32, %s20
        $region28: #{relu_conv_bn.3} parent=23 // pred_fallthru
          _
      $region24: #{relu_conv_bn.3} parent=5 // pred_fallthru
        _
      %p161 = scmp.le.s32.totalorder 1, %s12
      %p162 = scmp.lt.s32.totalorder %s12, 3
      %p163 = pnand %p161, %p162
      %p164 = pneg %p163
      // Predicated region
      $region29: #{relu_conv_bn.3} parent=5 // pred_check
        _
      $region30: #{relu_conv_bn.3} parent=5 // pred_check_branch
        %166 = sbr.rel (%p163) target = $region32
      $region31: #{relu_conv_bn.3} parent=5 // pred_region
        %s167 = ssub.s32 %s12, 1
        %s168 = smul.u32 32, %s22
        %p169 = scmp.lt.s32.totalorder %s21, 1
        %s170 = scalar_select %p169, %s21, 1
        %p171 = scmp.lt.s32.totalorder %s168, 31
        %s172 = scalar_select %p171, %s168, 31
        %s173 = smul.addr %s172, 2
        %s174 = smul.addr %s170, 64
        %s175 = sadd.s32 %s173, %s174
        %s176 = smul.addr %s175, 4
        %s177 = scalar_lea.vmem %s0, %s176
        %p178 = pneg %p52
        %p179 = pneg %p49
        %p180 = pneg %p73
        %p181 = pneg %p70
        %p182 = pneg %p94
        %p183 = pneg %p91
        %p184 = pneg %p122
        %p185 = pneg %p119
        %s186 = sand.u32 %s109, 1
        %s187 = scalar_lea.sflag [#allocation3], %s186
        %s188 = sand.u32 %s109, 1
        %s189 = smul.addr %s188, 512
        %s190 = scalar_lea.vmem [#allocation2], %s189
        %s191 = smul.u32 32, %s22
        %p192 = scmp.lt.s32.totalorder %s21, 1
        %s193 = scalar_select %p192, %s21, 1
        %p194 = scmp.lt.s32.totalorder %s191, 31
        %s195 = scalar_select %p194, %s191, 31
        %s196 = smul.addr %s195, 2
        %s197 = smul.addr %s193, 64
        %s198 = sadd.s32 %s196, %s197
        %s199 = smul.addr %s198, 4
        %s200 = scalar_lea.vmem %s0, %s199
        %s201 = smul.u32 32, %s22
        %s202 = smul.u32 32, %s22
        %v203 = vld [vmem:[%s200] sm:$0xff]
        %v204 = vld [vmem:[%s200 + $0x8] sm:$0xff]
        %v205 = vld [vmem:[%s200 + $0x10] sm:$0xff]
        %v206 = vld [vmem:[%s200 + $0x18] sm:$0xff]
        %v207 = vld [vmem:[%s200 + $0x20] sm:$0xff]
        %v208 = vld [vmem:[%s200 + $0x28] sm:$0xff]
        %v209 = vld [vmem:[%s200 + $0x30] sm:$0xff]
        %v210 = vld [vmem:[%s200 + $0x38] sm:$0xff]
        %v211 = vld [vmem:[%s200 + $0x40] sm:$0xff]
        %v212 = vld [vmem:[%s200 + $0x48] sm:$0xff]
        %v213 = vld [vmem:[%s200 + $0x50] sm:$0xff]
        %v214 = vld [vmem:[%s200 + $0x58] sm:$0xff]
        %v215 = vld [vmem:[%s200 + $0x60] sm:$0xff]
        %v216 = vld [vmem:[%s200 + $0x68] sm:$0xff]
        %v217 = vld [vmem:[%s200 + $0x70] sm:$0xff]
        %v218 = vld [vmem:[%s200 + $0x78] sm:$0xff]
        %v219 = vld [vmem:[%s200 + $0x80] sm:$0xff]
        %v220 = vld [vmem:[%s200 + $0x88] sm:$0xff]
        %v221 = vld [vmem:[%s200 + $0x90] sm:$0xff]
        %v222 = vld [vmem:[%s200 + $0x98] sm:$0xff]
        %v223 = vld [vmem:[%s200 + $0xa0] sm:$0xff]
        %v224 = vld [vmem:[%s200 + $0xa8] sm:$0xff]
        %v225 = vld [vmem:[%s200 + $0xb0] sm:$0xff]
        %v226 = vld [vmem:[%s200 + $0xb8] sm:$0xff]
        %v227 = vld [vmem:[%s200 + $0xc0] sm:$0xff]
        %v228 = vld [vmem:[%s200 + $0xc8] sm:$0xff]
        %v229 = vld [vmem:[%s200 + $0xd0] sm:$0xff]
        %v230 = vld [vmem:[%s200 + $0xd8] sm:$0xff]
        %v231 = vld [vmem:[%s200 + $0xe0] sm:$0xff]
        %v232 = vld [vmem:[%s200 + $0xe8] sm:$0xff]
        %v233 = vld [vmem:[%s200 + $0xf0] sm:$0xff]
        %v234 = vld [vmem:[%s200 + $0xf8] sm:$0xff]
        %v235 = vunpack.c.l.bf16 %v203
        %v236 = vunpack.c.h.bf16 %v203
        %v237 = vunpack.c.l.bf16 %v204
        %v238 = vunpack.c.h.bf16 %v204
        %v239 = vunpack.c.l.bf16 %v205
        %v240 = vunpack.c.h.bf16 %v205
        %v241 = vunpack.c.l.bf16 %v206
        %v242 = vunpack.c.h.bf16 %v206
        %v243 = vunpack.c.l.bf16 %v207
        %v244 = vunpack.c.h.bf16 %v207
        %v245 = vunpack.c.l.bf16 %v208
        %v246 = vunpack.c.h.bf16 %v208
        %v247 = vunpack.c.l.bf16 %v209
        %v248 = vunpack.c.h.bf16 %v209
        %v249 = vunpack.c.l.bf16 %v210
        %v250 = vunpack.c.h.bf16 %v210
        %v251 = vunpack.c.l.bf16 %v211
        %v252 = vunpack.c.h.bf16 %v211
        %v253 = vunpack.c.l.bf16 %v212
        %v254 = vunpack.c.h.bf16 %v212
        %v255 = vunpack.c.l.bf16 %v213
        %v256 = vunpack.c.h.bf16 %v213
        %v257 = vunpack.c.l.bf16 %v214
        %v258 = vunpack.c.h.bf16 %v214
        %v259 = vunpack.c.l.bf16 %v215
        %v260 = vunpack.c.h.bf16 %v215
        %v261 = vunpack.c.l.bf16 %v216
        %v262 = vunpack.c.h.bf16 %v216
        %v263 = vunpack.c.l.bf16 %v217
        %v264 = vunpack.c.h.bf16 %v217
        %v265 = vunpack.c.l.bf16 %v218
        %v266 = vunpack.c.h.bf16 %v218
        %v267 = vunpack.c.l.bf16 %v219
        %v268 = vunpack.c.h.bf16 %v219
        %v269 = vunpack.c.l.bf16 %v220
        %v270 = vunpack.c.h.bf16 %v220
        %v271 = vunpack.c.l.bf16 %v221
        %v272 = vunpack.c.h.bf16 %v221
        %v273 = vunpack.c.l.bf16 %v222
        %v274 = vunpack.c.h.bf16 %v222
        %v275 = vunpack.c.l.bf16 %v223
        %v276 = vunpack.c.h.bf16 %v223
        %v277 = vunpack.c.l.bf16 %v224
        %v278 = vunpack.c.h.bf16 %v224
        %v279 = vunpack.c.l.bf16 %v225
        %v280 = vunpack.c.h.bf16 %v225
        %v281 = vunpack.c.l.bf16 %v226
        %v282 = vunpack.c.h.bf16 %v226
        %v283 = vunpack.c.l.bf16 %v227
        %v284 = vunpack.c.h.bf16 %v227
        %v285 = vunpack.c.l.bf16 %v228
        %v286 = vunpack.c.h.bf16 %v228
        %v287 = vunpack.c.l.bf16 %v229
        %v288 = vunpack.c.h.bf16 %v229
        %v289 = vunpack.c.l.bf16 %v230
        %v290 = vunpack.c.h.bf16 %v230
        %v291 = vunpack.c.l.bf16 %v231
        %v292 = vunpack.c.h.bf16 %v231
        %v293 = vunpack.c.l.bf16 %v232
        %v294 = vunpack.c.h.bf16 %v232
        %v295 = vunpack.c.l.bf16 %v233
        %v296 = vunpack.c.h.bf16 %v233
        %v297 = vunpack.c.l.bf16 %v234
        %v298 = vunpack.c.h.bf16 %v234
        %v299 = vld [vmem:[%s1] sm:$0x3]
        %v301 = vperm.slane %v299, 0
        %v302 = vperm.slane %v299, 1
        %v305 = vmul.f32 %v235, %v301
        %v306 = vmul.f32 %v236, %v302
        %v307 = vmul.f32 %v237, %v301
        %v308 = vmul.f32 %v238, %v302
        %v309 = vmul.f32 %v239, %v301
        %v310 = vmul.f32 %v240, %v302
        %v311 = vmul.f32 %v241, %v301
        %v312 = vmul.f32 %v242, %v302
        %v313 = vmul.f32 %v243, %v301
        %v314 = vmul.f32 %v244, %v302
        %v315 = vmul.f32 %v245, %v301
        %v316 = vmul.f32 %v246, %v302
        %v317 = vmul.f32 %v247, %v301
        %v318 = vmul.f32 %v248, %v302
        %v319 = vmul.f32 %v249, %v301
        %v320 = vmul.f32 %v250, %v302
        %v321 = vmul.f32 %v251, %v301
        %v322 = vmul.f32 %v252, %v302
        %v323 = vmul.f32 %v253, %v301
        %v324 = vmul.f32 %v254, %v302
        %v325 = vmul.f32 %v255, %v301
        %v326 = vmul.f32 %v256, %v302
        %v327 = vmul.f32 %v257, %v301
        %v328 = vmul.f32 %v258, %v302
        %v329 = vmul.f32 %v259, %v301
        %v330 = vmul.f32 %v260, %v302
        %v331 = vmul.f32 %v261, %v301
        %v332 = vmul.f32 %v262, %v302
        %v333 = vmul.f32 %v263, %v301
        %v334 = vmul.f32 %v264, %v302
        %v335 = vmul.f32 %v265, %v301
        %v336 = vmul.f32 %v266, %v302
        %v337 = vmul.f32 %v267, %v301
        %v338 = vmul.f32 %v268, %v302
        %v339 = vmul.f32 %v269, %v301
        %v340 = vmul.f32 %v270, %v302
        %v341 = vmul.f32 %v271, %v301
        %v342 = vmul.f32 %v272, %v302
        %v343 = vmul.f32 %v273, %v301
        %v344 = vmul.f32 %v274, %v302
        %v345 = vmul.f32 %v275, %v301
        %v346 = vmul.f32 %v276, %v302
        %v347 = vmul.f32 %v277, %v301
        %v348 = vmul.f32 %v278, %v302
        %v349 = vmul.f32 %v279, %v301
        %v350 = vmul.f32 %v280, %v302
        %v351 = vmul.f32 %v281, %v301
        %v352 = vmul.f32 %v282, %v302
        %v353 = vmul.f32 %v283, %v301
        %v354 = vmul.f32 %v284, %v302
        %v355 = vmul.f32 %v285, %v301
        %v356 = vmul.f32 %v286, %v302
        %v357 = vmul.f32 %v287, %v301
        %v358 = vmul.f32 %v288, %v302
        %v359 = vmul.f32 %v289, %v301
        %v360 = vmul.f32 %v290, %v302
        %v361 = vmul.f32 %v291, %v301
        %v362 = vmul.f32 %v292, %v302
        %v363 = vmul.f32 %v293, %v301
        %v364 = vmul.f32 %v294, %v302
        %v365 = vmul.f32 %v295, %v301
        %v366 = vmul.f32 %v296, %v302
        %v367 = vmul.f32 %v297, %v301
        %v368 = vmul.f32 %v298, %v302
        %v369 = vld [vmem:[%s2] sm:$0x3]
        %v371 = vperm.slane %v369, 0
        %v372 = vperm.slane %v369, 1
        %v375 = vadd.f32 %v305, %v371
        %v376 = vadd.f32 %v306, %v372
        %v377 = vadd.f32 %v307, %v371
        %v378 = vadd.f32 %v308, %v372
        %v379 = vadd.f32 %v309, %v371
        %v380 = vadd.f32 %v310, %v372
        %v381 = vadd.f32 %v311, %v371
        %v382 = vadd.f32 %v312, %v372
        %v383 = vadd.f32 %v313, %v371
        %v384 = vadd.f32 %v314, %v372
        %v385 = vadd.f32 %v315, %v371
        %v386 = vadd.f32 %v316, %v372
        %v387 = vadd.f32 %v317, %v371
        %v388 = vadd.f32 %v318, %v372
        %v389 = vadd.f32 %v319, %v371
        %v390 = vadd.f32 %v320, %v372
        %v391 = vadd.f32 %v321, %v371
        %v392 = vadd.f32 %v322, %v372
        %v393 = vadd.f32 %v323, %v371
        %v394 = vadd.f32 %v324, %v372
        %v395 = vadd.f32 %v325, %v371
        %v396 = vadd.f32 %v326, %v372
        %v397 = vadd.f32 %v327, %v371
        %v398 = vadd.f32 %v328, %v372
        %v399 = vadd.f32 %v329, %v371
        %v400 = vadd.f32 %v330, %v372
        %v401 = vadd.f32 %v331, %v371
        %v402 = vadd.f32 %v332, %v372
        %v403 = vadd.f32 %v333, %v371
        %v404 = vadd.f32 %v334, %v372
        %v405 = vadd.f32 %v335, %v371
        %v406 = vadd.f32 %v336, %v372
        %v407 = vadd.f32 %v337, %v371
        %v408 = vadd.f32 %v338, %v372
        %v409 = vadd.f32 %v339, %v371
        %v410 = vadd.f32 %v340, %v372
        %v411 = vadd.f32 %v341, %v371
        %v412 = vadd.f32 %v342, %v372
        %v413 = vadd.f32 %v343, %v371
        %v414 = vadd.f32 %v344, %v372
        %v415 = vadd.f32 %v345, %v371
        %v416 = vadd.f32 %v346, %v372
        %v417 = vadd.f32 %v347, %v371
        %v418 = vadd.f32 %v348, %v372
        %v419 = vadd.f32 %v349, %v371
        %v420 = vadd.f32 %v350, %v372
        %v421 = vadd.f32 %v351, %v371
        %v422 = vadd.f32 %v352, %v372
        %v423 = vadd.f32 %v353, %v371
        %v424 = vadd.f32 %v354, %v372
        %v425 = vadd.f32 %v355, %v371
        %v426 = vadd.f32 %v356, %v372
        %v427 = vadd.f32 %v357, %v371
        %v428 = vadd.f32 %v358, %v372
        %v429 = vadd.f32 %v359, %v371
        %v430 = vadd.f32 %v360, %v372
        %v431 = vadd.f32 %v361, %v371
        %v432 = vadd.f32 %v362, %v372
        %v433 = vadd.f32 %v363, %v371
        %v434 = vadd.f32 %v364, %v372
        %v435 = vadd.f32 %v365, %v371
        %v436 = vadd.f32 %v366, %v372
        %v437 = vadd.f32 %v367, %v371
        %v438 = vadd.f32 %v368, %v372
        %439 = vst [vmem:[%s190] sm:$0xff] %v375
        %440 = vst [vmem:[%s190 + $0x8] sm:$0xff] %v376
        %441 = vst [vmem:[%s190 + $0x10] sm:$0xff] %v377
        %442 = vst [vmem:[%s190 + $0x18] sm:$0xff] %v378
        %443 = vst [vmem:[%s190 + $0x20] sm:$0xff] %v379
        %444 = vst [vmem:[%s190 + $0x28] sm:$0xff] %v380
        %445 = vst [vmem:[%s190 + $0x30] sm:$0xff] %v381
        %446 = vst [vmem:[%s190 + $0x38] sm:$0xff] %v382
        %447 = vst [vmem:[%s190 + $0x40] sm:$0xff] %v383
        %448 = vst [vmem:[%s190 + $0x48] sm:$0xff] %v384
        %449 = vst [vmem:[%s190 + $0x50] sm:$0xff] %v385
        %450 = vst [vmem:[%s190 + $0x58] sm:$0xff] %v386
        %451 = vst [vmem:[%s190 + $0x60] sm:$0xff] %v387
        %452 = vst [vmem:[%s190 + $0x68] sm:$0xff] %v388
        %453 = vst [vmem:[%s190 + $0x70] sm:$0xff] %v389
        %454 = vst [vmem:[%s190 + $0x78] sm:$0xff] %v390
        %455 = vst [vmem:[%s190 + $0x80] sm:$0xff] %v391
        %456 = vst [vmem:[%s190 + $0x88] sm:$0xff] %v392
        %457 = vst [vmem:[%s190 + $0x90] sm:$0xff] %v393
        %458 = vst [vmem:[%s190 + $0x98] sm:$0xff] %v394
        %459 = vst [vmem:[%s190 + $0xa0] sm:$0xff] %v395
        %460 = vst [vmem:[%s190 + $0xa8] sm:$0xff] %v396
        %461 = vst [vmem:[%s190 + $0xb0] sm:$0xff] %v397
        %462 = vst [vmem:[%s190 + $0xb8] sm:$0xff] %v398
        %463 = vst [vmem:[%s190 + $0xc0] sm:$0xff] %v399
        %464 = vst [vmem:[%s190 + $0xc8] sm:$0xff] %v400
        %465 = vst [vmem:[%s190 + $0xd0] sm:$0xff] %v401
        %466 = vst [vmem:[%s190 + $0xd8] sm:$0xff] %v402
        %467 = vst [vmem:[%s190 + $0xe0] sm:$0xff] %v403
        %468 = vst [vmem:[%s190 + $0xe8] sm:$0xff] %v404
        %469 = vst [vmem:[%s190 + $0xf0] sm:$0xff] %v405
        %470 = vst [vmem:[%s190 + $0xf8] sm:$0xff] %v406
        %471 = vst [vmem:[%s190 + $0x100] sm:$0xff] %v407
        %472 = vst [vmem:[%s190 + $0x108] sm:$0xff] %v408
        %473 = vst [vmem:[%s190 + $0x110] sm:$0xff] %v409
        %474 = vst [vmem:[%s190 + $0x118] sm:$0xff] %v410
        %475 = vst [vmem:[%s190 + $0x120] sm:$0xff] %v411
        %476 = vst [vmem:[%s190 + $0x128] sm:$0xff] %v412
        %477 = vst [vmem:[%s190 + $0x130] sm:$0xff] %v413
        %478 = vst [vmem:[%s190 + $0x138] sm:$0xff] %v414
        %479 = vst [vmem:[%s190 + $0x140] sm:$0xff] %v415
        %480 = vst [vmem:[%s190 + $0x148] sm:$0xff] %v416
        %481 = vst [vmem:[%s190 + $0x150] sm:$0xff] %v417
        %482 = vst [vmem:[%s190 + $0x158] sm:$0xff] %v418
        %483 = vst [vmem:[%s190 + $0x160] sm:$0xff] %v419
        %484 = vst [vmem:[%s190 + $0x168] sm:$0xff] %v420
        %485 = vst [vmem:[%s190 + $0x170] sm:$0xff] %v421
        %486 = vst [vmem:[%s190 + $0x178] sm:$0xff] %v422
        %487 = vst [vmem:[%s190 + $0x180] sm:$0xff] %v423
        %488 = vst [vmem:[%s190 + $0x188] sm:$0xff] %v424
        %489 = vst [vmem:[%s190 + $0x190] sm:$0xff] %v425
        %490 = vst [vmem:[%s190 + $0x198] sm:$0xff] %v426
        %491 = vst [vmem:[%s190 + $0x1a0] sm:$0xff] %v427
        %492 = vst [vmem:[%s190 + $0x1a8] sm:$0xff] %v428
        %493 = vst [vmem:[%s190 + $0x1b0] sm:$0xff] %v429
        %494 = vst [vmem:[%s190 + $0x1b8] sm:$0xff] %v430
        %495 = vst [vmem:[%s190 + $0x1c0] sm:$0xff] %v431
        %496 = vst [vmem:[%s190 + $0x1c8] sm:$0xff] %v432
        %497 = vst [vmem:[%s190 + $0x1d0] sm:$0xff] %v433
        %498 = vst [vmem:[%s190 + $0x1d8] sm:$0xff] %v434
        %499 = vst [vmem:[%s190 + $0x1e0] sm:$0xff] %v435
        %500 = vst [vmem:[%s190 + $0x1e8] sm:$0xff] %v436
        %501 = vst [vmem:[%s190 + $0x1f0] sm:$0xff] %v437
        %502 = vst [vmem:[%s190 + $0x1f8] sm:$0xff] %v438
        %s503 = sand.u32 %s109, 1
        %s504 = scalar_lea.sflag [#allocation3], %s503
        %s505 = sand.u32 %s109, 1
        %s506 = smul.addr %s505, 512
        %s507 = scalar_lea.vmem [#allocation2], %s506
        // Predicated region
        $region33: #{relu_conv_bn.3} parent=31 // pred_check
          %p508 = pneg %p119
        $region34: #{relu_conv_bn.3} parent=31 // pred_check_branch
          %510 = sbr.rel (%p508) target = $region36
        $region35: #{relu_conv_bn.3} parent=31 // pred_region
          %s511 = smul.u32 32, %s22
          %513 = vsyncadd %s504, 0
          %s514 = smul.addr %s511, 2
          %s515 = smul.addr %s21, 64
          %s516 = sadd.s32 %s514, %s515
          %s517 = smul.addr %s516, 8
          %s518 = scalar_lea.hbm %s3, %s517
          %s519 = sshll.u32 %s507, 4
          %s520 = int_to_ptr.vmem [resolvable:$true] %s519
          %s521 = sshll.u32 %s518, 4
          %s522 = int_to_ptr.hbm [resolvable:$true] %s521
          %527 = dma.vmem_to_hbm [thread:$0]  %s520, 8192, %s522, %s504, 256, 256, 16
        $region36: #{relu_conv_bn.3} parent=31 // pred_fallthru
          _
      $region32: #{relu_conv_bn.3} parent=5 // pred_fallthru
        _
      %p528 = scmp.le.s32.totalorder 2, %s12
      // Predicated region
      $region37: #{relu_conv_bn.3} parent=5 // pred_check
        %p529 = pneg %p528
      $region38: #{relu_conv_bn.3} parent=5 // pred_check_branch
        %531 = sbr.rel (%p529) target = $region40
      $region39: #{relu_conv_bn.3} parent=5 // pred_region
        %s532 = ssub.s32 %s12, 2
        // Predicated region
        $region41: #{relu_conv_bn.3} parent=39 // pred_check
          %p533 = pneg %p125
        $region42: #{relu_conv_bn.3} parent=39 // pred_check_branch
          %535 = sbr.rel (%p533) target = $region44
        $region43: #{relu_conv_bn.3} parent=39 // pred_region
          %s536 = sand.u32 %s110, 1
          %s537 = scalar_lea.sflag [#allocation3], %s536
          %s538 = sand.u32 %s110, 1
          %s539 = smul.addr %s538, 512
          %s540 = scalar_lea.vmem [#allocation2], %s539
          %542 = dma.done %s537, 8192
        $region44: #{relu_conv_bn.3} parent=39 // pred_fallthru
          _
      $region40: #{relu_conv_bn.3} parent=5 // pred_fallthru
        _
    $region6: #{relu_conv_bn.3} parent=1 // loop_footer
      %s16 = sadd.s32 1, %s12
    $region7: #{relu_conv_bn.3} parent=1 // loop_footer_branch
      %11 = sbr.rel target = $region3
    $region8: #{relu_conv_bn.3} parent=1 // loop_exit
      _
    %543 = vsyncpa [#allocation3], 1
    %s544 = scalar_lea.sflag [#allocation3], 1
    %545 = vsyncpa %s544, 1

// kernel: relu_conv_bn.2
$region0: #{relu_conv_bn.2}
  #allocation0 [shape = 'u32[]', space=smem, size = 0x4, offset = 0x4, fixed_abs, tag = 'smem constant byte address 0x4 - core index']
  #allocation1 [shape = 'u32[72,128]{1,0:T(1,128)}', space=vmem, size = 0x9000, scoped, tag = 'internal scratch']
  #allocation2 [shape = 'bf16[16,16,2304]{2,1,0:T(8,128)(2,1)}', space=vmem, size = 0x120000, scoped, tag = 'scratch operand']
  %s0 = inlined_call_operand.vmem [shape: bf16[2,18,18,256], index: 0, kind: input, shape index: {}]
  %s1 = inlined_call_operand.vmem [shape: bf16[2304,256], index: 1, kind: input, shape index: {}]
  %s2 = inlined_call_operand.vmem [shape: f32[1,256], index: 2, kind: input, shape index: {}]
  %s3 = inlined_call_operand.vmem [shape: bf16[2,256,256], index: 3, kind: output, shape index: {0}]
  %s4 = inlined_call_operand.vmem [shape: f32[2,1,256], index: 4, kind: output, shape index: {1}]
  %s5 = inlined_call_operand.vmem [shape: f32[2,1,256], index: 5, kind: output, shape index: {2}]
  %6 = xla_tuple %s3, %s4, %s5
  %s7 = sld [smem:[#allocation0]]
  $region61: #{relu_conv_bn.2} parent=0
    _
  %s9 = ssub.s32 1, %s7
  %s10 = scalar_select 0, %s9, %s7
  loop: start=0, step=1, limit=4
  $region2: #{relu_conv_bn.2} parent=0 // loop_pre_header
    _
  $region3: #{relu_conv_bn.2} parent=0 // loop_header
    %s12 = sphi 0, %s16
    %p13 = scmp.ge.s32.totalorder %s12, 4
    %s22 = sphi 0, %s24
    %s25 = sphi 0, %s22
    %s26 = sphi 0, %s25
    %s42 = sphi 0, %s26
    %s46 = sphi 0, %s46
    %s48 = sphi 0, %s46
    %s49 = sphi 0, %s48
    %s63 = sphi 0, %s49
    %s67 = sphi 0, %s67
    %s69 = sphi 0, %s67
    %s70 = sphi 0, %s69
    %s84 = sphi 0, %s70
    %s90 = sphi 0, %s92
    %s93 = sphi 0, %s90
    %s94 = sphi 0, %s93
    %s110 = sphi 0, %s94
    %s116 = sphi 0, %s118
    %s119 = sphi 0, %s116
    %s120 = sphi 0, %s119
    %s136 = sphi 0, %s120
    %s142 = sphi 0, %s144
    %s145 = sphi 0, %s142
    %s146 = sphi 0, %s145
    %s162 = sphi 0, %s146
  $region4: #{relu_conv_bn.2} parent=0 // loop_header_branch
    %15 = sbr.rel (%p13) target = $region8
  $region5: #{relu_conv_bn.2} parent=0 // loop_body
    %s17 = ssub.s32 %s12, 1
    %s18 = ssub.s32 %s12, 2
    %s19 = sadd.s32 %s12, 1
    %s20 = ssub.s32 %s12, %s19
    %p21 = scmp.eq.s32.totalorder %s20, 0
    %s23 = sadd.s32 %s22, 1
    %s24 = scalar_select %p21, %s22, %s23
    %p27 = pneg %p21
    %p28 = scmp.eq.s32.totalorder %s12, 1
    %p29 = por %p27, %p28
    %p30 = scmp.ne.s32.totalorder %s22, %s25
    %p31 = scmp.eq.s32.totalorder %s12, 0
    %p32 = por %p30, %p31
    %p33 = scmp.ne.s32.totalorder %s22, %s25
    %p34 = scmp.eq.s32.totalorder %s17, 1
    %p35 = por %p33, %p34
    %p36 = scmp.ne.s32.totalorder %s25, %s26
    %p37 = scmp.eq.s32.totalorder %s17, 0
    %p38 = por %p36, %p37
    %p39 = scmp.ne.s32.totalorder %s25, %s26
    %p40 = scmp.eq.s32.totalorder %s18, 1
    %p41 = por %p39, %p40
    %p43 = scmp.ne.s32.totalorder %s26, %s42
    %p44 = scmp.eq.s32.totalorder %s18, 0
    %p45 = por %p43, %p44
    %s47 = sadd.s32 %s46, 1
    %p50 = scmp.eq.s32.totalorder %s12, 1
    %p51 = scmp.ne.s32.totalorder %s46, %s48
    %p52 = scmp.eq.s32.totalorder %s12, 0
    %p53 = por %p51, %p52
    %p54 = scmp.ne.s32.totalorder %s46, %s48
    %p55 = scmp.eq.s32.totalorder %s17, 1
    %p56 = por %p54, %p55
    %p57 = scmp.ne.s32.totalorder %s48, %s49
    %p58 = scmp.eq.s32.totalorder %s17, 0
    %p59 = por %p57, %p58
    %p60 = scmp.ne.s32.totalorder %s48, %s49
    %p61 = scmp.eq.s32.totalorder %s18, 1
    %p62 = por %p60, %p61
    %p64 = scmp.ne.s32.totalorder %s49, %s63
    %p65 = scmp.eq.s32.totalorder %s18, 0
    %p66 = por %p64, %p65
    %s68 = sadd.s32 %s67, 1
    %p71 = scmp.eq.s32.totalorder %s12, 1
    %p72 = scmp.ne.s32.totalorder %s67, %s69
    %p73 = scmp.eq.s32.totalorder %s12, 0
    %p74 = por %p72, %p73
    %p75 = scmp.ne.s32.totalorder %s67, %s69
    %p76 = scmp.eq.s32.totalorder %s17, 1
    %p77 = por %p75, %p76
    %p78 = scmp.ne.s32.totalorder %s69, %s70
    %p79 = scmp.eq.s32.totalorder %s17, 0
    %p80 = por %p78, %p79
    %p81 = scmp.ne.s32.totalorder %s69, %s70
    %p82 = scmp.eq.s32.totalorder %s18, 1
    %p83 = por %p81, %p82
    %p85 = scmp.ne.s32.totalorder %s70, %s84
    %p86 = scmp.eq.s32.totalorder %s18, 0
    %p87 = por %p85, %p86
    %s88 = ssub.s32 %s12, %s19
    %p89 = scmp.eq.s32.totalorder %s88, 0
    %s91 = sadd.s32 %s90, 1
    %s92 = scalar_select %p89, %s90, %s91
    %p95 = pneg %p89
    %p96 = scmp.eq.s32.totalorder %s12, 1
    %p97 = por %p95, %p96
    %p98 = scmp.ne.s32.totalorder %s90, %s93
    %p99 = scmp.eq.s32.totalorder %s12, 0
    %p100 = por %p98, %p99
    %p101 = scmp.ne.s32.totalorder %s90, %s93
    %p102 = scmp.eq.s32.totalorder %s17, 1
    %p103 = por %p101, %p102
    %p104 = scmp.ne.s32.totalorder %s93, %s94
    %p105 = scmp.eq.s32.totalorder %s17, 0
    %p106 = por %p104, %p105
    %p107 = scmp.ne.s32.totalorder %s93, %s94
    %p108 = scmp.eq.s32.totalorder %s18, 1
    %p109 = por %p107, %p108
    %p111 = scmp.ne.s32.totalorder %s94, %s110
    %p112 = scmp.eq.s32.totalorder %s18, 0
    %p113 = por %p111, %p112
    %s114 = ssub.s32 %s12, %s19
    %p115 = scmp.eq.s32.totalorder %s114, 0
    %s117 = sadd.s32 %s116, 1
    %s118 = scalar_select %p115, %s116, %s117
    %p121 = pneg %p115
    %p122 = scmp.eq.s32.totalorder %s12, 1
    %p123 = por %p121, %p122
    %p124 = scmp.ne.s32.totalorder %s116, %s119
    %p125 = scmp.eq.s32.totalorder %s12, 0
    %p126 = por %p124, %p125
    %p127 = scmp.ne.s32.totalorder %s116, %s119
    %p128 = scmp.eq.s32.totalorder %s17, 1
    %p129 = por %p127, %p128
    %p130 = scmp.ne.s32.totalorder %s119, %s120
    %p131 = scmp.eq.s32.totalorder %s17, 0
    %p132 = por %p130, %p131
    %p133 = scmp.ne.s32.totalorder %s119, %s120
    %p134 = scmp.eq.s32.totalorder %s18, 1
    %p135 = por %p133, %p134
    %p137 = scmp.ne.s32.totalorder %s120, %s136
    %p138 = scmp.eq.s32.totalorder %s18, 0
    %p139 = por %p137, %p138
    %s140 = ssub.s32 %s12, %s19
    %p141 = scmp.eq.s32.totalorder %s140, 0
    %s143 = sadd.s32 %s142, 1
    %s144 = scalar_select %p141, %s142, %s143
    %p147 = pneg %p141
    %p148 = scmp.eq.s32.totalorder %s12, 1
    %p149 = por %p147, %p148
    %p150 = scmp.ne.s32.totalorder %s142, %s145
    %p151 = scmp.eq.s32.totalorder %s12, 0
    %p152 = por %p150, %p151
    %p153 = scmp.ne.s32.totalorder %s142, %s145
    %p154 = scmp.eq.s32.totalorder %s17, 1
    %p155 = por %p153, %p154
    %p156 = scmp.ne.s32.totalorder %s145, %s146
    %p157 = scmp.eq.s32.totalorder %s17, 0
    %p158 = por %p156, %p157
    %p159 = scmp.ne.s32.totalorder %s145, %s146
    %p160 = scmp.eq.s32.totalorder %s18, 1
    %p161 = por %p159, %p160
    %p163 = scmp.ne.s32.totalorder %s146, %s162
    %p164 = scmp.eq.s32.totalorder %s18, 0
    %p165 = por %p163, %p164
    %p166 = scmp.le.s32.totalorder 1, %s12
    %p167 = scmp.lt.s32.totalorder %s12, 3
    %p168 = pnand %p166, %p167
    %p169 = pneg %p168
    // Predicated region
    $region9: #{relu_conv_bn.2} parent=5 // pred_check
      _
    $region10: #{relu_conv_bn.2} parent=5 // pred_check_branch
      %171 = sbr.rel (%p168) target = $region12
    $region11: #{relu_conv_bn.2} parent=5 // pred_region
      %s172 = ssub.s32 %s12, 1
      // Predicated region
      $region13: #{relu_conv_bn.2} parent=11 // pred_check
        %p173 = pneg %p59
      $region14: #{relu_conv_bn.2} parent=11 // pred_check_branch
        %175 = sbr.rel (%p173) target = $region16
      $region15: #{relu_conv_bn.2} parent=11 // pred_region
        _
      $region16: #{relu_conv_bn.2} parent=11 // pred_fallthru
        _
      // Predicated region
      $region17: #{relu_conv_bn.2} parent=11 // pred_check
        %p176 = pneg %p80
      $region18: #{relu_conv_bn.2} parent=11 // pred_check_branch
        %178 = sbr.rel (%p176) target = $region20
      $region19: #{relu_conv_bn.2} parent=11 // pred_region
        _
      $region20: #{relu_conv_bn.2} parent=11 // pred_fallthru
        _
    $region12: #{relu_conv_bn.2} parent=5 // pred_fallthru
      _
    %p179 = scmp.lt.s32.totalorder %s12, 2
    // Predicated region
    $region21: #{relu_conv_bn.2} parent=5 // pred_check
      %p180 = pneg %p179
    $region22: #{relu_conv_bn.2} parent=5 // pred_check_branch
      %182 = sbr.rel (%p180) target = $region24
    $region23: #{relu_conv_bn.2} parent=5 // pred_region
      // Predicated region
      $region25: #{relu_conv_bn.2} parent=23 // pred_check
        %p183 = pneg %p32
      $region26: #{relu_conv_bn.2} parent=23 // pred_check_branch
        %185 = sbr.rel (%p183) target = $region28
      $region27: #{relu_conv_bn.2} parent=23 // pred_region
        %p186 = scmp.lt.s32.totalorder %s12, 1
        %s187 = scalar_select %p186, %s12, 1
        %s188 = smul.addr %s187, 108
        %s189 = smul.addr %s188, 4
        %s190 = scalar_lea.vmem %s0, %s189
      $region28: #{relu_conv_bn.2} parent=23 // pred_fallthru
        _
    $region24: #{relu_conv_bn.2} parent=5 // pred_fallthru
      _
    %p191 = scmp.le.s32.totalorder 1, %s12
    %p192 = scmp.lt.s32.totalorder %s12, 3
    %p193 = pnand %p191, %p192
    %p194 = pneg %p193
    // Predicated region
    $region29: #{relu_conv_bn.2} parent=5 // pred_check
      _
    $region30: #{relu_conv_bn.2} parent=5 // pred_check_branch
      %196 = sbr.rel (%p193) target = $region32
    $region31: #{relu_conv_bn.2} parent=5 // pred_region
      %s197 = ssub.s32 %s12, 1
      %p198 = scmp.lt.s32.totalorder %s17, 1
      %s199 = scalar_select %p198, %s17, 1
      %s200 = smul.addr %s199, 108
      %s201 = smul.addr %s200, 4
      %s202 = scalar_lea.vmem %s0, %s201
      %p203 = pneg %p38
      %p204 = pneg %p35
      %p205 = pneg %p59
      %p206 = pneg %p56
      %p207 = pneg %p80
      %p208 = pneg %p77
      %p209 = pneg %p106
      %p210 = pneg %p103
      %p211 = scmp.lt.s32.totalorder %s17, 1
      %s212 = scalar_select %p211, %s17, 1
      %s213 = smul.addr %s212, 64
      %s214 = smul.addr %s213, 4
      %s215 = scalar_lea.vmem %s3, %s214
      %p216 = pneg %p132
      %p217 = pneg %p129
      %p218 = scmp.lt.s32.totalorder %s17, 1
      %s219 = scalar_select %p218, %s17, 1
      %s220 = smul.addr %s219, 2
      %s221 = scalar_lea.vmem %s4, %s220
      %p222 = pneg %p158
      %p223 = pneg %p155
      %p224 = scmp.lt.s32.totalorder %s17, 1
      %s225 = scalar_select %p224, %s17, 1
      %s226 = smul.addr %s225, 2
      %s227 = scalar_lea.vmem %s5, %s226
      %p228 = scmp.lt.s32.totalorder %s17, 1
      %s229 = scalar_select %p228, %s17, 1
      %s230 = smul.addr %s229, 108
      %s231 = smul.addr %s230, 4
      %s232 = scalar_lea.vmem %s0, %s231
      %p233 = scmp.lt.s32.totalorder %s17, 1
      %s234 = scalar_select %p233, %s17, 1
      %s235 = smul.addr %s234, 64
      %s236 = smul.addr %s235, 4
      %s237 = scalar_lea.vmem %s3, %s236
      %p238 = scmp.lt.s32.totalorder %s17, 1
      %s239 = scalar_select %p238, %s17, 1
      %s240 = smul.addr %s239, 2
      %s241 = scalar_lea.vmem %s4, %s240
      %p242 = scmp.lt.s32.totalorder %s17, 1
      %s243 = scalar_select %p242, %s17, 1
      %s244 = smul.addr %s243, 2
      %s245 = scalar_lea.vmem %s5, %s244
      %v246 = vld [vmem:[%s232] sm:$0xff]
      %v247 = vld [vmem:[%s232 + $0x8] sm:$0xff]
      %v248 = vld [vmem:[%s232 + $0x10] sm:$0x11]
      %v249 = vld [vmem:[%s232 + $0x18] sm:$0xff]
      %v250 = vld [vmem:[%s232 + $0x20] sm:$0xff]
      %v251 = vld [vmem:[%s232 + $0x28] sm:$0x11]
      %v252 = vld [vmem:[%s232 + $0x30] sm:$0xff]
      %v253 = vld [vmem:[%s232 + $0x38] sm:$0xff]
      %v254 = vld [vmem:[%s232 + $0x40] sm:$0x11]
      %v255 = vld [vmem:[%s232 + $0x48] sm:$0xff]
      %v256 = vld [vmem:[%s232 + $0x50] sm:$0xff]
      %v257 = vld [vmem:[%s232 + $0x58] sm:$0x11]
      %v258 = vld [vmem:[%s232 + $0x60] sm:$0xff]
      %v259 = vld [vmem:[%s232 + $0x68] sm:$0xff]
      %v260 = vld [vmem:[%s232 + $0x70] sm:$0x11]
      %v261 = vld [vmem:[%s232 + $0x78] sm:$0xff]
      %v262 = vld [vmem:[%s232 + $0x80] sm:$0xff]
      %v263 = vld [vmem:[%s232 + $0x88] sm:$0x11]
      %v264 = vld [vmem:[%s232 + $0x90] sm:$0xff]
      %v265 = vld [vmem:[%s232 + $0x98] sm:$0xff]
      %v266 = vld [vmem:[%s232 + $0xa0] sm:$0x11]
      %v267 = vld [vmem:[%s232 + $0xa8] sm:$0xff]
      %v268 = vld [vmem:[%s232 + $0xb0] sm:$0xff]
      %v269 = vld [vmem:[%s232 + $0xb8] sm:$0x11]
      %v270 = vld [vmem:[%s232 + $0xc0] sm:$0xff]
      %v271 = vld [vmem:[%s232 + $0xc8] sm:$0xff]
      %v272 = vld [vmem:[%s232 + $0xd0] sm:$0x11]
      %v273 = vld [vmem:[%s232 + $0xd8] sm:$0xff]
      %v274 = vld [vmem:[%s232 + $0xe0] sm:$0xff]
      %v275 = vld [vmem:[%s232 + $0xe8] sm:$0x11]
      %v276 = vld [vmem:[%s232 + $0xf0] sm:$0xff]
      %v277 = vld [vmem:[%s232 + $0xf8] sm:$0xff]
      %v278 = vld [vmem:[%s232 + $0x100] sm:$0x11]
      %v279 = vld [vmem:[%s232 + $0x108] sm:$0xff]
      %v280 = vld [vmem:[%s232 + $0x110] sm:$0xff]
      %v281 = vld [vmem:[%s232 + $0x118] sm:$0x11]
      %v282 = vld [vmem:[%s232 + $0x120] sm:$0xff]
      %v283 = vld [vmem:[%s232 + $0x128] sm:$0xff]
      %v284 = vld [vmem:[%s232 + $0x130] sm:$0x11]
      %v285 = vld [vmem:[%s232 + $0x138] sm:$0xff]
      %v286 = vld [vmem:[%s232 + $0x140] sm:$0xff]
      %v287 = vld [vmem:[%s232 + $0x148] sm:$0x11]
      %v288 = vld [vmem:[%s232 + $0x150] sm:$0xff]
      %v289 = vld [vmem:[%s232 + $0x158] sm:$0xff]
      %v290 = vld [vmem:[%s232 + $0x160] sm:$0x11]
      %v291 = vld [vmem:[%s232 + $0x168] sm:$0xff]
      %v292 = vld [vmem:[%s232 + $0x170] sm:$0xff]
      %v293 = vld [vmem:[%s232 + $0x178] sm:$0x11]
      %v294 = vld [vmem:[%s232 + $0x180] sm:$0xff]
      %v295 = vld [vmem:[%s232 + $0x188] sm:$0xff]
      %v296 = vld [vmem:[%s232 + $0x190] sm:$0x11]
      %v297 = vld [vmem:[%s232 + $0x198] sm:$0xff]
      %v298 = vld [vmem:[%s232 + $0x1a0] sm:$0xff]
      %v299 = vld [vmem:[%s232 + $0x1a8] sm:$0x11]
      %v300 = vunpack.c.l.bf16 %v246
      %v301 = vunpack.c.h.bf16 %v246
      %v302 = vunpack.c.l.bf16 %v247
      %v303 = vunpack.c.h.bf16 %v247
      %v304 = vunpack.c.l.bf16 %v248
      %v305 = vunpack.c.h.bf16 %v248
      %v306 = vunpack.c.l.bf16 %v249
      %v307 = vunpack.c.h.bf16 %v249
      %v308 = vunpack.c.l.bf16 %v250
      %v309 = vunpack.c.h.bf16 %v250
      %v310 = vunpack.c.l.bf16 %v251
      %v311 = vunpack.c.h.bf16 %v251
      %v312 = vunpack.c.l.bf16 %v252
      %v313 = vunpack.c.h.bf16 %v252
      %v314 = vunpack.c.l.bf16 %v253
      %v315 = vunpack.c.h.bf16 %v253
      %v316 = vunpack.c.l.bf16 %v254
      %v317 = vunpack.c.h.bf16 %v254
      %v318 = vunpack.c.l.bf16 %v255
      %v319 = vunpack.c.h.bf16 %v255
      %v320 = vunpack.c.l.bf16 %v256
      %v321 = vunpack.c.h.bf16 %v256
      %v322 = vunpack.c.l.bf16 %v257
      %v323 = vunpack.c.h.bf16 %v257
      %v324 = vunpack.c.l.bf16 %v258
      %v325 = vunpack.c.h.bf16 %v258
      %v326 = vunpack.c.l.bf16 %v259
      %v327 = vunpack.c.h.bf16 %v259
      %v328 = vunpack.c.l.bf16 %v260
      %v329 = vunpack.c.h.bf16 %v260
      %v330 = vunpack.c.l.bf16 %v261
      %v331 = vunpack.c.h.bf16 %v261
      %v332 = vunpack.c.l.bf16 %v262
      %v333 = vunpack.c.h.bf16 %v262
      %v334 = vunpack.c.l.bf16 %v263
      %v335 = vunpack.c.h.bf16 %v263
      %v336 = vunpack.c.l.bf16 %v264
      %v337 = vunpack.c.h.bf16 %v264
      %v338 = vunpack.c.l.bf16 %v265
      %v339 = vunpack.c.h.bf16 %v265
      %v340 = vunpack.c.l.bf16 %v266
      %v341 = vunpack.c.h.bf16 %v266
      %v342 = vunpack.c.l.bf16 %v267
      %v343 = vunpack.c.h.bf16 %v267
      %v344 = vunpack.c.l.bf16 %v268
      %v345 = vunpack.c.h.bf16 %v268
      %v346 = vunpack.c.l.bf16 %v269
      %v347 = vunpack.c.h.bf16 %v269
      %v348 = vunpack.c.l.bf16 %v270
      %v349 = vunpack.c.h.bf16 %v270
      %v350 = vunpack.c.l.bf16 %v271
      %v351 = vunpack.c.h.bf16 %v271
      %v352 = vunpack.c.l.bf16 %v272
      %v353 = vunpack.c.h.bf16 %v272
      %v354 = vunpack.c.l.bf16 %v273
      %v355 = vunpack.c.h.bf16 %v273
      %v356 = vunpack.c.l.bf16 %v274
      %v357 = vunpack.c.h.bf16 %v274
      %v358 = vunpack.c.l.bf16 %v275
      %v359 = vunpack.c.h.bf16 %v275
      %v360 = vunpack.c.l.bf16 %v276
      %v361 = vunpack.c.h.bf16 %v276
      %v362 = vunpack.c.l.bf16 %v277
      %v363 = vunpack.c.h.bf16 %v277
      %v364 = vunpack.c.l.bf16 %v278
      %v365 = vunpack.c.h.bf16 %v278
      %v366 = vunpack.c.l.bf16 %v279
      %v367 = vunpack.c.h.bf16 %v279
      %v368 = vunpack.c.l.bf16 %v280
      %v369 = vunpack.c.h.bf16 %v280
      %v370 = vunpack.c.l.bf16 %v281
      %v371 = vunpack.c.h.bf16 %v281
      %v372 = vunpack.c.l.bf16 %v282
      %v373 = vunpack.c.h.bf16 %v282
      %v374 = vunpack.c.l.bf16 %v283
      %v375 = vunpack.c.h.bf16 %v283
      %v376 = vunpack.c.l.bf16 %v284
      %v377 = vunpack.c.h.bf16 %v284
      %v378 = vunpack.c.l.bf16 %v285
      %v379 = vunpack.c.h.bf16 %v285
      %v380 = vunpack.c.l.bf16 %v286
      %v381 = vunpack.c.h.bf16 %v286
      %v382 = vunpack.c.l.bf16 %v287
      %v383 = vunpack.c.h.bf16 %v287
      %v384 = vunpack.c.l.bf16 %v288
      %v385 = vunpack.c.h.bf16 %v288
      %v386 = vunpack.c.l.bf16 %v289
      %v387 = vunpack.c.h.bf16 %v289
      %v388 = vunpack.c.l.bf16 %v290
      %v389 = vunpack.c.h.bf16 %v290
      %v390 = vunpack.c.l.bf16 %v291
      %v391 = vunpack.c.h.bf16 %v291
      %v392 = vunpack.c.l.bf16 %v292
      %v393 = vunpack.c.h.bf16 %v292
      %v394 = vunpack.c.l.bf16 %v293
      %v395 = vunpack.c.h.bf16 %v293
      %v396 = vunpack.c.l.bf16 %v294
      %v397 = vunpack.c.h.bf16 %v294
      %v398 = vunpack.c.l.bf16 %v295
      %v399 = vunpack.c.h.bf16 %v295
      %v400 = vunpack.c.l.bf16 %v296
      %v401 = vunpack.c.h.bf16 %v296
      %v402 = vunpack.c.l.bf16 %v297
      %v403 = vunpack.c.h.bf16 %v297
      %v404 = vunpack.c.l.bf16 %v298
      %v405 = vunpack.c.h.bf16 %v298
      %v406 = vunpack.c.l.bf16 %v299
      %v407 = vunpack.c.h.bf16 %v299
      %v408 = vmax.f32 %v300, 0.0
      %v409 = vmax.f32 %v301, 0.0
      %v410 = vmax.f32 %v302, 0.0
      %v411 = vmax.f32 %v303, 0.0
      %v412 = vmax.f32 %v304, 0.0
      %v413 = vmax.f32 %v305, 0.0
      %v414 = vmax.f32 %v306, 0.0
      %v415 = vmax.f32 %v307, 0.0
      %v416 = vmax.f32 %v308, 0.0
      %v417 = vmax.f32 %v309, 0.0
      %v418 = vmax.f32 %v310, 0.0
      %v419 = vmax.f32 %v311, 0.0
      %v420 = vmax.f32 %v312, 0.0
      %v421 = vmax.f32 %v313, 0.0
      %v422 = vmax.f32 %v314, 0.0
      %v423 = vmax.f32 %v315, 0.0
      %v424 = vmax.f32 %v316, 0.0
      %v425 = vmax.f32 %v317, 0.0
      %v426 = vmax.f32 %v318, 0.0
      %v427 = vmax.f32 %v319, 0.0
      %v428 = vmax.f32 %v320, 0.0
      %v429 = vmax.f32 %v321, 0.0
      %v430 = vmax.f32 %v322, 0.0
      %v431 = vmax.f32 %v323, 0.0
      %v432 = vmax.f32 %v324, 0.0
      %v433 = vmax.f32 %v325, 0.0
      %v434 = vmax.f32 %v326, 0.0
      %v435 = vmax.f32 %v327, 0.0
      %v436 = vmax.f32 %v328, 0.0
      %v437 = vmax.f32 %v329, 0.0
      %v438 = vmax.f32 %v330, 0.0
      %v439 = vmax.f32 %v331, 0.0
      %v440 = vmax.f32 %v332, 0.0
      %v441 = vmax.f32 %v333, 0.0
      %v442 = vmax.f32 %v334, 0.0
      %v443 = vmax.f32 %v335, 0.0
      %v444 = vmax.f32 %v336, 0.0
      %v445 = vmax.f32 %v337, 0.0
      %v446 = vmax.f32 %v338, 0.0
      %v447 = vmax.f32 %v339, 0.0
      %v448 = vmax.f32 %v340, 0.0
      %v449 = vmax.f32 %v341, 0.0
      %v450 = vmax.f32 %v342, 0.0
      %v451 = vmax.f32 %v343, 0.0
      %v452 = vmax.f32 %v344, 0.0
      %v453 = vmax.f32 %v345, 0.0
      %v454 = vmax.f32 %v346, 0.0
      %v455 = vmax.f32 %v347, 0.0
      %v456 = vmax.f32 %v348, 0.0
      %v457 = vmax.f32 %v349, 0.0
      %v458 = vmax.f32 %v350, 0.0
      %v459 = vmax.f32 %v351, 0.0
      %v460 = vmax.f32 %v352, 0.0
      %v461 = vmax.f32 %v353, 0.0
      %v462 = vmax.f32 %v354, 0.0
      %v463 = vmax.f32 %v355, 0.0
      %v464 = vmax.f32 %v356, 0.0
      %v465 = vmax.f32 %v357, 0.0
      %v466 = vmax.f32 %v358, 0.0
      %v467 = vmax.f32 %v359, 0.0
      %v468 = vmax.f32 %v360, 0.0
      %v469 = vmax.f32 %v361, 0.0
      %v470 = vmax.f32 %v362, 0.0
      %v471 = vmax.f32 %v363, 0.0
      %v472 = vmax.f32 %v364, 0.0
      %v473 = vmax.f32 %v365, 0.0
      %v474 = vmax.f32 %v366, 0.0
      %v475 = vmax.f32 %v367, 0.0
      %v476 = vmax.f32 %v368, 0.0
      %v477 = vmax.f32 %v369, 0.0
      %v478 = vmax.f32 %v370, 0.0
      %v479 = vmax.f32 %v371, 0.0
      %v480 = vmax.f32 %v372, 0.0
      %v481 = vmax.f32 %v373, 0.0
      %v482 = vmax.f32 %v374, 0.0
      %v483 = vmax.f32 %v375, 0.0
      %v484 = vmax.f32 %v376, 0.0
      %v485 = vmax.f32 %v377, 0.0
      %v486 = vmax.f32 %v378, 0.0
      %v487 = vmax.f32 %v379, 0.0
      %v488 = vmax.f32 %v380, 0.0
      %v489 = vmax.f32 %v381, 0.0
      %v490 = vmax.f32 %v382, 0.0
      %v491 = vmax.f32 %v383, 0.0
      %v492 = vmax.f32 %v384, 0.0
      %v493 = vmax.f32 %v385, 0.0
      %v494 = vmax.f32 %v386, 0.0
      %v495 = vmax.f32 %v387, 0.0
      %v496 = vmax.f32 %v388, 0.0
      %v497 = vmax.f32 %v389, 0.0
      %v498 = vmax.f32 %v390, 0.0
      %v499 = vmax.f32 %v391, 0.0
      %v500 = vmax.f32 %v392, 0.0
      %v501 = vmax.f32 %v393, 0.0
      %v502 = vmax.f32 %v394, 0.0
      %v503 = vmax.f32 %v395, 0.0
      %v504 = vmax.f32 %v396, 0.0
      %v505 = vmax.f32 %v397, 0.0
      %v506 = vmax.f32 %v398, 0.0
      %v507 = vmax.f32 %v399, 0.0
      %v508 = vmax.f32 %v400, 0.0
      %v509 = vmax.f32 %v401, 0.0
      %v510 = vmax.f32 %v402, 0.0
      %v511 = vmax.f32 %v403, 0.0
      %v512 = vmax.f32 %v404, 0.0
      %v513 = vmax.f32 %v405, 0.0
      %v514 = vmax.f32 %v406, 0.0
      %v515 = vmax.f32 %v407, 0.0
      %v516 = vpack.c.bf16 %v409, %v408
      %v517 = vpack.c.bf16 %v411, %v410
      %v518 = vpack.c.bf16 %v413, %v412
      %v519 = vpack.c.bf16 %v415, %v414
      %v520 = vpack.c.bf16 %v417, %v416
      %v521 = vpack.c.bf16 %v419, %v418
      %v522 = vpack.c.bf16 %v421, %v420
      %v523 = vpack.c.bf16 %v423, %v422
      %v524 = vpack.c.bf16 %v425, %v424
      %v525 = vpack.c.bf16 %v427, %v426
      %v526 = vpack.c.bf16 %v429, %v428
      %v527 = vpack.c.bf16 %v431, %v430
      %v528 = vpack.c.bf16 %v433, %v432
      %v529 = vpack.c.bf16 %v435, %v434
      %v530 = vpack.c.bf16 %v437, %v436
      %v531 = vpack.c.bf16 %v439, %v438
      %v532 = vpack.c.bf16 %v441, %v440
      %v533 = vpack.c.bf16 %v443, %v442
      %v534 = vpack.c.bf16 %v445, %v444
      %v535 = vpack.c.bf16 %v447, %v446
      %v536 = vpack.c.bf16 %v449, %v448
      %v537 = vpack.c.bf16 %v451, %v450
      %v538 = vpack.c.bf16 %v453, %v452
      %v539 = vpack.c.bf16 %v455, %v454
      %v540 = vpack.c.bf16 %v457, %v456
      %v541 = vpack.c.bf16 %v459, %v458
      %v542 = vpack.c.bf16 %v461, %v460
      %v543 = vpack.c.bf16 %v463, %v462
      %v544 = vpack.c.bf16 %v465, %v464
      %v545 = vpack.c.bf16 %v467, %v466
      %v546 = vpack.c.bf16 %v469, %v468
      %v547 = vpack.c.bf16 %v471, %v470
      %v548 = vpack.c.bf16 %v473, %v472
      %v549 = vpack.c.bf16 %v475, %v474
      %v550 = vpack.c.bf16 %v477, %v476
      %v551 = vpack.c.bf16 %v479, %v478
      %v552 = vpack.c.bf16 %v481, %v480
      %v553 = vpack.c.bf16 %v483, %v482
      %v554 = vpack.c.bf16 %v485, %v484
      %v555 = vpack.c.bf16 %v487, %v486
      %v556 = vpack.c.bf16 %v489, %v488
      %v557 = vpack.c.bf16 %v491, %v490
      %v558 = vpack.c.bf16 %v493, %v492
      %v559 = vpack.c.bf16 %v495, %v494
      %v560 = vpack.c.bf16 %v497, %v496
      %v561 = vpack.c.bf16 %v499, %v498
      %v562 = vpack.c.bf16 %v501, %v500
      %v563 = vpack.c.bf16 %v503, %v502
      %v564 = vpack.c.bf16 %v505, %v504
      %v565 = vpack.c.bf16 %v507, %v506
      %v566 = vpack.c.bf16 %v509, %v508
      %v567 = vpack.c.bf16 %v511, %v510
      %v568 = vpack.c.bf16 %v513, %v512
      %v569 = vpack.c.bf16 %v515, %v514
      %570 = vst [vmem:[#allocation2] sm:$0xff] %v516
      %571 = vst [vmem:[#allocation2 + $0x48] sm:$0xff] %v517
      %572 = vst [vmem:[#allocation2 + $0x90] sm:$0xff] %v519
      %573 = vst [vmem:[#allocation2 + $0xd8] sm:$0xff] %v520
      %574 = vst [vmem:[#allocation2 + $0x120] sm:$0xff] %v522
      %575 = vst [vmem:[#allocation2 + $0x168] sm:$0xff] %v523
      %576 = vst [vmem:[#allocation2 + $0x1b0] sm:$0xff] %v525
      %577 = vst [vmem:[#allocation2 + $0x1f8] sm:$0xff] %v526
      %578 = vst [vmem:[#allocation2 + $0x240] sm:$0xff] %v528
      %579 = vst [vmem:[#allocation2 + $0x288] sm:$0xff] %v529
      %580 = vst [vmem:[#allocation2 + $0x2d0] sm:$0xff] %v531
      %581 = vst [vmem:[#allocation2 + $0x318] sm:$0xff] %v532
      %582 = vst [vmem:[#allocation2 + $0x360] sm:$0xff] %v534
      %583 = vst [vmem:[#allocation2 + $0x3a8] sm:$0xff] %v535
      %584 = vst [vmem:[#allocation2 + $0x3f0] sm:$0xff] %v537
      %585 = vst [vmem:[#allocation2 + $0x438] sm:$0xff] %v538
      %586 = vst [vmem:[#allocation2 + $0x480] sm:$0xff] %v540
      %587 = vst [vmem:[#allocation2 + $0x4c8] sm:$0xff] %v541
      %588 = vst [vmem:[#allocation2 + $0x510] sm:$0xff] %v543
      %589 = vst [vmem:[#allocation2 + $0x558] sm:$0xff] %v544
      %590 = vst [vmem:[#allocation2 + $0x5a0] sm:$0xff] %v546
      %591 = vst [vmem:[#allocation2 + $0x5e8] sm:$0xff] %v547
      %592 = vst [vmem:[#allocation2 + $0x630] sm:$0xff] %v549
      %593 = vst [vmem:[#allocation2 + $0x678] sm:$0xff] %v550
      %594 = vst [vmem:[#allocation2 + $0x6c0] sm:$0xff] %v552
      %595 = vst [vmem:[#allocation2 + $0x708] sm:$0xff] %v553
      %596 = vst [vmem:[#allocation2 + $0x750] sm:$0xff] %v555
      %597 = vst [vmem:[#allocation2 + $0x798] sm:$0xff] %v556
      %598 = vst [vmem:[#allocation2 + $0x7e0] sm:$0xff] %v558
      %599 = vst [vmem:[#allocation2 + $0x828] sm:$0xff] %v559
      %600 = vst [vmem:[#allocation2 + $0x870] sm:$0xff] %v561
      %601 = vst [vmem:[#allocation2 + $0x8b8] sm:$0xff] %v562
      %602 = vst [vmem:[#allocation2 + $0x18] sm:$0xff] %v519
      %603 = vst [vmem:[#allocation2 + $0x60] sm:$0xff] %v520
      %604 = vst [vmem:[#allocation2 + $0xa8] sm:$0xff] %v522
      %605 = vst [vmem:[#allocation2 + $0xf0] sm:$0xff] %v523
      %606 = vst [vmem:[#allocation2 + $0x138] sm:$0xff] %v525
      %607 = vst [vmem:[#allocation2 + $0x180] sm:$0xff] %v526
      %608 = vst [vmem:[#allocation2 + $0x1c8] sm:$0xff] %v528
      %609 = vst [vmem:[#allocation2 + $0x210] sm:$0xff] %v529
      %610 = vst [vmem:[#allocation2 + $0x258] sm:$0xff] %v531
      %611 = vst [vmem:[#allocation2 + $0x2a0] sm:$0xff] %v532
      %612 = vst [vmem:[#allocation2 + $0x2e8] sm:$0xff] %v534
      %613 = vst [vmem:[#allocation2 + $0x330] sm:$0xff] %v535
      %614 = vst [vmem:[#allocation2 + $0x378] sm:$0xff] %v537
      %615 = vst [vmem:[#allocation2 + $0x3c0] sm:$0xff] %v538
      %616 = vst [vmem:[#allocation2 + $0x408] sm:$0xff] %v540
      %617 = vst [vmem:[#allocation2 + $0x450] sm:$0xff] %v541
      %618 = vst [vmem:[#allocation2 + $0x498] sm:$0xff] %v543
      %619 = vst [vmem:[#allocation2 + $0x4e0] sm:$0xff] %v544
      %620 = vst [vmem:[#allocation2 + $0x528] sm:$0xff] %v546
      %621 = vst [vmem:[#allocation2 + $0x570] sm:$0xff] %v547
      %622 = vst [vmem:[#allocation2 + $0x5b8] sm:$0xff] %v549
      %623 = vst [vmem:[#allocation2 + $0x600] sm:$0xff] %v550
      %624 = vst [vmem:[#allocation2 + $0x648] sm:$0xff] %v552
      %625 = vst [vmem:[#allocation2 + $0x690] sm:$0xff] %v553
      %626 = vst [vmem:[#allocation2 + $0x6d8] sm:$0xff] %v555
      %627 = vst [vmem:[#allocation2 + $0x720] sm:$0xff] %v556
      %628 = vst [vmem:[#allocation2 + $0x768] sm:$0xff] %v558
      %629 = vst [vmem:[#allocation2 + $0x7b0] sm:$0xff] %v559
      %630 = vst [vmem:[#allocation2 + $0x7f8] sm:$0xff] %v561
      %631 = vst [vmem:[#allocation2 + $0x840] sm:$0xff] %v562
      %632 = vst [vmem:[#allocation2 + $0x888] sm:$0xff] %v564
      %633 = vst [vmem:[#allocation2 + $0x8d0] sm:$0xff] %v565
      %634 = vst [vmem:[#allocation2 + $0x30] sm:$0xff] %v522
      %635 = vst [vmem:[#allocation2 + $0x78] sm:$0xff] %v523
      %636 = vst [vmem:[#allocation2 + $0xc0] sm:$0xff] %v525
      %637 = vst [vmem:[#allocation2 + $0x108] sm:$0xff] %v526
      %638 = vst [vmem:[#allocation2 + $0x150] sm:$0xff] %v528
      %639 = vst [vmem:[#allocation2 + $0x198] sm:$0xff] %v529
      %640 = vst [vmem:[#allocation2 + $0x1e0] sm:$0xff] %v531
      %641 = vst [vmem:[#allocation2 + $0x228] sm:$0xff] %v532
      %642 = vst [vmem:[#allocation2 + $0x270] sm:$0xff] %v534
      %643 = vst [vmem:[#allocation2 + $0x2b8] sm:$0xff] %v535
      %644 = vst [vmem:[#allocation2 + $0x300] sm:$0xff] %v537
      %645 = vst [vmem:[#allocation2 + $0x348] sm:$0xff] %v538
      %646 = vst [vmem:[#allocation2 + $0x390] sm:$0xff] %v540
      %647 = vst [vmem:[#allocation2 + $0x3d8] sm:$0xff] %v541
      %648 = vst [vmem:[#allocation2 + $0x420] sm:$0xff] %v543
      %649 = vst [vmem:[#allocation2 + $0x468] sm:$0xff] %v544
      %650 = vst [vmem:[#allocation2 + $0x4b0] sm:$0xff] %v546
      %651 = vst [vmem:[#allocation2 + $0x4f8] sm:$0xff] %v547
      %652 = vst [vmem:[#allocation2 + $0x540] sm:$0xff] %v549
      %653 = vst [vmem:[#allocation2 + $0x588] sm:$0xff] %v550
      %654 = vst [vmem:[#allocation2 + $0x5d0] sm:$0xff] %v552
      %655 = vst [vmem:[#allocation2 + $0x618] sm:$0xff] %v553
      %656 = vst [vmem:[#allocation2 + $0x660] sm:$0xff] %v555
      %657 = vst [vmem:[#allocation2 + $0x6a8] sm:$0xff] %v556
      %658 = vst [vmem:[#allocation2 + $0x6f0] sm:$0xff] %v558
      %659 = vst [vmem:[#allocation2 + $0x738] sm:$0xff] %v559
      %660 = vst [vmem:[#allocation2 + $0x780] sm:$0xff] %v561
      %661 = vst [vmem:[#allocation2 + $0x7c8] sm:$0xff] %v562
      %662 = vst [vmem:[#allocation2 + $0x810] sm:$0xff] %v564
      %663 = vst [vmem:[#allocation2 + $0x858] sm:$0xff] %v565
      %664 = vst [vmem:[#allocation2 + $0x8a0] sm:$0xff] %v567
      %665 = vst [vmem:[#allocation2 + $0x8e8] sm:$0xff] %v568
      %vm666 = vsmask.f32 3328
      %vm667 = vsmask.f32 7440
      %vm668 = vmor %vm666, %vm667
      %v670 = vshrl.u32 %v516, 16
      %v672 = vrot.slane %v670, 4
      %v673 = vshll.u32 %v516, 16
      %v675 = vrot.slane %v673, 5
      %v676 = vor.u32 %v672, %v675
      %v677 = vrot.slane %v676, 4
      %v679 = vshll.u32 %v517, 16
      %v681 = vrot.slane %v679, 5
      %v682 = vsel %vm668, %v677, %v681
      %v683 = vshrl.u32 %v517, 16
      %v685 = vrot.slane %v683, 4
      %v686 = vor.u32 %v685, %v681
      %v687 = vrot.slane %v686, 4
      %v689 = vshll.u32 %v518, 16
      %v691 = vrot.slane %v689, 5
      %v692 = vsel %vm668, %v687, %v691
      %v694 = vshrl.u32 %v519, 16
      %v696 = vrot.slane %v694, 4
      %v697 = vshll.u32 %v519, 16
      %v699 = vrot.slane %v697, 5
      %v700 = vor.u32 %v696, %v699
      %v701 = vrot.slane %v700, 4
      %v703 = vshll.u32 %v520, 16
      %v705 = vrot.slane %v703, 5
      %v706 = vsel %vm668, %v701, %v705
      %v707 = vshrl.u32 %v520, 16
      %v709 = vrot.slane %v707, 4
      %v710 = vor.u32 %v709, %v705
      %v711 = vrot.slane %v710, 4
      %v713 = vshll.u32 %v521, 16
      %v715 = vrot.slane %v713, 5
      %v716 = vsel %vm668, %v711, %v715
      %v718 = vshrl.u32 %v522, 16
      %v720 = vrot.slane %v718, 4
      %v721 = vshll.u32 %v522, 16
      %v723 = vrot.slane %v721, 5
      %v724 = vor.u32 %v720, %v723
      %v725 = vrot.slane %v724, 4
      %v727 = vshll.u32 %v523, 16
      %v729 = vrot.slane %v727, 5
      %v730 = vsel %vm668, %v725, %v729
      %v731 = vshrl.u32 %v523, 16
      %v733 = vrot.slane %v731, 4
      %v734 = vor.u32 %v733, %v729
      %v735 = vrot.slane %v734, 4
      %v737 = vshll.u32 %v524, 16
      %v739 = vrot.slane %v737, 5
      %v740 = vsel %vm668, %v735, %v739
      %v742 = vshrl.u32 %v525, 16
      %v744 = vrot.slane %v742, 4
      %v745 = vshll.u32 %v525, 16
      %v747 = vrot.slane %v745, 5
      %v748 = vor.u32 %v744, %v747
      %v749 = vrot.slane %v748, 4
      %v751 = vshll.u32 %v526, 16
      %v753 = vrot.slane %v751, 5
      %v754 = vsel %vm668, %v749, %v753
      %v755 = vshrl.u32 %v526, 16
      %v757 = vrot.slane %v755, 4
      %v758 = vor.u32 %v757, %v753
      %v759 = vrot.slane %v758, 4
      %v761 = vshll.u32 %v527, 16
      %v763 = vrot.slane %v761, 5
      %v764 = vsel %vm668, %v759, %v763
      %v766 = vshrl.u32 %v528, 16
      %v768 = vrot.slane %v766, 4
      %v769 = vshll.u32 %v528, 16
      %v771 = vrot.slane %v769, 5
      %v772 = vor.u32 %v768, %v771
      %v773 = vrot.slane %v772, 4
      %v775 = vshll.u32 %v529, 16
      %v777 = vrot.slane %v775, 5
      %v778 = vsel %vm668, %v773, %v777
      %v779 = vshrl.u32 %v529, 16
      %v781 = vrot.slane %v779, 4
      %v782 = vor.u32 %v781, %v777
      %v783 = vrot.slane %v782, 4
      %v785 = vshll.u32 %v530, 16
      %v787 = vrot.slane %v785, 5
      %v788 = vsel %vm668, %v783, %v787
      %v790 = vshrl.u32 %v531, 16
      %v792 = vrot.slane %v790, 4
      %v793 = vshll.u32 %v531, 16
      %v795 = vrot.slane %v793, 5
      %v796 = vor.u32 %v792, %v795
      %v797 = vrot.slane %v796, 4
      %v799 = vshll.u32 %v532, 16
      %v801 = vrot.slane %v799, 5
      %v802 = vsel %vm668, %v797, %v801
      %v803 = vshrl.u32 %v532, 16
      %v805 = vrot.slane %v803, 4
      %v806 = vor.u32 %v805, %v801
      %v807 = vrot.slane %v806, 4
      %v809 = vshll.u32 %v533, 16
      %v811 = vrot.slane %v809, 5
      %v812 = vsel %vm668, %v807, %v811
      %v814 = vshrl.u32 %v534, 16
      %v816 = vrot.slane %v814, 4
      %v817 = vshll.u32 %v534, 16
      %v819 = vrot.slane %v817, 5
      %v820 = vor.u32 %v816, %v819
      %v821 = vrot.slane %v820, 4
      %v823 = vshll.u32 %v535, 16
      %v825 = vrot.slane %v823, 5
      %v826 = vsel %vm668, %v821, %v825
      %v827 = vshrl.u32 %v535, 16
      %v829 = vrot.slane %v827, 4
      %v830 = vor.u32 %v829, %v825
      %v831 = vrot.slane %v830, 4
      %v833 = vshll.u32 %v536, 16
      %v835 = vrot.slane %v833, 5
      %v836 = vsel %vm668, %v831, %v835
      %v838 = vshrl.u32 %v537, 16
      %v840 = vrot.slane %v838, 4
      %v841 = vshll.u32 %v537, 16
      %v843 = vrot.slane %v841, 5
      %v844 = vor.u32 %v840, %v843
      %v845 = vrot.slane %v844, 4
      %v847 = vshll.u32 %v538, 16
      %v849 = vrot.slane %v847, 5
      %v850 = vsel %vm668, %v845, %v849
      %v851 = vshrl.u32 %v538, 16
      %v853 = vrot.slane %v851, 4
      %v854 = vor.u32 %v853, %v849
      %v855 = vrot.slane %v854, 4
      %v857 = vshll.u32 %v539, 16
      %v859 = vrot.slane %v857, 5
      %v860 = vsel %vm668, %v855, %v859
      %v862 = vshrl.u32 %v540, 16
      %v864 = vrot.slane %v862, 4
      %v865 = vshll.u32 %v540, 16
      %v867 = vrot.slane %v865, 5
      %v868 = vor.u32 %v864, %v867
      %v869 = vrot.slane %v868, 4
      %v871 = vshll.u32 %v541, 16
      %v873 = vrot.slane %v871, 5
      %v874 = vsel %vm668, %v869, %v873
      %v875 = vshrl.u32 %v541, 16
      %v877 = vrot.slane %v875, 4
      %v878 = vor.u32 %v877, %v873
      %v879 = vrot.slane %v878, 4
      %v881 = vshll.u32 %v542, 16
      %v883 = vrot.slane %v881, 5
      %v884 = vsel %vm668, %v879, %v883
      %v886 = vshrl.u32 %v543, 16
      %v888 = vrot.slane %v886, 4
      %v889 = vshll.u32 %v543, 16
      %v891 = vrot.slane %v889, 5
      %v892 = vor.u32 %v888, %v891
      %v893 = vrot.slane %v892, 4
      %v895 = vshll.u32 %v544, 16
      %v897 = vrot.slane %v895, 5
      %v898 = vsel %vm668, %v893, %v897
      %v899 = vshrl.u32 %v544, 16
      %v901 = vrot.slane %v899, 4
      %v902 = vor.u32 %v901, %v897
      %v903 = vrot.slane %v902, 4
      %v905 = vshll.u32 %v545, 16
      %v907 = vrot.slane %v905, 5
      %v908 = vsel %vm668, %v903, %v907
      %v910 = vshrl.u32 %v546, 16
      %v912 = vrot.slane %v910, 4
      %v913 = vshll.u32 %v546, 16
      %v915 = vrot.slane %v913, 5
      %v916 = vor.u32 %v912, %v915
      %v917 = vrot.slane %v916, 4
      %v919 = vshll.u32 %v547, 16
      %v921 = vrot.slane %v919, 5
      %v922 = vsel %vm668, %v917, %v921
      %v923 = vshrl.u32 %v547, 16
      %v925 = vrot.slane %v923, 4
      %v926 = vor.u32 %v925, %v921
      %v927 = vrot.slane %v926, 4
      %v929 = vshll.u32 %v548, 16
      %v931 = vrot.slane %v929, 5
      %v932 = vsel %vm668, %v927, %v931
      %v934 = vshrl.u32 %v549, 16
      %v936 = vrot.slane %v934, 4
      %v937 = vshll.u32 %v549, 16
      %v939 = vrot.slane %v937, 5
      %v940 = vor.u32 %v936, %v939
      %v941 = vrot.slane %v940, 4
      %v943 = vshll.u32 %v550, 16
      %v945 = vrot.slane %v943, 5
      %v946 = vsel %vm668, %v941, %v945
      %v947 = vshrl.u32 %v550, 16
      %v949 = vrot.slane %v947, 4
      %v950 = vor.u32 %v949, %v945
      %v951 = vrot.slane %v950, 4
      %v953 = vshll.u32 %v551, 16
      %v955 = vrot.slane %v953, 5
      %v956 = vsel %vm668, %v951, %v955
      %v958 = vshrl.u32 %v552, 16
      %v960 = vrot.slane %v958, 4
      %v961 = vshll.u32 %v552, 16
      %v963 = vrot.slane %v961, 5
      %v964 = vor.u32 %v960, %v963
      %v965 = vrot.slane %v964, 4
      %v967 = vshll.u32 %v553, 16
      %v969 = vrot.slane %v967, 5
      %v970 = vsel %vm668, %v965, %v969
      %v971 = vshrl.u32 %v553, 16
      %v973 = vrot.slane %v971, 4
      %v974 = vor.u32 %v973, %v969
      %v975 = vrot.slane %v974, 4
      %v977 = vshll.u32 %v554, 16
      %v979 = vrot.slane %v977, 5
      %v980 = vsel %vm668, %v975, %v979
      %v982 = vshrl.u32 %v555, 16
      %v984 = vrot.slane %v982, 4
      %v985 = vshll.u32 %v555, 16
      %v987 = vrot.slane %v985, 5
      %v988 = vor.u32 %v984, %v987
      %v989 = vrot.slane %v988, 4
      %v991 = vshll.u32 %v556, 16
      %v993 = vrot.slane %v991, 5
      %v994 = vsel %vm668, %v989, %v993
      %v995 = vshrl.u32 %v556, 16
      %v997 = vrot.slane %v995, 4
      %v998 = vor.u32 %v997, %v993
      %v999 = vrot.slane %v998, 4
      %v1001 = vshll.u32 %v557, 16
      %v1003 = vrot.slane %v1001, 5
      %v1004 = vsel %vm668, %v999, %v1003
      %v1006 = vshrl.u32 %v558, 16
      %v1008 = vrot.slane %v1006, 4
      %v1009 = vshll.u32 %v558, 16
      %v1011 = vrot.slane %v1009, 5
      %v1012 = vor.u32 %v1008, %v1011
      %v1013 = vrot.slane %v1012, 4
      %v1015 = vshll.u32 %v559, 16
      %v1017 = vrot.slane %v1015, 5
      %v1018 = vsel %vm668, %v1013, %v1017
      %v1019 = vshrl.u32 %v559, 16
      %v1021 = vrot.slane %v1019, 4
      %v1022 = vor.u32 %v1021, %v1017
      %v1023 = vrot.slane %v1022, 4
      %v1025 = vshll.u32 %v560, 16
      %v1027 = vrot.slane %v1025, 5
      %v1028 = vsel %vm668, %v1023, %v1027
      %v1030 = vshrl.u32 %v561, 16
      %v1032 = vrot.slane %v1030, 4
      %v1033 = vshll.u32 %v561, 16
      %v1035 = vrot.slane %v1033, 5
      %v1036 = vor.u32 %v1032, %v1035
      %v1037 = vrot.slane %v1036, 4
      %v1039 = vshll.u32 %v562, 16
      %v1041 = vrot.slane %v1039, 5
      %v1042 = vsel %vm668, %v1037, %v1041
      %v1043 = vshrl.u32 %v562, 16
      %v1045 = vrot.slane %v1043, 4
      %v1046 = vor.u32 %v1045, %v1041
      %v1047 = vrot.slane %v1046, 4
      %v1049 = vshll.u32 %v563, 16
      %v1051 = vrot.slane %v1049, 5
      %v1052 = vsel %vm668, %v1047, %v1051
      %1085 = vst [vmem:[#allocation2 + $0x8] sm:$0xff] %v682
      %1086 = vst [vmem:[#allocation2 + $0x50] sm:$0xff] %v692
      %1087 = vst [vmem:[#allocation2 + $0x98] sm:$0xff] %v706
      %1088 = vst [vmem:[#allocation2 + $0xe0] sm:$0xff] %v716
      %1089 = vst [vmem:[#allocation2 + $0x128] sm:$0xff] %v730
      %1090 = vst [vmem:[#allocation2 + $0x170] sm:$0xff] %v740
      %1091 = vst [vmem:[#allocation2 + $0x1b8] sm:$0xff] %v754
      %1092 = vst [vmem:[#allocation2 + $0x200] sm:$0xff] %v764
      %1093 = vst [vmem:[#allocation2 + $0x248] sm:$0xff] %v778
      %1094 = vst [vmem:[#allocation2 + $0x290] sm:$0xff] %v788
      %1095 = vst [vmem:[#allocation2 + $0x2d8] sm:$0xff] %v802
      %1096 = vst [vmem:[#allocation2 + $0x320] sm:$0xff] %v812
      %1097 = vst [vmem:[#allocation2 + $0x368] sm:$0xff] %v826
      %1098 = vst [vmem:[#allocation2 + $0x3b0] sm:$0xff] %v836
      %1099 = vst [vmem:[#allocation2 + $0x3f8] sm:$0xff] %v850
      %1100 = vst [vmem:[#allocation2 + $0x440] sm:$0xff] %v860
      %1101 = vst [vmem:[#allocation2 + $0x488] sm:$0xff] %v874
      %1102 = vst [vmem:[#allocation2 + $0x4d0] sm:$0xff] %v884
      %1103 = vst [vmem:[#allocation2 + $0x518] sm:$0xff] %v898
      %1104 = vst [vmem:[#allocation2 + $0x560] sm:$0xff] %v908
      %1105 = vst [vmem:[#allocation2 + $0x5a8] sm:$0xff] %v922
      %1106 = vst [vmem:[#allocation2 + $0x5f0] sm:$0xff] %v932
      %1107 = vst [vmem:[#allocation2 + $0x638] sm:$0xff] %v946
      %1108 = vst [vmem:[#allocation2 + $0x680] sm:$0xff] %v956
      %1109 = vst [vmem:[#allocation2 + $0x6c8] sm:$0xff] %v970
      %1110 = vst [vmem:[#allocation2 + $0x710] sm:$0xff] %v980
      %1111 = vst [vmem:[#allocation2 + $0x758] sm:$0xff] %v994
      %1112 = vst [vmem:[#allocation2 + $0x7a0] sm:$0xff] %v1004
      %1113 = vst [vmem:[#allocation2 + $0x7e8] sm:$0xff] %v1018
      %1114 = vst [vmem:[#allocation2 + $0x830] sm:$0xff] %v1028
      %1115 = vst [vmem:[#allocation2 + $0x878] sm:$0xff] %v1042
      %1116 = vst [vmem:[#allocation2 + $0x8c0] sm:$0xff] %v1052
      %v1118 = vshrl.u32 %v564, 16
      %v1120 = vrot.slane %v1118, 4
      %v1121 = vshll.u32 %v564, 16
      %v1123 = vrot.slane %v1121, 5
      %v1124 = vor.u32 %v1120, %v1123
      %v1125 = vrot.slane %v1124, 4
      %v1127 = vshll.u32 %v565, 16
      %v1129 = vrot.slane %v1127, 5
      %v1130 = vsel %vm668, %v1125, %v1129
      %v1131 = vshrl.u32 %v565, 16
      %v1133 = vrot.slane %v1131, 4
      %v1134 = vor.u32 %v1133, %v1129
      %v1135 = vrot.slane %v1134, 4
      %v1137 = vshll.u32 %v566, 16
      %v1139 = vrot.slane %v1137, 5
      %v1140 = vsel %vm668, %v1135, %v1139
      %1143 = vst [vmem:[#allocation2 + $0x20] sm:$0xff] %v706
      %1144 = vst [vmem:[#allocation2 + $0x68] sm:$0xff] %v716
      %1145 = vst [vmem:[#allocation2 + $0xb0] sm:$0xff] %v730
      %1146 = vst [vmem:[#allocation2 + $0xf8] sm:$0xff] %v740
      %1147 = vst [vmem:[#allocation2 + $0x140] sm:$0xff] %v754
      %1148 = vst [vmem:[#allocation2 + $0x188] sm:$0xff] %v764
      %1149 = vst [vmem:[#allocation2 + $0x1d0] sm:$0xff] %v778
      %1150 = vst [vmem:[#allocation2 + $0x218] sm:$0xff] %v788
      %1151 = vst [vmem:[#allocation2 + $0x260] sm:$0xff] %v802
      %1152 = vst [vmem:[#allocation2 + $0x2a8] sm:$0xff] %v812
      %1153 = vst [vmem:[#allocation2 + $0x2f0] sm:$0xff] %v826
      %1154 = vst [vmem:[#allocation2 + $0x338] sm:$0xff] %v836
      %1155 = vst [vmem:[#allocation2 + $0x380] sm:$0xff] %v850
      %1156 = vst [vmem:[#allocation2 + $0x3c8] sm:$0xff] %v860
      %1157 = vst [vmem:[#allocation2 + $0x410] sm:$0xff] %v874
      %1158 = vst [vmem:[#allocation2 + $0x458] sm:$0xff] %v884
      %1159 = vst [vmem:[#allocation2 + $0x4a0] sm:$0xff] %v898
      %1160 = vst [vmem:[#allocation2 + $0x4e8] sm:$0xff] %v908
      %1161 = vst [vmem:[#allocation2 + $0x530] sm:$0xff] %v922
      %1162 = vst [vmem:[#allocation2 + $0x578] sm:$0xff] %v932
      %1163 = vst [vmem:[#allocation2 + $0x5c0] sm:$0xff] %v946
      %1164 = vst [vmem:[#allocation2 + $0x608] sm:$0xff] %v956
      %1165 = vst [vmem:[#allocation2 + $0x650] sm:$0xff] %v970
      %1166 = vst [vmem:[#allocation2 + $0x698] sm:$0xff] %v980
      %1167 = vst [vmem:[#allocation2 + $0x6e0] sm:$0xff] %v994
      %1168 = vst [vmem:[#allocation2 + $0x728] sm:$0xff] %v1004
      %1169 = vst [vmem:[#allocation2 + $0x770] sm:$0xff] %v1018
      %1170 = vst [vmem:[#allocation2 + $0x7b8] sm:$0xff] %v1028
      %1171 = vst [vmem:[#allocation2 + $0x800] sm:$0xff] %v1042
      %1172 = vst [vmem:[#allocation2 + $0x848] sm:$0xff] %v1052
      %1173 = vst [vmem:[#allocation2 + $0x890] sm:$0xff] %v1130
      %1174 = vst [vmem:[#allocation2 + $0x8d8] sm:$0xff] %v1140
      %v1176 = vshrl.u32 %v567, 16
      %v1178 = vrot.slane %v1176, 4
      %v1179 = vshll.u32 %v567, 16
      %v1181 = vrot.slane %v1179, 5
      %v1182 = vor.u32 %v1178, %v1181
      %v1183 = vrot.slane %v1182, 4
      %v1185 = vshll.u32 %v568, 16
      %v1187 = vrot.slane %v1185, 5
      %v1188 = vsel %vm668, %v1183, %v1187
      %v1189 = vshrl.u32 %v568, 16
      %v1191 = vrot.slane %v1189, 4
      %v1192 = vor.u32 %v1191, %v1187
      %v1193 = vrot.slane %v1192, 4
      %v1195 = vshll.u32 %v569, 16
      %v1197 = vrot.slane %v1195, 5
      %v1198 = vsel %vm668, %v1193, %v1197
      %1201 = vst [vmem:[#allocation2 + $0x38] sm:$0xff] %v730
      %1202 = vst [vmem:[#allocation2 + $0x80] sm:$0xff] %v740
      %1203 = vst [vmem:[#allocation2 + $0xc8] sm:$0xff] %v754
      %1204 = vst [vmem:[#allocation2 + $0x110] sm:$0xff] %v764
      %1205 = vst [vmem:[#allocation2 + $0x158] sm:$0xff] %v778
      %1206 = vst [vmem:[#allocation2 + $0x1a0] sm:$0xff] %v788
      %1207 = vst [vmem:[#allocation2 + $0x1e8] sm:$0xff] %v802
      %1208 = vst [vmem:[#allocation2 + $0x230] sm:$0xff] %v812
      %1209 = vst [vmem:[#allocation2 + $0x278] sm:$0xff] %v826
      %1210 = vst [vmem:[#allocation2 + $0x2c0] sm:$0xff] %v836
      %1211 = vst [vmem:[#allocation2 + $0x308] sm:$0xff] %v850
      %1212 = vst [vmem:[#allocation2 + $0x350] sm:$0xff] %v860
      %1213 = vst [vmem:[#allocation2 + $0x398] sm:$0xff] %v874
      %1214 = vst [vmem:[#allocation2 + $0x3e0] sm:$0xff] %v884
      %1215 = vst [vmem:[#allocation2 + $0x428] sm:$0xff] %v898
      %1216 = vst [vmem:[#allocation2 + $0x470] sm:$0xff] %v908
      %1217 = vst [vmem:[#allocation2 + $0x4b8] sm:$0xff] %v922
      %1218 = vst [vmem:[#allocation2 + $0x500] sm:$0xff] %v932
      %1219 = vst [vmem:[#allocation2 + $0x548] sm:$0xff] %v946
      %1220 = vst [vmem:[#allocation2 + $0x590] sm:$0xff] %v956
      %1221 = vst [vmem:[#allocation2 + $0x5d8] sm:$0xff] %v970
      %1222 = vst [vmem:[#allocation2 + $0x620] sm:$0xff] %v980
      %1223 = vst [vmem:[#allocation2 + $0x668] sm:$0xff] %v994
      %1224 = vst [vmem:[#allocation2 + $0x6b0] sm:$0xff] %v1004
      %1225 = vst [vmem:[#allocation2 + $0x6f8] sm:$0xff] %v1018
      %1226 = vst [vmem:[#allocation2 + $0x740] sm:$0xff] %v1028
      %1227 = vst [vmem:[#allocation2 + $0x788] sm:$0xff] %v1042
      %1228 = vst [vmem:[#allocation2 + $0x7d0] sm:$0xff] %v1052
      %1229 = vst [vmem:[#allocation2 + $0x818] sm:$0xff] %v1130
      %1230 = vst [vmem:[#allocation2 + $0x860] sm:$0xff] %v1140
      %1231 = vst [vmem:[#allocation2 + $0x8a8] sm:$0xff] %v1188
      %1232 = vst [vmem:[#allocation2 + $0x8f0] sm:$0xff] %v1198
      %vm1281 = vcmask 1042432
      %vm1282 = vcmask 1046532
      %vm1283 = vmor %vm1281, %vm1282
      %v1284 = vrot.slane %v516, 5
      %v1285 = vrot.slane %v1284, 4
      %v1286 = vrot.slane %v517, 5
      %v1287 = vsel %vm1283, %v1285, %v1286
      %v1288 = vrot.slane %v1286, 4
      %v1289 = vrot.slane %v518, 5
      %v1290 = vsel %vm1283, %v1288, %v1289
      %v1291 = vrot.slane %v519, 5
      %v1292 = vrot.slane %v1291, 4
      %v1293 = vrot.slane %v520, 5
      %v1294 = vsel %vm1283, %v1292, %v1293
      %v1295 = vrot.slane %v1293, 4
      %v1296 = vrot.slane %v521, 5
      %v1297 = vsel %vm1283, %v1295, %v1296
      %v1298 = vrot.slane %v522, 5
      %v1299 = vrot.slane %v1298, 4
      %v1300 = vrot.slane %v523, 5
      %v1301 = vsel %vm1283, %v1299, %v1300
      %v1302 = vrot.slane %v1300, 4
      %v1303 = vrot.slane %v524, 5
      %v1304 = vsel %vm1283, %v1302, %v1303
      %v1305 = vrot.slane %v525, 5
      %v1306 = vrot.slane %v1305, 4
      %v1307 = vrot.slane %v526, 5
      %v1308 = vsel %vm1283, %v1306, %v1307
      %v1309 = vrot.slane %v1307, 4
      %v1310 = vrot.slane %v527, 5
      %v1311 = vsel %vm1283, %v1309, %v1310
      %v1312 = vrot.slane %v528, 5
      %v1313 = vrot.slane %v1312, 4
      %v1314 = vrot.slane %v529, 5
      %v1315 = vsel %vm1283, %v1313, %v1314
      %v1316 = vrot.slane %v1314, 4
      %v1317 = vrot.slane %v530, 5
      %v1318 = vsel %vm1283, %v1316, %v1317
      %v1319 = vrot.slane %v531, 5
      %v1320 = vrot.slane %v1319, 4
      %v1321 = vrot.slane %v532, 5
      %v1322 = vsel %vm1283, %v1320, %v1321
      %v1323 = vrot.slane %v1321, 4
      %v1324 = vrot.slane %v533, 5
      %v1325 = vsel %vm1283, %v1323, %v1324
      %v1326 = vrot.slane %v534, 5
      %v1327 = vrot.slane %v1326, 4
      %v1328 = vrot.slane %v535, 5
      %v1329 = vsel %vm1283, %v1327, %v1328
      %v1330 = vrot.slane %v1328, 4
      %v1331 = vrot.slane %v536, 5
      %v1332 = vsel %vm1283, %v1330, %v1331
      %v1333 = vrot.slane %v537, 5
      %v1334 = vrot.slane %v1333, 4
      %v1335 = vrot.slane %v538, 5
      %v1336 = vsel %vm1283, %v1334, %v1335
      %v1337 = vrot.slane %v1335, 4
      %v1338 = vrot.slane %v539, 5
      %v1339 = vsel %vm1283, %v1337, %v1338
      %v1340 = vrot.slane %v540, 5
      %v1341 = vrot.slane %v1340, 4
      %v1342 = vrot.slane %v541, 5
      %v1343 = vsel %vm1283, %v1341, %v1342
      %v1344 = vrot.slane %v1342, 4
      %v1345 = vrot.slane %v542, 5
      %v1346 = vsel %vm1283, %v1344, %v1345
      %v1347 = vrot.slane %v543, 5
      %v1348 = vrot.slane %v1347, 4
      %v1349 = vrot.slane %v544, 5
      %v1350 = vsel %vm1283, %v1348, %v1349
      %v1351 = vrot.slane %v1349, 4
      %v1352 = vrot.slane %v545, 5
      %v1353 = vsel %vm1283, %v1351, %v1352
      %v1354 = vrot.slane %v546, 5
      %v1355 = vrot.slane %v1354, 4
      %v1356 = vrot.slane %v547, 5
      %v1357 = vsel %vm1283, %v1355, %v1356
      %v1358 = vrot.slane %v1356, 4
      %v1359 = vrot.slane %v548, 5
      %v1360 = vsel %vm1283, %v1358, %v1359
      %v1361 = vrot.slane %v549, 5
      %v1362 = vrot.slane %v1361, 4
      %v1363 = vrot.slane %v550, 5
      %v1364 = vsel %vm1283, %v1362, %v1363
      %v1365 = vrot.slane %v1363, 4
      %v1366 = vrot.slane %v551, 5
      %v1367 = vsel %vm1283, %v1365, %v1366
      %v1368 = vrot.slane %v552, 5
      %v1369 = vrot.slane %v1368, 4
      %v1370 = vrot.slane %v553, 5
      %v1371 = vsel %vm1283, %v1369, %v1370
      %v1372 = vrot.slane %v1370, 4
      %v1373 = vrot.slane %v554, 5
      %v1374 = vsel %vm1283, %v1372, %v1373
      %v1375 = vrot.slane %v555, 5
      %v1376 = vrot.slane %v1375, 4
      %v1377 = vrot.slane %v556, 5
      %v1378 = vsel %vm1283, %v1376, %v1377
      %v1379 = vrot.slane %v1377, 4
      %v1380 = vrot.slane %v557, 5
      %v1381 = vsel %vm1283, %v1379, %v1380
      %v1382 = vrot.slane %v558, 5
      %v1383 = vrot.slane %v1382, 4
      %v1384 = vrot.slane %v559, 5
      %v1385 = vsel %vm1283, %v1383, %v1384
      %v1386 = vrot.slane %v1384, 4
      %v1387 = vrot.slane %v560, 5
      %v1388 = vsel %vm1283, %v1386, %v1387
      %v1389 = vrot.slane %v561, 5
      %v1390 = vrot.slane %v1389, 4
      %v1391 = vrot.slane %v562, 5
      %v1392 = vsel %vm1283, %v1390, %v1391
      %v1393 = vrot.slane %v1391, 4
      %v1394 = vrot.slane %v563, 5
      %v1395 = vsel %vm1283, %v1393, %v1394
      %1428 = vst [vmem:[#allocation2 + $0x10] sm:$0xff] %v1287
      %1429 = vst [vmem:[#allocation2 + $0x58] sm:$0xff] %v1290
      %1430 = vst [vmem:[#allocation2 + $0xa0] sm:$0xff] %v1294
      %1431 = vst [vmem:[#allocation2 + $0xe8] sm:$0xff] %v1297
      %1432 = vst [vmem:[#allocation2 + $0x130] sm:$0xff] %v1301
      %1433 = vst [vmem:[#allocation2 + $0x178] sm:$0xff] %v1304
      %1434 = vst [vmem:[#allocation2 + $0x1c0] sm:$0xff] %v1308
      %1435 = vst [vmem:[#allocation2 + $0x208] sm:$0xff] %v1311
      %1436 = vst [vmem:[#allocation2 + $0x250] sm:$0xff] %v1315
      %1437 = vst [vmem:[#allocation2 + $0x298] sm:$0xff] %v1318
      %1438 = vst [vmem:[#allocation2 + $0x2e0] sm:$0xff] %v1322
      %1439 = vst [vmem:[#allocation2 + $0x328] sm:$0xff] %v1325
      %1440 = vst [vmem:[#allocation2 + $0x370] sm:$0xff] %v1329
      %1441 = vst [vmem:[#allocation2 + $0x3b8] sm:$0xff] %v1332
      %1442 = vst [vmem:[#allocation2 + $0x400] sm:$0xff] %v1336
      %1443 = vst [vmem:[#allocation2 + $0x448] sm:$0xff] %v1339
      %1444 = vst [vmem:[#allocation2 + $0x490] sm:$0xff] %v1343
      %1445 = vst [vmem:[#allocation2 + $0x4d8] sm:$0xff] %v1346
      %1446 = vst [vmem:[#allocation2 + $0x520] sm:$0xff] %v1350
      %1447 = vst [vmem:[#allocation2 + $0x568] sm:$0xff] %v1353
      %1448 = vst [vmem:[#allocation2 + $0x5b0] sm:$0xff] %v1357
      %1449 = vst [vmem:[#allocation2 + $0x5f8] sm:$0xff] %v1360
      %1450 = vst [vmem:[#allocation2 + $0x640] sm:$0xff] %v1364
      %1451 = vst [vmem:[#allocation2 + $0x688] sm:$0xff] %v1367
      %1452 = vst [vmem:[#allocation2 + $0x6d0] sm:$0xff] %v1371
      %1453 = vst [vmem:[#allocation2 + $0x718] sm:$0xff] %v1374
      %1454 = vst [vmem:[#allocation2 + $0x760] sm:$0xff] %v1378
      %1455 = vst [vmem:[#allocation2 + $0x7a8] sm:$0xff] %v1381
      %1456 = vst [vmem:[#allocation2 + $0x7f0] sm:$0xff] %v1385
      %1457 = vst [vmem:[#allocation2 + $0x838] sm:$0xff] %v1388
      %1458 = vst [vmem:[#allocation2 + $0x880] sm:$0xff] %v1392
      %1459 = vst [vmem:[#allocation2 + $0x8c8] sm:$0xff] %v1395
      %v1463 = vrot.slane %v564, 5
      %v1464 = vrot.slane %v1463, 4
      %v1465 = vrot.slane %v565, 5
      %v1466 = vsel %vm1283, %v1464, %v1465
      %v1467 = vrot.slane %v1465, 4
      %v1468 = vrot.slane %v566, 5
      %v1469 = vsel %vm1283, %v1467, %v1468
      %1472 = vst [vmem:[#allocation2 + $0x28] sm:$0xff] %v1294
      %1473 = vst [vmem:[#allocation2 + $0x70] sm:$0xff] %v1297
      %1474 = vst [vmem:[#allocation2 + $0xb8] sm:$0xff] %v1301
      %1475 = vst [vmem:[#allocation2 + $0x100] sm:$0xff] %v1304
      %1476 = vst [vmem:[#allocation2 + $0x148] sm:$0xff] %v1308
      %1477 = vst [vmem:[#allocation2 + $0x190] sm:$0xff] %v1311
      %1478 = vst [vmem:[#allocation2 + $0x1d8] sm:$0xff] %v1315
      %1479 = vst [vmem:[#allocation2 + $0x220] sm:$0xff] %v1318
      %1480 = vst [vmem:[#allocation2 + $0x268] sm:$0xff] %v1322
      %1481 = vst [vmem:[#allocation2 + $0x2b0] sm:$0xff] %v1325
      %1482 = vst [vmem:[#allocation2 + $0x2f8] sm:$0xff] %v1329
      %1483 = vst [vmem:[#allocation2 + $0x340] sm:$0xff] %v1332
      %1484 = vst [vmem:[#allocation2 + $0x388] sm:$0xff] %v1336
      %1485 = vst [vmem:[#allocation2 + $0x3d0] sm:$0xff] %v1339
      %1486 = vst [vmem:[#allocation2 + $0x418] sm:$0xff] %v1343
      %1487 = vst [vmem:[#allocation2 + $0x460] sm:$0xff] %v1346
      %1488 = vst [vmem:[#allocation2 + $0x4a8] sm:$0xff] %v1350
      %1489 = vst [vmem:[#allocation2 + $0x4f0] sm:$0xff] %v1353
      %1490 = vst [vmem:[#allocation2 + $0x538] sm:$0xff] %v1357
      %1491 = vst [vmem:[#allocation2 + $0x580] sm:$0xff] %v1360
      %1492 = vst [vmem:[#allocation2 + $0x5c8] sm:$0xff] %v1364
      %1493 = vst [vmem:[#allocation2 + $0x610] sm:$0xff] %v1367
      %1494 = vst [vmem:[#allocation2 + $0x658] sm:$0xff] %v1371
      %1495 = vst [vmem:[#allocation2 + $0x6a0] sm:$0xff] %v1374
      %1496 = vst [vmem:[#allocation2 + $0x6e8] sm:$0xff] %v1378
      %1497 = vst [vmem:[#allocation2 + $0x730] sm:$0xff] %v1381
      %1498 = vst [vmem:[#allocation2 + $0x778] sm:$0xff] %v1385
      %1499 = vst [vmem:[#allocation2 + $0x7c0] sm:$0xff] %v1388
      %1500 = vst [vmem:[#allocation2 + $0x808] sm:$0xff] %v1392
      %1501 = vst [vmem:[#allocation2 + $0x850] sm:$0xff] %v1395
      %1502 = vst [vmem:[#allocation2 + $0x898] sm:$0xff] %v1466
      %1503 = vst [vmem:[#allocation2 + $0x8e0] sm:$0xff] %v1469
      %v1507 = vrot.slane %v567, 5
      %v1508 = vrot.slane %v1507, 4
      %v1509 = vrot.slane %v568, 5
      %v1510 = vsel %vm1283, %v1508, %v1509
      %v1511 = vrot.slane %v1509, 4
      %v1512 = vrot.slane %v569, 5
      %v1513 = vsel %vm1283, %v1511, %v1512
      %1516 = vst [vmem:[#allocation2 + $0x40] sm:$0xff] %v1301
      %1517 = vst [vmem:[#allocation2 + $0x88] sm:$0xff] %v1304
      %1518 = vst [vmem:[#allocation2 + $0xd0] sm:$0xff] %v1308
      %1519 = vst [vmem:[#allocation2 + $0x118] sm:$0xff] %v1311
      %1520 = vst [vmem:[#allocation2 + $0x160] sm:$0xff] %v1315
      %1521 = vst [vmem:[#allocation2 + $0x1a8] sm:$0xff] %v1318
      %1522 = vst [vmem:[#allocation2 + $0x1f0] sm:$0xff] %v1322
      %1523 = vst [vmem:[#allocation2 + $0x238] sm:$0xff] %v1325
      %1524 = vst [vmem:[#allocation2 + $0x280] sm:$0xff] %v1329
      %1525 = vst [vmem:[#allocation2 + $0x2c8] sm:$0xff] %v1332
      %1526 = vst [vmem:[#allocation2 + $0x310] sm:$0xff] %v1336
      %1527 = vst [vmem:[#allocation2 + $0x358] sm:$0xff] %v1339
      %1528 = vst [vmem:[#allocation2 + $0x3a0] sm:$0xff] %v1343
      %1529 = vst [vmem:[#allocation2 + $0x3e8] sm:$0xff] %v1346
      %1530 = vst [vmem:[#allocation2 + $0x430] sm:$0xff] %v1350
      %1531 = vst [vmem:[#allocation2 + $0x478] sm:$0xff] %v1353
      %1532 = vst [vmem:[#allocation2 + $0x4c0] sm:$0xff] %v1357
      %1533 = vst [vmem:[#allocation2 + $0x508] sm:$0xff] %v1360
      %1534 = vst [vmem:[#allocation2 + $0x550] sm:$0xff] %v1364
      %1535 = vst [vmem:[#allocation2 + $0x598] sm:$0xff] %v1367
      %1536 = vst [vmem:[#allocation2 + $0x5e0] sm:$0xff] %v1371
      %1537 = vst [vmem:[#allocation2 + $0x628] sm:$0xff] %v1374
      %1538 = vst [vmem:[#allocation2 + $0x670] sm:$0xff] %v1378
      %1539 = vst [vmem:[#allocation2 + $0x6b8] sm:$0xff] %v1381
      %1540 = vst [vmem:[#allocation2 + $0x700] sm:$0xff] %v1385
      %1541 = vst [vmem:[#allocation2 + $0x748] sm:$0xff] %v1388
      %1542 = vst [vmem:[#allocation2 + $0x790] sm:$0xff] %v1392
      %1543 = vst [vmem:[#allocation2 + $0x7d8] sm:$0xff] %v1395
      %1544 = vst [vmem:[#allocation2 + $0x820] sm:$0xff] %v1466
      %1545 = vst [vmem:[#allocation2 + $0x868] sm:$0xff] %v1469
      %1546 = vst [vmem:[#allocation2 + $0x8b0] sm:$0xff] %v1510
      %1547 = vst [vmem:[#allocation2 + $0x8f8] sm:$0xff] %v1513
      %v1548 = vld [vmem:[#allocation2] sm:$0xff]
      %v1549 = vld [vmem:[#allocation2 + $0x8] sm:$0xff]
      %v1550 = vld [vmem:[#allocation2 + $0x10] sm:$0xff]
      %v1551 = vld [vmem:[#allocation2 + $0x18] sm:$0xff]
      %v1552 = vld [vmem:[#allocation2 + $0x20] sm:$0xff]
      %v1553 = vld [vmem:[#allocation2 + $0x28] sm:$0xff]
      %v1554 = vld [vmem:[#allocation2 + $0x30] sm:$0xff]
      %v1555 = vld [vmem:[#allocation2 + $0x38] sm:$0xff]
      %v1556 = vld [vmem:[#allocation2 + $0x40] sm:$0xff]
      %v1557 = vld [vmem:[#allocation2 + $0x48] sm:$0xff]
      %v1558 = vld [vmem:[#allocation2 + $0x50] sm:$0xff]
      %v1559 = vld [vmem:[#allocation2 + $0x58] sm:$0xff]
      %v1560 = vld [vmem:[#allocation2 + $0x60] sm:$0xff]
      %v1561 = vld [vmem:[#allocation2 + $0x68] sm:$0xff]
      %v1562 = vld [vmem:[#allocation2 + $0x70] sm:$0xff]
      %v1563 = vld [vmem:[#allocation2 + $0x78] sm:$0xff]
      %v1564 = vld [vmem:[#allocation2 + $0x80] sm:$0xff]
      %v1565 = vld [vmem:[#allocation2 + $0x88] sm:$0xff]
      %v1566 = vld [vmem:[#allocation2 + $0x90] sm:$0xff]
      %v1567 = vld [vmem:[#allocation2 + $0x98] sm:$0xff]
      %v1568 = vld [vmem:[#allocation2 + $0xa0] sm:$0xff]
      %v1569 = vld [vmem:[#allocation2 + $0xa8] sm:$0xff]
      %v1570 = vld [vmem:[#allocation2 + $0xb0] sm:$0xff]
      %v1571 = vld [vmem:[#allocation2 + $0xb8] sm:$0xff]
      %v1572 = vld [vmem:[#allocation2 + $0xc0] sm:$0xff]
      %v1573 = vld [vmem:[#allocation2 + $0xc8] sm:$0xff]
      %v1574 = vld [vmem:[#allocation2 + $0xd0] sm:$0xff]
      %v1575 = vld [vmem:[#allocation2 + $0xd8] sm:$0xff]
      %v1576 = vld [vmem:[#allocation2 + $0xe0] sm:$0xff]
      %v1577 = vld [vmem:[#allocation2 + $0xe8] sm:$0xff]
      %v1578 = vld [vmem:[#allocation2 + $0xf0] sm:$0xff]
      %v1579 = vld [vmem:[#allocation2 + $0xf8] sm:$0xff]
      %v1580 = vld [vmem:[#allocation2 + $0x100] sm:$0xff]
      %v1581 = vld [vmem:[#allocation2 + $0x108] sm:$0xff]
      %v1582 = vld [vmem:[#allocation2 + $0x110] sm:$0xff]
      %v1583 = vld [vmem:[#allocation2 + $0x118] sm:$0xff]
      %v1584 = vld [vmem:[#allocation2 + $0x120] sm:$0xff]
      %v1585 = vld [vmem:[#allocation2 + $0x128] sm:$0xff]
      %v1586 = vld [vmem:[#allocation2 + $0x130] sm:$0xff]
      %v1587 = vld [vmem:[#allocation2 + $0x138] sm:$0xff]
      %v1588 = vld [vmem:[#allocation2 + $0x140] sm:$0xff]
      %v1589 = vld [vmem:[#allocation2 + $0x148] sm:$0xff]
      %v1590 = vld [vmem:[#allocation2 + $0x150] sm:$0xff]
      %v1591 = vld [vmem:[#allocation2 + $0x158] sm:$0xff]
      %v1592 = vld [vmem:[#allocation2 + $0x160] sm:$0xff]
      %v1593 = vld [vmem:[#allocation2 + $0x168] sm:$0xff]
      %v1594 = vld [vmem:[#allocation2 + $0x170] sm:$0xff]
      %v1595 = vld [vmem:[#allocation2 + $0x178] sm:$0xff]
      %v1596 = vld [vmem:[#allocation2 + $0x180] sm:$0xff]
      %v1597 = vld [vmem:[#allocation2 + $0x188] sm:$0xff]
      %v1598 = vld [vmem:[#allocation2 + $0x190] sm:$0xff]
      %v1599 = vld [vmem:[#allocation2 + $0x198] sm:$0xff]
      %v1600 = vld [vmem:[#allocation2 + $0x1a0] sm:$0xff]
      %v1601 = vld [vmem:[#allocation2 + $0x1a8] sm:$0xff]
      %v1602 = vld [vmem:[#allocation2 + $0x1b0] sm:$0xff]
      %v1603 = vld [vmem:[#allocation2 + $0x1b8] sm:$0xff]
      %v1604 = vld [vmem:[#allocation2 + $0x1c0] sm:$0xff]
      %v1605 = vld [vmem:[#allocation2 + $0x1c8] sm:$0xff]
      %v1606 = vld [vmem:[#allocation2 + $0x1d0] sm:$0xff]
      %v1607 = vld [vmem:[#allocation2 + $0x1d8] sm:$0xff]
      %v1608 = vld [vmem:[#allocation2 + $0x1e0] sm:$0xff]
      %v1609 = vld [vmem:[#allocation2 + $0x1e8] sm:$0xff]
      %v1610 = vld [vmem:[#allocation2 + $0x1f0] sm:$0xff]
      %v1611 = vld [vmem:[#allocation2 + $0x1f8] sm:$0xff]
      %v1612 = vld [vmem:[#allocation2 + $0x200] sm:$0xff]
      %v1613 = vld [vmem:[#allocation2 + $0x208] sm:$0xff]
      %v1614 = vld [vmem:[#allocation2 + $0x210] sm:$0xff]
      %v1615 = vld [vmem:[#allocation2 + $0x218] sm:$0xff]
      %v1616 = vld [vmem:[#allocation2 + $0x220] sm:$0xff]
      %v1617 = vld [vmem:[#allocation2 + $0x228] sm:$0xff]
      %v1618 = vld [vmem:[#allocation2 + $0x230] sm:$0xff]
      %v1619 = vld [vmem:[#allocation2 + $0x238] sm:$0xff]
      %v1620 = vld [vmem:[#allocation2 + $0x240] sm:$0xff]
      %v1621 = vld [vmem:[#allocation2 + $0x248] sm:$0xff]
      %v1622 = vld [vmem:[#allocation2 + $0x250] sm:$0xff]
      %v1623 = vld [vmem:[#allocation2 + $0x258] sm:$0xff]
      %v1624 = vld [vmem:[#allocation2 + $0x260] sm:$0xff]
      %v1625 = vld [vmem:[#allocation2 + $0x268] sm:$0xff]
      %v1626 = vld [vmem:[#allocation2 + $0x270] sm:$0xff]
      %v1627 = vld [vmem:[#allocation2 + $0x278] sm:$0xff]
      %v1628 = vld [vmem:[#allocation2 + $0x280] sm:$0xff]
      %v1629 = vld [vmem:[#allocation2 + $0x288] sm:$0xff]
      %v1630 = vld [vmem:[#allocation2 + $0x290] sm:$0xff]
      %v1631 = vld [vmem:[#allocation2 + $0x298] sm:$0xff]
      %v1632 = vld [vmem:[#allocation2 + $0x2a0] sm:$0xff]
      %v1633 = vld [vmem:[#allocation2 + $0x2a8] sm:$0xff]
      %v1634 = vld [vmem:[#allocation2 + $0x2b0] sm:$0xff]
      %v1635 = vld [vmem:[#allocation2 + $0x2b8] sm:$0xff]
      %v1636 = vld [vmem:[#allocation2 + $0x2c0] sm:$0xff]
      %v1637 = vld [vmem:[#allocation2 + $0x2c8] sm:$0xff]
      %v1638 = vld [vmem:[#allocation2 + $0x2d0] sm:$0xff]
      %v1639 = vld [vmem:[#allocation2 + $0x2d8] sm:$0xff]
      %v1640 = vld [vmem:[#allocation2 + $0x2e0] sm:$0xff]
      %v1641 = vld [vmem:[#allocation2 + $0x2e8] sm:$0xff]
      %v1642 = vld [vmem:[#allocation2 + $0x2f0] sm:$0xff]
      %v1643 = vld [vmem:[#allocation2 + $0x2f8] sm:$0xff]
      %v1644 = vld [vmem:[#allocation2 + $0x300] sm:$0xff]
      %v1645 = vld [vmem:[#allocation2 + $0x308] sm:$0xff]
      %v1646 = vld [vmem:[#allocation2 + $0x310] sm:$0xff]
      %v1647 = vld [vmem:[#allocation2 + $0x318] sm:$0xff]
      %v1648 = vld [vmem:[#allocation2 + $0x320] sm:$0xff]
      %v1649 = vld [vmem:[#allocation2 + $0x328] sm:$0xff]
      %v1650 = vld [vmem:[#allocation2 + $0x330] sm:$0xff]
      %v1651 = vld [vmem:[#allocation2 + $0x338] sm:$0xff]
      %v1652 = vld [vmem:[#allocation2 + $0x340] sm:$0xff]
      %v1653 = vld [vmem:[#allocation2 + $0x348] sm:$0xff]
      %v1654 = vld [vmem:[#allocation2 + $0x350] sm:$0xff]
      %v1655 = vld [vmem:[#allocation2 + $0x358] sm:$0xff]
      %v1656 = vld [vmem:[#allocation2 + $0x360] sm:$0xff]
      %v1657 = vld [vmem:[#allocation2 + $0x368] sm:$0xff]
      %v1658 = vld [vmem:[#allocation2 + $0x370] sm:$0xff]
      %v1659 = vld [vmem:[#allocation2 + $0x378] sm:$0xff]
      %v1660 = vld [vmem:[#allocation2 + $0x380] sm:$0xff]
      %v1661 = vld [vmem:[#allocation2 + $0x388] sm:$0xff]
      %v1662 = vld [vmem:[#allocation2 + $0x390] sm:$0xff]
      %v1663 = vld [vmem:[#allocation2 + $0x398] sm:$0xff]
      %v1664 = vld [vmem:[#allocation2 + $0x3a0] sm:$0xff]
      %v1665 = vld [vmem:[#allocation2 + $0x3a8] sm:$0xff]
      %v1666 = vld [vmem:[#allocation2 + $0x3b0] sm:$0xff]
      %v1667 = vld [vmem:[#allocation2 + $0x3b8] sm:$0xff]
      %v1668 = vld [vmem:[#allocation2 + $0x3c0] sm:$0xff]
      %v1669 = vld [vmem:[#allocation2 + $0x3c8] sm:$0xff]
      %v1670 = vld [vmem:[#allocation2 + $0x3d0] sm:$0xff]
      %v1671 = vld [vmem:[#allocation2 + $0x3d8] sm:$0xff]
      %v1672 = vld [vmem:[#allocation2 + $0x3e0] sm:$0xff]
      %v1673 = vld [vmem:[#allocation2 + $0x3e8] sm:$0xff]
      %v1674 = vld [vmem:[#allocation2 + $0x3f0] sm:$0xff]
      %v1675 = vld [vmem:[#allocation2 + $0x3f8] sm:$0xff]
      %v1676 = vld [vmem:[#allocation2 + $0x400] sm:$0xff]
      %v1677 = vld [vmem:[#allocation2 + $0x408] sm:$0xff]
      %v1678 = vld [vmem:[#allocation2 + $0x410] sm:$0xff]
      %v1679 = vld [vmem:[#allocation2 + $0x418] sm:$0xff]
      %v1680 = vld [vmem:[#allocation2 + $0x420] sm:$0xff]
      %v1681 = vld [vmem:[#allocation2 + $0x428] sm:$0xff]
      %v1682 = vld [vmem:[#allocation2 + $0x430] sm:$0xff]
      %v1683 = vld [vmem:[#allocation2 + $0x438] sm:$0xff]
      %v1684 = vld [vmem:[#allocation2 + $0x440] sm:$0xff]
      %v1685 = vld [vmem:[#allocation2 + $0x448] sm:$0xff]
      %v1686 = vld [vmem:[#allocation2 + $0x450] sm:$0xff]
      %v1687 = vld [vmem:[#allocation2 + $0x458] sm:$0xff]
      %v1688 = vld [vmem:[#allocation2 + $0x460] sm:$0xff]
      %v1689 = vld [vmem:[#allocation2 + $0x468] sm:$0xff]
      %v1690 = vld [vmem:[#allocation2 + $0x470] sm:$0xff]
      %v1691 = vld [vmem:[#allocation2 + $0x478] sm:$0xff]
      %v1692 = vld [vmem:[#allocation2 + $0x480] sm:$0xff]
      %v1693 = vld [vmem:[#allocation2 + $0x488] sm:$0xff]
      %v1694 = vld [vmem:[#allocation2 + $0x490] sm:$0xff]
      %v1695 = vld [vmem:[#allocation2 + $0x498] sm:$0xff]
      %v1696 = vld [vmem:[#allocation2 + $0x4a0] sm:$0xff]
      %v1697 = vld [vmem:[#allocation2 + $0x4a8] sm:$0xff]
      %v1698 = vld [vmem:[#allocation2 + $0x4b0] sm:$0xff]
      %v1699 = vld [vmem:[#allocation2 + $0x4b8] sm:$0xff]
      %v1700 = vld [vmem:[#allocation2 + $0x4c0] sm:$0xff]
      %v1701 = vld [vmem:[#allocation2 + $0x4c8] sm:$0xff]
      %v1702 = vld [vmem:[#allocation2 + $0x4d0] sm:$0xff]
      %v1703 = vld [vmem:[#allocation2 + $0x4d8] sm:$0xff]
      %v1704 = vld [vmem:[#allocation2 + $0x4e0] sm:$0xff]
      %v1705 = vld [vmem:[#allocation2 + $0x4e8] sm:$0xff]
      %v1706 = vld [vmem:[#allocation2 + $0x4f0] sm:$0xff]
      %v1707 = vld [vmem:[#allocation2 + $0x4f8] sm:$0xff]
      %v1708 = vld [vmem:[#allocation2 + $0x500] sm:$0xff]
      %v1709 = vld [vmem:[#allocation2 + $0x508] sm:$0xff]
      %v1710 = vld [vmem:[#allocation2 + $0x510] sm:$0xff]
      %v1711 = vld [vmem:[#allocation2 + $0x518] sm:$0xff]
      %v1712 = vld [vmem:[#allocation2 + $0x520] sm:$0xff]
      %v1713 = vld [vmem:[#allocation2 + $0x528] sm:$0xff]
      %v1714 = vld [vmem:[#allocation2 + $0x530] sm:$0xff]
      %v1715 = vld [vmem:[#allocation2 + $0x538] sm:$0xff]
      %v1716 = vld [vmem:[#allocation2 + $0x540] sm:$0xff]
      %v1717 = vld [vmem:[#allocation2 + $0x548] sm:$0xff]
      %v1718 = vld [vmem:[#allocation2 + $0x550] sm:$0xff]
      %v1719 = vld [vmem:[#allocation2 + $0x558] sm:$0xff]
      %v1720 = vld [vmem:[#allocation2 + $0x560] sm:$0xff]
      %v1721 = vld [vmem:[#allocation2 + $0x568] sm:$0xff]
      %v1722 = vld [vmem:[#allocation2 + $0x570] sm:$0xff]
      %v1723 = vld [vmem:[#allocation2 + $0x578] sm:$0xff]
      %v1724 = vld [vmem:[#allocation2 + $0x580] sm:$0xff]
      %v1725 = vld [vmem:[#allocation2 + $0x588] sm:$0xff]
      %v1726 = vld [vmem:[#allocation2 + $0x590] sm:$0xff]
      %v1727 = vld [vmem:[#allocation2 + $0x598] sm:$0xff]
      %v1728 = vld [vmem:[#allocation2 + $0x5a0] sm:$0xff]
      %v1729 = vld [vmem:[#allocation2 + $0x5a8] sm:$0xff]
      %v1730 = vld [vmem:[#allocation2 + $0x5b0] sm:$0xff]
      %v1731 = vld [vmem:[#allocation2 + $0x5b8] sm:$0xff]
      %v1732 = vld [vmem:[#allocation2 + $0x5c0] sm:$0xff]
      %v1733 = vld [vmem:[#allocation2 + $0x5c8] sm:$0xff]
      %v1734 = vld [vmem:[#allocation2 + $0x5d0] sm:$0xff]
      %v1735 = vld [vmem:[#allocation2 + $0x5d8] sm:$0xff]
      %v1736 = vld [vmem:[#allocation2 + $0x5e0] sm:$0xff]
      %v1737 = vld [vmem:[#allocation2 + $0x5e8] sm:$0xff]
      %v1738 = vld [vmem:[#allocation2 + $0x5f0] sm:$0xff]
      %v1739 = vld [vmem:[#allocation2 + $0x5f8] sm:$0xff]
      %v1740 = vld [vmem:[#allocation2 + $0x600] sm:$0xff]
      %v1741 = vld [vmem:[#allocation2 + $0x608] sm:$0xff]
      %v1742 = vld [vmem:[#allocation2 + $0x610] sm:$0xff]
      %v1743 = vld [vmem:[#allocation2 + $0x618] sm:$0xff]
      %v1744 = vld [vmem:[#allocation2 + $0x620] sm:$0xff]
      %v1745 = vld [vmem:[#allocation2 + $0x628] sm:$0xff]
      %v1746 = vld [vmem:[#allocation2 + $0x630] sm:$0xff]
      %v1747 = vld [vmem:[#allocation2 + $0x638] sm:$0xff]
      %v1748 = vld [vmem:[#allocation2 + $0x640] sm:$0xff]
      %v1749 = vld [vmem:[#allocation2 + $0x648] sm:$0xff]
      %v1750 = vld [vmem:[#allocation2 + $0x650] sm:$0xff]
      %v1751 = vld [vmem:[#allocation2 + $0x658] sm:$0xff]
      %v1752 = vld [vmem:[#allocation2 + $0x660] sm:$0xff]
      %v1753 = vld [vmem:[#allocation2 + $0x668] sm:$0xff]
      %v1754 = vld [vmem:[#allocation2 + $0x670] sm:$0xff]
      %v1755 = vld [vmem:[#allocation2 + $0x678] sm:$0xff]
      %v1756 = vld [vmem:[#allocation2 + $0x680] sm:$0xff]
      %v1757 = vld [vmem:[#allocation2 + $0x688] sm:$0xff]
      %v1758 = vld [vmem:[#allocation2 + $0x690] sm:$0xff]
      %v1759 = vld [vmem:[#allocation2 + $0x698] sm:$0xff]
      %v1760 = vld [vmem:[#allocation2 + $0x6a0] sm:$0xff]
      %v1761 = vld [vmem:[#allocation2 + $0x6a8] sm:$0xff]
      %v1762 = vld [vmem:[#allocation2 + $0x6b0] sm:$0xff]
      %v1763 = vld [vmem:[#allocation2 + $0x6b8] sm:$0xff]
      %v1764 = vld [vmem:[#allocation2 + $0x6c0] sm:$0xff]
      %v1765 = vld [vmem:[#allocation2 + $0x6c8] sm:$0xff]
      %v1766 = vld [vmem:[#allocation2 + $0x6d0] sm:$0xff]
      %v1767 = vld [vmem:[#allocation2 + $0x6d8] sm:$0xff]
      %v1768 = vld [vmem:[#allocation2 + $0x6e0] sm:$0xff]
      %v1769 = vld [vmem:[#allocation2 + $0x6e8] sm:$0xff]
      %v1770 = vld [vmem:[#allocation2 + $0x6f0] sm:$0xff]
      %v1771 = vld [vmem:[#allocation2 + $0x6f8] sm:$0xff]
      %v1772 = vld [vmem:[#allocation2 + $0x700] sm:$0xff]
      %v1773 = vld [vmem:[#allocation2 + $0x708] sm:$0xff]
      %v1774 = vld [vmem:[#allocation2 + $0x710] sm:$0xff]
      %v1775 = vld [vmem:[#allocation2 + $0x718] sm:$0xff]
      %v1776 = vld [vmem:[#allocation2 + $0x720] sm:$0xff]
      %v1777 = vld [vmem:[#allocation2 + $0x728] sm:$0xff]
      %v1778 = vld [vmem:[#allocation2 + $0x730] sm:$0xff]
      %v1779 = vld [vmem:[#allocation2 + $0x738] sm:$0xff]
      %v1780 = vld [vmem:[#allocation2 + $0x740] sm:$0xff]
      %v1781 = vld [vmem:[#allocation2 + $0x748] sm:$0xff]
      %v1782 = vld [vmem:[#allocation2 + $0x750] sm:$0xff]
      %v1783 = vld [vmem:[#allocation2 + $0x758] sm:$0xff]
      %v1784 = vld [vmem:[#allocation2 + $0x760] sm:$0xff]
      %v1785 = vld [vmem:[#allocation2 + $0x768] sm:$0xff]
      %v1786 = vld [vmem:[#allocation2 + $0x770] sm:$0xff]
      %v1787 = vld [vmem:[#allocation2 + $0x778] sm:$0xff]
      %v1788 = vld [vmem:[#allocation2 + $0x780] sm:$0xff]
      %v1789 = vld [vmem:[#allocation2 + $0x788] sm:$0xff]
      %v1790 = vld [vmem:[#allocation2 + $0x790] sm:$0xff]
      %v1791 = vld [vmem:[#allocation2 + $0x798] sm:$0xff]
      %v1792 = vld [vmem:[#allocation2 + $0x7a0] sm:$0xff]
      %v1793 = vld [vmem:[#allocation2 + $0x7a8] sm:$0xff]
      %v1794 = vld [vmem:[#allocation2 + $0x7b0] sm:$0xff]
      %v1795 = vld [vmem:[#allocation2 + $0x7b8] sm:$0xff]
      %v1796 = vld [vmem:[#allocation2 + $0x7c0] sm:$0xff]
      %v1797 = vld [vmem:[#allocation2 + $0x7c8] sm:$0xff]
      %v1798 = vld [vmem:[#allocation2 + $0x7d0] sm:$0xff]
      %v1799 = vld [vmem:[#allocation2 + $0x7d8] sm:$0xff]
      %v1800 = vld [vmem:[#allocation2 + $0x7e0] sm:$0xff]
      %v1801 = vld [vmem:[#allocation2 + $0x7e8] sm:$0xff]
      %v1802 = vld [vmem:[#allocation2 + $0x7f0] sm:$0xff]
      %v1803 = vld [vmem:[#allocation2 + $0x7f8] sm:$0xff]
      %v1804 = vld [vmem:[#allocation2 + $0x800] sm:$0xff]
      %v1805 = vld [vmem:[#allocation2 + $0x808] sm:$0xff]
      %v1806 = vld [vmem:[#allocation2 + $0x810] sm:$0xff]
      %v1807 = vld [vmem:[#allocation2 + $0x818] sm:$0xff]
      %v1808 = vld [vmem:[#allocation2 + $0x820] sm:$0xff]
      %v1809 = vld [vmem:[#allocation2 + $0x828] sm:$0xff]
      %v1810 = vld [vmem:[#allocation2 + $0x830] sm:$0xff]
      %v1811 = vld [vmem:[#allocation2 + $0x838] sm:$0xff]
      %v1812 = vld [vmem:[#allocation2 + $0x840] sm:$0xff]
      %v1813 = vld [vmem:[#allocation2 + $0x848] sm:$0xff]
      %v1814 = vld [vmem:[#allocation2 + $0x850] sm:$0xff]
      %v1815 = vld [vmem:[#allocation2 + $0x858] sm:$0xff]
      %v1816 = vld [vmem:[#allocation2 + $0x860] sm:$0xff]
      %v1817 = vld [vmem:[#allocation2 + $0x868] sm:$0xff]
      %v1818 = vld [vmem:[#allocation2 + $0x870] sm:$0xff]
      %v1819 = vld [vmem:[#allocation2 + $0x878] sm:$0xff]
      %v1820 = vld [vmem:[#allocation2 + $0x880] sm:$0xff]
      %v1821 = vld [vmem:[#allocation2 + $0x888] sm:$0xff]
      %v1822 = vld [vmem:[#allocation2 + $0x890] sm:$0xff]
      %v1823 = vld [vmem:[#allocation2 + $0x898] sm:$0xff]
      %v1824 = vld [vmem:[#allocation2 + $0x8a0] sm:$0xff]
      %v1825 = vld [vmem:[#allocation2 + $0x8a8] sm:$0xff]
      %v1826 = vld [vmem:[#allocation2 + $0x8b0] sm:$0xff]
      %v1827 = vld [vmem:[#allocation2 + $0x8b8] sm:$0xff]
      %v1828 = vld [vmem:[#allocation2 + $0x8c0] sm:$0xff]
      %v1829 = vld [vmem:[#allocation2 + $0x8c8] sm:$0xff]
      %v1830 = vld [vmem:[#allocation2 + $0x8d0] sm:$0xff]
      %v1831 = vld [vmem:[#allocation2 + $0x8d8] sm:$0xff]
      %v1832 = vld [vmem:[#allocation2 + $0x8e0] sm:$0xff]
      %v1833 = vld [vmem:[#allocation2 + $0x8e8] sm:$0xff]
      %v1834 = vld [vmem:[#allocation2 + $0x8f0] sm:$0xff]
      %v1835 = vld [vmem:[#allocation2 + $0x8f8] sm:$0xff]
      %v1836 = vld [vmem:[%s1] sm:$0xff]
      %v1837 = vld [vmem:[%s1 + $0x8] sm:$0xff]
      %v1838 = vld [vmem:[%s1 + $0x10] sm:$0xff]
      %v1839 = vld [vmem:[%s1 + $0x18] sm:$0xff]
      %v1840 = vld [vmem:[%s1 + $0x20] sm:$0xff]
      %v1841 = vld [vmem:[%s1 + $0x28] sm:$0xff]
      %v1842 = vld [vmem:[%s1 + $0x30] sm:$0xff]
      %v1843 = vld [vmem:[%s1 + $0x38] sm:$0xff]
      %v1844 = vld [vmem:[%s1 + $0x40] sm:$0xff]
      %v1845 = vld [vmem:[%s1 + $0x48] sm:$0xff]
      %v1846 = vld [vmem:[%s1 + $0x50] sm:$0xff]
      %v1847 = vld [vmem:[%s1 + $0x58] sm:$0xff]
      %v1848 = vld [vmem:[%s1 + $0x60] sm:$0xff]
      %v1849 = vld [vmem:[%s1 + $0x68] sm:$0xff]
      %v1850 = vld [vmem:[%s1 + $0x70] sm:$0xff]
      %v1851 = vld [vmem:[%s1 + $0x78] sm:$0xff]
      %v1852 = vld [vmem:[%s1 + $0x80] sm:$0xff]
      %v1853 = vld [vmem:[%s1 + $0x88] sm:$0xff]
      %v1854 = vld [vmem:[%s1 + $0x90] sm:$0xff]
      %v1855 = vld [vmem:[%s1 + $0x98] sm:$0xff]
      %v1856 = vld [vmem:[%s1 + $0xa0] sm:$0xff]
      %v1857 = vld [vmem:[%s1 + $0xa8] sm:$0xff]
      %v1858 = vld [vmem:[%s1 + $0xb0] sm:$0xff]
      %v1859 = vld [vmem:[%s1 + $0xb8] sm:$0xff]
      %v1860 = vld [vmem:[%s1 + $0xc0] sm:$0xff]
      %v1861 = vld [vmem:[%s1 + $0xc8] sm:$0xff]
      %v1862 = vld [vmem:[%s1 + $0xd0] sm:$0xff]
      %v1863 = vld [vmem:[%s1 + $0xd8] sm:$0xff]
      %v1864 = vld [vmem:[%s1 + $0xe0] sm:$0xff]
      %v1865 = vld [vmem:[%s1 + $0xe8] sm:$0xff]
      %v1866 = vld [vmem:[%s1 + $0xf0] sm:$0xff]
      %v1867 = vld [vmem:[%s1 + $0xf8] sm:$0xff]
      %v1868 = vld [vmem:[%s1 + $0x100] sm:$0xff]
      %v1869 = vld [vmem:[%s1 + $0x108] sm:$0xff]
      %v1870 = vld [vmem:[%s1 + $0x110] sm:$0xff]
      %v1871 = vld [vmem:[%s1 + $0x118] sm:$0xff]
      %v1872 = vld [vmem:[%s1 + $0x120] sm:$0xff]
      %v1873 = vld [vmem:[%s1 + $0x128] sm:$0xff]
      %v1874 = vld [vmem:[%s1 + $0x130] sm:$0xff]
      %v1875 = vld [vmem:[%s1 + $0x138] sm:$0xff]
      %v1876 = vld [vmem:[%s1 + $0x140] sm:$0xff]
      %v1877 = vld [vmem:[%s1 + $0x148] sm:$0xff]
      %v1878 = vld [vmem:[%s1 + $0x150] sm:$0xff]
      %v1879 = vld [vmem:[%s1 + $0x158] sm:$0xff]
      %v1880 = vld [vmem:[%s1 + $0x160] sm:$0xff]
      %v1881 = vld [vmem:[%s1 + $0x168] sm:$0xff]
      %v1882 = vld [vmem:[%s1 + $0x170] sm:$0xff]
      %v1883 = vld [vmem:[%s1 + $0x178] sm:$0xff]
      %v1884 = vld [vmem:[%s1 + $0x180] sm:$0xff]
      %v1885 = vld [vmem:[%s1 + $0x188] sm:$0xff]
      %v1886 = vld [vmem:[%s1 + $0x190] sm:$0xff]
      %v1887 = vld [vmem:[%s1 + $0x198] sm:$0xff]
      %v1888 = vld [vmem:[%s1 + $0x1a0] sm:$0xff]
      %v1889 = vld [vmem:[%s1 + $0x1a8] sm:$0xff]
      %v1890 = vld [vmem:[%s1 + $0x1b0] sm:$0xff]
      %v1891 = vld [vmem:[%s1 + $0x1b8] sm:$0xff]
      %v1892 = vld [vmem:[%s1 + $0x1c0] sm:$0xff]
      %v1893 = vld [vmem:[%s1 + $0x1c8] sm:$0xff]
      %v1894 = vld [vmem:[%s1 + $0x1d0] sm:$0xff]
      %v1895 = vld [vmem:[%s1 + $0x1d8] sm:$0xff]
      %v1896 = vld [vmem:[%s1 + $0x1e0] sm:$0xff]
      %v1897 = vld [vmem:[%s1 + $0x1e8] sm:$0xff]
      %v1898 = vld [vmem:[%s1 + $0x1f0] sm:$0xff]
      %v1899 = vld [vmem:[%s1 + $0x1f8] sm:$0xff]
      %v1900 = vld [vmem:[%s1 + $0x200] sm:$0xff]
      %v1901 = vld [vmem:[%s1 + $0x208] sm:$0xff]
      %v1902 = vld [vmem:[%s1 + $0x210] sm:$0xff]
      %v1903 = vld [vmem:[%s1 + $0x218] sm:$0xff]
      %v1904 = vld [vmem:[%s1 + $0x220] sm:$0xff]
      %v1905 = vld [vmem:[%s1 + $0x228] sm:$0xff]
      %v1906 = vld [vmem:[%s1 + $0x230] sm:$0xff]
      %v1907 = vld [vmem:[%s1 + $0x238] sm:$0xff]
      %v1908 = vld [vmem:[%s1 + $0x240] sm:$0xff]
      %v1909 = vld [vmem:[%s1 + $0x248] sm:$0xff]
      %v1910 = vld [vmem:[%s1 + $0x250] sm:$0xff]
      %v1911 = vld [vmem:[%s1 + $0x258] sm:$0xff]
      %v1912 = vld [vmem:[%s1 + $0x260] sm:$0xff]
      %v1913 = vld [vmem:[%s1 + $0x268] sm:$0xff]
      %v1914 = vld [vmem:[%s1 + $0x270] sm:$0xff]
      %v1915 = vld [vmem:[%s1 + $0x278] sm:$0xff]
      %v1916 = vld [vmem:[%s1 + $0x280] sm:$0xff]
      %v1917 = vld [vmem:[%s1 + $0x288] sm:$0xff]
      %v1918 = vld [vmem:[%s1 + $0x290] sm:$0xff]
      %v1919 = vld [vmem:[%s1 + $0x298] sm:$0xff]
      %v1920 = vld [vmem:[%s1 + $0x2a0] sm:$0xff]
      %v1921 = vld [vmem:[%s1 + $0x2a8] sm:$0xff]
      %v1922 = vld [vmem:[%s1 + $0x2b0] sm:$0xff]
      %v1923 = vld [vmem:[%s1 + $0x2b8] sm:$0xff]
      %v1924 = vld [vmem:[%s1 + $0x2c0] sm:$0xff]
      %v1925 = vld [vmem:[%s1 + $0x2c8] sm:$0xff]
      %v1926 = vld [vmem:[%s1 + $0x2d0] sm:$0xff]
      %v1927 = vld [vmem:[%s1 + $0x2d8] sm:$0xff]
      %v1928 = vld [vmem:[%s1 + $0x2e0] sm:$0xff]
      %v1929 = vld [vmem:[%s1 + $0x2e8] sm:$0xff]
      %v1930 = vld [vmem:[%s1 + $0x2f0] sm:$0xff]
      %v1931 = vld [vmem:[%s1 + $0x2f8] sm:$0xff]
      %v1932 = vld [vmem:[%s1 + $0x300] sm:$0xff]
      %v1933 = vld [vmem:[%s1 + $0x308] sm:$0xff]
      %v1934 = vld [vmem:[%s1 + $0x310] sm:$0xff]
      %v1935 = vld [vmem:[%s1 + $0x318] sm:$0xff]
      %v1936 = vld [vmem:[%s1 + $0x320] sm:$0xff]
      %v1937 = vld [vmem:[%s1 + $0x328] sm:$0xff]
      %v1938 = vld [vmem:[%s1 + $0x330] sm:$0xff]
      %v1939 = vld [vmem:[%s1 + $0x338] sm:$0xff]
      %v1940 = vld [vmem:[%s1 + $0x340] sm:$0xff]
      %v1941 = vld [vmem:[%s1 + $0x348] sm:$0xff]
      %v1942 = vld [vmem:[%s1 + $0x350] sm:$0xff]
      %v1943 = vld [vmem:[%s1 + $0x358] sm:$0xff]
      %v1944 = vld [vmem:[%s1 + $0x360] sm:$0xff]
      %v1945 = vld [vmem:[%s1 + $0x368] sm:$0xff]
      %v1946 = vld [vmem:[%s1 + $0x370] sm:$0xff]
      %v1947 = vld [vmem:[%s1 + $0x378] sm:$0xff]
      %v1948 = vld [vmem:[%s1 + $0x380] sm:$0xff]
      %v1949 = vld [vmem:[%s1 + $0x388] sm:$0xff]
      %v1950 = vld [vmem:[%s1 + $0x390] sm:$0xff]
      %v1951 = vld [vmem:[%s1 + $0x398] sm:$0xff]
      %v1952 = vld [vmem:[%s1 + $0x3a0] sm:$0xff]
      %v1953 = vld [vmem:[%s1 + $0x3a8] sm:$0xff]
      %v1954 = vld [vmem:[%s1 + $0x3b0] sm:$0xff]
      %v1955 = vld [vmem:[%s1 + $0x3b8] sm:$0xff]
      %v1956 = vld [vmem:[%s1 + $0x3c0] sm:$0xff]
      %v1957 = vld [vmem:[%s1 + $0x3c8] sm:$0xff]
      %v1958 = vld [vmem:[%s1 + $0x3d0] sm:$0xff]
      %v1959 = vld [vmem:[%s1 + $0x3d8] sm:$0xff]
      %v1960 = vld [vmem:[%s1 + $0x3e0] sm:$0xff]
      %v1961 = vld [vmem:[%s1 + $0x3e8] sm:$0xff]
      %v1962 = vld [vmem:[%s1 + $0x3f0] sm:$0xff]
      %v1963 = vld [vmem:[%s1 + $0x3f8] sm:$0xff]
      %v1964 = vld [vmem:[%s1 + $0x400] sm:$0xff]
      %v1965 = vld [vmem:[%s1 + $0x408] sm:$0xff]
      %v1966 = vld [vmem:[%s1 + $0x410] sm:$0xff]
      %v1967 = vld [vmem:[%s1 + $0x418] sm:$0xff]
      %v1968 = vld [vmem:[%s1 + $0x420] sm:$0xff]
      %v1969 = vld [vmem:[%s1 + $0x428] sm:$0xff]
      %v1970 = vld [vmem:[%s1 + $0x430] sm:$0xff]
      %v1971 = vld [vmem:[%s1 + $0x438] sm:$0xff]
      %v1972 = vld [vmem:[%s1 + $0x440] sm:$0xff]
      %v1973 = vld [vmem:[%s1 + $0x448] sm:$0xff]
      %v1974 = vld [vmem:[%s1 + $0x450] sm:$0xff]
      %v1975 = vld [vmem:[%s1 + $0x458] sm:$0xff]
      %v1976 = vld [vmem:[%s1 + $0x460] sm:$0xff]
      %v1977 = vld [vmem:[%s1 + $0x468] sm:$0xff]
      %v1978 = vld [vmem:[%s1 + $0x470] sm:$0xff]
      %v1979 = vld [vmem:[%s1 + $0x478] sm:$0xff]
      %v1980 = vld [vmem:[%s1 + $0x480] sm:$0xff]
      %v1981 = vld [vmem:[%s1 + $0x488] sm:$0xff]
      %v1982 = vld [vmem:[%s1 + $0x490] sm:$0xff]
      %v1983 = vld [vmem:[%s1 + $0x498] sm:$0xff]
      %v1984 = vld [vmem:[%s1 + $0x4a0] sm:$0xff]
      %v1985 = vld [vmem:[%s1 + $0x4a8] sm:$0xff]
      %v1986 = vld [vmem:[%s1 + $0x4b0] sm:$0xff]
      %v1987 = vld [vmem:[%s1 + $0x4b8] sm:$0xff]
      %v1988 = vld [vmem:[%s1 + $0x4c0] sm:$0xff]
      %v1989 = vld [vmem:[%s1 + $0x4c8] sm:$0xff]
      %v1990 = vld [vmem:[%s1 + $0x4d0] sm:$0xff]
      %v1991 = vld [vmem:[%s1 + $0x4d8] sm:$0xff]
      %v1992 = vld [vmem:[%s1 + $0x4e0] sm:$0xff]
      %v1993 = vld [vmem:[%s1 + $0x4e8] sm:$0xff]
      %v1994 = vld [vmem:[%s1 + $0x4f0] sm:$0xff]
      %v1995 = vld [vmem:[%s1 + $0x4f8] sm:$0xff]
      %v1996 = vld [vmem:[%s1 + $0x500] sm:$0xff]
      %v1997 = vld [vmem:[%s1 + $0x508] sm:$0xff]
      %v1998 = vld [vmem:[%s1 + $0x510] sm:$0xff]
      %v1999 = vld [vmem:[%s1 + $0x518] sm:$0xff]
      %v2000 = vld [vmem:[%s1 + $0x520] sm:$0xff]
      %v2001 = vld [vmem:[%s1 + $0x528] sm:$0xff]
      %v2002 = vld [vmem:[%s1 + $0x530] sm:$0xff]
      %v2003 = vld [vmem:[%s1 + $0x538] sm:$0xff]
      %v2004 = vld [vmem:[%s1 + $0x540] sm:$0xff]
      %v2005 = vld [vmem:[%s1 + $0x548] sm:$0xff]
      %v2006 = vld [vmem:[%s1 + $0x550] sm:$0xff]
      %v2007 = vld [vmem:[%s1 + $0x558] sm:$0xff]
      %v2008 = vld [vmem:[%s1 + $0x560] sm:$0xff]
      %v2009 = vld [vmem:[%s1 + $0x568] sm:$0xff]
      %v2010 = vld [vmem:[%s1 + $0x570] sm:$0xff]
      %v2011 = vld [vmem:[%s1 + $0x578] sm:$0xff]
      %v2012 = vld [vmem:[%s1 + $0x580] sm:$0xff]
      %v2013 = vld [vmem:[%s1 + $0x588] sm:$0xff]
      %v2014 = vld [vmem:[%s1 + $0x590] sm:$0xff]
      %v2015 = vld [vmem:[%s1 + $0x598] sm:$0xff]
      %v2016 = vld [vmem:[%s1 + $0x5a0] sm:$0xff]
      %v2017 = vld [vmem:[%s1 + $0x5a8] sm:$0xff]
      %v2018 = vld [vmem:[%s1 + $0x5b0] sm:$0xff]
      %v2019 = vld [vmem:[%s1 + $0x5b8] sm:$0xff]
      %v2020 = vld [vmem:[%s1 + $0x5c0] sm:$0xff]
      %v2021 = vld [vmem:[%s1 + $0x5c8] sm:$0xff]
      %v2022 = vld [vmem:[%s1 + $0x5d0] sm:$0xff]
      %v2023 = vld [vmem:[%s1 + $0x5d8] sm:$0xff]
      %v2024 = vld [vmem:[%s1 + $0x5e0] sm:$0xff]
      %v2025 = vld [vmem:[%s1 + $0x5e8] sm:$0xff]
      %v2026 = vld [vmem:[%s1 + $0x5f0] sm:$0xff]
      %v2027 = vld [vmem:[%s1 + $0x5f8] sm:$0xff]
      %v2028 = vld [vmem:[%s1 + $0x600] sm:$0xff]
      %v2029 = vld [vmem:[%s1 + $0x608] sm:$0xff]
      %v2030 = vld [vmem:[%s1 + $0x610] sm:$0xff]
      %v2031 = vld [vmem:[%s1 + $0x618] sm:$0xff]
      %v2032 = vld [vmem:[%s1 + $0x620] sm:$0xff]
      %v2033 = vld [vmem:[%s1 + $0x628] sm:$0xff]
      %v2034 = vld [vmem:[%s1 + $0x630] sm:$0xff]
      %v2035 = vld [vmem:[%s1 + $0x638] sm:$0xff]
      %v2036 = vld [vmem:[%s1 + $0x640] sm:$0xff]
      %v2037 = vld [vmem:[%s1 + $0x648] sm:$0xff]
      %v2038 = vld [vmem:[%s1 + $0x650] sm:$0xff]
      %v2039 = vld [vmem:[%s1 + $0x658] sm:$0xff]
      %v2040 = vld [vmem:[%s1 + $0x660] sm:$0xff]
      %v2041 = vld [vmem:[%s1 + $0x668] sm:$0xff]
      %v2042 = vld [vmem:[%s1 + $0x670] sm:$0xff]
      %v2043 = vld [vmem:[%s1 + $0x678] sm:$0xff]
      %v2044 = vld [vmem:[%s1 + $0x680] sm:$0xff]
      %v2045 = vld [vmem:[%s1 + $0x688] sm:$0xff]
      %v2046 = vld [vmem:[%s1 + $0x690] sm:$0xff]
      %v2047 = vld [vmem:[%s1 + $0x698] sm:$0xff]
      %v2048 = vld [vmem:[%s1 + $0x6a0] sm:$0xff]
      %v2049 = vld [vmem:[%s1 + $0x6a8] sm:$0xff]
      %v2050 = vld [vmem:[%s1 + $0x6b0] sm:$0xff]
      %v2051 = vld [vmem:[%s1 + $0x6b8] sm:$0xff]
      %v2052 = vld [vmem:[%s1 + $0x6c0] sm:$0xff]
      %v2053 = vld [vmem:[%s1 + $0x6c8] sm:$0xff]
      %v2054 = vld [vmem:[%s1 + $0x6d0] sm:$0xff]
      %v2055 = vld [vmem:[%s1 + $0x6d8] sm:$0xff]
      %v2056 = vld [vmem:[%s1 + $0x6e0] sm:$0xff]
      %v2057 = vld [vmem:[%s1 + $0x6e8] sm:$0xff]
      %v2058 = vld [vmem:[%s1 + $0x6f0] sm:$0xff]
      %v2059 = vld [vmem:[%s1 + $0x6f8] sm:$0xff]
      %v2060 = vld [vmem:[%s1 + $0x700] sm:$0xff]
      %v2061 = vld [vmem:[%s1 + $0x708] sm:$0xff]
      %v2062 = vld [vmem:[%s1 + $0x710] sm:$0xff]
      %v2063 = vld [vmem:[%s1 + $0x718] sm:$0xff]
      %v2064 = vld [vmem:[%s1 + $0x720] sm:$0xff]
      %v2065 = vld [vmem:[%s1 + $0x728] sm:$0xff]
      %v2066 = vld [vmem:[%s1 + $0x730] sm:$0xff]
      %v2067 = vld [vmem:[%s1 + $0x738] sm:$0xff]
      %v2068 = vld [vmem:[%s1 + $0x740] sm:$0xff]
      %v2069 = vld [vmem:[%s1 + $0x748] sm:$0xff]
      %v2070 = vld [vmem:[%s1 + $0x750] sm:$0xff]
      %v2071 = vld [vmem:[%s1 + $0x758] sm:$0xff]
      %v2072 = vld [vmem:[%s1 + $0x760] sm:$0xff]
      %v2073 = vld [vmem:[%s1 + $0x768] sm:$0xff]
      %v2074 = vld [vmem:[%s1 + $0x770] sm:$0xff]
      %v2075 = vld [vmem:[%s1 + $0x778] sm:$0xff]
      %v2076 = vld [vmem:[%s1 + $0x780] sm:$0xff]
      %v2077 = vld [vmem:[%s1 + $0x788] sm:$0xff]
      %v2078 = vld [vmem:[%s1 + $0x790] sm:$0xff]
      %v2079 = vld [vmem:[%s1 + $0x798] sm:$0xff]
      %v2080 = vld [vmem:[%s1 + $0x7a0] sm:$0xff]
      %v2081 = vld [vmem:[%s1 + $0x7a8] sm:$0xff]
      %v2082 = vld [vmem:[%s1 + $0x7b0] sm:$0xff]
      %v2083 = vld [vmem:[%s1 + $0x7b8] sm:$0xff]
      %v2084 = vld [vmem:[%s1 + $0x7c0] sm:$0xff]
      %v2085 = vld [vmem:[%s1 + $0x7c8] sm:$0xff]
      %v2086 = vld [vmem:[%s1 + $0x7d0] sm:$0xff]
      %v2087 = vld [vmem:[%s1 + $0x7d8] sm:$0xff]
      %v2088 = vld [vmem:[%s1 + $0x7e0] sm:$0xff]
      %v2089 = vld [vmem:[%s1 + $0x7e8] sm:$0xff]
      %v2090 = vld [vmem:[%s1 + $0x7f0] sm:$0xff]
      %v2091 = vld [vmem:[%s1 + $0x7f8] sm:$0xff]
      %v2092 = vld [vmem:[%s1 + $0x800] sm:$0xff]
      %v2093 = vld [vmem:[%s1 + $0x808] sm:$0xff]
      %v2094 = vld [vmem:[%s1 + $0x810] sm:$0xff]
      %v2095 = vld [vmem:[%s1 + $0x818] sm:$0xff]
      %v2096 = vld [vmem:[%s1 + $0x820] sm:$0xff]
      %v2097 = vld [vmem:[%s1 + $0x828] sm:$0xff]
      %v2098 = vld [vmem:[%s1 + $0x830] sm:$0xff]
      %v2099 = vld [vmem:[%s1 + $0x838] sm:$0xff]
      %v2100 = vld [vmem:[%s1 + $0x840] sm:$0xff]
      %v2101 = vld [vmem:[%s1 + $0x848] sm:$0xff]
      %v2102 = vld [vmem:[%s1 + $0x850] sm:$0xff]
      %v2103 = vld [vmem:[%s1 + $0x858] sm:$0xff]
      %v2104 = vld [vmem:[%s1 + $0x860] sm:$0xff]
      %v2105 = vld [vmem:[%s1 + $0x868] sm:$0xff]
      %v2106 = vld [vmem:[%s1 + $0x870] sm:$0xff]
      %v2107 = vld [vmem:[%s1 + $0x878] sm:$0xff]
      %v2108 = vld [vmem:[%s1 + $0x880] sm:$0xff]
      %v2109 = vld [vmem:[%s1 + $0x888] sm:$0xff]
      %v2110 = vld [vmem:[%s1 + $0x890] sm:$0xff]
      %v2111 = vld [vmem:[%s1 + $0x898] sm:$0xff]
      %v2112 = vld [vmem:[%s1 + $0x8a0] sm:$0xff]
      %v2113 = vld [vmem:[%s1 + $0x8a8] sm:$0xff]
      %v2114 = vld [vmem:[%s1 + $0x8b0] sm:$0xff]
      %v2115 = vld [vmem:[%s1 + $0x8b8] sm:$0xff]
      %v2116 = vld [vmem:[%s1 + $0x8c0] sm:$0xff]
      %v2117 = vld [vmem:[%s1 + $0x8c8] sm:$0xff]
      %v2118 = vld [vmem:[%s1 + $0x8d0] sm:$0xff]
      %v2119 = vld [vmem:[%s1 + $0x8d8] sm:$0xff]
      %v2120 = vld [vmem:[%s1 + $0x8e0] sm:$0xff]
      %v2121 = vld [vmem:[%s1 + $0x8e8] sm:$0xff]
      %v2122 = vld [vmem:[%s1 + $0x8f0] sm:$0xff]
      %v2123 = vld [vmem:[%s1 + $0x8f8] sm:$0xff]
      %v2124 = vld [vmem:[%s2] sm:$0x3]
      %v2126 = vperm.slane %v2124, 0
      %v2127 = vperm.slane %v2124, 1
      %v2418 = vunpack.c.l.b16 %v1548
      %v2419 = vunpack.c.h.b16 %v1548
      %v2420 = vunpack.c.l.b16 %v1549
      %v2421 = vunpack.c.h.b16 %v1549
      %v2422 = vunpack.c.l.b16 %v1550
      %v2423 = vunpack.c.h.b16 %v1550
      %v2424 = vunpack.c.l.b16 %v1551
      %v2425 = vunpack.c.h.b16 %v1551
      %v2426 = vunpack.c.l.b16 %v1552
      %v2427 = vunpack.c.h.b16 %v1552
      %v2428 = vunpack.c.l.b16 %v1553
      %v2429 = vunpack.c.h.b16 %v1553
      %v2430 = vunpack.c.l.b16 %v1554
      %v2431 = vunpack.c.h.b16 %v1554
      %v2432 = vunpack.c.l.b16 %v1555
      %v2433 = vunpack.c.h.b16 %v1555
      %v2434 = vunpack.c.l.b16 %v1556
      %v2435 = vunpack.c.h.b16 %v1556
      %v2436 = vunpack.c.l.b16 %v1557
      %v2437 = vunpack.c.h.b16 %v1557
      %v2438 = vunpack.c.l.b16 %v1558
      %v2439 = vunpack.c.h.b16 %v1558
      %v2440 = vunpack.c.l.b16 %v1559
      %v2441 = vunpack.c.h.b16 %v1559
      %v2442 = vunpack.c.l.b16 %v1560
      %v2443 = vunpack.c.h.b16 %v1560
      %v2444 = vunpack.c.l.b16 %v1561
      %v2445 = vunpack.c.h.b16 %v1561
      %v2446 = vunpack.c.l.b16 %v1562
      %v2447 = vunpack.c.h.b16 %v1562
      %v2448 = vunpack.c.l.b16 %v1563
      %v2449 = vunpack.c.h.b16 %v1563
      %v2450 = vunpack.c.l.b16 %v1564
      %v2451 = vunpack.c.h.b16 %v1564
      %v2452 = vunpack.c.l.b16 %v1565
      %v2453 = vunpack.c.h.b16 %v1565
      %v2454 = vunpack.c.l.b16 %v1566
      %v2455 = vunpack.c.h.b16 %v1566
      %v2456 = vunpack.c.l.b16 %v1567
      %v2457 = vunpack.c.h.b16 %v1567
      %v2458 = vunpack.c.l.b16 %v1568
      %v2459 = vunpack.c.h.b16 %v1568
      %v2460 = vunpack.c.l.b16 %v1569
      %v2461 = vunpack.c.h.b16 %v1569
      %v2462 = vunpack.c.l.b16 %v1570
      %v2463 = vunpack.c.h.b16 %v1570
      %v2464 = vunpack.c.l.b16 %v1571
      %v2465 = vunpack.c.h.b16 %v1571
      %v2466 = vunpack.c.l.b16 %v1572
      %v2467 = vunpack.c.h.b16 %v1572
      %v2468 = vunpack.c.l.b16 %v1573
      %v2469 = vunpack.c.h.b16 %v1573
      %v2470 = vunpack.c.l.b16 %v1574
      %v2471 = vunpack.c.h.b16 %v1574
      %v2472 = vunpack.c.l.b16 %v1575
      %v2473 = vunpack.c.h.b16 %v1575
      %v2474 = vunpack.c.l.b16 %v1576
      %v2475 = vunpack.c.h.b16 %v1576
      %v2476 = vunpack.c.l.b16 %v1577
      %v2477 = vunpack.c.h.b16 %v1577
      %v2478 = vunpack.c.l.b16 %v1578
      %v2479 = vunpack.c.h.b16 %v1578
      %v2480 = vunpack.c.l.b16 %v1579
      %v2481 = vunpack.c.h.b16 %v1579
      %v2482 = vunpack.c.l.b16 %v1580
      %v2483 = vunpack.c.h.b16 %v1580
      %v2484 = vunpack.c.l.b16 %v1581
      %v2485 = vunpack.c.h.b16 %v1581
      %v2486 = vunpack.c.l.b16 %v1582
      %v2487 = vunpack.c.h.b16 %v1582
      %v2488 = vunpack.c.l.b16 %v1583
      %v2489 = vunpack.c.h.b16 %v1583
      %v2490 = vunpack.c.l.b16 %v1584
      %v2491 = vunpack.c.h.b16 %v1584
      %v2492 = vunpack.c.l.b16 %v1585
      %v2493 = vunpack.c.h.b16 %v1585
      %v2494 = vunpack.c.l.b16 %v1586
      %v2495 = vunpack.c.h.b16 %v1586
      %v2496 = vunpack.c.l.b16 %v1587
      %v2497 = vunpack.c.h.b16 %v1587
      %v2498 = vunpack.c.l.b16 %v1588
      %v2499 = vunpack.c.h.b16 %v1588
      %v2500 = vunpack.c.l.b16 %v1589
      %v2501 = vunpack.c.h.b16 %v1589
      %v2502 = vunpack.c.l.b16 %v1590
      %v2503 = vunpack.c.h.b16 %v1590
      %v2504 = vunpack.c.l.b16 %v1591
      %v2505 = vunpack.c.h.b16 %v1591
      %v2506 = vunpack.c.l.b16 %v1592
      %v2507 = vunpack.c.h.b16 %v1592
      %v2508 = vunpack.c.l.b16 %v1593
      %v2509 = vunpack.c.h.b16 %v1593
      %v2510 = vunpack.c.l.b16 %v1594
      %v2511 = vunpack.c.h.b16 %v1594
      %v2512 = vunpack.c.l.b16 %v1595
      %v2513 = vunpack.c.h.b16 %v1595
      %v2514 = vunpack.c.l.b16 %v1596
      %v2515 = vunpack.c.h.b16 %v1596
      %v2516 = vunpack.c.l.b16 %v1597
      %v2517 = vunpack.c.h.b16 %v1597
      %v2518 = vunpack.c.l.b16 %v1598
      %v2519 = vunpack.c.h.b16 %v1598
      %v2520 = vunpack.c.l.b16 %v1599
      %v2521 = vunpack.c.h.b16 %v1599
      %v2522 = vunpack.c.l.b16 %v1600
      %v2523 = vunpack.c.h.b16 %v1600
      %v2524 = vunpack.c.l.b16 %v1601
      %v2525 = vunpack.c.h.b16 %v1601
      %v2526 = vunpack.c.l.b16 %v1602
      %v2527 = vunpack.c.h.b16 %v1602
      %v2528 = vunpack.c.l.b16 %v1603
      %v2529 = vunpack.c.h.b16 %v1603
      %v2530 = vunpack.c.l.b16 %v1604
      %v2531 = vunpack.c.h.b16 %v1604
      %v2532 = vunpack.c.l.b16 %v1605
      %v2533 = vunpack.c.h.b16 %v1605
      %v2534 = vunpack.c.l.b16 %v1606
      %v2535 = vunpack.c.h.b16 %v1606
      %v2536 = vunpack.c.l.b16 %v1607
      %v2537 = vunpack.c.h.b16 %v1607
      %v2538 = vunpack.c.l.b16 %v1608
      %v2539 = vunpack.c.h.b16 %v1608
      %v2540 = vunpack.c.l.b16 %v1609
      %v2541 = vunpack.c.h.b16 %v1609
      %v2542 = vunpack.c.l.b16 %v1610
      %v2543 = vunpack.c.h.b16 %v1610
      %v2544 = vunpack.c.l.b16 %v1611
      %v2545 = vunpack.c.h.b16 %v1611
      %v2546 = vunpack.c.l.b16 %v1612
      %v2547 = vunpack.c.h.b16 %v1612
      %v2548 = vunpack.c.l.b16 %v1613
      %v2549 = vunpack.c.h.b16 %v1613
      %v2550 = vunpack.c.l.b16 %v1614
      %v2551 = vunpack.c.h.b16 %v1614
      %v2552 = vunpack.c.l.b16 %v1615
      %v2553 = vunpack.c.h.b16 %v1615
      %v2554 = vunpack.c.l.b16 %v1616
      %v2555 = vunpack.c.h.b16 %v1616
      %v2556 = vunpack.c.l.b16 %v1617
      %v2557 = vunpack.c.h.b16 %v1617
      %v2558 = vunpack.c.l.b16 %v1618
      %v2559 = vunpack.c.h.b16 %v1618
      %v2560 = vunpack.c.l.b16 %v1619
      %v2561 = vunpack.c.h.b16 %v1619
      %v2562 = vunpack.c.l.b16 %v1620
      %v2563 = vunpack.c.h.b16 %v1620
      %v2564 = vunpack.c.l.b16 %v1621
      %v2565 = vunpack.c.h.b16 %v1621
      %v2566 = vunpack.c.l.b16 %v1622
      %v2567 = vunpack.c.h.b16 %v1622
      %v2568 = vunpack.c.l.b16 %v1623
      %v2569 = vunpack.c.h.b16 %v1623
      %v2570 = vunpack.c.l.b16 %v1624
      %v2571 = vunpack.c.h.b16 %v1624
      %v2572 = vunpack.c.l.b16 %v1625
      %v2573 = vunpack.c.h.b16 %v1625
      %v2574 = vunpack.c.l.b16 %v1626
      %v2575 = vunpack.c.h.b16 %v1626
      %v2576 = vunpack.c.l.b16 %v1627
      %v2577 = vunpack.c.h.b16 %v1627
      %v2578 = vunpack.c.l.b16 %v1628
      %v2579 = vunpack.c.h.b16 %v1628
      %v2580 = vunpack.c.l.b16 %v1629
      %v2581 = vunpack.c.h.b16 %v1629
      %v2582 = vunpack.c.l.b16 %v1630
      %v2583 = vunpack.c.h.b16 %v1630
      %v2584 = vunpack.c.l.b16 %v1631
      %v2585 = vunpack.c.h.b16 %v1631
      %v2586 = vunpack.c.l.b16 %v1632
      %v2587 = vunpack.c.h.b16 %v1632
      %v2588 = vunpack.c.l.b16 %v1633
      %v2589 = vunpack.c.h.b16 %v1633
      %v2590 = vunpack.c.l.b16 %v1634
      %v2591 = vunpack.c.h.b16 %v1634
      %v2592 = vunpack.c.l.b16 %v1635
      %v2593 = vunpack.c.h.b16 %v1635
      %v2594 = vunpack.c.l.b16 %v1636
      %v2595 = vunpack.c.h.b16 %v1636
      %v2596 = vunpack.c.l.b16 %v1637
      %v2597 = vunpack.c.h.b16 %v1637
      %v2598 = vunpack.c.l.b16 %v1638
      %v2599 = vunpack.c.h.b16 %v1638
      %v2600 = vunpack.c.l.b16 %v1639
      %v2601 = vunpack.c.h.b16 %v1639
      %v2602 = vunpack.c.l.b16 %v1640
      %v2603 = vunpack.c.h.b16 %v1640
      %v2604 = vunpack.c.l.b16 %v1641
      %v2605 = vunpack.c.h.b16 %v1641
      %v2606 = vunpack.c.l.b16 %v1642
      %v2607 = vunpack.c.h.b16 %v1642
      %v2608 = vunpack.c.l.b16 %v1643
      %v2609 = vunpack.c.h.b16 %v1643
      %v2610 = vunpack.c.l.b16 %v1644
      %v2611 = vunpack.c.h.b16 %v1644
      %v2612 = vunpack.c.l.b16 %v1645
      %v2613 = vunpack.c.h.b16 %v1645
      %v2614 = vunpack.c.l.b16 %v1646
      %v2615 = vunpack.c.h.b16 %v1646
      %v2616 = vunpack.c.l.b16 %v1647
      %v2617 = vunpack.c.h.b16 %v1647
      %v2618 = vunpack.c.l.b16 %v1648
      %v2619 = vunpack.c.h.b16 %v1648
      %v2620 = vunpack.c.l.b16 %v1649
      %v2621 = vunpack.c.h.b16 %v1649
      %v2622 = vunpack.c.l.b16 %v1650
      %v2623 = vunpack.c.h.b16 %v1650
      %v2624 = vunpack.c.l.b16 %v1651
      %v2625 = vunpack.c.h.b16 %v1651
      %v2626 = vunpack.c.l.b16 %v1652
      %v2627 = vunpack.c.h.b16 %v1652
      %v2628 = vunpack.c.l.b16 %v1653
      %v2629 = vunpack.c.h.b16 %v1653
      %v2630 = vunpack.c.l.b16 %v1654
      %v2631 = vunpack.c.h.b16 %v1654
      %v2632 = vunpack.c.l.b16 %v1655
      %v2633 = vunpack.c.h.b16 %v1655
      %v2634 = vunpack.c.l.b16 %v1656
      %v2635 = vunpack.c.h.b16 %v1656
      %v2636 = vunpack.c.l.b16 %v1657
      %v2637 = vunpack.c.h.b16 %v1657
      %v2638 = vunpack.c.l.b16 %v1658
      %v2639 = vunpack.c.h.b16 %v1658
      %v2640 = vunpack.c.l.b16 %v1659
      %v2641 = vunpack.c.h.b16 %v1659
      %v2642 = vunpack.c.l.b16 %v1660
      %v2643 = vunpack.c.h.b16 %v1660
      %v2644 = vunpack.c.l.b16 %v1661
      %v2645 = vunpack.c.h.b16 %v1661
      %v2646 = vunpack.c.l.b16 %v1662
      %v2647 = vunpack.c.h.b16 %v1662
      %v2648 = vunpack.c.l.b16 %v1663
      %v2649 = vunpack.c.h.b16 %v1663
      %v2650 = vunpack.c.l.b16 %v1664
      %v2651 = vunpack.c.h.b16 %v1664
      %v2652 = vunpack.c.l.b16 %v1665
      %v2653 = vunpack.c.h.b16 %v1665
      %v2654 = vunpack.c.l.b16 %v1666
      %v2655 = vunpack.c.h.b16 %v1666
      %v2656 = vunpack.c.l.b16 %v1667
      %v2657 = vunpack.c.h.b16 %v1667
      %v2658 = vunpack.c.l.b16 %v1668
      %v2659 = vunpack.c.h.b16 %v1668
      %v2660 = vunpack.c.l.b16 %v1669
      %v2661 = vunpack.c.h.b16 %v1669
      %v2662 = vunpack.c.l.b16 %v1670
      %v2663 = vunpack.c.h.b16 %v1670
      %v2664 = vunpack.c.l.b16 %v1671
      %v2665 = vunpack.c.h.b16 %v1671
      %v2666 = vunpack.c.l.b16 %v1672
      %v2667 = vunpack.c.h.b16 %v1672
      %v2668 = vunpack.c.l.b16 %v1673
      %v2669 = vunpack.c.h.b16 %v1673
      %v2670 = vunpack.c.l.b16 %v1674
      %v2671 = vunpack.c.h.b16 %v1674
      %v2672 = vunpack.c.l.b16 %v1675
      %v2673 = vunpack.c.h.b16 %v1675
      %v2674 = vunpack.c.l.b16 %v1676
      %v2675 = vunpack.c.h.b16 %v1676
      %v2676 = vunpack.c.l.b16 %v1677
      %v2677 = vunpack.c.h.b16 %v1677
      %v2678 = vunpack.c.l.b16 %v1678
      %v2679 = vunpack.c.h.b16 %v1678
      %v2680 = vunpack.c.l.b16 %v1679
      %v2681 = vunpack.c.h.b16 %v1679
      %v2682 = vunpack.c.l.b16 %v1680
      %v2683 = vunpack.c.h.b16 %v1680
      %v2684 = vunpack.c.l.b16 %v1681
      %v2685 = vunpack.c.h.b16 %v1681
      %v2686 = vunpack.c.l.b16 %v1682
      %v2687 = vunpack.c.h.b16 %v1682
      %v2688 = vunpack.c.l.b16 %v1683
      %v2689 = vunpack.c.h.b16 %v1683
      %v2690 = vunpack.c.l.b16 %v1684
      %v2691 = vunpack.c.h.b16 %v1684
      %v2692 = vunpack.c.l.b16 %v1685
      %v2693 = vunpack.c.h.b16 %v1685
      %v2694 = vunpack.c.l.b16 %v1686
      %v2695 = vunpack.c.h.b16 %v1686
      %v2696 = vunpack.c.l.b16 %v1687
      %v2697 = vunpack.c.h.b16 %v1687
      %v2698 = vunpack.c.l.b16 %v1688
      %v2699 = vunpack.c.h.b16 %v1688
      %v2700 = vunpack.c.l.b16 %v1689
      %v2701 = vunpack.c.h.b16 %v1689
      %v2702 = vunpack.c.l.b16 %v1690
      %v2703 = vunpack.c.h.b16 %v1690
      %v2704 = vunpack.c.l.b16 %v1691
      %v2705 = vunpack.c.h.b16 %v1691
      %v2706 = vunpack.c.l.b16 %v1692
      %v2707 = vunpack.c.h.b16 %v1692
      %v2708 = vunpack.c.l.b16 %v1693
      %v2709 = vunpack.c.h.b16 %v1693
      %v2710 = vunpack.c.l.b16 %v1694
      %v2711 = vunpack.c.h.b16 %v1694
      %v2712 = vunpack.c.l.b16 %v1695
      %v2713 = vunpack.c.h.b16 %v1695
      %v2714 = vunpack.c.l.b16 %v1696
      %v2715 = vunpack.c.h.b16 %v1696
      %v2716 = vunpack.c.l.b16 %v1697
      %v2717 = vunpack.c.h.b16 %v1697
      %v2718 = vunpack.c.l.b16 %v1698
      %v2719 = vunpack.c.h.b16 %v1698
      %v2720 = vunpack.c.l.b16 %v1699
      %v2721 = vunpack.c.h.b16 %v1699
      %v2722 = vunpack.c.l.b16 %v1700
      %v2723 = vunpack.c.h.b16 %v1700
      %v2724 = vunpack.c.l.b16 %v1701
      %v2725 = vunpack.c.h.b16 %v1701
      %v2726 = vunpack.c.l.b16 %v1702
      %v2727 = vunpack.c.h.b16 %v1702
      %v2728 = vunpack.c.l.b16 %v1703
      %v2729 = vunpack.c.h.b16 %v1703
      %v2730 = vunpack.c.l.b16 %v1704
      %v2731 = vunpack.c.h.b16 %v1704
      %v2732 = vunpack.c.l.b16 %v1705
      %v2733 = vunpack.c.h.b16 %v1705
      %v2734 = vunpack.c.l.b16 %v1706
      %v2735 = vunpack.c.h.b16 %v1706
      %v2736 = vunpack.c.l.b16 %v1707
      %v2737 = vunpack.c.h.b16 %v1707
      %v2738 = vunpack.c.l.b16 %v1708
      %v2739 = vunpack.c.h.b16 %v1708
      %v2740 = vunpack.c.l.b16 %v1709
      %v2741 = vunpack.c.h.b16 %v1709
      %v2742 = vunpack.c.l.b16 %v1710
      %v2743 = vunpack.c.h.b16 %v1710
      %v2744 = vunpack.c.l.b16 %v1711
      %v2745 = vunpack.c.h.b16 %v1711
      %v2746 = vunpack.c.l.b16 %v1712
      %v2747 = vunpack.c.h.b16 %v1712
      %v2748 = vunpack.c.l.b16 %v1713
      %v2749 = vunpack.c.h.b16 %v1713
      %v2750 = vunpack.c.l.b16 %v1714
      %v2751 = vunpack.c.h.b16 %v1714
      %v2752 = vunpack.c.l.b16 %v1715
      %v2753 = vunpack.c.h.b16 %v1715
      %v2754 = vunpack.c.l.b16 %v1716
      %v2755 = vunpack.c.h.b16 %v1716
      %v2756 = vunpack.c.l.b16 %v1717
      %v2757 = vunpack.c.h.b16 %v1717
      %v2758 = vunpack.c.l.b16 %v1718
      %v2759 = vunpack.c.h.b16 %v1718
      %v2760 = vunpack.c.l.b16 %v1719
      %v2761 = vunpack.c.h.b16 %v1719
      %v2762 = vunpack.c.l.b16 %v1720
      %v2763 = vunpack.c.h.b16 %v1720
      %v2764 = vunpack.c.l.b16 %v1721
      %v2765 = vunpack.c.h.b16 %v1721
      %v2766 = vunpack.c.l.b16 %v1722
      %v2767 = vunpack.c.h.b16 %v1722
      %v2768 = vunpack.c.l.b16 %v1723
      %v2769 = vunpack.c.h.b16 %v1723
      %v2770 = vunpack.c.l.b16 %v1724
      %v2771 = vunpack.c.h.b16 %v1724
      %v2772 = vunpack.c.l.b16 %v1725
      %v2773 = vunpack.c.h.b16 %v1725
      %v2774 = vunpack.c.l.b16 %v1726
      %v2775 = vunpack.c.h.b16 %v1726
      %v2776 = vunpack.c.l.b16 %v1727
      %v2777 = vunpack.c.h.b16 %v1727
      %v2778 = vunpack.c.l.b16 %v1728
      %v2779 = vunpack.c.h.b16 %v1728
      %v2780 = vunpack.c.l.b16 %v1729
      %v2781 = vunpack.c.h.b16 %v1729
      %v2782 = vunpack.c.l.b16 %v1730
      %v2783 = vunpack.c.h.b16 %v1730
      %v2784 = vunpack.c.l.b16 %v1731
      %v2785 = vunpack.c.h.b16 %v1731
      %v2786 = vunpack.c.l.b16 %v1732
      %v2787 = vunpack.c.h.b16 %v1732
      %v2788 = vunpack.c.l.b16 %v1733
      %v2789 = vunpack.c.h.b16 %v1733
      %v2790 = vunpack.c.l.b16 %v1734
      %v2791 = vunpack.c.h.b16 %v1734
      %v2792 = vunpack.c.l.b16 %v1735
      %v2793 = vunpack.c.h.b16 %v1735
      %v2794 = vunpack.c.l.b16 %v1736
      %v2795 = vunpack.c.h.b16 %v1736
      %v2796 = vunpack.c.l.b16 %v1737
      %v2797 = vunpack.c.h.b16 %v1737
      %v2798 = vunpack.c.l.b16 %v1738
      %v2799 = vunpack.c.h.b16 %v1738
      %v2800 = vunpack.c.l.b16 %v1739
      %v2801 = vunpack.c.h.b16 %v1739
      %v2802 = vunpack.c.l.b16 %v1740
      %v2803 = vunpack.c.h.b16 %v1740
      %v2804 = vunpack.c.l.b16 %v1741
      %v2805 = vunpack.c.h.b16 %v1741
      %v2806 = vunpack.c.l.b16 %v1742
      %v2807 = vunpack.c.h.b16 %v1742
      %v2808 = vunpack.c.l.b16 %v1743
      %v2809 = vunpack.c.h.b16 %v1743
      %v2810 = vunpack.c.l.b16 %v1744
      %v2811 = vunpack.c.h.b16 %v1744
      %v2812 = vunpack.c.l.b16 %v1745
      %v2813 = vunpack.c.h.b16 %v1745
      %v2814 = vunpack.c.l.b16 %v1746
      %v2815 = vunpack.c.h.b16 %v1746
      %v2816 = vunpack.c.l.b16 %v1747
      %v2817 = vunpack.c.h.b16 %v1747
      %v2818 = vunpack.c.l.b16 %v1748
      %v2819 = vunpack.c.h.b16 %v1748
      %v2820 = vunpack.c.l.b16 %v1749
      %v2821 = vunpack.c.h.b16 %v1749
      %v2822 = vunpack.c.l.b16 %v1750
      %v2823 = vunpack.c.h.b16 %v1750
      %v2824 = vunpack.c.l.b16 %v1751
      %v2825 = vunpack.c.h.b16 %v1751
      %v2826 = vunpack.c.l.b16 %v1752
      %v2827 = vunpack.c.h.b16 %v1752
      %v2828 = vunpack.c.l.b16 %v1753
      %v2829 = vunpack.c.h.b16 %v1753
      %v2830 = vunpack.c.l.b16 %v1754
      %v2831 = vunpack.c.h.b16 %v1754
      %v2832 = vunpack.c.l.b16 %v1755
      %v2833 = vunpack.c.h.b16 %v1755
      %v2834 = vunpack.c.l.b16 %v1756
      %v2835 = vunpack.c.h.b16 %v1756
      %v2836 = vunpack.c.l.b16 %v1757
      %v2837 = vunpack.c.h.b16 %v1757
      %v2838 = vunpack.c.l.b16 %v1758
      %v2839 = vunpack.c.h.b16 %v1758
      %v2840 = vunpack.c.l.b16 %v1759
      %v2841 = vunpack.c.h.b16 %v1759
      %v2842 = vunpack.c.l.b16 %v1760
      %v2843 = vunpack.c.h.b16 %v1760
      %v2844 = vunpack.c.l.b16 %v1761
      %v2845 = vunpack.c.h.b16 %v1761
      %v2846 = vunpack.c.l.b16 %v1762
      %v2847 = vunpack.c.h.b16 %v1762
      %v2848 = vunpack.c.l.b16 %v1763
      %v2849 = vunpack.c.h.b16 %v1763
      %v2850 = vunpack.c.l.b16 %v1764
      %v2851 = vunpack.c.h.b16 %v1764
      %v2852 = vunpack.c.l.b16 %v1765
      %v2853 = vunpack.c.h.b16 %v1765
      %v2854 = vunpack.c.l.b16 %v1766
      %v2855 = vunpack.c.h.b16 %v1766
      %v2856 = vunpack.c.l.b16 %v1767
      %v2857 = vunpack.c.h.b16 %v1767
      %v2858 = vunpack.c.l.b16 %v1768
      %v2859 = vunpack.c.h.b16 %v1768
      %v2860 = vunpack.c.l.b16 %v1769
      %v2861 = vunpack.c.h.b16 %v1769
      %v2862 = vunpack.c.l.b16 %v1770
      %v2863 = vunpack.c.h.b16 %v1770
      %v2864 = vunpack.c.l.b16 %v1771
      %v2865 = vunpack.c.h.b16 %v1771
      %v2866 = vunpack.c.l.b16 %v1772
      %v2867 = vunpack.c.h.b16 %v1772
      %v2868 = vunpack.c.l.b16 %v1773
      %v2869 = vunpack.c.h.b16 %v1773
      %v2870 = vunpack.c.l.b16 %v1774
      %v2871 = vunpack.c.h.b16 %v1774
      %v2872 = vunpack.c.l.b16 %v1775
      %v2873 = vunpack.c.h.b16 %v1775
      %v2874 = vunpack.c.l.b16 %v1776
      %v2875 = vunpack.c.h.b16 %v1776
      %v2876 = vunpack.c.l.b16 %v1777
      %v2877 = vunpack.c.h.b16 %v1777
      %v2878 = vunpack.c.l.b16 %v1778
      %v2879 = vunpack.c.h.b16 %v1778
      %v2880 = vunpack.c.l.b16 %v1779
      %v2881 = vunpack.c.h.b16 %v1779
      %v2882 = vunpack.c.l.b16 %v1780
      %v2883 = vunpack.c.h.b16 %v1780
      %v2884 = vunpack.c.l.b16 %v1781
      %v2885 = vunpack.c.h.b16 %v1781
      %v2886 = vunpack.c.l.b16 %v1782
      %v2887 = vunpack.c.h.b16 %v1782
      %v2888 = vunpack.c.l.b16 %v1783
      %v2889 = vunpack.c.h.b16 %v1783
      %v2890 = vunpack.c.l.b16 %v1784
      %v2891 = vunpack.c.h.b16 %v1784
      %v2892 = vunpack.c.l.b16 %v1785
      %v2893 = vunpack.c.h.b16 %v1785
      %v2894 = vunpack.c.l.b16 %v1786
      %v2895 = vunpack.c.h.b16 %v1786
      %v2896 = vunpack.c.l.b16 %v1787
      %v2897 = vunpack.c.h.b16 %v1787
      %v2898 = vunpack.c.l.b16 %v1788
      %v2899 = vunpack.c.h.b16 %v1788
      %v2900 = vunpack.c.l.b16 %v1789
      %v2901 = vunpack.c.h.b16 %v1789
      %v2902 = vunpack.c.l.b16 %v1790
      %v2903 = vunpack.c.h.b16 %v1790
      %v2904 = vunpack.c.l.b16 %v1791
      %v2905 = vunpack.c.h.b16 %v1791
      %v2906 = vunpack.c.l.b16 %v1792
      %v2907 = vunpack.c.h.b16 %v1792
      %v2908 = vunpack.c.l.b16 %v1793
      %v2909 = vunpack.c.h.b16 %v1793
      %v2910 = vunpack.c.l.b16 %v1794
      %v2911 = vunpack.c.h.b16 %v1794
      %v2912 = vunpack.c.l.b16 %v1795
      %v2913 = vunpack.c.h.b16 %v1795
      %v2914 = vunpack.c.l.b16 %v1796
      %v2915 = vunpack.c.h.b16 %v1796
      %v2916 = vunpack.c.l.b16 %v1797
      %v2917 = vunpack.c.h.b16 %v1797
      %v2918 = vunpack.c.l.b16 %v1798
      %v2919 = vunpack.c.h.b16 %v1798
      %v2920 = vunpack.c.l.b16 %v1799
      %v2921 = vunpack.c.h.b16 %v1799
      %v2922 = vunpack.c.l.b16 %v1800
      %v2923 = vunpack.c.h.b16 %v1800
      %v2924 = vunpack.c.l.b16 %v1801
      %v2925 = vunpack.c.h.b16 %v1801
      %v2926 = vunpack.c.l.b16 %v1802
      %v2927 = vunpack.c.h.b16 %v1802
      %v2928 = vunpack.c.l.b16 %v1803
      %v2929 = vunpack.c.h.b16 %v1803
      %v2930 = vunpack.c.l.b16 %v1804
      %v2931 = vunpack.c.h.b16 %v1804
      %v2932 = vunpack.c.l.b16 %v1805
      %v2933 = vunpack.c.h.b16 %v1805
      %v2934 = vunpack.c.l.b16 %v1806
      %v2935 = vunpack.c.h.b16 %v1806
      %v2936 = vunpack.c.l.b16 %v1807
      %v2937 = vunpack.c.h.b16 %v1807
      %v2938 = vunpack.c.l.b16 %v1808
      %v2939 = vunpack.c.h.b16 %v1808
      %v2940 = vunpack.c.l.b16 %v1809
      %v2941 = vunpack.c.h.b16 %v1809
      %v2942 = vunpack.c.l.b16 %v1810
      %v2943 = vunpack.c.h.b16 %v1810
      %v2944 = vunpack.c.l.b16 %v1811
      %v2945 = vunpack.c.h.b16 %v1811
      %v2946 = vunpack.c.l.b16 %v1812
      %v2947 = vunpack.c.h.b16 %v1812
      %v2948 = vunpack.c.l.b16 %v1813
      %v2949 = vunpack.c.h.b16 %v1813
      %v2950 = vunpack.c.l.b16 %v1814
      %v2951 = vunpack.c.h.b16 %v1814
      %v2952 = vunpack.c.l.b16 %v1815
      %v2953 = vunpack.c.h.b16 %v1815
      %v2954 = vunpack.c.l.b16 %v1816
      %v2955 = vunpack.c.h.b16 %v1816
      %v2956 = vunpack.c.l.b16 %v1817
      %v2957 = vunpack.c.h.b16 %v1817
      %v2958 = vunpack.c.l.b16 %v1818
      %v2959 = vunpack.c.h.b16 %v1818
      %v2960 = vunpack.c.l.b16 %v1819
      %v2961 = vunpack.c.h.b16 %v1819
      %v2962 = vunpack.c.l.b16 %v1820
      %v2963 = vunpack.c.h.b16 %v1820
      %v2964 = vunpack.c.l.b16 %v1821
      %v2965 = vunpack.c.h.b16 %v1821
      %v2966 = vunpack.c.l.b16 %v1822
      %v2967 = vunpack.c.h.b16 %v1822
      %v2968 = vunpack.c.l.b16 %v1823
      %v2969 = vunpack.c.h.b16 %v1823
      %v2970 = vunpack.c.l.b16 %v1824
      %v2971 = vunpack.c.h.b16 %v1824
      %v2972 = vunpack.c.l.b16 %v1825
      %v2973 = vunpack.c.h.b16 %v1825
      %v2974 = vunpack.c.l.b16 %v1826
      %v2975 = vunpack.c.h.b16 %v1826
      %v2976 = vunpack.c.l.b16 %v1827
      %v2977 = vunpack.c.h.b16 %v1827
      %v2978 = vunpack.c.l.b16 %v1828
      %v2979 = vunpack.c.h.b16 %v1828
      %v2980 = vunpack.c.l.b16 %v1829
      %v2981 = vunpack.c.h.b16 %v1829
      %v2982 = vunpack.c.l.b16 %v1830
      %v2983 = vunpack.c.h.b16 %v1830
      %v2984 = vunpack.c.l.b16 %v1831
      %v2985 = vunpack.c.h.b16 %v1831
      %v2986 = vunpack.c.l.b16 %v1832
      %v2987 = vunpack.c.h.b16 %v1832
      %v2988 = vunpack.c.l.b16 %v1833
      %v2989 = vunpack.c.h.b16 %v1833
      %v2990 = vunpack.c.l.b16 %v1834
      %v2991 = vunpack.c.h.b16 %v1834
      %v2992 = vunpack.c.l.b16 %v1835
      %v2993 = vunpack.c.h.b16 %v1835
      %v2994 = vpack.c.b16 %v2436, %v2418
      %v2995 = vpack.c.b16 %v2437, %v2419
      %v2996 = vpack.c.b16 %v2438, %v2420
      %v2997 = vpack.c.b16 %v2439, %v2421
      %v2998 = vpack.c.b16 %v2440, %v2422
      %v2999 = vpack.c.b16 %v2441, %v2423
      %v3000 = vpack.c.b16 %v2442, %v2424
      %v3001 = vpack.c.b16 %v2443, %v2425
      %v3002 = vpack.c.b16 %v2444, %v2426
      %v3003 = vpack.c.b16 %v2445, %v2427
      %v3004 = vpack.c.b16 %v2446, %v2428
      %v3005 = vpack.c.b16 %v2447, %v2429
      %v3006 = vpack.c.b16 %v2448, %v2430
      %v3007 = vpack.c.b16 %v2449, %v2431
      %v3008 = vpack.c.b16 %v2450, %v2432
      %v3009 = vpack.c.b16 %v2451, %v2433
      %v3010 = vpack.c.b16 %v2452, %v2434
      %v3011 = vpack.c.b16 %v2453, %v2435
      %v3012 = vpack.c.b16 %v2472, %v2454
      %v3013 = vpack.c.b16 %v2473, %v2455
      %v3014 = vpack.c.b16 %v2474, %v2456
      %v3015 = vpack.c.b16 %v2475, %v2457
      %v3016 = vpack.c.b16 %v2476, %v2458
      %v3017 = vpack.c.b16 %v2477, %v2459
      %v3018 = vpack.c.b16 %v2478, %v2460
      %v3019 = vpack.c.b16 %v2479, %v2461
      %v3020 = vpack.c.b16 %v2480, %v2462
      %v3021 = vpack.c.b16 %v2481, %v2463
      %v3022 = vpack.c.b16 %v2482, %v2464
      %v3023 = vpack.c.b16 %v2483, %v2465
      %v3024 = vpack.c.b16 %v2484, %v2466
      %v3025 = vpack.c.b16 %v2485, %v2467
      %v3026 = vpack.c.b16 %v2486, %v2468
      %v3027 = vpack.c.b16 %v2487, %v2469
      %v3028 = vpack.c.b16 %v2488, %v2470
      %v3029 = vpack.c.b16 %v2489, %v2471
      %v3030 = vpack.c.b16 %v2508, %v2490
      %v3031 = vpack.c.b16 %v2509, %v2491
      %v3032 = vpack.c.b16 %v2510, %v2492
      %v3033 = vpack.c.b16 %v2511, %v2493
      %v3034 = vpack.c.b16 %v2512, %v2494
      %v3035 = vpack.c.b16 %v2513, %v2495
      %v3036 = vpack.c.b16 %v2514, %v2496
      %v3037 = vpack.c.b16 %v2515, %v2497
      %v3038 = vpack.c.b16 %v2516, %v2498
      %v3039 = vpack.c.b16 %v2517, %v2499
      %v3040 = vpack.c.b16 %v2518, %v2500
      %v3041 = vpack.c.b16 %v2519, %v2501
      %v3042 = vpack.c.b16 %v2520, %v2502
      %v3043 = vpack.c.b16 %v2521, %v2503
      %v3044 = vpack.c.b16 %v2522, %v2504
      %v3045 = vpack.c.b16 %v2523, %v2505
      %v3046 = vpack.c.b16 %v2524, %v2506
      %v3047 = vpack.c.b16 %v2525, %v2507
      %v3048 = vpack.c.b16 %v2544, %v2526
      %v3049 = vpack.c.b16 %v2545, %v2527
      %v3050 = vpack.c.b16 %v2546, %v2528
      %v3051 = vpack.c.b16 %v2547, %v2529
      %v3052 = vpack.c.b16 %v2548, %v2530
      %v3053 = vpack.c.b16 %v2549, %v2531
      %v3054 = vpack.c.b16 %v2550, %v2532
      %v3055 = vpack.c.b16 %v2551, %v2533
      %v3056 = vpack.c.b16 %v2552, %v2534
      %v3057 = vpack.c.b16 %v2553, %v2535
      %v3058 = vpack.c.b16 %v2554, %v2536
      %v3059 = vpack.c.b16 %v2555, %v2537
      %v3060 = vpack.c.b16 %v2556, %v2538
      %v3061 = vpack.c.b16 %v2557, %v2539
      %v3062 = vpack.c.b16 %v2558, %v2540
      %v3063 = vpack.c.b16 %v2559, %v2541
      %v3064 = vpack.c.b16 %v2560, %v2542
      %v3065 = vpack.c.b16 %v2561, %v2543
      %v3066 = vpack.c.b16 %v2580, %v2562
      %v3067 = vpack.c.b16 %v2581, %v2563
      %v3068 = vpack.c.b16 %v2582, %v2564
      %v3069 = vpack.c.b16 %v2583, %v2565
      %v3070 = vpack.c.b16 %v2584, %v2566
      %v3071 = vpack.c.b16 %v2585, %v2567
      %v3072 = vpack.c.b16 %v2586, %v2568
      %v3073 = vpack.c.b16 %v2587, %v2569
      %v3074 = vpack.c.b16 %v2588, %v2570
      %v3075 = vpack.c.b16 %v2589, %v2571
      %v3076 = vpack.c.b16 %v2590, %v2572
      %v3077 = vpack.c.b16 %v2591, %v2573
      %v3078 = vpack.c.b16 %v2592, %v2574
      %v3079 = vpack.c.b16 %v2593, %v2575
      %v3080 = vpack.c.b16 %v2594, %v2576
      %v3081 = vpack.c.b16 %v2595, %v2577
      %v3082 = vpack.c.b16 %v2596, %v2578
      %v3083 = vpack.c.b16 %v2597, %v2579
      %v3084 = vpack.c.b16 %v2616, %v2598
      %v3085 = vpack.c.b16 %v2617, %v2599
      %v3086 = vpack.c.b16 %v2618, %v2600
      %v3087 = vpack.c.b16 %v2619, %v2601
      %v3088 = vpack.c.b16 %v2620, %v2602
      %v3089 = vpack.c.b16 %v2621, %v2603
      %v3090 = vpack.c.b16 %v2622, %v2604
      %v3091 = vpack.c.b16 %v2623, %v2605
      %v3092 = vpack.c.b16 %v2624, %v2606
      %v3093 = vpack.c.b16 %v2625, %v2607
      %v3094 = vpack.c.b16 %v2626, %v2608
      %v3095 = vpack.c.b16 %v2627, %v2609
      %v3096 = vpack.c.b16 %v2628, %v2610
      %v3097 = vpack.c.b16 %v2629, %v2611
      %v3098 = vpack.c.b16 %v2630, %v2612
      %v3099 = vpack.c.b16 %v2631, %v2613
      %v3100 = vpack.c.b16 %v2632, %v2614
      %v3101 = vpack.c.b16 %v2633, %v2615
      %v3102 = vpack.c.b16 %v2652, %v2634
      %v3103 = vpack.c.b16 %v2653, %v2635
      %v3104 = vpack.c.b16 %v2654, %v2636
      %v3105 = vpack.c.b16 %v2655, %v2637
      %v3106 = vpack.c.b16 %v2656, %v2638
      %v3107 = vpack.c.b16 %v2657, %v2639
      %v3108 = vpack.c.b16 %v2658, %v2640
      %v3109 = vpack.c.b16 %v2659, %v2641
      %v3110 = vpack.c.b16 %v2660, %v2642
      %v3111 = vpack.c.b16 %v2661, %v2643
      %v3112 = vpack.c.b16 %v2662, %v2644
      %v3113 = vpack.c.b16 %v2663, %v2645
      %v3114 = vpack.c.b16 %v2664, %v2646
      %v3115 = vpack.c.b16 %v2665, %v2647
      %v3116 = vpack.c.b16 %v2666, %v2648
      %v3117 = vpack.c.b16 %v2667, %v2649
      %v3118 = vpack.c.b16 %v2668, %v2650
      %v3119 = vpack.c.b16 %v2669, %v2651
      %v3120 = vpack.c.b16 %v2688, %v2670
      %v3121 = vpack.c.b16 %v2689, %v2671
      %v3122 = vpack.c.b16 %v2690, %v2672
      %v3123 = vpack.c.b16 %v2691, %v2673
      %v3124 = vpack.c.b16 %v2692, %v2674
      %v3125 = vpack.c.b16 %v2693, %v2675
      %v3126 = vpack.c.b16 %v2694, %v2676
      %v3127 = vpack.c.b16 %v2695, %v2677
      %v3128 = vpack.c.b16 %v2696, %v2678
      %v3129 = vpack.c.b16 %v2697, %v2679
      %v3130 = vpack.c.b16 %v2698, %v2680
      %v3131 = vpack.c.b16 %v2699, %v2681
      %v3132 = vpack.c.b16 %v2700, %v2682
      %v3133 = vpack.c.b16 %v2701, %v2683
      %v3134 = vpack.c.b16 %v2702, %v2684
      %v3135 = vpack.c.b16 %v2703, %v2685
      %v3136 = vpack.c.b16 %v2704, %v2686
      %v3137 = vpack.c.b16 %v2705, %v2687
      %v3138 = vpack.c.b16 %v2724, %v2706
      %v3139 = vpack.c.b16 %v2725, %v2707
      %v3140 = vpack.c.b16 %v2726, %v2708
      %v3141 = vpack.c.b16 %v2727, %v2709
      %v3142 = vpack.c.b16 %v2728, %v2710
      %v3143 = vpack.c.b16 %v2729, %v2711
      %v3144 = vpack.c.b16 %v2730, %v2712
      %v3145 = vpack.c.b16 %v2731, %v2713
      %v3146 = vpack.c.b16 %v2732, %v2714
      %v3147 = vpack.c.b16 %v2733, %v2715
      %v3148 = vpack.c.b16 %v2734, %v2716
      %v3149 = vpack.c.b16 %v2735, %v2717
      %v3150 = vpack.c.b16 %v2736, %v2718
      %v3151 = vpack.c.b16 %v2737, %v2719
      %v3152 = vpack.c.b16 %v2738, %v2720
      %v3153 = vpack.c.b16 %v2739, %v2721
      %v3154 = vpack.c.b16 %v2740, %v2722
      %v3155 = vpack.c.b16 %v2741, %v2723
      %v3156 = vpack.c.b16 %v2760, %v2742
      %v3157 = vpack.c.b16 %v2761, %v2743
      %v3158 = vpack.c.b16 %v2762, %v2744
      %v3159 = vpack.c.b16 %v2763, %v2745
      %v3160 = vpack.c.b16 %v2764, %v2746
      %v3161 = vpack.c.b16 %v2765, %v2747
      %v3162 = vpack.c.b16 %v2766, %v2748
      %v3163 = vpack.c.b16 %v2767, %v2749
      %v3164 = vpack.c.b16 %v2768, %v2750
      %v3165 = vpack.c.b16 %v2769, %v2751
      %v3166 = vpack.c.b16 %v2770, %v2752
      %v3167 = vpack.c.b16 %v2771, %v2753
      %v3168 = vpack.c.b16 %v2772, %v2754
      %v3169 = vpack.c.b16 %v2773, %v2755
      %v3170 = vpack.c.b16 %v2774, %v2756
      %v3171 = vpack.c.b16 %v2775, %v2757
      %v3172 = vpack.c.b16 %v2776, %v2758
      %v3173 = vpack.c.b16 %v2777, %v2759
      %v3174 = vpack.c.b16 %v2796, %v2778
      %v3175 = vpack.c.b16 %v2797, %v2779
      %v3176 = vpack.c.b16 %v2798, %v2780
      %v3177 = vpack.c.b16 %v2799, %v2781
      %v3178 = vpack.c.b16 %v2800, %v2782
      %v3179 = vpack.c.b16 %v2801, %v2783
      %v3180 = vpack.c.b16 %v2802, %v2784
      %v3181 = vpack.c.b16 %v2803, %v2785
      %v3182 = vpack.c.b16 %v2804, %v2786
      %v3183 = vpack.c.b16 %v2805, %v2787
      %v3184 = vpack.c.b16 %v2806, %v2788
      %v3185 = vpack.c.b16 %v2807, %v2789
      %v3186 = vpack.c.b16 %v2808, %v2790
      %v3187 = vpack.c.b16 %v2809, %v2791
      %v3188 = vpack.c.b16 %v2810, %v2792
      %v3189 = vpack.c.b16 %v2811, %v2793
      %v3190 = vpack.c.b16 %v2812, %v2794
      %v3191 = vpack.c.b16 %v2813, %v2795
      %v3192 = vpack.c.b16 %v2832, %v2814
      %v3193 = vpack.c.b16 %v2833, %v2815
      %v3194 = vpack.c.b16 %v2834, %v2816
      %v3195 = vpack.c.b16 %v2835, %v2817
      %v3196 = vpack.c.b16 %v2836, %v2818
      %v3197 = vpack.c.b16 %v2837, %v2819
      %v3198 = vpack.c.b16 %v2838, %v2820
      %v3199 = vpack.c.b16 %v2839, %v2821
      %v3200 = vpack.c.b16 %v2840, %v2822
      %v3201 = vpack.c.b16 %v2841, %v2823
      %v3202 = vpack.c.b16 %v2842, %v2824
      %v3203 = vpack.c.b16 %v2843, %v2825
      %v3204 = vpack.c.b16 %v2844, %v2826
      %v3205 = vpack.c.b16 %v2845, %v2827
      %v3206 = vpack.c.b16 %v2846, %v2828
      %v3207 = vpack.c.b16 %v2847, %v2829
      %v3208 = vpack.c.b16 %v2848, %v2830
      %v3209 = vpack.c.b16 %v2849, %v2831
      %v3210 = vpack.c.b16 %v2868, %v2850
      %v3211 = vpack.c.b16 %v2869, %v2851
      %v3212 = vpack.c.b16 %v2870, %v2852
      %v3213 = vpack.c.b16 %v2871, %v2853
      %v3214 = vpack.c.b16 %v2872, %v2854
      %v3215 = vpack.c.b16 %v2873, %v2855
      %v3216 = vpack.c.b16 %v2874, %v2856
      %v3217 = vpack.c.b16 %v2875, %v2857
      %v3218 = vpack.c.b16 %v2876, %v2858
      %v3219 = vpack.c.b16 %v2877, %v2859
      %v3220 = vpack.c.b16 %v2878, %v2860
      %v3221 = vpack.c.b16 %v2879, %v2861
      %v3222 = vpack.c.b16 %v2880, %v2862
      %v3223 = vpack.c.b16 %v2881, %v2863
      %v3224 = vpack.c.b16 %v2882, %v2864
      %v3225 = vpack.c.b16 %v2883, %v2865
      %v3226 = vpack.c.b16 %v2884, %v2866
      %v3227 = vpack.c.b16 %v2885, %v2867
      %v3228 = vpack.c.b16 %v2904, %v2886
      %v3229 = vpack.c.b16 %v2905, %v2887
      %v3230 = vpack.c.b16 %v2906, %v2888
      %v3231 = vpack.c.b16 %v2907, %v2889
      %v3232 = vpack.c.b16 %v2908, %v2890
      %v3233 = vpack.c.b16 %v2909, %v2891
      %v3234 = vpack.c.b16 %v2910, %v2892
      %v3235 = vpack.c.b16 %v2911, %v2893
      %v3236 = vpack.c.b16 %v2912, %v2894
      %v3237 = vpack.c.b16 %v2913, %v2895
      %v3238 = vpack.c.b16 %v2914, %v2896
      %v3239 = vpack.c.b16 %v2915, %v2897
      %v3240 = vpack.c.b16 %v2916, %v2898
      %v3241 = vpack.c.b16 %v2917, %v2899
      %v3242 = vpack.c.b16 %v2918, %v2900
      %v3243 = vpack.c.b16 %v2919, %v2901
      %v3244 = vpack.c.b16 %v2920, %v2902
      %v3245 = vpack.c.b16 %v2921, %v2903
      %v3246 = vpack.c.b16 %v2940, %v2922
      %v3247 = vpack.c.b16 %v2941, %v2923
      %v3248 = vpack.c.b16 %v2942, %v2924
      %v3249 = vpack.c.b16 %v2943, %v2925
      %v3250 = vpack.c.b16 %v2944, %v2926
      %v3251 = vpack.c.b16 %v2945, %v2927
      %v3252 = vpack.c.b16 %v2946, %v2928
      %v3253 = vpack.c.b16 %v2947, %v2929
      %v3254 = vpack.c.b16 %v2948, %v2930
      %v3255 = vpack.c.b16 %v2949, %v2931
      %v3256 = vpack.c.b16 %v2950, %v2932
      %v3257 = vpack.c.b16 %v2951, %v2933
      %v3258 = vpack.c.b16 %v2952, %v2934
      %v3259 = vpack.c.b16 %v2953, %v2935
      %v3260 = vpack.c.b16 %v2954, %v2936
      %v3261 = vpack.c.b16 %v2955, %v2937
      %v3262 = vpack.c.b16 %v2956, %v2938
      %v3263 = vpack.c.b16 %v2957, %v2939
      %v3264 = vpack.c.b16 %v2976, %v2958
      %v3265 = vpack.c.b16 %v2977, %v2959
      %v3266 = vpack.c.b16 %v2978, %v2960
      %v3267 = vpack.c.b16 %v2979, %v2961
      %v3268 = vpack.c.b16 %v2980, %v2962
      %v3269 = vpack.c.b16 %v2981, %v2963
      %v3270 = vpack.c.b16 %v2982, %v2964
      %v3271 = vpack.c.b16 %v2983, %v2965
      %v3272 = vpack.c.b16 %v2984, %v2966
      %v3273 = vpack.c.b16 %v2985, %v2967
      %v3274 = vpack.c.b16 %v2986, %v2968
      %v3275 = vpack.c.b16 %v2987, %v2969
      %v3276 = vpack.c.b16 %v2988, %v2970
      %v3277 = vpack.c.b16 %v2989, %v2971
      %v3278 = vpack.c.b16 %v2990, %v2972
      %v3279 = vpack.c.b16 %v2991, %v2973
      %v3280 = vpack.c.b16 %v2992, %v2974
      %v3281 = vpack.c.b16 %v2993, %v2975
      %v3858 = vunpack.c.l.b16 %v1836
      %v3859 = vunpack.c.h.b16 %v1836
      %v3860 = vunpack.c.l.b16 %v1837
      %v3861 = vunpack.c.h.b16 %v1837
      %v3862 = vunpack.c.l.b16 %v1838
      %v3863 = vunpack.c.h.b16 %v1838
      %v3864 = vunpack.c.l.b16 %v1839
      %v3865 = vunpack.c.h.b16 %v1839
      %v3866 = vunpack.c.l.b16 %v1840
      %v3867 = vunpack.c.h.b16 %v1840
      %v3868 = vunpack.c.l.b16 %v1841
      %v3869 = vunpack.c.h.b16 %v1841
      %v3870 = vunpack.c.l.b16 %v1842
      %v3871 = vunpack.c.h.b16 %v1842
      %v3872 = vunpack.c.l.b16 %v1843
      %v3873 = vunpack.c.h.b16 %v1843
      %v3874 = vunpack.c.l.b16 %v1844
      %v3875 = vunpack.c.h.b16 %v1844
      %v3876 = vunpack.c.l.b16 %v1845
      %v3877 = vunpack.c.h.b16 %v1845
      %v3878 = vunpack.c.l.b16 %v1846
      %v3879 = vunpack.c.h.b16 %v1846
      %v3880 = vunpack.c.l.b16 %v1847
      %v3881 = vunpack.c.h.b16 %v1847
      %v3882 = vunpack.c.l.b16 %v1848
      %v3883 = vunpack.c.h.b16 %v1848
      %v3884 = vunpack.c.l.b16 %v1849
      %v3885 = vunpack.c.h.b16 %v1849
      %v3886 = vunpack.c.l.b16 %v1850
      %v3887 = vunpack.c.h.b16 %v1850
      %v3888 = vunpack.c.l.b16 %v1851
      %v3889 = vunpack.c.h.b16 %v1851
      %v3890 = vunpack.c.l.b16 %v1852
      %v3891 = vunpack.c.h.b16 %v1852
      %v3892 = vunpack.c.l.b16 %v1853
      %v3893 = vunpack.c.h.b16 %v1853
      %v3894 = vunpack.c.l.b16 %v1854
      %v3895 = vunpack.c.h.b16 %v1854
      %v3896 = vunpack.c.l.b16 %v1855
      %v3897 = vunpack.c.h.b16 %v1855
      %v3898 = vunpack.c.l.b16 %v1856
      %v3899 = vunpack.c.h.b16 %v1856
      %v3900 = vunpack.c.l.b16 %v1857
      %v3901 = vunpack.c.h.b16 %v1857
      %v3902 = vunpack.c.l.b16 %v1858
      %v3903 = vunpack.c.h.b16 %v1858
      %v3904 = vunpack.c.l.b16 %v1859
      %v3905 = vunpack.c.h.b16 %v1859
      %v3906 = vunpack.c.l.b16 %v1860
      %v3907 = vunpack.c.h.b16 %v1860
      %v3908 = vunpack.c.l.b16 %v1861
      %v3909 = vunpack.c.h.b16 %v1861
      %v3910 = vunpack.c.l.b16 %v1862
      %v3911 = vunpack.c.h.b16 %v1862
      %v3912 = vunpack.c.l.b16 %v1863
      %v3913 = vunpack.c.h.b16 %v1863
      %v3914 = vunpack.c.l.b16 %v1864
      %v3915 = vunpack.c.h.b16 %v1864
      %v3916 = vunpack.c.l.b16 %v1865
      %v3917 = vunpack.c.h.b16 %v1865
      %v3918 = vunpack.c.l.b16 %v1866
      %v3919 = vunpack.c.h.b16 %v1866
      %v3920 = vunpack.c.l.b16 %v1867
      %v3921 = vunpack.c.h.b16 %v1867
      %v3922 = vunpack.c.l.b16 %v1868
      %v3923 = vunpack.c.h.b16 %v1868
      %v3924 = vunpack.c.l.b16 %v1869
      %v3925 = vunpack.c.h.b16 %v1869
      %v3926 = vunpack.c.l.b16 %v1870
      %v3927 = vunpack.c.h.b16 %v1870
      %v3928 = vunpack.c.l.b16 %v1871
      %v3929 = vunpack.c.h.b16 %v1871
      %v3930 = vunpack.c.l.b16 %v1872
      %v3931 = vunpack.c.h.b16 %v1872
      %v3932 = vunpack.c.l.b16 %v1873
      %v3933 = vunpack.c.h.b16 %v1873
      %v3934 = vunpack.c.l.b16 %v1874
      %v3935 = vunpack.c.h.b16 %v1874
      %v3936 = vunpack.c.l.b16 %v1875
      %v3937 = vunpack.c.h.b16 %v1875
      %v3938 = vunpack.c.l.b16 %v1876
      %v3939 = vunpack.c.h.b16 %v1876
      %v3940 = vunpack.c.l.b16 %v1877
      %v3941 = vunpack.c.h.b16 %v1877
      %v3942 = vunpack.c.l.b16 %v1878
      %v3943 = vunpack.c.h.b16 %v1878
      %v3944 = vunpack.c.l.b16 %v1879
      %v3945 = vunpack.c.h.b16 %v1879
      %v3946 = vunpack.c.l.b16 %v1880
      %v3947 = vunpack.c.h.b16 %v1880
      %v3948 = vunpack.c.l.b16 %v1881
      %v3949 = vunpack.c.h.b16 %v1881
      %v3950 = vunpack.c.l.b16 %v1882
      %v3951 = vunpack.c.h.b16 %v1882
      %v3952 = vunpack.c.l.b16 %v1883
      %v3953 = vunpack.c.h.b16 %v1883
      %v3954 = vunpack.c.l.b16 %v1884
      %v3955 = vunpack.c.h.b16 %v1884
      %v3956 = vunpack.c.l.b16 %v1885
      %v3957 = vunpack.c.h.b16 %v1885
      %v3958 = vunpack.c.l.b16 %v1886
      %v3959 = vunpack.c.h.b16 %v1886
      %v3960 = vunpack.c.l.b16 %v1887
      %v3961 = vunpack.c.h.b16 %v1887
      %v3962 = vunpack.c.l.b16 %v1888
      %v3963 = vunpack.c.h.b16 %v1888
      %v3964 = vunpack.c.l.b16 %v1889
      %v3965 = vunpack.c.h.b16 %v1889
      %v3966 = vunpack.c.l.b16 %v1890
      %v3967 = vunpack.c.h.b16 %v1890
      %v3968 = vunpack.c.l.b16 %v1891
      %v3969 = vunpack.c.h.b16 %v1891
      %v3970 = vunpack.c.l.b16 %v1892
      %v3971 = vunpack.c.h.b16 %v1892
      %v3972 = vunpack.c.l.b16 %v1893
      %v3973 = vunpack.c.h.b16 %v1893
      %v3974 = vunpack.c.l.b16 %v1894
      %v3975 = vunpack.c.h.b16 %v1894
      %v3976 = vunpack.c.l.b16 %v1895
      %v3977 = vunpack.c.h.b16 %v1895
      %v3978 = vunpack.c.l.b16 %v1896
      %v3979 = vunpack.c.h.b16 %v1896
      %v3980 = vunpack.c.l.b16 %v1897
      %v3981 = vunpack.c.h.b16 %v1897
      %v3982 = vunpack.c.l.b16 %v1898
      %v3983 = vunpack.c.h.b16 %v1898
      %v3984 = vunpack.c.l.b16 %v1899
      %v3985 = vunpack.c.h.b16 %v1899
      %v3986 = vunpack.c.l.b16 %v1900
      %v3987 = vunpack.c.h.b16 %v1900
      %v3988 = vunpack.c.l.b16 %v1901
      %v3989 = vunpack.c.h.b16 %v1901
      %v3990 = vunpack.c.l.b16 %v1902
      %v3991 = vunpack.c.h.b16 %v1902
      %v3992 = vunpack.c.l.b16 %v1903
      %v3993 = vunpack.c.h.b16 %v1903
      %v3994 = vunpack.c.l.b16 %v1904
      %v3995 = vunpack.c.h.b16 %v1904
      %v3996 = vunpack.c.l.b16 %v1905
      %v3997 = vunpack.c.h.b16 %v1905
      %v3998 = vunpack.c.l.b16 %v1906
      %v3999 = vunpack.c.h.b16 %v1906
      %v4000 = vunpack.c.l.b16 %v1907
      %v4001 = vunpack.c.h.b16 %v1907
      %v4002 = vunpack.c.l.b16 %v1908
      %v4003 = vunpack.c.h.b16 %v1908
      %v4004 = vunpack.c.l.b16 %v1909
      %v4005 = vunpack.c.h.b16 %v1909
      %v4006 = vunpack.c.l.b16 %v1910
      %v4007 = vunpack.c.h.b16 %v1910
      %v4008 = vunpack.c.l.b16 %v1911
      %v4009 = vunpack.c.h.b16 %v1911
      %v4010 = vunpack.c.l.b16 %v1912
      %v4011 = vunpack.c.h.b16 %v1912
      %v4012 = vunpack.c.l.b16 %v1913
      %v4013 = vunpack.c.h.b16 %v1913
      %v4014 = vunpack.c.l.b16 %v1914
      %v4015 = vunpack.c.h.b16 %v1914
      %v4016 = vunpack.c.l.b16 %v1915
      %v4017 = vunpack.c.h.b16 %v1915
      %v4018 = vunpack.c.l.b16 %v1916
      %v4019 = vunpack.c.h.b16 %v1916
      %v4020 = vunpack.c.l.b16 %v1917
      %v4021 = vunpack.c.h.b16 %v1917
      %v4022 = vunpack.c.l.b16 %v1918
      %v4023 = vunpack.c.h.b16 %v1918
      %v4024 = vunpack.c.l.b16 %v1919
      %v4025 = vunpack.c.h.b16 %v1919
      %v4026 = vunpack.c.l.b16 %v1920
      %v4027 = vunpack.c.h.b16 %v1920
      %v4028 = vunpack.c.l.b16 %v1921
      %v4029 = vunpack.c.h.b16 %v1921
      %v4030 = vunpack.c.l.b16 %v1922
      %v4031 = vunpack.c.h.b16 %v1922
      %v4032 = vunpack.c.l.b16 %v1923
      %v4033 = vunpack.c.h.b16 %v1923
      %v4034 = vunpack.c.l.b16 %v1924
      %v4035 = vunpack.c.h.b16 %v1924
      %v4036 = vunpack.c.l.b16 %v1925
      %v4037 = vunpack.c.h.b16 %v1925
      %v4038 = vunpack.c.l.b16 %v1926
      %v4039 = vunpack.c.h.b16 %v1926
      %v4040 = vunpack.c.l.b16 %v1927
      %v4041 = vunpack.c.h.b16 %v1927
      %v4042 = vunpack.c.l.b16 %v1928
      %v4043 = vunpack.c.h.b16 %v1928
      %v4044 = vunpack.c.l.b16 %v1929
      %v4045 = vunpack.c.h.b16 %v1929
      %v4046 = vunpack.c.l.b16 %v1930
      %v4047 = vunpack.c.h.b16 %v1930
      %v4048 = vunpack.c.l.b16 %v1931
      %v4049 = vunpack.c.h.b16 %v1931
      %v4050 = vunpack.c.l.b16 %v1932
      %v4051 = vunpack.c.h.b16 %v1932
      %v4052 = vunpack.c.l.b16 %v1933
      %v4053 = vunpack.c.h.b16 %v1933
      %v4054 = vunpack.c.l.b16 %v1934
      %v4055 = vunpack.c.h.b16 %v1934
      %v4056 = vunpack.c.l.b16 %v1935
      %v4057 = vunpack.c.h.b16 %v1935
      %v4058 = vunpack.c.l.b16 %v1936
      %v4059 = vunpack.c.h.b16 %v1936
      %v4060 = vunpack.c.l.b16 %v1937
      %v4061 = vunpack.c.h.b16 %v1937
      %v4062 = vunpack.c.l.b16 %v1938
      %v4063 = vunpack.c.h.b16 %v1938
      %v4064 = vunpack.c.l.b16 %v1939
      %v4065 = vunpack.c.h.b16 %v1939
      %v4066 = vunpack.c.l.b16 %v1940
      %v4067 = vunpack.c.h.b16 %v1940
      %v4068 = vunpack.c.l.b16 %v1941
      %v4069 = vunpack.c.h.b16 %v1941
      %v4070 = vunpack.c.l.b16 %v1942
      %v4071 = vunpack.c.h.b16 %v1942
      %v4072 = vunpack.c.l.b16 %v1943
      %v4073 = vunpack.c.h.b16 %v1943
      %v4074 = vunpack.c.l.b16 %v1944
      %v4075 = vunpack.c.h.b16 %v1944
      %v4076 = vunpack.c.l.b16 %v1945
      %v4077 = vunpack.c.h.b16 %v1945
      %v4078 = vunpack.c.l.b16 %v1946
      %v4079 = vunpack.c.h.b16 %v1946
      %v4080 = vunpack.c.l.b16 %v1947
      %v4081 = vunpack.c.h.b16 %v1947
      %v4082 = vunpack.c.l.b16 %v1948
      %v4083 = vunpack.c.h.b16 %v1948
      %v4084 = vunpack.c.l.b16 %v1949
      %v4085 = vunpack.c.h.b16 %v1949
      %v4086 = vunpack.c.l.b16 %v1950
      %v4087 = vunpack.c.h.b16 %v1950
      %v4088 = vunpack.c.l.b16 %v1951
      %v4089 = vunpack.c.h.b16 %v1951
      %v4090 = vunpack.c.l.b16 %v1952
      %v4091 = vunpack.c.h.b16 %v1952
      %v4092 = vunpack.c.l.b16 %v1953
      %v4093 = vunpack.c.h.b16 %v1953
      %v4094 = vunpack.c.l.b16 %v1954
      %v4095 = vunpack.c.h.b16 %v1954
      %v4096 = vunpack.c.l.b16 %v1955
      %v4097 = vunpack.c.h.b16 %v1955
      %v4098 = vunpack.c.l.b16 %v1956
      %v4099 = vunpack.c.h.b16 %v1956
      %v4100 = vunpack.c.l.b16 %v1957
      %v4101 = vunpack.c.h.b16 %v1957
      %v4102 = vunpack.c.l.b16 %v1958
      %v4103 = vunpack.c.h.b16 %v1958
      %v4104 = vunpack.c.l.b16 %v1959
      %v4105 = vunpack.c.h.b16 %v1959
      %v4106 = vunpack.c.l.b16 %v1960
      %v4107 = vunpack.c.h.b16 %v1960
      %v4108 = vunpack.c.l.b16 %v1961
      %v4109 = vunpack.c.h.b16 %v1961
      %v4110 = vunpack.c.l.b16 %v1962
      %v4111 = vunpack.c.h.b16 %v1962
      %v4112 = vunpack.c.l.b16 %v1963
      %v4113 = vunpack.c.h.b16 %v1963
      %v4114 = vunpack.c.l.b16 %v1964
      %v4115 = vunpack.c.h.b16 %v1964
      %v4116 = vunpack.c.l.b16 %v1965
      %v4117 = vunpack.c.h.b16 %v1965
      %v4118 = vunpack.c.l.b16 %v1966
      %v4119 = vunpack.c.h.b16 %v1966
      %v4120 = vunpack.c.l.b16 %v1967
      %v4121 = vunpack.c.h.b16 %v1967
      %v4122 = vunpack.c.l.b16 %v1968
      %v4123 = vunpack.c.h.b16 %v1968
      %v4124 = vunpack.c.l.b16 %v1969
      %v4125 = vunpack.c.h.b16 %v1969
      %v4126 = vunpack.c.l.b16 %v1970
      %v4127 = vunpack.c.h.b16 %v1970
      %v4128 = vunpack.c.l.b16 %v1971
      %v4129 = vunpack.c.h.b16 %v1971
      %v4130 = vunpack.c.l.b16 %v1972
      %v4131 = vunpack.c.h.b16 %v1972
      %v4132 = vunpack.c.l.b16 %v1973
      %v4133 = vunpack.c.h.b16 %v1973
      %v4134 = vunpack.c.l.b16 %v1974
      %v4135 = vunpack.c.h.b16 %v1974
      %v4136 = vunpack.c.l.b16 %v1975
      %v4137 = vunpack.c.h.b16 %v1975
      %v4138 = vunpack.c.l.b16 %v1976
      %v4139 = vunpack.c.h.b16 %v1976
      %v4140 = vunpack.c.l.b16 %v1977
      %v4141 = vunpack.c.h.b16 %v1977
      %v4142 = vunpack.c.l.b16 %v1978
      %v4143 = vunpack.c.h.b16 %v1978
      %v4144 = vunpack.c.l.b16 %v1979
      %v4145 = vunpack.c.h.b16 %v1979
      %v4146 = vunpack.c.l.b16 %v1980
      %v4147 = vunpack.c.h.b16 %v1980
      %v4148 = vunpack.c.l.b16 %v1981
      %v4149 = vunpack.c.h.b16 %v1981
      %v4150 = vunpack.c.l.b16 %v1982
      %v4151 = vunpack.c.h.b16 %v1982
      %v4152 = vunpack.c.l.b16 %v1983
      %v4153 = vunpack.c.h.b16 %v1983
      %v4154 = vunpack.c.l.b16 %v1984
      %v4155 = vunpack.c.h.b16 %v1984
      %v4156 = vunpack.c.l.b16 %v1985
      %v4157 = vunpack.c.h.b16 %v1985
      %v4158 = vunpack.c.l.b16 %v1986
      %v4159 = vunpack.c.h.b16 %v1986
      %v4160 = vunpack.c.l.b16 %v1987
      %v4161 = vunpack.c.h.b16 %v1987
      %v4162 = vunpack.c.l.b16 %v1988
      %v4163 = vunpack.c.h.b16 %v1988
      %v4164 = vunpack.c.l.b16 %v1989
      %v4165 = vunpack.c.h.b16 %v1989
      %v4166 = vunpack.c.l.b16 %v1990
      %v4167 = vunpack.c.h.b16 %v1990
      %v4168 = vunpack.c.l.b16 %v1991
      %v4169 = vunpack.c.h.b16 %v1991
      %v4170 = vunpack.c.l.b16 %v1992
      %v4171 = vunpack.c.h.b16 %v1992
      %v4172 = vunpack.c.l.b16 %v1993
      %v4173 = vunpack.c.h.b16 %v1993
      %v4174 = vunpack.c.l.b16 %v1994
      %v4175 = vunpack.c.h.b16 %v1994
      %v4176 = vunpack.c.l.b16 %v1995
      %v4177 = vunpack.c.h.b16 %v1995
      %v4178 = vunpack.c.l.b16 %v1996
      %v4179 = vunpack.c.h.b16 %v1996
      %v4180 = vunpack.c.l.b16 %v1997
      %v4181 = vunpack.c.h.b16 %v1997
      %v4182 = vunpack.c.l.b16 %v1998
      %v4183 = vunpack.c.h.b16 %v1998
      %v4184 = vunpack.c.l.b16 %v1999
      %v4185 = vunpack.c.h.b16 %v1999
      %v4186 = vunpack.c.l.b16 %v2000
      %v4187 = vunpack.c.h.b16 %v2000
      %v4188 = vunpack.c.l.b16 %v2001
      %v4189 = vunpack.c.h.b16 %v2001
      %v4190 = vunpack.c.l.b16 %v2002
      %v4191 = vunpack.c.h.b16 %v2002
      %v4192 = vunpack.c.l.b16 %v2003
      %v4193 = vunpack.c.h.b16 %v2003
      %v4194 = vunpack.c.l.b16 %v2004
      %v4195 = vunpack.c.h.b16 %v2004
      %v4196 = vunpack.c.l.b16 %v2005
      %v4197 = vunpack.c.h.b16 %v2005
      %v4198 = vunpack.c.l.b16 %v2006
      %v4199 = vunpack.c.h.b16 %v2006
      %v4200 = vunpack.c.l.b16 %v2007
      %v4201 = vunpack.c.h.b16 %v2007
      %v4202 = vunpack.c.l.b16 %v2008
      %v4203 = vunpack.c.h.b16 %v2008
      %v4204 = vunpack.c.l.b16 %v2009
      %v4205 = vunpack.c.h.b16 %v2009
      %v4206 = vunpack.c.l.b16 %v2010
      %v4207 = vunpack.c.h.b16 %v2010
      %v4208 = vunpack.c.l.b16 %v2011
      %v4209 = vunpack.c.h.b16 %v2011
      %v4210 = vunpack.c.l.b16 %v2012
      %v4211 = vunpack.c.h.b16 %v2012
      %v4212 = vunpack.c.l.b16 %v2013
      %v4213 = vunpack.c.h.b16 %v2013
      %v4214 = vunpack.c.l.b16 %v2014
      %v4215 = vunpack.c.h.b16 %v2014
      %v4216 = vunpack.c.l.b16 %v2015
      %v4217 = vunpack.c.h.b16 %v2015
      %v4218 = vunpack.c.l.b16 %v2016
      %v4219 = vunpack.c.h.b16 %v2016
      %v4220 = vunpack.c.l.b16 %v2017
      %v4221 = vunpack.c.h.b16 %v2017
      %v4222 = vunpack.c.l.b16 %v2018
      %v4223 = vunpack.c.h.b16 %v2018
      %v4224 = vunpack.c.l.b16 %v2019
      %v4225 = vunpack.c.h.b16 %v2019
      %v4226 = vunpack.c.l.b16 %v2020
      %v4227 = vunpack.c.h.b16 %v2020
      %v4228 = vunpack.c.l.b16 %v2021
      %v4229 = vunpack.c.h.b16 %v2021
      %v4230 = vunpack.c.l.b16 %v2022
      %v4231 = vunpack.c.h.b16 %v2022
      %v4232 = vunpack.c.l.b16 %v2023
      %v4233 = vunpack.c.h.b16 %v2023
      %v4234 = vunpack.c.l.b16 %v2024
      %v4235 = vunpack.c.h.b16 %v2024
      %v4236 = vunpack.c.l.b16 %v2025
      %v4237 = vunpack.c.h.b16 %v2025
      %v4238 = vunpack.c.l.b16 %v2026
      %v4239 = vunpack.c.h.b16 %v2026
      %v4240 = vunpack.c.l.b16 %v2027
      %v4241 = vunpack.c.h.b16 %v2027
      %v4242 = vunpack.c.l.b16 %v2028
      %v4243 = vunpack.c.h.b16 %v2028
      %v4244 = vunpack.c.l.b16 %v2029
      %v4245 = vunpack.c.h.b16 %v2029
      %v4246 = vunpack.c.l.b16 %v2030
      %v4247 = vunpack.c.h.b16 %v2030
      %v4248 = vunpack.c.l.b16 %v2031
      %v4249 = vunpack.c.h.b16 %v2031
      %v4250 = vunpack.c.l.b16 %v2032
      %v4251 = vunpack.c.h.b16 %v2032
      %v4252 = vunpack.c.l.b16 %v2033
      %v4253 = vunpack.c.h.b16 %v2033
      %v4254 = vunpack.c.l.b16 %v2034
      %v4255 = vunpack.c.h.b16 %v2034
      %v4256 = vunpack.c.l.b16 %v2035
      %v4257 = vunpack.c.h.b16 %v2035
      %v4258 = vunpack.c.l.b16 %v2036
      %v4259 = vunpack.c.h.b16 %v2036
      %v4260 = vunpack.c.l.b16 %v2037
      %v4261 = vunpack.c.h.b16 %v2037
      %v4262 = vunpack.c.l.b16 %v2038
      %v4263 = vunpack.c.h.b16 %v2038
      %v4264 = vunpack.c.l.b16 %v2039
      %v4265 = vunpack.c.h.b16 %v2039
      %v4266 = vunpack.c.l.b16 %v2040
      %v4267 = vunpack.c.h.b16 %v2040
      %v4268 = vunpack.c.l.b16 %v2041
      %v4269 = vunpack.c.h.b16 %v2041
      %v4270 = vunpack.c.l.b16 %v2042
      %v4271 = vunpack.c.h.b16 %v2042
      %v4272 = vunpack.c.l.b16 %v2043
      %v4273 = vunpack.c.h.b16 %v2043
      %v4274 = vunpack.c.l.b16 %v2044
      %v4275 = vunpack.c.h.b16 %v2044
      %v4276 = vunpack.c.l.b16 %v2045
      %v4277 = vunpack.c.h.b16 %v2045
      %v4278 = vunpack.c.l.b16 %v2046
      %v4279 = vunpack.c.h.b16 %v2046
      %v4280 = vunpack.c.l.b16 %v2047
      %v4281 = vunpack.c.h.b16 %v2047
      %v4282 = vunpack.c.l.b16 %v2048
      %v4283 = vunpack.c.h.b16 %v2048
      %v4284 = vunpack.c.l.b16 %v2049
      %v4285 = vunpack.c.h.b16 %v2049
      %v4286 = vunpack.c.l.b16 %v2050
      %v4287 = vunpack.c.h.b16 %v2050
      %v4288 = vunpack.c.l.b16 %v2051
      %v4289 = vunpack.c.h.b16 %v2051
      %v4290 = vunpack.c.l.b16 %v2052
      %v4291 = vunpack.c.h.b16 %v2052
      %v4292 = vunpack.c.l.b16 %v2053
      %v4293 = vunpack.c.h.b16 %v2053
      %v4294 = vunpack.c.l.b16 %v2054
      %v4295 = vunpack.c.h.b16 %v2054
      %v4296 = vunpack.c.l.b16 %v2055
      %v4297 = vunpack.c.h.b16 %v2055
      %v4298 = vunpack.c.l.b16 %v2056
      %v4299 = vunpack.c.h.b16 %v2056
      %v4300 = vunpack.c.l.b16 %v2057
      %v4301 = vunpack.c.h.b16 %v2057
      %v4302 = vunpack.c.l.b16 %v2058
      %v4303 = vunpack.c.h.b16 %v2058
      %v4304 = vunpack.c.l.b16 %v2059
      %v4305 = vunpack.c.h.b16 %v2059
      %v4306 = vunpack.c.l.b16 %v2060
      %v4307 = vunpack.c.h.b16 %v2060
      %v4308 = vunpack.c.l.b16 %v2061
      %v4309 = vunpack.c.h.b16 %v2061
      %v4310 = vunpack.c.l.b16 %v2062
      %v4311 = vunpack.c.h.b16 %v2062
      %v4312 = vunpack.c.l.b16 %v2063
      %v4313 = vunpack.c.h.b16 %v2063
      %v4314 = vunpack.c.l.b16 %v2064
      %v4315 = vunpack.c.h.b16 %v2064
      %v4316 = vunpack.c.l.b16 %v2065
      %v4317 = vunpack.c.h.b16 %v2065
      %v4318 = vunpack.c.l.b16 %v2066
      %v4319 = vunpack.c.h.b16 %v2066
      %v4320 = vunpack.c.l.b16 %v2067
      %v4321 = vunpack.c.h.b16 %v2067
      %v4322 = vunpack.c.l.b16 %v2068
      %v4323 = vunpack.c.h.b16 %v2068
      %v4324 = vunpack.c.l.b16 %v2069
      %v4325 = vunpack.c.h.b16 %v2069
      %v4326 = vunpack.c.l.b16 %v2070
      %v4327 = vunpack.c.h.b16 %v2070
      %v4328 = vunpack.c.l.b16 %v2071
      %v4329 = vunpack.c.h.b16 %v2071
      %v4330 = vunpack.c.l.b16 %v2072
      %v4331 = vunpack.c.h.b16 %v2072
      %v4332 = vunpack.c.l.b16 %v2073
      %v4333 = vunpack.c.h.b16 %v2073
      %v4334 = vunpack.c.l.b16 %v2074
      %v4335 = vunpack.c.h.b16 %v2074
      %v4336 = vunpack.c.l.b16 %v2075
      %v4337 = vunpack.c.h.b16 %v2075
      %v4338 = vunpack.c.l.b16 %v2076
      %v4339 = vunpack.c.h.b16 %v2076
      %v4340 = vunpack.c.l.b16 %v2077
      %v4341 = vunpack.c.h.b16 %v2077
      %v4342 = vunpack.c.l.b16 %v2078
      %v4343 = vunpack.c.h.b16 %v2078
      %v4344 = vunpack.c.l.b16 %v2079
      %v4345 = vunpack.c.h.b16 %v2079
      %v4346 = vunpack.c.l.b16 %v2080
      %v4347 = vunpack.c.h.b16 %v2080
      %v4348 = vunpack.c.l.b16 %v2081
      %v4349 = vunpack.c.h.b16 %v2081
      %v4350 = vunpack.c.l.b16 %v2082
      %v4351 = vunpack.c.h.b16 %v2082
      %v4352 = vunpack.c.l.b16 %v2083
      %v4353 = vunpack.c.h.b16 %v2083
      %v4354 = vunpack.c.l.b16 %v2084
      %v4355 = vunpack.c.h.b16 %v2084
      %v4356 = vunpack.c.l.b16 %v2085
      %v4357 = vunpack.c.h.b16 %v2085
      %v4358 = vunpack.c.l.b16 %v2086
      %v4359 = vunpack.c.h.b16 %v2086
      %v4360 = vunpack.c.l.b16 %v2087
      %v4361 = vunpack.c.h.b16 %v2087
      %v4362 = vunpack.c.l.b16 %v2088
      %v4363 = vunpack.c.h.b16 %v2088
      %v4364 = vunpack.c.l.b16 %v2089
      %v4365 = vunpack.c.h.b16 %v2089
      %v4366 = vunpack.c.l.b16 %v2090
      %v4367 = vunpack.c.h.b16 %v2090
      %v4368 = vunpack.c.l.b16 %v2091
      %v4369 = vunpack.c.h.b16 %v2091
      %v4370 = vunpack.c.l.b16 %v2092
      %v4371 = vunpack.c.h.b16 %v2092
      %v4372 = vunpack.c.l.b16 %v2093
      %v4373 = vunpack.c.h.b16 %v2093
      %v4374 = vunpack.c.l.b16 %v2094
      %v4375 = vunpack.c.h.b16 %v2094
      %v4376 = vunpack.c.l.b16 %v2095
      %v4377 = vunpack.c.h.b16 %v2095
      %v4378 = vunpack.c.l.b16 %v2096
      %v4379 = vunpack.c.h.b16 %v2096
      %v4380 = vunpack.c.l.b16 %v2097
      %v4381 = vunpack.c.h.b16 %v2097
      %v4382 = vunpack.c.l.b16 %v2098
      %v4383 = vunpack.c.h.b16 %v2098
      %v4384 = vunpack.c.l.b16 %v2099
      %v4385 = vunpack.c.h.b16 %v2099
      %v4386 = vunpack.c.l.b16 %v2100
      %v4387 = vunpack.c.h.b16 %v2100
      %v4388 = vunpack.c.l.b16 %v2101
      %v4389 = vunpack.c.h.b16 %v2101
      %v4390 = vunpack.c.l.b16 %v2102
      %v4391 = vunpack.c.h.b16 %v2102
      %v4392 = vunpack.c.l.b16 %v2103
      %v4393 = vunpack.c.h.b16 %v2103
      %v4394 = vunpack.c.l.b16 %v2104
      %v4395 = vunpack.c.h.b16 %v2104
      %v4396 = vunpack.c.l.b16 %v2105
      %v4397 = vunpack.c.h.b16 %v2105
      %v4398 = vunpack.c.l.b16 %v2106
      %v4399 = vunpack.c.h.b16 %v2106
      %v4400 = vunpack.c.l.b16 %v2107
      %v4401 = vunpack.c.h.b16 %v2107
      %v4402 = vunpack.c.l.b16 %v2108
      %v4403 = vunpack.c.h.b16 %v2108
      %v4404 = vunpack.c.l.b16 %v2109
      %v4405 = vunpack.c.h.b16 %v2109
      %v4406 = vunpack.c.l.b16 %v2110
      %v4407 = vunpack.c.h.b16 %v2110
      %v4408 = vunpack.c.l.b16 %v2111
      %v4409 = vunpack.c.h.b16 %v2111
      %v4410 = vunpack.c.l.b16 %v2112
      %v4411 = vunpack.c.h.b16 %v2112
      %v4412 = vunpack.c.l.b16 %v2113
      %v4413 = vunpack.c.h.b16 %v2113
      %v4414 = vunpack.c.l.b16 %v2114
      %v4415 = vunpack.c.h.b16 %v2114
      %v4416 = vunpack.c.l.b16 %v2115
      %v4417 = vunpack.c.h.b16 %v2115
      %v4418 = vunpack.c.l.b16 %v2116
      %v4419 = vunpack.c.h.b16 %v2116
      %v4420 = vunpack.c.l.b16 %v2117
      %v4421 = vunpack.c.h.b16 %v2117
      %v4422 = vunpack.c.l.b16 %v2118
      %v4423 = vunpack.c.h.b16 %v2118
      %v4424 = vunpack.c.l.b16 %v2119
      %v4425 = vunpack.c.h.b16 %v2119
      %v4426 = vunpack.c.l.b16 %v2120
      %v4427 = vunpack.c.h.b16 %v2120
      %v4428 = vunpack.c.l.b16 %v2121
      %v4429 = vunpack.c.h.b16 %v2121
      %v4430 = vunpack.c.l.b16 %v2122
      %v4431 = vunpack.c.h.b16 %v2122
      %v4432 = vunpack.c.l.b16 %v2123
      %v4433 = vunpack.c.h.b16 %v2123
      %v4434 = vpack.c.b16 %v3860, %v3858
      %v4435 = vpack.c.b16 %v3861, %v3859
      %v4436 = vpack.c.b16 %v3864, %v3862
      %v4437 = vpack.c.b16 %v3865, %v3863
      %v4438 = vpack.c.b16 %v3868, %v3866
      %v4439 = vpack.c.b16 %v3869, %v3867
      %v4440 = vpack.c.b16 %v3872, %v3870
      %v4441 = vpack.c.b16 %v3873, %v3871
      %v4442 = vpack.c.b16 %v3876, %v3874
      %v4443 = vpack.c.b16 %v3877, %v3875
      %v4444 = vpack.c.b16 %v3880, %v3878
      %v4445 = vpack.c.b16 %v3881, %v3879
      %v4446 = vpack.c.b16 %v3884, %v3882
      %v4447 = vpack.c.b16 %v3885, %v3883
      %v4448 = vpack.c.b16 %v3888, %v3886
      %v4449 = vpack.c.b16 %v3889, %v3887
      %v4450 = vpack.c.b16 %v3892, %v3890
      %v4451 = vpack.c.b16 %v3893, %v3891
      %v4452 = vpack.c.b16 %v3896, %v3894
      %v4453 = vpack.c.b16 %v3897, %v3895
      %v4454 = vpack.c.b16 %v3900, %v3898
      %v4455 = vpack.c.b16 %v3901, %v3899
      %v4456 = vpack.c.b16 %v3904, %v3902
      %v4457 = vpack.c.b16 %v3905, %v3903
      %v4458 = vpack.c.b16 %v3908, %v3906
      %v4459 = vpack.c.b16 %v3909, %v3907
      %v4460 = vpack.c.b16 %v3912, %v3910
      %v4461 = vpack.c.b16 %v3913, %v3911
      %v4462 = vpack.c.b16 %v3916, %v3914
      %v4463 = vpack.c.b16 %v3917, %v3915
      %v4464 = vpack.c.b16 %v3920, %v3918
      %v4465 = vpack.c.b16 %v3921, %v3919
      %v4466 = vpack.c.b16 %v3924, %v3922
      %v4467 = vpack.c.b16 %v3925, %v3923
      %v4468 = vpack.c.b16 %v3928, %v3926
      %v4469 = vpack.c.b16 %v3929, %v3927
      %v4470 = vpack.c.b16 %v3932, %v3930
      %v4471 = vpack.c.b16 %v3933, %v3931
      %v4472 = vpack.c.b16 %v3936, %v3934
      %v4473 = vpack.c.b16 %v3937, %v3935
      %v4474 = vpack.c.b16 %v3940, %v3938
      %v4475 = vpack.c.b16 %v3941, %v3939
      %v4476 = vpack.c.b16 %v3944, %v3942
      %v4477 = vpack.c.b16 %v3945, %v3943
      %v4478 = vpack.c.b16 %v3948, %v3946
      %v4479 = vpack.c.b16 %v3949, %v3947
      %v4480 = vpack.c.b16 %v3952, %v3950
      %v4481 = vpack.c.b16 %v3953, %v3951
      %v4482 = vpack.c.b16 %v3956, %v3954
      %v4483 = vpack.c.b16 %v3957, %v3955
      %v4484 = vpack.c.b16 %v3960, %v3958
      %v4485 = vpack.c.b16 %v3961, %v3959
      %v4486 = vpack.c.b16 %v3964, %v3962
      %v4487 = vpack.c.b16 %v3965, %v3963
      %v4488 = vpack.c.b16 %v3968, %v3966
      %v4489 = vpack.c.b16 %v3969, %v3967
      %v4490 = vpack.c.b16 %v3972, %v3970
      %v4491 = vpack.c.b16 %v3973, %v3971
      %v4492 = vpack.c.b16 %v3976, %v3974
      %v4493 = vpack.c.b16 %v3977, %v3975
      %v4494 = vpack.c.b16 %v3980, %v3978
      %v4495 = vpack.c.b16 %v3981, %v3979
      %v4496 = vpack.c.b16 %v3984, %v3982
      %v4497 = vpack.c.b16 %v3985, %v3983
      %v4498 = vpack.c.b16 %v3988, %v3986
      %v4499 = vpack.c.b16 %v3989, %v3987
      %v4500 = vpack.c.b16 %v3992, %v3990
      %v4501 = vpack.c.b16 %v3993, %v3991
      %v4502 = vpack.c.b16 %v3996, %v3994
      %v4503 = vpack.c.b16 %v3997, %v3995
      %v4504 = vpack.c.b16 %v4000, %v3998
      %v4505 = vpack.c.b16 %v4001, %v3999
      %v4506 = vpack.c.b16 %v4004, %v4002
      %v4507 = vpack.c.b16 %v4005, %v4003
      %v4508 = vpack.c.b16 %v4008, %v4006
      %v4509 = vpack.c.b16 %v4009, %v4007
      %v4510 = vpack.c.b16 %v4012, %v4010
      %v4511 = vpack.c.b16 %v4013, %v4011
      %v4512 = vpack.c.b16 %v4016, %v4014
      %v4513 = vpack.c.b16 %v4017, %v4015
      %v4514 = vpack.c.b16 %v4020, %v4018
      %v4515 = vpack.c.b16 %v4021, %v4019
      %v4516 = vpack.c.b16 %v4024, %v4022
      %v4517 = vpack.c.b16 %v4025, %v4023
      %v4518 = vpack.c.b16 %v4028, %v4026
      %v4519 = vpack.c.b16 %v4029, %v4027
      %v4520 = vpack.c.b16 %v4032, %v4030
      %v4521 = vpack.c.b16 %v4033, %v4031
      %v4522 = vpack.c.b16 %v4036, %v4034
      %v4523 = vpack.c.b16 %v4037, %v4035
      %v4524 = vpack.c.b16 %v4040, %v4038
      %v4525 = vpack.c.b16 %v4041, %v4039
      %v4526 = vpack.c.b16 %v4044, %v4042
      %v4527 = vpack.c.b16 %v4045, %v4043
      %v4528 = vpack.c.b16 %v4048, %v4046
      %v4529 = vpack.c.b16 %v4049, %v4047
      %v4530 = vpack.c.b16 %v4052, %v4050
      %v4531 = vpack.c.b16 %v4053, %v4051
      %v4532 = vpack.c.b16 %v4056, %v4054
      %v4533 = vpack.c.b16 %v4057, %v4055
      %v4534 = vpack.c.b16 %v4060, %v4058
      %v4535 = vpack.c.b16 %v4061, %v4059
      %v4536 = vpack.c.b16 %v4064, %v4062
      %v4537 = vpack.c.b16 %v4065, %v4063
      %v4538 = vpack.c.b16 %v4068, %v4066
      %v4539 = vpack.c.b16 %v4069, %v4067
      %v4540 = vpack.c.b16 %v4072, %v4070
      %v4541 = vpack.c.b16 %v4073, %v4071
      %v4542 = vpack.c.b16 %v4076, %v4074
      %v4543 = vpack.c.b16 %v4077, %v4075
      %v4544 = vpack.c.b16 %v4080, %v4078
      %v4545 = vpack.c.b16 %v4081, %v4079
      %v4546 = vpack.c.b16 %v4084, %v4082
      %v4547 = vpack.c.b16 %v4085, %v4083
      %v4548 = vpack.c.b16 %v4088, %v4086
      %v4549 = vpack.c.b16 %v4089, %v4087
      %v4550 = vpack.c.b16 %v4092, %v4090
      %v4551 = vpack.c.b16 %v4093, %v4091
      %v4552 = vpack.c.b16 %v4096, %v4094
      %v4553 = vpack.c.b16 %v4097, %v4095
      %v4554 = vpack.c.b16 %v4100, %v4098
      %v4555 = vpack.c.b16 %v4101, %v4099
      %v4556 = vpack.c.b16 %v4104, %v4102
      %v4557 = vpack.c.b16 %v4105, %v4103
      %v4558 = vpack.c.b16 %v4108, %v4106
      %v4559 = vpack.c.b16 %v4109, %v4107
      %v4560 = vpack.c.b16 %v4112, %v4110
      %v4561 = vpack.c.b16 %v4113, %v4111
      %v4562 = vpack.c.b16 %v4116, %v4114
      %v4563 = vpack.c.b16 %v4117, %v4115
      %v4564 = vpack.c.b16 %v4120, %v4118
      %v4565 = vpack.c.b16 %v4121, %v4119
      %v4566 = vpack.c.b16 %v4124, %v4122
      %v4567 = vpack.c.b16 %v4125, %v4123
      %v4568 = vpack.c.b16 %v4128, %v4126
      %v4569 = vpack.c.b16 %v4129, %v4127
      %v4570 = vpack.c.b16 %v4132, %v4130
      %v4571 = vpack.c.b16 %v4133, %v4131
      %v4572 = vpack.c.b16 %v4136, %v4134
      %v4573 = vpack.c.b16 %v4137, %v4135
      %v4574 = vpack.c.b16 %v4140, %v4138
      %v4575 = vpack.c.b16 %v4141, %v4139
      %v4576 = vpack.c.b16 %v4144, %v4142
      %v4577 = vpack.c.b16 %v4145, %v4143
      %v4578 = vpack.c.b16 %v4148, %v4146
      %v4579 = vpack.c.b16 %v4149, %v4147
      %v4580 = vpack.c.b16 %v4152, %v4150
      %v4581 = vpack.c.b16 %v4153, %v4151
      %v4582 = vpack.c.b16 %v4156, %v4154
      %v4583 = vpack.c.b16 %v4157, %v4155
      %v4584 = vpack.c.b16 %v4160, %v4158
      %v4585 = vpack.c.b16 %v4161, %v4159
      %v4586 = vpack.c.b16 %v4164, %v4162
      %v4587 = vpack.c.b16 %v4165, %v4163
      %v4588 = vpack.c.b16 %v4168, %v4166
      %v4589 = vpack.c.b16 %v4169, %v4167
      %v4590 = vpack.c.b16 %v4172, %v4170
      %v4591 = vpack.c.b16 %v4173, %v4171
      %v4592 = vpack.c.b16 %v4176, %v4174
      %v4593 = vpack.c.b16 %v4177, %v4175
      %v4594 = vpack.c.b16 %v4180, %v4178
      %v4595 = vpack.c.b16 %v4181, %v4179
      %v4596 = vpack.c.b16 %v4184, %v4182
      %v4597 = vpack.c.b16 %v4185, %v4183
      %v4598 = vpack.c.b16 %v4188, %v4186
      %v4599 = vpack.c.b16 %v4189, %v4187
      %v4600 = vpack.c.b16 %v4192, %v4190
      %v4601 = vpack.c.b16 %v4193, %v4191
      %v4602 = vpack.c.b16 %v4196, %v4194
      %v4603 = vpack.c.b16 %v4197, %v4195
      %v4604 = vpack.c.b16 %v4200, %v4198
      %v4605 = vpack.c.b16 %v4201, %v4199
      %v4606 = vpack.c.b16 %v4204, %v4202
      %v4607 = vpack.c.b16 %v4205, %v4203
      %v4608 = vpack.c.b16 %v4208, %v4206
      %v4609 = vpack.c.b16 %v4209, %v4207
      %v4610 = vpack.c.b16 %v4212, %v4210
      %v4611 = vpack.c.b16 %v4213, %v4211
      %v4612 = vpack.c.b16 %v4216, %v4214
      %v4613 = vpack.c.b16 %v4217, %v4215
      %v4614 = vpack.c.b16 %v4220, %v4218
      %v4615 = vpack.c.b16 %v4221, %v4219
      %v4616 = vpack.c.b16 %v4224, %v4222
      %v4617 = vpack.c.b16 %v4225, %v4223
      %v4618 = vpack.c.b16 %v4228, %v4226
      %v4619 = vpack.c.b16 %v4229, %v4227
      %v4620 = vpack.c.b16 %v4232, %v4230
      %v4621 = vpack.c.b16 %v4233, %v4231
      %v4622 = vpack.c.b16 %v4236, %v4234
      %v4623 = vpack.c.b16 %v4237, %v4235
      %v4624 = vpack.c.b16 %v4240, %v4238
      %v4625 = vpack.c.b16 %v4241, %v4239
      %v4626 = vpack.c.b16 %v4244, %v4242
      %v4627 = vpack.c.b16 %v4245, %v4243
      %v4628 = vpack.c.b16 %v4248, %v4246
      %v4629 = vpack.c.b16 %v4249, %v4247
      %v4630 = vpack.c.b16 %v4252, %v4250
      %v4631 = vpack.c.b16 %v4253, %v4251
      %v4632 = vpack.c.b16 %v4256, %v4254
      %v4633 = vpack.c.b16 %v4257, %v4255
      %v4634 = vpack.c.b16 %v4260, %v4258
      %v4635 = vpack.c.b16 %v4261, %v4259
      %v4636 = vpack.c.b16 %v4264, %v4262
      %v4637 = vpack.c.b16 %v4265, %v4263
      %v4638 = vpack.c.b16 %v4268, %v4266
      %v4639 = vpack.c.b16 %v4269, %v4267
      %v4640 = vpack.c.b16 %v4272, %v4270
      %v4641 = vpack.c.b16 %v4273, %v4271
      %v4642 = vpack.c.b16 %v4276, %v4274
      %v4643 = vpack.c.b16 %v4277, %v4275
      %v4644 = vpack.c.b16 %v4280, %v4278
      %v4645 = vpack.c.b16 %v4281, %v4279
      %v4646 = vpack.c.b16 %v4284, %v4282
      %v4647 = vpack.c.b16 %v4285, %v4283
      %v4648 = vpack.c.b16 %v4288, %v4286
      %v4649 = vpack.c.b16 %v4289, %v4287
      %v4650 = vpack.c.b16 %v4292, %v4290
      %v4651 = vpack.c.b16 %v4293, %v4291
      %v4652 = vpack.c.b16 %v4296, %v4294
      %v4653 = vpack.c.b16 %v4297, %v4295
      %v4654 = vpack.c.b16 %v4300, %v4298
      %v4655 = vpack.c.b16 %v4301, %v4299
      %v4656 = vpack.c.b16 %v4304, %v4302
      %v4657 = vpack.c.b16 %v4305, %v4303
      %v4658 = vpack.c.b16 %v4308, %v4306
      %v4659 = vpack.c.b16 %v4309, %v4307
      %v4660 = vpack.c.b16 %v4312, %v4310
      %v4661 = vpack.c.b16 %v4313, %v4311
      %v4662 = vpack.c.b16 %v4316, %v4314
      %v4663 = vpack.c.b16 %v4317, %v4315
      %v4664 = vpack.c.b16 %v4320, %v4318
      %v4665 = vpack.c.b16 %v4321, %v4319
      %v4666 = vpack.c.b16 %v4324, %v4322
      %v4667 = vpack.c.b16 %v4325, %v4323
      %v4668 = vpack.c.b16 %v4328, %v4326
      %v4669 = vpack.c.b16 %v4329, %v4327
      %v4670 = vpack.c.b16 %v4332, %v4330
      %v4671 = vpack.c.b16 %v4333, %v4331
      %v4672 = vpack.c.b16 %v4336, %v4334
      %v4673 = vpack.c.b16 %v4337, %v4335
      %v4674 = vpack.c.b16 %v4340, %v4338
      %v4675 = vpack.c.b16 %v4341, %v4339
      %v4676 = vpack.c.b16 %v4344, %v4342
      %v4677 = vpack.c.b16 %v4345, %v4343
      %v4678 = vpack.c.b16 %v4348, %v4346
      %v4679 = vpack.c.b16 %v4349, %v4347
      %v4680 = vpack.c.b16 %v4352, %v4350
      %v4681 = vpack.c.b16 %v4353, %v4351
      %v4682 = vpack.c.b16 %v4356, %v4354
      %v4683 = vpack.c.b16 %v4357, %v4355
      %v4684 = vpack.c.b16 %v4360, %v4358
      %v4685 = vpack.c.b16 %v4361, %v4359
      %v4686 = vpack.c.b16 %v4364, %v4362
      %v4687 = vpack.c.b16 %v4365, %v4363
      %v4688 = vpack.c.b16 %v4368, %v4366
      %v4689 = vpack.c.b16 %v4369, %v4367
      %v4690 = vpack.c.b16 %v4372, %v4370
      %v4691 = vpack.c.b16 %v4373, %v4371
      %v4692 = vpack.c.b16 %v4376, %v4374
      %v4693 = vpack.c.b16 %v4377, %v4375
      %v4694 = vpack.c.b16 %v4380, %v4378
      %v4695 = vpack.c.b16 %v4381, %v4379
      %v4696 = vpack.c.b16 %v4384, %v4382
      %v4697 = vpack.c.b16 %v4385, %v4383
      %v4698 = vpack.c.b16 %v4388, %v4386
      %v4699 = vpack.c.b16 %v4389, %v4387
      %v4700 = vpack.c.b16 %v4392, %v4390
      %v4701 = vpack.c.b16 %v4393, %v4391
      %v4702 = vpack.c.b16 %v4396, %v4394
      %v4703 = vpack.c.b16 %v4397, %v4395
      %v4704 = vpack.c.b16 %v4400, %v4398
      %v4705 = vpack.c.b16 %v4401, %v4399
      %v4706 = vpack.c.b16 %v4404, %v4402
      %v4707 = vpack.c.b16 %v4405, %v4403
      %v4708 = vpack.c.b16 %v4408, %v4406
      %v4709 = vpack.c.b16 %v4409, %v4407
      %v4710 = vpack.c.b16 %v4412, %v4410
      %v4711 = vpack.c.b16 %v4413, %v4411
      %v4712 = vpack.c.b16 %v4416, %v4414
      %v4713 = vpack.c.b16 %v4417, %v4415
      %v4714 = vpack.c.b16 %v4420, %v4418
      %v4715 = vpack.c.b16 %v4421, %v4419
      %v4716 = vpack.c.b16 %v4424, %v4422
      %v4717 = vpack.c.b16 %v4425, %v4423
      %v4718 = vpack.c.b16 %v4428, %v4426
      %v4719 = vpack.c.b16 %v4429, %v4427
      %v4720 = vpack.c.b16 %v4432, %v4430
      %v4721 = vpack.c.b16 %v4433, %v4431
      %5010 = vmatpush.bf16.msra.mxu0 %v4448
      %5011 = vmatpush.bf16.msra.mxu0 %v4446
      %5012 = vmatpush.bf16.msra.mxu0 %v4444
      %5013 = vmatpush.bf16.msra.mxu0 %v4442
      %5014 = vmatpush.bf16.msra.mxu0 %v4440
      %5015 = vmatpush.bf16.msra.mxu0 %v4438
      %5016 = vmatpush.bf16.msra.mxu0 %v4436
      %5017 = vmatpush.bf16.msra.mxu0 %v4434
      %5018 = vmatmul.bf16.gmra.mxu0 %v2994
      %v5019 = vpop.f32.mrf.mxu0
      %v5020 = vadd.f32 %v2126, %v5019
      %v5021 = vpop.f32.mrf.mxu0
      %v5022 = vadd.f32 %v2126, %v5021
      %5023 = vmatmul.bf16.gmra.mxu0 %v3012
      %v5024 = vpop.f32.mrf.mxu0
      %v5025 = vadd.f32 %v2126, %v5024
      %v5026 = vpop.f32.mrf.mxu0
      %v5027 = vadd.f32 %v2126, %v5026
      %5028 = vmatmul.bf16.gmra.mxu0 %v3030
      %v5029 = vpop.f32.mrf.mxu0
      %v5030 = vadd.f32 %v2126, %v5029
      %v5031 = vpop.f32.mrf.mxu0
      %v5032 = vadd.f32 %v2126, %v5031
      %5033 = vmatmul.bf16.gmra.mxu0 %v3048
      %v5034 = vpop.f32.mrf.mxu0
      %v5035 = vadd.f32 %v2126, %v5034
      %v5036 = vpop.f32.mrf.mxu0
      %v5037 = vadd.f32 %v2126, %v5036
      %5038 = vmatmul.bf16.gmra.mxu0 %v3066
      %v5039 = vpop.f32.mrf.mxu0
      %v5040 = vadd.f32 %v2126, %v5039
      %v5041 = vpop.f32.mrf.mxu0
      %v5042 = vadd.f32 %v2126, %v5041
      %5043 = vmatmul.bf16.gmra.mxu0 %v3084
      %v5044 = vpop.f32.mrf.mxu0
      %v5045 = vadd.f32 %v2126, %v5044
      %v5046 = vpop.f32.mrf.mxu0
      %v5047 = vadd.f32 %v2126, %v5046
      %5048 = vmatmul.bf16.gmra.mxu0 %v3102
      %v5049 = vpop.f32.mrf.mxu0
      %v5050 = vadd.f32 %v2126, %v5049
      %v5051 = vpop.f32.mrf.mxu0
      %v5052 = vadd.f32 %v2126, %v5051
      %5053 = vmatmul.bf16.gmra.mxu0 %v3120
      %v5054 = vpop.f32.mrf.mxu0
      %v5055 = vadd.f32 %v2126, %v5054
      %v5056 = vpop.f32.mrf.mxu0
      %v5057 = vadd.f32 %v2126, %v5056
      %5058 = vmatmul.bf16.gmra.mxu0 %v3138
      %v5059 = vpop.f32.mrf.mxu0
      %v5060 = vadd.f32 %v2126, %v5059
      %v5061 = vpop.f32.mrf.mxu0
      %v5062 = vadd.f32 %v2126, %v5061
      %5063 = vmatmul.bf16.gmra.mxu0 %v3156
      %v5064 = vpop.f32.mrf.mxu0
      %v5065 = vadd.f32 %v2126, %v5064
      %v5066 = vpop.f32.mrf.mxu0
      %v5067 = vadd.f32 %v2126, %v5066
      %5068 = vmatmul.bf16.gmra.mxu0 %v3174
      %v5069 = vpop.f32.mrf.mxu0
      %v5070 = vadd.f32 %v2126, %v5069
      %v5071 = vpop.f32.mrf.mxu0
      %v5072 = vadd.f32 %v2126, %v5071
      %5073 = vmatmul.bf16.gmra.mxu0 %v3192
      %v5074 = vpop.f32.mrf.mxu0
      %v5075 = vadd.f32 %v2126, %v5074
      %v5076 = vpop.f32.mrf.mxu0
      %v5077 = vadd.f32 %v2126, %v5076
      %5078 = vmatmul.bf16.gmra.mxu0 %v3210
      %v5079 = vpop.f32.mrf.mxu0
      %v5080 = vadd.f32 %v2126, %v5079
      %v5081 = vpop.f32.mrf.mxu0
      %v5082 = vadd.f32 %v2126, %v5081
      %5083 = vmatmul.bf16.gmra.mxu0 %v3228
      %v5084 = vpop.f32.mrf.mxu0
      %v5085 = vadd.f32 %v2126, %v5084
      %v5086 = vpop.f32.mrf.mxu0
      %v5087 = vadd.f32 %v2126, %v5086
      %5088 = vmatmul.bf16.gmra.mxu0 %v3246
      %v5089 = vpop.f32.mrf.mxu0
      %v5090 = vadd.f32 %v2126, %v5089
      %v5091 = vpop.f32.mrf.mxu0
      %v5092 = vadd.f32 %v2126, %v5091
      %5093 = vmatmul.bf16.gmra.mxu0 %v3264
      %v5094 = vpop.f32.mrf.mxu0
      %v5095 = vadd.f32 %v2126, %v5094
      %v5096 = vpop.f32.mrf.mxu0
      %v5097 = vadd.f32 %v2126, %v5096
      %5098 = vdwg.mxu0
      %5099 = vmatpush.bf16.msra.mxu0 %v4464
      %5100 = vmatpush.bf16.msra.mxu0 %v4462
      %5101 = vmatpush.bf16.msra.mxu0 %v4460
      %5102 = vmatpush.bf16.msra.mxu0 %v4458
      %5103 = vmatpush.bf16.msra.mxu0 %v4456
      %5104 = vmatpush.bf16.msra.mxu0 %v4454
      %5105 = vmatpush.bf16.msra.mxu0 %v4452
      %5106 = vmatpush.bf16.msra.mxu0 %v4450
      %5107 = vmatmul.bf16.gmra.mxu0 %v2995
      %v5108 = vpop.f32.mrf.mxu0
      %v5109 = vadd.f32 %v5020, %v5108
      %v5110 = vpop.f32.mrf.mxu0
      %v5111 = vadd.f32 %v5022, %v5110
      %5112 = vmatmul.bf16.gmra.mxu0 %v3013
      %v5113 = vpop.f32.mrf.mxu0
      %v5114 = vadd.f32 %v5025, %v5113
      %v5115 = vpop.f32.mrf.mxu0
      %v5116 = vadd.f32 %v5027, %v5115
      %5117 = vmatmul.bf16.gmra.mxu0 %v3031
      %v5118 = vpop.f32.mrf.mxu0
      %v5119 = vadd.f32 %v5030, %v5118
      %v5120 = vpop.f32.mrf.mxu0
      %v5121 = vadd.f32 %v5032, %v5120
      %5122 = vmatmul.bf16.gmra.mxu0 %v3049
      %v5123 = vpop.f32.mrf.mxu0
      %v5124 = vadd.f32 %v5035, %v5123
      %v5125 = vpop.f32.mrf.mxu0
      %v5126 = vadd.f32 %v5037, %v5125
      %5127 = vmatmul.bf16.gmra.mxu0 %v3067
      %v5128 = vpop.f32.mrf.mxu0
      %v5129 = vadd.f32 %v5040, %v5128
      %v5130 = vpop.f32.mrf.mxu0
      %v5131 = vadd.f32 %v5042, %v5130
      %5132 = vmatmul.bf16.gmra.mxu0 %v3085
      %v5133 = vpop.f32.mrf.mxu0
      %v5134 = vadd.f32 %v5045, %v5133
      %v5135 = vpop.f32.mrf.mxu0
      %v5136 = vadd.f32 %v5047, %v5135
      %5137 = vmatmul.bf16.gmra.mxu0 %v3103
      %v5138 = vpop.f32.mrf.mxu0
      %v5139 = vadd.f32 %v5050, %v5138
      %v5140 = vpop.f32.mrf.mxu0
      %v5141 = vadd.f32 %v5052, %v5140
      %5142 = vmatmul.bf16.gmra.mxu0 %v3121
      %v5143 = vpop.f32.mrf.mxu0
      %v5144 = vadd.f32 %v5055, %v5143
      %v5145 = vpop.f32.mrf.mxu0
      %v5146 = vadd.f32 %v5057, %v5145
      %5147 = vmatmul.bf16.gmra.mxu0 %v3139
      %v5148 = vpop.f32.mrf.mxu0
      %v5149 = vadd.f32 %v5060, %v5148
      %v5150 = vpop.f32.mrf.mxu0
      %v5151 = vadd.f32 %v5062, %v5150
      %5152 = vmatmul.bf16.gmra.mxu0 %v3157
      %v5153 = vpop.f32.mrf.mxu0
      %v5154 = vadd.f32 %v5065, %v5153
      %v5155 = vpop.f32.mrf.mxu0
      %v5156 = vadd.f32 %v5067, %v5155
      %5157 = vmatmul.bf16.gmra.mxu0 %v3175
      %v5158 = vpop.f32.mrf.mxu0
      %v5159 = vadd.f32 %v5070, %v5158
      %v5160 = vpop.f32.mrf.mxu0
      %v5161 = vadd.f32 %v5072, %v5160
      %5162 = vmatmul.bf16.gmra.mxu0 %v3193
      %v5163 = vpop.f32.mrf.mxu0
      %v5164 = vadd.f32 %v5075, %v5163
      %v5165 = vpop.f32.mrf.mxu0
      %v5166 = vadd.f32 %v5077, %v5165
      %5167 = vmatmul.bf16.gmra.mxu0 %v3211
      %v5168 = vpop.f32.mrf.mxu0
      %v5169 = vadd.f32 %v5080, %v5168
      %v5170 = vpop.f32.mrf.mxu0
      %v5171 = vadd.f32 %v5082, %v5170
      %5172 = vmatmul.bf16.gmra.mxu0 %v3229
      %v5173 = vpop.f32.mrf.mxu0
      %v5174 = vadd.f32 %v5085, %v5173
      %v5175 = vpop.f32.mrf.mxu0
      %v5176 = vadd.f32 %v5087, %v5175
      %5177 = vmatmul.bf16.gmra.mxu0 %v3247
      %v5178 = vpop.f32.mrf.mxu0
      %v5179 = vadd.f32 %v5090, %v5178
      %v5180 = vpop.f32.mrf.mxu0
      %v5181 = vadd.f32 %v5092, %v5180
      %5182 = vmatmul.bf16.gmra.mxu0 %v3265
      %v5183 = vpop.f32.mrf.mxu0
      %v5184 = vadd.f32 %v5095, %v5183
      %v5185 = vpop.f32.mrf.mxu0
      %v5186 = vadd.f32 %v5097, %v5185
      %5187 = vdwg.mxu0
      %5188 = vmatpush.bf16.msra.mxu0 %v4480
      %5189 = vmatpush.bf16.msra.mxu0 %v4478
      %5190 = vmatpush.bf16.msra.mxu0 %v4476
      %5191 = vmatpush.bf16.msra.mxu0 %v4474
      %5192 = vmatpush.bf16.msra.mxu0 %v4472
      %5193 = vmatpush.bf16.msra.mxu0 %v4470
      %5194 = vmatpush.bf16.msra.mxu0 %v4468
      %5195 = vmatpush.bf16.msra.mxu0 %v4466
      %5196 = vmatmul.bf16.gmra.mxu0 %v2996
      %v5197 = vpop.f32.mrf.mxu0
      %v5198 = vadd.f32 %v5109, %v5197
      %v5199 = vpop.f32.mrf.mxu0
      %v5200 = vadd.f32 %v5111, %v5199
      %5201 = vmatmul.bf16.gmra.mxu0 %v3014
      %v5202 = vpop.f32.mrf.mxu0
      %v5203 = vadd.f32 %v5114, %v5202
      %v5204 = vpop.f32.mrf.mxu0
      %v5205 = vadd.f32 %v5116, %v5204
      %5206 = vmatmul.bf16.gmra.mxu0 %v3032
      %v5207 = vpop.f32.mrf.mxu0
      %v5208 = vadd.f32 %v5119, %v5207
      %v5209 = vpop.f32.mrf.mxu0
      %v5210 = vadd.f32 %v5121, %v5209
      %5211 = vmatmul.bf16.gmra.mxu0 %v3050
      %v5212 = vpop.f32.mrf.mxu0
      %v5213 = vadd.f32 %v5124, %v5212
      %v5214 = vpop.f32.mrf.mxu0
      %v5215 = vadd.f32 %v5126, %v5214
      %5216 = vmatmul.bf16.gmra.mxu0 %v3068
      %v5217 = vpop.f32.mrf.mxu0
      %v5218 = vadd.f32 %v5129, %v5217
      %v5219 = vpop.f32.mrf.mxu0
      %v5220 = vadd.f32 %v5131, %v5219
      %5221 = vmatmul.bf16.gmra.mxu0 %v3086
      %v5222 = vpop.f32.mrf.mxu0
      %v5223 = vadd.f32 %v5134, %v5222
      %v5224 = vpop.f32.mrf.mxu0
      %v5225 = vadd.f32 %v5136, %v5224
      %5226 = vmatmul.bf16.gmra.mxu0 %v3104
      %v5227 = vpop.f32.mrf.mxu0
      %v5228 = vadd.f32 %v5139, %v5227
      %v5229 = vpop.f32.mrf.mxu0
      %v5230 = vadd.f32 %v5141, %v5229
      %5231 = vmatmul.bf16.gmra.mxu0 %v3122
      %v5232 = vpop.f32.mrf.mxu0
      %v5233 = vadd.f32 %v5144, %v5232
      %v5234 = vpop.f32.mrf.mxu0
      %v5235 = vadd.f32 %v5146, %v5234
      %5236 = vmatmul.bf16.gmra.mxu0 %v3140
      %v5237 = vpop.f32.mrf.mxu0
      %v5238 = vadd.f32 %v5149, %v5237
      %v5239 = vpop.f32.mrf.mxu0
      %v5240 = vadd.f32 %v5151, %v5239
      %5241 = vmatmul.bf16.gmra.mxu0 %v3158
      %v5242 = vpop.f32.mrf.mxu0
      %v5243 = vadd.f32 %v5154, %v5242
      %v5244 = vpop.f32.mrf.mxu0
      %v5245 = vadd.f32 %v5156, %v5244
      %5246 = vmatmul.bf16.gmra.mxu0 %v3176
      %v5247 = vpop.f32.mrf.mxu0
      %v5248 = vadd.f32 %v5159, %v5247
      %v5249 = vpop.f32.mrf.mxu0
      %v5250 = vadd.f32 %v5161, %v5249
      %5251 = vmatmul.bf16.gmra.mxu0 %v3194
      %v5252 = vpop.f32.mrf.mxu0
      %v5253 = vadd.f32 %v5164, %v5252
      %v5254 = vpop.f32.mrf.mxu0
      %v5255 = vadd.f32 %v5166, %v5254
      %5256 = vmatmul.bf16.gmra.mxu0 %v3212
      %v5257 = vpop.f32.mrf.mxu0
      %v5258 = vadd.f32 %v5169, %v5257
      %v5259 = vpop.f32.mrf.mxu0
      %v5260 = vadd.f32 %v5171, %v5259
      %5261 = vmatmul.bf16.gmra.mxu0 %v3230
      %v5262 = vpop.f32.mrf.mxu0
      %v5263 = vadd.f32 %v5174, %v5262
      %v5264 = vpop.f32.mrf.mxu0
      %v5265 = vadd.f32 %v5176, %v5264
      %5266 = vmatmul.bf16.gmra.mxu0 %v3248
      %v5267 = vpop.f32.mrf.mxu0
      %v5268 = vadd.f32 %v5179, %v5267
      %v5269 = vpop.f32.mrf.mxu0
      %v5270 = vadd.f32 %v5181, %v5269
      %5271 = vmatmul.bf16.gmra.mxu0 %v3266
      %v5272 = vpop.f32.mrf.mxu0
      %v5273 = vadd.f32 %v5184, %v5272
      %v5274 = vpop.f32.mrf.mxu0
      %v5275 = vadd.f32 %v5186, %v5274
      %5276 = vdwg.mxu0
      %5277 = vmatpush.bf16.msra.mxu0 %v4496
      %5278 = vmatpush.bf16.msra.mxu0 %v4494
      %5279 = vmatpush.bf16.msra.mxu0 %v4492
      %5280 = vmatpush.bf16.msra.mxu0 %v4490
      %5281 = vmatpush.bf16.msra.mxu0 %v4488
      %5282 = vmatpush.bf16.msra.mxu0 %v4486
      %5283 = vmatpush.bf16.msra.mxu0 %v4484
      %5284 = vmatpush.bf16.msra.mxu0 %v4482
      %5285 = vmatmul.bf16.gmra.mxu0 %v2997
      %v5286 = vpop.f32.mrf.mxu0
      %v5287 = vadd.f32 %v5198, %v5286
      %v5288 = vpop.f32.mrf.mxu0
      %v5289 = vadd.f32 %v5200, %v5288
      %5290 = vmatmul.bf16.gmra.mxu0 %v3015
      %v5291 = vpop.f32.mrf.mxu0
      %v5292 = vadd.f32 %v5203, %v5291
      %v5293 = vpop.f32.mrf.mxu0
      %v5294 = vadd.f32 %v5205, %v5293
      %5295 = vmatmul.bf16.gmra.mxu0 %v3033
      %v5296 = vpop.f32.mrf.mxu0
      %v5297 = vadd.f32 %v5208, %v5296
      %v5298 = vpop.f32.mrf.mxu0
      %v5299 = vadd.f32 %v5210, %v5298
      %5300 = vmatmul.bf16.gmra.mxu0 %v3051
      %v5301 = vpop.f32.mrf.mxu0
      %v5302 = vadd.f32 %v5213, %v5301
      %v5303 = vpop.f32.mrf.mxu0
      %v5304 = vadd.f32 %v5215, %v5303
      %5305 = vmatmul.bf16.gmra.mxu0 %v3069
      %v5306 = vpop.f32.mrf.mxu0
      %v5307 = vadd.f32 %v5218, %v5306
      %v5308 = vpop.f32.mrf.mxu0
      %v5309 = vadd.f32 %v5220, %v5308
      %5310 = vmatmul.bf16.gmra.mxu0 %v3087
      %v5311 = vpop.f32.mrf.mxu0
      %v5312 = vadd.f32 %v5223, %v5311
      %v5313 = vpop.f32.mrf.mxu0
      %v5314 = vadd.f32 %v5225, %v5313
      %5315 = vmatmul.bf16.gmra.mxu0 %v3105
      %v5316 = vpop.f32.mrf.mxu0
      %v5317 = vadd.f32 %v5228, %v5316
      %v5318 = vpop.f32.mrf.mxu0
      %v5319 = vadd.f32 %v5230, %v5318
      %5320 = vmatmul.bf16.gmra.mxu0 %v3123
      %v5321 = vpop.f32.mrf.mxu0
      %v5322 = vadd.f32 %v5233, %v5321
      %v5323 = vpop.f32.mrf.mxu0
      %v5324 = vadd.f32 %v5235, %v5323
      %5325 = vmatmul.bf16.gmra.mxu0 %v3141
      %v5326 = vpop.f32.mrf.mxu0
      %v5327 = vadd.f32 %v5238, %v5326
      %v5328 = vpop.f32.mrf.mxu0
      %v5329 = vadd.f32 %v5240, %v5328
      %5330 = vmatmul.bf16.gmra.mxu0 %v3159
      %v5331 = vpop.f32.mrf.mxu0
      %v5332 = vadd.f32 %v5243, %v5331
      %v5333 = vpop.f32.mrf.mxu0
      %v5334 = vadd.f32 %v5245, %v5333
      %5335 = vmatmul.bf16.gmra.mxu0 %v3177
      %v5336 = vpop.f32.mrf.mxu0
      %v5337 = vadd.f32 %v5248, %v5336
      %v5338 = vpop.f32.mrf.mxu0
      %v5339 = vadd.f32 %v5250, %v5338
      %5340 = vmatmul.bf16.gmra.mxu0 %v3195
      %v5341 = vpop.f32.mrf.mxu0
      %v5342 = vadd.f32 %v5253, %v5341
      %v5343 = vpop.f32.mrf.mxu0
      %v5344 = vadd.f32 %v5255, %v5343
      %5345 = vmatmul.bf16.gmra.mxu0 %v3213
      %v5346 = vpop.f32.mrf.mxu0
      %v5347 = vadd.f32 %v5258, %v5346
      %v5348 = vpop.f32.mrf.mxu0
      %v5349 = vadd.f32 %v5260, %v5348
      %5350 = vmatmul.bf16.gmra.mxu0 %v3231
      %v5351 = vpop.f32.mrf.mxu0
      %v5352 = vadd.f32 %v5263, %v5351
      %v5353 = vpop.f32.mrf.mxu0
      %v5354 = vadd.f32 %v5265, %v5353
      %5355 = vmatmul.bf16.gmra.mxu0 %v3249
      %v5356 = vpop.f32.mrf.mxu0
      %v5357 = vadd.f32 %v5268, %v5356
      %v5358 = vpop.f32.mrf.mxu0
      %v5359 = vadd.f32 %v5270, %v5358
      %5360 = vmatmul.bf16.gmra.mxu0 %v3267
      %v5361 = vpop.f32.mrf.mxu0
      %v5362 = vadd.f32 %v5273, %v5361
      %v5363 = vpop.f32.mrf.mxu0
      %v5364 = vadd.f32 %v5275, %v5363
      %5365 = vdwg.mxu0
      %5366 = vmatpush.bf16.msra.mxu0 %v4512
      %5367 = vmatpush.bf16.msra.mxu0 %v4510
      %5368 = vmatpush.bf16.msra.mxu0 %v4508
      %5369 = vmatpush.bf16.msra.mxu0 %v4506
      %5370 = vmatpush.bf16.msra.mxu0 %v4504
      %5371 = vmatpush.bf16.msra.mxu0 %v4502
      %5372 = vmatpush.bf16.msra.mxu0 %v4500
      %5373 = vmatpush.bf16.msra.mxu0 %v4498
      %5374 = vmatmul.bf16.gmra.mxu0 %v2998
      %v5375 = vpop.f32.mrf.mxu0
      %v5376 = vadd.f32 %v5287, %v5375
      %v5377 = vpop.f32.mrf.mxu0
      %v5378 = vadd.f32 %v5289, %v5377
      %5379 = vmatmul.bf16.gmra.mxu0 %v3016
      %v5380 = vpop.f32.mrf.mxu0
      %v5381 = vadd.f32 %v5292, %v5380
      %v5382 = vpop.f32.mrf.mxu0
      %v5383 = vadd.f32 %v5294, %v5382
      %5384 = vmatmul.bf16.gmra.mxu0 %v3034
      %v5385 = vpop.f32.mrf.mxu0
      %v5386 = vadd.f32 %v5297, %v5385
      %v5387 = vpop.f32.mrf.mxu0
      %v5388 = vadd.f32 %v5299, %v5387
      %5389 = vmatmul.bf16.gmra.mxu0 %v3052
      %v5390 = vpop.f32.mrf.mxu0
      %v5391 = vadd.f32 %v5302, %v5390
      %v5392 = vpop.f32.mrf.mxu0
      %v5393 = vadd.f32 %v5304, %v5392
      %5394 = vmatmul.bf16.gmra.mxu0 %v3070
      %v5395 = vpop.f32.mrf.mxu0
      %v5396 = vadd.f32 %v5307, %v5395
      %v5397 = vpop.f32.mrf.mxu0
      %v5398 = vadd.f32 %v5309, %v5397
      %5399 = vmatmul.bf16.gmra.mxu0 %v3088
      %v5400 = vpop.f32.mrf.mxu0
      %v5401 = vadd.f32 %v5312, %v5400
      %v5402 = vpop.f32.mrf.mxu0
      %v5403 = vadd.f32 %v5314, %v5402
      %5404 = vmatmul.bf16.gmra.mxu0 %v3106
      %v5405 = vpop.f32.mrf.mxu0
      %v5406 = vadd.f32 %v5317, %v5405
      %v5407 = vpop.f32.mrf.mxu0
      %v5408 = vadd.f32 %v5319, %v5407
      %5409 = vmatmul.bf16.gmra.mxu0 %v3124
      %v5410 = vpop.f32.mrf.mxu0
      %v5411 = vadd.f32 %v5322, %v5410
      %v5412 = vpop.f32.mrf.mxu0
      %v5413 = vadd.f32 %v5324, %v5412
      %5414 = vmatmul.bf16.gmra.mxu0 %v3142
      %v5415 = vpop.f32.mrf.mxu0
      %v5416 = vadd.f32 %v5327, %v5415
      %v5417 = vpop.f32.mrf.mxu0
      %v5418 = vadd.f32 %v5329, %v5417
      %5419 = vmatmul.bf16.gmra.mxu0 %v3160
      %v5420 = vpop.f32.mrf.mxu0
      %v5421 = vadd.f32 %v5332, %v5420
      %v5422 = vpop.f32.mrf.mxu0
      %v5423 = vadd.f32 %v5334, %v5422
      %5424 = vmatmul.bf16.gmra.mxu0 %v3178
      %v5425 = vpop.f32.mrf.mxu0
      %v5426 = vadd.f32 %v5337, %v5425
      %v5427 = vpop.f32.mrf.mxu0
      %v5428 = vadd.f32 %v5339, %v5427
      %5429 = vmatmul.bf16.gmra.mxu0 %v3196
      %v5430 = vpop.f32.mrf.mxu0
      %v5431 = vadd.f32 %v5342, %v5430
      %v5432 = vpop.f32.mrf.mxu0
      %v5433 = vadd.f32 %v5344, %v5432
      %5434 = vmatmul.bf16.gmra.mxu0 %v3214
      %v5435 = vpop.f32.mrf.mxu0
      %v5436 = vadd.f32 %v5347, %v5435
      %v5437 = vpop.f32.mrf.mxu0
      %v5438 = vadd.f32 %v5349, %v5437
      %5439 = vmatmul.bf16.gmra.mxu0 %v3232
      %v5440 = vpop.f32.mrf.mxu0
      %v5441 = vadd.f32 %v5352, %v5440
      %v5442 = vpop.f32.mrf.mxu0
      %v5443 = vadd.f32 %v5354, %v5442
      %5444 = vmatmul.bf16.gmra.mxu0 %v3250
      %v5445 = vpop.f32.mrf.mxu0
      %v5446 = vadd.f32 %v5357, %v5445
      %v5447 = vpop.f32.mrf.mxu0
      %v5448 = vadd.f32 %v5359, %v5447
      %5449 = vmatmul.bf16.gmra.mxu0 %v3268
      %v5450 = vpop.f32.mrf.mxu0
      %v5451 = vadd.f32 %v5362, %v5450
      %v5452 = vpop.f32.mrf.mxu0
      %v5453 = vadd.f32 %v5364, %v5452
      %5454 = vdwg.mxu0
      %5455 = vmatpush.bf16.msra.mxu0 %v4528
      %5456 = vmatpush.bf16.msra.mxu0 %v4526
      %5457 = vmatpush.bf16.msra.mxu0 %v4524
      %5458 = vmatpush.bf16.msra.mxu0 %v4522
      %5459 = vmatpush.bf16.msra.mxu0 %v4520
      %5460 = vmatpush.bf16.msra.mxu0 %v4518
      %5461 = vmatpush.bf16.msra.mxu0 %v4516
      %5462 = vmatpush.bf16.msra.mxu0 %v4514
      %5463 = vmatmul.bf16.gmra.mxu0 %v2999
      %v5464 = vpop.f32.mrf.mxu0
      %v5465 = vadd.f32 %v5376, %v5464
      %v5466 = vpop.f32.mrf.mxu0
      %v5467 = vadd.f32 %v5378, %v5466
      %5468 = vmatmul.bf16.gmra.mxu0 %v3017
      %v5469 = vpop.f32.mrf.mxu0
      %v5470 = vadd.f32 %v5381, %v5469
      %v5471 = vpop.f32.mrf.mxu0
      %v5472 = vadd.f32 %v5383, %v5471
      %5473 = vmatmul.bf16.gmra.mxu0 %v3035
      %v5474 = vpop.f32.mrf.mxu0
      %v5475 = vadd.f32 %v5386, %v5474
      %v5476 = vpop.f32.mrf.mxu0
      %v5477 = vadd.f32 %v5388, %v5476
      %5478 = vmatmul.bf16.gmra.mxu0 %v3053
      %v5479 = vpop.f32.mrf.mxu0
      %v5480 = vadd.f32 %v5391, %v5479
      %v5481 = vpop.f32.mrf.mxu0
      %v5482 = vadd.f32 %v5393, %v5481
      %5483 = vmatmul.bf16.gmra.mxu0 %v3071
      %v5484 = vpop.f32.mrf.mxu0
      %v5485 = vadd.f32 %v5396, %v5484
      %v5486 = vpop.f32.mrf.mxu0
      %v5487 = vadd.f32 %v5398, %v5486
      %5488 = vmatmul.bf16.gmra.mxu0 %v3089
      %v5489 = vpop.f32.mrf.mxu0
      %v5490 = vadd.f32 %v5401, %v5489
      %v5491 = vpop.f32.mrf.mxu0
      %v5492 = vadd.f32 %v5403, %v5491
      %5493 = vmatmul.bf16.gmra.mxu0 %v3107
      %v5494 = vpop.f32.mrf.mxu0
      %v5495 = vadd.f32 %v5406, %v5494
      %v5496 = vpop.f32.mrf.mxu0
      %v5497 = vadd.f32 %v5408, %v5496
      %5498 = vmatmul.bf16.gmra.mxu0 %v3125
      %v5499 = vpop.f32.mrf.mxu0
      %v5500 = vadd.f32 %v5411, %v5499
      %v5501 = vpop.f32.mrf.mxu0
      %v5502 = vadd.f32 %v5413, %v5501
      %5503 = vmatmul.bf16.gmra.mxu0 %v3143
      %v5504 = vpop.f32.mrf.mxu0
      %v5505 = vadd.f32 %v5416, %v5504
      %v5506 = vpop.f32.mrf.mxu0
      %v5507 = vadd.f32 %v5418, %v5506
      %5508 = vmatmul.bf16.gmra.mxu0 %v3161
      %v5509 = vpop.f32.mrf.mxu0
      %v5510 = vadd.f32 %v5421, %v5509
      %v5511 = vpop.f32.mrf.mxu0
      %v5512 = vadd.f32 %v5423, %v5511
      %5513 = vmatmul.bf16.gmra.mxu0 %v3179
      %v5514 = vpop.f32.mrf.mxu0
      %v5515 = vadd.f32 %v5426, %v5514
      %v5516 = vpop.f32.mrf.mxu0
      %v5517 = vadd.f32 %v5428, %v5516
      %5518 = vmatmul.bf16.gmra.mxu0 %v3197
      %v5519 = vpop.f32.mrf.mxu0
      %v5520 = vadd.f32 %v5431, %v5519
      %v5521 = vpop.f32.mrf.mxu0
      %v5522 = vadd.f32 %v5433, %v5521
      %5523 = vmatmul.bf16.gmra.mxu0 %v3215
      %v5524 = vpop.f32.mrf.mxu0
      %v5525 = vadd.f32 %v5436, %v5524
      %v5526 = vpop.f32.mrf.mxu0
      %v5527 = vadd.f32 %v5438, %v5526
      %5528 = vmatmul.bf16.gmra.mxu0 %v3233
      %v5529 = vpop.f32.mrf.mxu0
      %v5530 = vadd.f32 %v5441, %v5529
      %v5531 = vpop.f32.mrf.mxu0
      %v5532 = vadd.f32 %v5443, %v5531
      %5533 = vmatmul.bf16.gmra.mxu0 %v3251
      %v5534 = vpop.f32.mrf.mxu0
      %v5535 = vadd.f32 %v5446, %v5534
      %v5536 = vpop.f32.mrf.mxu0
      %v5537 = vadd.f32 %v5448, %v5536
      %5538 = vmatmul.bf16.gmra.mxu0 %v3269
      %v5539 = vpop.f32.mrf.mxu0
      %v5540 = vadd.f32 %v5451, %v5539
      %v5541 = vpop.f32.mrf.mxu0
      %v5542 = vadd.f32 %v5453, %v5541
      %5543 = vdwg.mxu0
      %5544 = vmatpush.bf16.msra.mxu0 %v4544
      %5545 = vmatpush.bf16.msra.mxu0 %v4542
      %5546 = vmatpush.bf16.msra.mxu0 %v4540
      %5547 = vmatpush.bf16.msra.mxu0 %v4538
      %5548 = vmatpush.bf16.msra.mxu0 %v4536
      %5549 = vmatpush.bf16.msra.mxu0 %v4534
      %5550 = vmatpush.bf16.msra.mxu0 %v4532
      %5551 = vmatpush.bf16.msra.mxu0 %v4530
      %5552 = vmatmul.bf16.gmra.mxu0 %v3000
      %v5553 = vpop.f32.mrf.mxu0
      %v5554 = vadd.f32 %v5465, %v5553
      %v5555 = vpop.f32.mrf.mxu0
      %v5556 = vadd.f32 %v5467, %v5555
      %5557 = vmatmul.bf16.gmra.mxu0 %v3018
      %v5558 = vpop.f32.mrf.mxu0
      %v5559 = vadd.f32 %v5470, %v5558
      %v5560 = vpop.f32.mrf.mxu0
      %v5561 = vadd.f32 %v5472, %v5560
      %5562 = vmatmul.bf16.gmra.mxu0 %v3036
      %v5563 = vpop.f32.mrf.mxu0
      %v5564 = vadd.f32 %v5475, %v5563
      %v5565 = vpop.f32.mrf.mxu0
      %v5566 = vadd.f32 %v5477, %v5565
      %5567 = vmatmul.bf16.gmra.mxu0 %v3054
      %v5568 = vpop.f32.mrf.mxu0
      %v5569 = vadd.f32 %v5480, %v5568
      %v5570 = vpop.f32.mrf.mxu0
      %v5571 = vadd.f32 %v5482, %v5570
      %5572 = vmatmul.bf16.gmra.mxu0 %v3072
      %v5573 = vpop.f32.mrf.mxu0
      %v5574 = vadd.f32 %v5485, %v5573
      %v5575 = vpop.f32.mrf.mxu0
      %v5576 = vadd.f32 %v5487, %v5575
      %5577 = vmatmul.bf16.gmra.mxu0 %v3090
      %v5578 = vpop.f32.mrf.mxu0
      %v5579 = vadd.f32 %v5490, %v5578
      %v5580 = vpop.f32.mrf.mxu0
      %v5581 = vadd.f32 %v5492, %v5580
      %5582 = vmatmul.bf16.gmra.mxu0 %v3108
      %v5583 = vpop.f32.mrf.mxu0
      %v5584 = vadd.f32 %v5495, %v5583
      %v5585 = vpop.f32.mrf.mxu0
      %v5586 = vadd.f32 %v5497, %v5585
      %5587 = vmatmul.bf16.gmra.mxu0 %v3126
      %v5588 = vpop.f32.mrf.mxu0
      %v5589 = vadd.f32 %v5500, %v5588
      %v5590 = vpop.f32.mrf.mxu0
      %v5591 = vadd.f32 %v5502, %v5590
      %5592 = vmatmul.bf16.gmra.mxu0 %v3144
      %v5593 = vpop.f32.mrf.mxu0
      %v5594 = vadd.f32 %v5505, %v5593
      %v5595 = vpop.f32.mrf.mxu0
      %v5596 = vadd.f32 %v5507, %v5595
      %5597 = vmatmul.bf16.gmra.mxu0 %v3162
      %v5598 = vpop.f32.mrf.mxu0
      %v5599 = vadd.f32 %v5510, %v5598
      %v5600 = vpop.f32.mrf.mxu0
      %v5601 = vadd.f32 %v5512, %v5600
      %5602 = vmatmul.bf16.gmra.mxu0 %v3180
      %v5603 = vpop.f32.mrf.mxu0
      %v5604 = vadd.f32 %v5515, %v5603
      %v5605 = vpop.f32.mrf.mxu0
      %v5606 = vadd.f32 %v5517, %v5605
      %5607 = vmatmul.bf16.gmra.mxu0 %v3198
      %v5608 = vpop.f32.mrf.mxu0
      %v5609 = vadd.f32 %v5520, %v5608
      %v5610 = vpop.f32.mrf.mxu0
      %v5611 = vadd.f32 %v5522, %v5610
      %5612 = vmatmul.bf16.gmra.mxu0 %v3216
      %v5613 = vpop.f32.mrf.mxu0
      %v5614 = vadd.f32 %v5525, %v5613
      %v5615 = vpop.f32.mrf.mxu0
      %v5616 = vadd.f32 %v5527, %v5615
      %5617 = vmatmul.bf16.gmra.mxu0 %v3234
      %v5618 = vpop.f32.mrf.mxu0
      %v5619 = vadd.f32 %v5530, %v5618
      %v5620 = vpop.f32.mrf.mxu0
      %v5621 = vadd.f32 %v5532, %v5620
      %5622 = vmatmul.bf16.gmra.mxu0 %v3252
      %v5623 = vpop.f32.mrf.mxu0
      %v5624 = vadd.f32 %v5535, %v5623
      %v5625 = vpop.f32.mrf.mxu0
      %v5626 = vadd.f32 %v5537, %v5625
      %5627 = vmatmul.bf16.gmra.mxu0 %v3270
      %v5628 = vpop.f32.mrf.mxu0
      %v5629 = vadd.f32 %v5540, %v5628
      %v5630 = vpop.f32.mrf.mxu0
      %v5631 = vadd.f32 %v5542, %v5630
      %5632 = vdwg.mxu0
      %5633 = vmatpush.bf16.msra.mxu0 %v4560
      %5634 = vmatpush.bf16.msra.mxu0 %v4558
      %5635 = vmatpush.bf16.msra.mxu0 %v4556
      %5636 = vmatpush.bf16.msra.mxu0 %v4554
      %5637 = vmatpush.bf16.msra.mxu0 %v4552
      %5638 = vmatpush.bf16.msra.mxu0 %v4550
      %5639 = vmatpush.bf16.msra.mxu0 %v4548
      %5640 = vmatpush.bf16.msra.mxu0 %v4546
      %5641 = vmatmul.bf16.gmra.mxu0 %v3001
      %v5642 = vpop.f32.mrf.mxu0
      %v5643 = vadd.f32 %v5554, %v5642
      %v5644 = vpop.f32.mrf.mxu0
      %v5645 = vadd.f32 %v5556, %v5644
      %5646 = vmatmul.bf16.gmra.mxu0 %v3019
      %v5647 = vpop.f32.mrf.mxu0
      %v5648 = vadd.f32 %v5559, %v5647
      %v5649 = vpop.f32.mrf.mxu0
      %v5650 = vadd.f32 %v5561, %v5649
      %5651 = vmatmul.bf16.gmra.mxu0 %v3037
      %v5652 = vpop.f32.mrf.mxu0
      %v5653 = vadd.f32 %v5564, %v5652
      %v5654 = vpop.f32.mrf.mxu0
      %v5655 = vadd.f32 %v5566, %v5654
      %5656 = vmatmul.bf16.gmra.mxu0 %v3055
      %v5657 = vpop.f32.mrf.mxu0
      %v5658 = vadd.f32 %v5569, %v5657
      %v5659 = vpop.f32.mrf.mxu0
      %v5660 = vadd.f32 %v5571, %v5659
      %5661 = vmatmul.bf16.gmra.mxu0 %v3073
      %v5662 = vpop.f32.mrf.mxu0
      %v5663 = vadd.f32 %v5574, %v5662
      %v5664 = vpop.f32.mrf.mxu0
      %v5665 = vadd.f32 %v5576, %v5664
      %5666 = vmatmul.bf16.gmra.mxu0 %v3091
      %v5667 = vpop.f32.mrf.mxu0
      %v5668 = vadd.f32 %v5579, %v5667
      %v5669 = vpop.f32.mrf.mxu0
      %v5670 = vadd.f32 %v5581, %v5669
      %5671 = vmatmul.bf16.gmra.mxu0 %v3109
      %v5672 = vpop.f32.mrf.mxu0
      %v5673 = vadd.f32 %v5584, %v5672
      %v5674 = vpop.f32.mrf.mxu0
      %v5675 = vadd.f32 %v5586, %v5674
      %5676 = vmatmul.bf16.gmra.mxu0 %v3127
      %v5677 = vpop.f32.mrf.mxu0
      %v5678 = vadd.f32 %v5589, %v5677
      %v5679 = vpop.f32.mrf.mxu0
      %v5680 = vadd.f32 %v5591, %v5679
      %5681 = vmatmul.bf16.gmra.mxu0 %v3145
      %v5682 = vpop.f32.mrf.mxu0
      %v5683 = vadd.f32 %v5594, %v5682
      %v5684 = vpop.f32.mrf.mxu0
      %v5685 = vadd.f32 %v5596, %v5684
      %5686 = vmatmul.bf16.gmra.mxu0 %v3163
      %v5687 = vpop.f32.mrf.mxu0
      %v5688 = vadd.f32 %v5599, %v5687
      %v5689 = vpop.f32.mrf.mxu0
      %v5690 = vadd.f32 %v5601, %v5689
      %5691 = vmatmul.bf16.gmra.mxu0 %v3181
      %v5692 = vpop.f32.mrf.mxu0
      %v5693 = vadd.f32 %v5604, %v5692
      %v5694 = vpop.f32.mrf.mxu0
      %v5695 = vadd.f32 %v5606, %v5694
      %5696 = vmatmul.bf16.gmra.mxu0 %v3199
      %v5697 = vpop.f32.mrf.mxu0
      %v5698 = vadd.f32 %v5609, %v5697
      %v5699 = vpop.f32.mrf.mxu0
      %v5700 = vadd.f32 %v5611, %v5699
      %5701 = vmatmul.bf16.gmra.mxu0 %v3217
      %v5702 = vpop.f32.mrf.mxu0
      %v5703 = vadd.f32 %v5614, %v5702
      %v5704 = vpop.f32.mrf.mxu0
      %v5705 = vadd.f32 %v5616, %v5704
      %5706 = vmatmul.bf16.gmra.mxu0 %v3235
      %v5707 = vpop.f32.mrf.mxu0
      %v5708 = vadd.f32 %v5619, %v5707
      %v5709 = vpop.f32.mrf.mxu0
      %v5710 = vadd.f32 %v5621, %v5709
      %5711 = vmatmul.bf16.gmra.mxu0 %v3253
      %v5712 = vpop.f32.mrf.mxu0
      %v5713 = vadd.f32 %v5624, %v5712
      %v5714 = vpop.f32.mrf.mxu0
      %v5715 = vadd.f32 %v5626, %v5714
      %5716 = vmatmul.bf16.gmra.mxu0 %v3271
      %v5717 = vpop.f32.mrf.mxu0
      %v5718 = vadd.f32 %v5629, %v5717
      %v5719 = vpop.f32.mrf.mxu0
      %v5720 = vadd.f32 %v5631, %v5719
      %5721 = vdwg.mxu0
      %5722 = vmatpush.bf16.msra.mxu0 %v4576
      %5723 = vmatpush.bf16.msra.mxu0 %v4574
      %5724 = vmatpush.bf16.msra.mxu0 %v4572
      %5725 = vmatpush.bf16.msra.mxu0 %v4570
      %5726 = vmatpush.bf16.msra.mxu0 %v4568
      %5727 = vmatpush.bf16.msra.mxu0 %v4566
      %5728 = vmatpush.bf16.msra.mxu0 %v4564
      %5729 = vmatpush.bf16.msra.mxu0 %v4562
      %5730 = vmatmul.bf16.gmra.mxu0 %v3002
      %v5731 = vpop.f32.mrf.mxu0
      %v5732 = vadd.f32 %v5643, %v5731
      %v5733 = vpop.f32.mrf.mxu0
      %v5734 = vadd.f32 %v5645, %v5733
      %5735 = vmatmul.bf16.gmra.mxu0 %v3020
      %v5736 = vpop.f32.mrf.mxu0
      %v5737 = vadd.f32 %v5648, %v5736
      %v5738 = vpop.f32.mrf.mxu0
      %v5739 = vadd.f32 %v5650, %v5738
      %5740 = vmatmul.bf16.gmra.mxu0 %v3038
      %v5741 = vpop.f32.mrf.mxu0
      %v5742 = vadd.f32 %v5653, %v5741
      %v5743 = vpop.f32.mrf.mxu0
      %v5744 = vadd.f32 %v5655, %v5743
      %5745 = vmatmul.bf16.gmra.mxu0 %v3056
      %v5746 = vpop.f32.mrf.mxu0
      %v5747 = vadd.f32 %v5658, %v5746
      %v5748 = vpop.f32.mrf.mxu0
      %v5749 = vadd.f32 %v5660, %v5748
      %5750 = vmatmul.bf16.gmra.mxu0 %v3074
      %v5751 = vpop.f32.mrf.mxu0
      %v5752 = vadd.f32 %v5663, %v5751
      %v5753 = vpop.f32.mrf.mxu0
      %v5754 = vadd.f32 %v5665, %v5753
      %5755 = vmatmul.bf16.gmra.mxu0 %v3092
      %v5756 = vpop.f32.mrf.mxu0
      %v5757 = vadd.f32 %v5668, %v5756
      %v5758 = vpop.f32.mrf.mxu0
      %v5759 = vadd.f32 %v5670, %v5758
      %5760 = vmatmul.bf16.gmra.mxu0 %v3110
      %v5761 = vpop.f32.mrf.mxu0
      %v5762 = vadd.f32 %v5673, %v5761
      %v5763 = vpop.f32.mrf.mxu0
      %v5764 = vadd.f32 %v5675, %v5763
      %5765 = vmatmul.bf16.gmra.mxu0 %v3128
      %v5766 = vpop.f32.mrf.mxu0
      %v5767 = vadd.f32 %v5678, %v5766
      %v5768 = vpop.f32.mrf.mxu0
      %v5769 = vadd.f32 %v5680, %v5768
      %5770 = vmatmul.bf16.gmra.mxu0 %v3146
      %v5771 = vpop.f32.mrf.mxu0
      %v5772 = vadd.f32 %v5683, %v5771
      %v5773 = vpop.f32.mrf.mxu0
      %v5774 = vadd.f32 %v5685, %v5773
      %5775 = vmatmul.bf16.gmra.mxu0 %v3164
      %v5776 = vpop.f32.mrf.mxu0
      %v5777 = vadd.f32 %v5688, %v5776
      %v5778 = vpop.f32.mrf.mxu0
      %v5779 = vadd.f32 %v5690, %v5778
      %5780 = vmatmul.bf16.gmra.mxu0 %v3182
      %v5781 = vpop.f32.mrf.mxu0
      %v5782 = vadd.f32 %v5693, %v5781
      %v5783 = vpop.f32.mrf.mxu0
      %v5784 = vadd.f32 %v5695, %v5783
      %5785 = vmatmul.bf16.gmra.mxu0 %v3200
      %v5786 = vpop.f32.mrf.mxu0
      %v5787 = vadd.f32 %v5698, %v5786
      %v5788 = vpop.f32.mrf.mxu0
      %v5789 = vadd.f32 %v5700, %v5788
      %5790 = vmatmul.bf16.gmra.mxu0 %v3218
      %v5791 = vpop.f32.mrf.mxu0
      %v5792 = vadd.f32 %v5703, %v5791
      %v5793 = vpop.f32.mrf.mxu0
      %v5794 = vadd.f32 %v5705, %v5793
      %5795 = vmatmul.bf16.gmra.mxu0 %v3236
      %v5796 = vpop.f32.mrf.mxu0
      %v5797 = vadd.f32 %v5708, %v5796
      %v5798 = vpop.f32.mrf.mxu0
      %v5799 = vadd.f32 %v5710, %v5798
      %5800 = vmatmul.bf16.gmra.mxu0 %v3254
      %v5801 = vpop.f32.mrf.mxu0
      %v5802 = vadd.f32 %v5713, %v5801
      %v5803 = vpop.f32.mrf.mxu0
      %v5804 = vadd.f32 %v5715, %v5803
      %5805 = vmatmul.bf16.gmra.mxu0 %v3272
      %v5806 = vpop.f32.mrf.mxu0
      %v5807 = vadd.f32 %v5718, %v5806
      %v5808 = vpop.f32.mrf.mxu0
      %v5809 = vadd.f32 %v5720, %v5808
      %5810 = vdwg.mxu0
      %5811 = vmatpush.bf16.msra.mxu0 %v4592
      %5812 = vmatpush.bf16.msra.mxu0 %v4590
      %5813 = vmatpush.bf16.msra.mxu0 %v4588
      %5814 = vmatpush.bf16.msra.mxu0 %v4586
      %5815 = vmatpush.bf16.msra.mxu0 %v4584
      %5816 = vmatpush.bf16.msra.mxu0 %v4582
      %5817 = vmatpush.bf16.msra.mxu0 %v4580
      %5818 = vmatpush.bf16.msra.mxu0 %v4578
      %5819 = vmatmul.bf16.gmra.mxu0 %v3003
      %v5820 = vpop.f32.mrf.mxu0
      %v5821 = vadd.f32 %v5732, %v5820
      %v5822 = vpop.f32.mrf.mxu0
      %v5823 = vadd.f32 %v5734, %v5822
      %5824 = vmatmul.bf16.gmra.mxu0 %v3021
      %v5825 = vpop.f32.mrf.mxu0
      %v5826 = vadd.f32 %v5737, %v5825
      %v5827 = vpop.f32.mrf.mxu0
      %v5828 = vadd.f32 %v5739, %v5827
      %5829 = vmatmul.bf16.gmra.mxu0 %v3039
      %v5830 = vpop.f32.mrf.mxu0
      %v5831 = vadd.f32 %v5742, %v5830
      %v5832 = vpop.f32.mrf.mxu0
      %v5833 = vadd.f32 %v5744, %v5832
      %5834 = vmatmul.bf16.gmra.mxu0 %v3057
      %v5835 = vpop.f32.mrf.mxu0
      %v5836 = vadd.f32 %v5747, %v5835
      %v5837 = vpop.f32.mrf.mxu0
      %v5838 = vadd.f32 %v5749, %v5837
      %5839 = vmatmul.bf16.gmra.mxu0 %v3075
      %v5840 = vpop.f32.mrf.mxu0
      %v5841 = vadd.f32 %v5752, %v5840
      %v5842 = vpop.f32.mrf.mxu0
      %v5843 = vadd.f32 %v5754, %v5842
      %5844 = vmatmul.bf16.gmra.mxu0 %v3093
      %v5845 = vpop.f32.mrf.mxu0
      %v5846 = vadd.f32 %v5757, %v5845
      %v5847 = vpop.f32.mrf.mxu0
      %v5848 = vadd.f32 %v5759, %v5847
      %5849 = vmatmul.bf16.gmra.mxu0 %v3111
      %v5850 = vpop.f32.mrf.mxu0
      %v5851 = vadd.f32 %v5762, %v5850
      %v5852 = vpop.f32.mrf.mxu0
      %v5853 = vadd.f32 %v5764, %v5852
      %5854 = vmatmul.bf16.gmra.mxu0 %v3129
      %v5855 = vpop.f32.mrf.mxu0
      %v5856 = vadd.f32 %v5767, %v5855
      %v5857 = vpop.f32.mrf.mxu0
      %v5858 = vadd.f32 %v5769, %v5857
      %5859 = vmatmul.bf16.gmra.mxu0 %v3147
      %v5860 = vpop.f32.mrf.mxu0
      %v5861 = vadd.f32 %v5772, %v5860
      %v5862 = vpop.f32.mrf.mxu0
      %v5863 = vadd.f32 %v5774, %v5862
      %5864 = vmatmul.bf16.gmra.mxu0 %v3165
      %v5865 = vpop.f32.mrf.mxu0
      %v5866 = vadd.f32 %v5777, %v5865
      %v5867 = vpop.f32.mrf.mxu0
      %v5868 = vadd.f32 %v5779, %v5867
      %5869 = vmatmul.bf16.gmra.mxu0 %v3183
      %v5870 = vpop.f32.mrf.mxu0
      %v5871 = vadd.f32 %v5782, %v5870
      %v5872 = vpop.f32.mrf.mxu0
      %v5873 = vadd.f32 %v5784, %v5872
      %5874 = vmatmul.bf16.gmra.mxu0 %v3201
      %v5875 = vpop.f32.mrf.mxu0
      %v5876 = vadd.f32 %v5787, %v5875
      %v5877 = vpop.f32.mrf.mxu0
      %v5878 = vadd.f32 %v5789, %v5877
      %5879 = vmatmul.bf16.gmra.mxu0 %v3219
      %v5880 = vpop.f32.mrf.mxu0
      %v5881 = vadd.f32 %v5792, %v5880
      %v5882 = vpop.f32.mrf.mxu0
      %v5883 = vadd.f32 %v5794, %v5882
      %5884 = vmatmul.bf16.gmra.mxu0 %v3237
      %v5885 = vpop.f32.mrf.mxu0
      %v5886 = vadd.f32 %v5797, %v5885
      %v5887 = vpop.f32.mrf.mxu0
      %v5888 = vadd.f32 %v5799, %v5887
      %5889 = vmatmul.bf16.gmra.mxu0 %v3255
      %v5890 = vpop.f32.mrf.mxu0
      %v5891 = vadd.f32 %v5802, %v5890
      %v5892 = vpop.f32.mrf.mxu0
      %v5893 = vadd.f32 %v5804, %v5892
      %5894 = vmatmul.bf16.gmra.mxu0 %v3273
      %v5895 = vpop.f32.mrf.mxu0
      %v5896 = vadd.f32 %v5807, %v5895
      %v5897 = vpop.f32.mrf.mxu0
      %v5898 = vadd.f32 %v5809, %v5897
      %5899 = vdwg.mxu0
      %5900 = vmatpush.bf16.msra.mxu0 %v4608
      %5901 = vmatpush.bf16.msra.mxu0 %v4606
      %5902 = vmatpush.bf16.msra.mxu0 %v4604
      %5903 = vmatpush.bf16.msra.mxu0 %v4602
      %5904 = vmatpush.bf16.msra.mxu0 %v4600
      %5905 = vmatpush.bf16.msra.mxu0 %v4598
      %5906 = vmatpush.bf16.msra.mxu0 %v4596
      %5907 = vmatpush.bf16.msra.mxu0 %v4594
      %5908 = vmatmul.bf16.gmra.mxu0 %v3004
      %v5909 = vpop.f32.mrf.mxu0
      %v5910 = vadd.f32 %v5821, %v5909
      %v5911 = vpop.f32.mrf.mxu0
      %v5912 = vadd.f32 %v5823, %v5911
      %5913 = vmatmul.bf16.gmra.mxu0 %v3022
      %v5914 = vpop.f32.mrf.mxu0
      %v5915 = vadd.f32 %v5826, %v5914
      %v5916 = vpop.f32.mrf.mxu0
      %v5917 = vadd.f32 %v5828, %v5916
      %5918 = vmatmul.bf16.gmra.mxu0 %v3040
      %v5919 = vpop.f32.mrf.mxu0
      %v5920 = vadd.f32 %v5831, %v5919
      %v5921 = vpop.f32.mrf.mxu0
      %v5922 = vadd.f32 %v5833, %v5921
      %5923 = vmatmul.bf16.gmra.mxu0 %v3058
      %v5924 = vpop.f32.mrf.mxu0
      %v5925 = vadd.f32 %v5836, %v5924
      %v5926 = vpop.f32.mrf.mxu0
      %v5927 = vadd.f32 %v5838, %v5926
      %5928 = vmatmul.bf16.gmra.mxu0 %v3076
      %v5929 = vpop.f32.mrf.mxu0
      %v5930 = vadd.f32 %v5841, %v5929
      %v5931 = vpop.f32.mrf.mxu0
      %v5932 = vadd.f32 %v5843, %v5931
      %5933 = vmatmul.bf16.gmra.mxu0 %v3094
      %v5934 = vpop.f32.mrf.mxu0
      %v5935 = vadd.f32 %v5846, %v5934
      %v5936 = vpop.f32.mrf.mxu0
      %v5937 = vadd.f32 %v5848, %v5936
      %5938 = vmatmul.bf16.gmra.mxu0 %v3112
      %v5939 = vpop.f32.mrf.mxu0
      %v5940 = vadd.f32 %v5851, %v5939
      %v5941 = vpop.f32.mrf.mxu0
      %v5942 = vadd.f32 %v5853, %v5941
      %5943 = vmatmul.bf16.gmra.mxu0 %v3130
      %v5944 = vpop.f32.mrf.mxu0
      %v5945 = vadd.f32 %v5856, %v5944
      %v5946 = vpop.f32.mrf.mxu0
      %v5947 = vadd.f32 %v5858, %v5946
      %5948 = vmatmul.bf16.gmra.mxu0 %v3148
      %v5949 = vpop.f32.mrf.mxu0
      %v5950 = vadd.f32 %v5861, %v5949
      %v5951 = vpop.f32.mrf.mxu0
      %v5952 = vadd.f32 %v5863, %v5951
      %5953 = vmatmul.bf16.gmra.mxu0 %v3166
      %v5954 = vpop.f32.mrf.mxu0
      %v5955 = vadd.f32 %v5866, %v5954
      %v5956 = vpop.f32.mrf.mxu0
      %v5957 = vadd.f32 %v5868, %v5956
      %5958 = vmatmul.bf16.gmra.mxu0 %v3184
      %v5959 = vpop.f32.mrf.mxu0
      %v5960 = vadd.f32 %v5871, %v5959
      %v5961 = vpop.f32.mrf.mxu0
      %v5962 = vadd.f32 %v5873, %v5961
      %5963 = vmatmul.bf16.gmra.mxu0 %v3202
      %v5964 = vpop.f32.mrf.mxu0
      %v5965 = vadd.f32 %v5876, %v5964
      %v5966 = vpop.f32.mrf.mxu0
      %v5967 = vadd.f32 %v5878, %v5966
      %5968 = vmatmul.bf16.gmra.mxu0 %v3220
      %v5969 = vpop.f32.mrf.mxu0
      %v5970 = vadd.f32 %v5881, %v5969
      %v5971 = vpop.f32.mrf.mxu0
      %v5972 = vadd.f32 %v5883, %v5971
      %5973 = vmatmul.bf16.gmra.mxu0 %v3238
      %v5974 = vpop.f32.mrf.mxu0
      %v5975 = vadd.f32 %v5886, %v5974
      %v5976 = vpop.f32.mrf.mxu0
      %v5977 = vadd.f32 %v5888, %v5976
      %5978 = vmatmul.bf16.gmra.mxu0 %v3256
      %v5979 = vpop.f32.mrf.mxu0
      %v5980 = vadd.f32 %v5891, %v5979
      %v5981 = vpop.f32.mrf.mxu0
      %v5982 = vadd.f32 %v5893, %v5981
      %5983 = vmatmul.bf16.gmra.mxu0 %v3274
      %v5984 = vpop.f32.mrf.mxu0
      %v5985 = vadd.f32 %v5896, %v5984
      %v5986 = vpop.f32.mrf.mxu0
      %v5987 = vadd.f32 %v5898, %v5986
      %5988 = vdwg.mxu0
      %5989 = vmatpush.bf16.msra.mxu0 %v4624
      %5990 = vmatpush.bf16.msra.mxu0 %v4622
      %5991 = vmatpush.bf16.msra.mxu0 %v4620
      %5992 = vmatpush.bf16.msra.mxu0 %v4618
      %5993 = vmatpush.bf16.msra.mxu0 %v4616
      %5994 = vmatpush.bf16.msra.mxu0 %v4614
      %5995 = vmatpush.bf16.msra.mxu0 %v4612
      %5996 = vmatpush.bf16.msra.mxu0 %v4610
      %5997 = vmatmul.bf16.gmra.mxu0 %v3005
      %v5998 = vpop.f32.mrf.mxu0
      %v5999 = vadd.f32 %v5910, %v5998
      %v6000 = vpop.f32.mrf.mxu0
      %v6001 = vadd.f32 %v5912, %v6000
      %6002 = vmatmul.bf16.gmra.mxu0 %v3023
      %v6003 = vpop.f32.mrf.mxu0
      %v6004 = vadd.f32 %v5915, %v6003
      %v6005 = vpop.f32.mrf.mxu0
      %v6006 = vadd.f32 %v5917, %v6005
      %6007 = vmatmul.bf16.gmra.mxu0 %v3041
      %v6008 = vpop.f32.mrf.mxu0
      %v6009 = vadd.f32 %v5920, %v6008
      %v6010 = vpop.f32.mrf.mxu0
      %v6011 = vadd.f32 %v5922, %v6010
      %6012 = vmatmul.bf16.gmra.mxu0 %v3059
      %v6013 = vpop.f32.mrf.mxu0
      %v6014 = vadd.f32 %v5925, %v6013
      %v6015 = vpop.f32.mrf.mxu0
      %v6016 = vadd.f32 %v5927, %v6015
      %6017 = vmatmul.bf16.gmra.mxu0 %v3077
      %v6018 = vpop.f32.mrf.mxu0
      %v6019 = vadd.f32 %v5930, %v6018
      %v6020 = vpop.f32.mrf.mxu0
      %v6021 = vadd.f32 %v5932, %v6020
      %6022 = vmatmul.bf16.gmra.mxu0 %v3095
      %v6023 = vpop.f32.mrf.mxu0
      %v6024 = vadd.f32 %v5935, %v6023
      %v6025 = vpop.f32.mrf.mxu0
      %v6026 = vadd.f32 %v5937, %v6025
      %6027 = vmatmul.bf16.gmra.mxu0 %v3113
      %v6028 = vpop.f32.mrf.mxu0
      %v6029 = vadd.f32 %v5940, %v6028
      %v6030 = vpop.f32.mrf.mxu0
      %v6031 = vadd.f32 %v5942, %v6030
      %6032 = vmatmul.bf16.gmra.mxu0 %v3131
      %v6033 = vpop.f32.mrf.mxu0
      %v6034 = vadd.f32 %v5945, %v6033
      %v6035 = vpop.f32.mrf.mxu0
      %v6036 = vadd.f32 %v5947, %v6035
      %6037 = vmatmul.bf16.gmra.mxu0 %v3149
      %v6038 = vpop.f32.mrf.mxu0
      %v6039 = vadd.f32 %v5950, %v6038
      %v6040 = vpop.f32.mrf.mxu0
      %v6041 = vadd.f32 %v5952, %v6040
      %6042 = vmatmul.bf16.gmra.mxu0 %v3167
      %v6043 = vpop.f32.mrf.mxu0
      %v6044 = vadd.f32 %v5955, %v6043
      %v6045 = vpop.f32.mrf.mxu0
      %v6046 = vadd.f32 %v5957, %v6045
      %6047 = vmatmul.bf16.gmra.mxu0 %v3185
      %v6048 = vpop.f32.mrf.mxu0
      %v6049 = vadd.f32 %v5960, %v6048
      %v6050 = vpop.f32.mrf.mxu0
      %v6051 = vadd.f32 %v5962, %v6050
      %6052 = vmatmul.bf16.gmra.mxu0 %v3203
      %v6053 = vpop.f32.mrf.mxu0
      %v6054 = vadd.f32 %v5965, %v6053
      %v6055 = vpop.f32.mrf.mxu0
      %v6056 = vadd.f32 %v5967, %v6055
      %6057 = vmatmul.bf16.gmra.mxu0 %v3221
      %v6058 = vpop.f32.mrf.mxu0
      %v6059 = vadd.f32 %v5970, %v6058
      %v6060 = vpop.f32.mrf.mxu0
      %v6061 = vadd.f32 %v5972, %v6060
      %6062 = vmatmul.bf16.gmra.mxu0 %v3239
      %v6063 = vpop.f32.mrf.mxu0
      %v6064 = vadd.f32 %v5975, %v6063
      %v6065 = vpop.f32.mrf.mxu0
      %v6066 = vadd.f32 %v5977, %v6065
      %6067 = vmatmul.bf16.gmra.mxu0 %v3257
      %v6068 = vpop.f32.mrf.mxu0
      %v6069 = vadd.f32 %v5980, %v6068
      %v6070 = vpop.f32.mrf.mxu0
      %v6071 = vadd.f32 %v5982, %v6070
      %6072 = vmatmul.bf16.gmra.mxu0 %v3275
      %v6073 = vpop.f32.mrf.mxu0
      %v6074 = vadd.f32 %v5985, %v6073
      %v6075 = vpop.f32.mrf.mxu0
      %v6076 = vadd.f32 %v5987, %v6075
      %6077 = vdwg.mxu0
      %6078 = vmatpush.bf16.msra.mxu0 %v4640
      %6079 = vmatpush.bf16.msra.mxu0 %v4638
      %6080 = vmatpush.bf16.msra.mxu0 %v4636
      %6081 = vmatpush.bf16.msra.mxu0 %v4634
      %6082 = vmatpush.bf16.msra.mxu0 %v4632
      %6083 = vmatpush.bf16.msra.mxu0 %v4630
      %6084 = vmatpush.bf16.msra.mxu0 %v4628
      %6085 = vmatpush.bf16.msra.mxu0 %v4626
      %6086 = vmatmul.bf16.gmra.mxu0 %v3006
      %v6087 = vpop.f32.mrf.mxu0
      %v6088 = vadd.f32 %v5999, %v6087
      %v6089 = vpop.f32.mrf.mxu0
      %v6090 = vadd.f32 %v6001, %v6089
      %6091 = vmatmul.bf16.gmra.mxu0 %v3024
      %v6092 = vpop.f32.mrf.mxu0
      %v6093 = vadd.f32 %v6004, %v6092
      %v6094 = vpop.f32.mrf.mxu0
      %v6095 = vadd.f32 %v6006, %v6094
      %6096 = vmatmul.bf16.gmra.mxu0 %v3042
      %v6097 = vpop.f32.mrf.mxu0
      %v6098 = vadd.f32 %v6009, %v6097
      %v6099 = vpop.f32.mrf.mxu0
      %v6100 = vadd.f32 %v6011, %v6099
      %6101 = vmatmul.bf16.gmra.mxu0 %v3060
      %v6102 = vpop.f32.mrf.mxu0
      %v6103 = vadd.f32 %v6014, %v6102
      %v6104 = vpop.f32.mrf.mxu0
      %v6105 = vadd.f32 %v6016, %v6104
      %6106 = vmatmul.bf16.gmra.mxu0 %v3078
      %v6107 = vpop.f32.mrf.mxu0
      %v6108 = vadd.f32 %v6019, %v6107
      %v6109 = vpop.f32.mrf.mxu0
      %v6110 = vadd.f32 %v6021, %v6109
      %6111 = vmatmul.bf16.gmra.mxu0 %v3096
      %v6112 = vpop.f32.mrf.mxu0
      %v6113 = vadd.f32 %v6024, %v6112
      %v6114 = vpop.f32.mrf.mxu0
      %v6115 = vadd.f32 %v6026, %v6114
      %6116 = vmatmul.bf16.gmra.mxu0 %v3114
      %v6117 = vpop.f32.mrf.mxu0
      %v6118 = vadd.f32 %v6029, %v6117
      %v6119 = vpop.f32.mrf.mxu0
      %v6120 = vadd.f32 %v6031, %v6119
      %6121 = vmatmul.bf16.gmra.mxu0 %v3132
      %v6122 = vpop.f32.mrf.mxu0
      %v6123 = vadd.f32 %v6034, %v6122
      %v6124 = vpop.f32.mrf.mxu0
      %v6125 = vadd.f32 %v6036, %v6124
      %6126 = vmatmul.bf16.gmra.mxu0 %v3150
      %v6127 = vpop.f32.mrf.mxu0
      %v6128 = vadd.f32 %v6039, %v6127
      %v6129 = vpop.f32.mrf.mxu0
      %v6130 = vadd.f32 %v6041, %v6129
      %6131 = vmatmul.bf16.gmra.mxu0 %v3168
      %v6132 = vpop.f32.mrf.mxu0
      %v6133 = vadd.f32 %v6044, %v6132
      %v6134 = vpop.f32.mrf.mxu0
      %v6135 = vadd.f32 %v6046, %v6134
      %6136 = vmatmul.bf16.gmra.mxu0 %v3186
      %v6137 = vpop.f32.mrf.mxu0
      %v6138 = vadd.f32 %v6049, %v6137
      %v6139 = vpop.f32.mrf.mxu0
      %v6140 = vadd.f32 %v6051, %v6139
      %6141 = vmatmul.bf16.gmra.mxu0 %v3204
      %v6142 = vpop.f32.mrf.mxu0
      %v6143 = vadd.f32 %v6054, %v6142
      %v6144 = vpop.f32.mrf.mxu0
      %v6145 = vadd.f32 %v6056, %v6144
      %6146 = vmatmul.bf16.gmra.mxu0 %v3222
      %v6147 = vpop.f32.mrf.mxu0
      %v6148 = vadd.f32 %v6059, %v6147
      %v6149 = vpop.f32.mrf.mxu0
      %v6150 = vadd.f32 %v6061, %v6149
      %6151 = vmatmul.bf16.gmra.mxu0 %v3240
      %v6152 = vpop.f32.mrf.mxu0
      %v6153 = vadd.f32 %v6064, %v6152
      %v6154 = vpop.f32.mrf.mxu0
      %v6155 = vadd.f32 %v6066, %v6154
      %6156 = vmatmul.bf16.gmra.mxu0 %v3258
      %v6157 = vpop.f32.mrf.mxu0
      %v6158 = vadd.f32 %v6069, %v6157
      %v6159 = vpop.f32.mrf.mxu0
      %v6160 = vadd.f32 %v6071, %v6159
      %6161 = vmatmul.bf16.gmra.mxu0 %v3276
      %v6162 = vpop.f32.mrf.mxu0
      %v6163 = vadd.f32 %v6074, %v6162
      %v6164 = vpop.f32.mrf.mxu0
      %v6165 = vadd.f32 %v6076, %v6164
      %6166 = vdwg.mxu0
      %6167 = vmatpush.bf16.msra.mxu0 %v4656
      %6168 = vmatpush.bf16.msra.mxu0 %v4654
      %6169 = vmatpush.bf16.msra.mxu0 %v4652
      %6170 = vmatpush.bf16.msra.mxu0 %v4650
      %6171 = vmatpush.bf16.msra.mxu0 %v4648
      %6172 = vmatpush.bf16.msra.mxu0 %v4646
      %6173 = vmatpush.bf16.msra.mxu0 %v4644
      %6174 = vmatpush.bf16.msra.mxu0 %v4642
      %6175 = vmatmul.bf16.gmra.mxu0 %v3007
      %v6176 = vpop.f32.mrf.mxu0
      %v6177 = vadd.f32 %v6088, %v6176
      %v6178 = vpop.f32.mrf.mxu0
      %v6179 = vadd.f32 %v6090, %v6178
      %6180 = vmatmul.bf16.gmra.mxu0 %v3025
      %v6181 = vpop.f32.mrf.mxu0
      %v6182 = vadd.f32 %v6093, %v6181
      %v6183 = vpop.f32.mrf.mxu0
      %v6184 = vadd.f32 %v6095, %v6183
      %6185 = vmatmul.bf16.gmra.mxu0 %v3043
      %v6186 = vpop.f32.mrf.mxu0
      %v6187 = vadd.f32 %v6098, %v6186
      %v6188 = vpop.f32.mrf.mxu0
      %v6189 = vadd.f32 %v6100, %v6188
      %6190 = vmatmul.bf16.gmra.mxu0 %v3061
      %v6191 = vpop.f32.mrf.mxu0
      %v6192 = vadd.f32 %v6103, %v6191
      %v6193 = vpop.f32.mrf.mxu0
      %v6194 = vadd.f32 %v6105, %v6193
      %6195 = vmatmul.bf16.gmra.mxu0 %v3079
      %v6196 = vpop.f32.mrf.mxu0
      %v6197 = vadd.f32 %v6108, %v6196
      %v6198 = vpop.f32.mrf.mxu0
      %v6199 = vadd.f32 %v6110, %v6198
      %6200 = vmatmul.bf16.gmra.mxu0 %v3097
      %v6201 = vpop.f32.mrf.mxu0
      %v6202 = vadd.f32 %v6113, %v6201
      %v6203 = vpop.f32.mrf.mxu0
      %v6204 = vadd.f32 %v6115, %v6203
      %6205 = vmatmul.bf16.gmra.mxu0 %v3115
      %v6206 = vpop.f32.mrf.mxu0
      %v6207 = vadd.f32 %v6118, %v6206
      %v6208 = vpop.f32.mrf.mxu0
      %v6209 = vadd.f32 %v6120, %v6208
      %6210 = vmatmul.bf16.gmra.mxu0 %v3133
      %v6211 = vpop.f32.mrf.mxu0
      %v6212 = vadd.f32 %v6123, %v6211
      %v6213 = vpop.f32.mrf.mxu0
      %v6214 = vadd.f32 %v6125, %v6213
      %6215 = vmatmul.bf16.gmra.mxu0 %v3151
      %v6216 = vpop.f32.mrf.mxu0
      %v6217 = vadd.f32 %v6128, %v6216
      %v6218 = vpop.f32.mrf.mxu0
      %v6219 = vadd.f32 %v6130, %v6218
      %6220 = vmatmul.bf16.gmra.mxu0 %v3169
      %v6221 = vpop.f32.mrf.mxu0
      %v6222 = vadd.f32 %v6133, %v6221
      %v6223 = vpop.f32.mrf.mxu0
      %v6224 = vadd.f32 %v6135, %v6223
      %6225 = vmatmul.bf16.gmra.mxu0 %v3187
      %v6226 = vpop.f32.mrf.mxu0
      %v6227 = vadd.f32 %v6138, %v6226
      %v6228 = vpop.f32.mrf.mxu0
      %v6229 = vadd.f32 %v6140, %v6228
      %6230 = vmatmul.bf16.gmra.mxu0 %v3205
      %v6231 = vpop.f32.mrf.mxu0
      %v6232 = vadd.f32 %v6143, %v6231
      %v6233 = vpop.f32.mrf.mxu0
      %v6234 = vadd.f32 %v6145, %v6233
      %6235 = vmatmul.bf16.gmra.mxu0 %v3223
      %v6236 = vpop.f32.mrf.mxu0
      %v6237 = vadd.f32 %v6148, %v6236
      %v6238 = vpop.f32.mrf.mxu0
      %v6239 = vadd.f32 %v6150, %v6238
      %6240 = vmatmul.bf16.gmra.mxu0 %v3241
      %v6241 = vpop.f32.mrf.mxu0
      %v6242 = vadd.f32 %v6153, %v6241
      %v6243 = vpop.f32.mrf.mxu0
      %v6244 = vadd.f32 %v6155, %v6243
      %6245 = vmatmul.bf16.gmra.mxu0 %v3259
      %v6246 = vpop.f32.mrf.mxu0
      %v6247 = vadd.f32 %v6158, %v6246
      %v6248 = vpop.f32.mrf.mxu0
      %v6249 = vadd.f32 %v6160, %v6248
      %6250 = vmatmul.bf16.gmra.mxu0 %v3277
      %v6251 = vpop.f32.mrf.mxu0
      %v6252 = vadd.f32 %v6163, %v6251
      %v6253 = vpop.f32.mrf.mxu0
      %v6254 = vadd.f32 %v6165, %v6253
      %6255 = vdwg.mxu0
      %6256 = vmatpush.bf16.msra.mxu0 %v4672
      %6257 = vmatpush.bf16.msra.mxu0 %v4670
      %6258 = vmatpush.bf16.msra.mxu0 %v4668
      %6259 = vmatpush.bf16.msra.mxu0 %v4666
      %6260 = vmatpush.bf16.msra.mxu0 %v4664
      %6261 = vmatpush.bf16.msra.mxu0 %v4662
      %6262 = vmatpush.bf16.msra.mxu0 %v4660
      %6263 = vmatpush.bf16.msra.mxu0 %v4658
      %6264 = vmatmul.bf16.gmra.mxu0 %v3008
      %v6265 = vpop.f32.mrf.mxu0
      %v6266 = vadd.f32 %v6177, %v6265
      %v6267 = vpop.f32.mrf.mxu0
      %v6268 = vadd.f32 %v6179, %v6267
      %6269 = vmatmul.bf16.gmra.mxu0 %v3026
      %v6270 = vpop.f32.mrf.mxu0
      %v6271 = vadd.f32 %v6182, %v6270
      %v6272 = vpop.f32.mrf.mxu0
      %v6273 = vadd.f32 %v6184, %v6272
      %6274 = vmatmul.bf16.gmra.mxu0 %v3044
      %v6275 = vpop.f32.mrf.mxu0
      %v6276 = vadd.f32 %v6187, %v6275
      %v6277 = vpop.f32.mrf.mxu0
      %v6278 = vadd.f32 %v6189, %v6277
      %6279 = vmatmul.bf16.gmra.mxu0 %v3062
      %v6280 = vpop.f32.mrf.mxu0
      %v6281 = vadd.f32 %v6192, %v6280
      %v6282 = vpop.f32.mrf.mxu0
      %v6283 = vadd.f32 %v6194, %v6282
      %6284 = vmatmul.bf16.gmra.mxu0 %v3080
      %v6285 = vpop.f32.mrf.mxu0
      %v6286 = vadd.f32 %v6197, %v6285
      %v6287 = vpop.f32.mrf.mxu0
      %v6288 = vadd.f32 %v6199, %v6287
      %6289 = vmatmul.bf16.gmra.mxu0 %v3098
      %v6290 = vpop.f32.mrf.mxu0
      %v6291 = vadd.f32 %v6202, %v6290
      %v6292 = vpop.f32.mrf.mxu0
      %v6293 = vadd.f32 %v6204, %v6292
      %6294 = vmatmul.bf16.gmra.mxu0 %v3116
      %v6295 = vpop.f32.mrf.mxu0
      %v6296 = vadd.f32 %v6207, %v6295
      %v6297 = vpop.f32.mrf.mxu0
      %v6298 = vadd.f32 %v6209, %v6297
      %6299 = vmatmul.bf16.gmra.mxu0 %v3134
      %v6300 = vpop.f32.mrf.mxu0
      %v6301 = vadd.f32 %v6212, %v6300
      %v6302 = vpop.f32.mrf.mxu0
      %v6303 = vadd.f32 %v6214, %v6302
      %6304 = vmatmul.bf16.gmra.mxu0 %v3152
      %v6305 = vpop.f32.mrf.mxu0
      %v6306 = vadd.f32 %v6217, %v6305
      %v6307 = vpop.f32.mrf.mxu0
      %v6308 = vadd.f32 %v6219, %v6307
      %6309 = vmatmul.bf16.gmra.mxu0 %v3170
      %v6310 = vpop.f32.mrf.mxu0
      %v6311 = vadd.f32 %v6222, %v6310
      %v6312 = vpop.f32.mrf.mxu0
      %v6313 = vadd.f32 %v6224, %v6312
      %6314 = vmatmul.bf16.gmra.mxu0 %v3188
      %v6315 = vpop.f32.mrf.mxu0
      %v6316 = vadd.f32 %v6227, %v6315
      %v6317 = vpop.f32.mrf.mxu0
      %v6318 = vadd.f32 %v6229, %v6317
      %6319 = vmatmul.bf16.gmra.mxu0 %v3206
      %v6320 = vpop.f32.mrf.mxu0
      %v6321 = vadd.f32 %v6232, %v6320
      %v6322 = vpop.f32.mrf.mxu0
      %v6323 = vadd.f32 %v6234, %v6322
      %6324 = vmatmul.bf16.gmra.mxu0 %v3224
      %v6325 = vpop.f32.mrf.mxu0
      %v6326 = vadd.f32 %v6237, %v6325
      %v6327 = vpop.f32.mrf.mxu0
      %v6328 = vadd.f32 %v6239, %v6327
      %6329 = vmatmul.bf16.gmra.mxu0 %v3242
      %v6330 = vpop.f32.mrf.mxu0
      %v6331 = vadd.f32 %v6242, %v6330
      %v6332 = vpop.f32.mrf.mxu0
      %v6333 = vadd.f32 %v6244, %v6332
      %6334 = vmatmul.bf16.gmra.mxu0 %v3260
      %v6335 = vpop.f32.mrf.mxu0
      %v6336 = vadd.f32 %v6247, %v6335
      %v6337 = vpop.f32.mrf.mxu0
      %v6338 = vadd.f32 %v6249, %v6337
      %6339 = vmatmul.bf16.gmra.mxu0 %v3278
      %v6340 = vpop.f32.mrf.mxu0
      %v6341 = vadd.f32 %v6252, %v6340
      %v6342 = vpop.f32.mrf.mxu0
      %v6343 = vadd.f32 %v6254, %v6342
      %6344 = vdwg.mxu0
      %6345 = vmatpush.bf16.msra.mxu0 %v4688
      %6346 = vmatpush.bf16.msra.mxu0 %v4686
      %6347 = vmatpush.bf16.msra.mxu0 %v4684
      %6348 = vmatpush.bf16.msra.mxu0 %v4682
      %6349 = vmatpush.bf16.msra.mxu0 %v4680
      %6350 = vmatpush.bf16.msra.mxu0 %v4678
      %6351 = vmatpush.bf16.msra.mxu0 %v4676
      %6352 = vmatpush.bf16.msra.mxu0 %v4674
      %6353 = vmatmul.bf16.gmra.mxu0 %v3009
      %v6354 = vpop.f32.mrf.mxu0
      %v6355 = vadd.f32 %v6266, %v6354
      %v6356 = vpop.f32.mrf.mxu0
      %v6357 = vadd.f32 %v6268, %v6356
      %6358 = vmatmul.bf16.gmra.mxu0 %v3027
      %v6359 = vpop.f32.mrf.mxu0
      %v6360 = vadd.f32 %v6271, %v6359
      %v6361 = vpop.f32.mrf.mxu0
      %v6362 = vadd.f32 %v6273, %v6361
      %6363 = vmatmul.bf16.gmra.mxu0 %v3045
      %v6364 = vpop.f32.mrf.mxu0
      %v6365 = vadd.f32 %v6276, %v6364
      %v6366 = vpop.f32.mrf.mxu0
      %v6367 = vadd.f32 %v6278, %v6366
      %6368 = vmatmul.bf16.gmra.mxu0 %v3063
      %v6369 = vpop.f32.mrf.mxu0
      %v6370 = vadd.f32 %v6281, %v6369
      %v6371 = vpop.f32.mrf.mxu0
      %v6372 = vadd.f32 %v6283, %v6371
      %6373 = vmatmul.bf16.gmra.mxu0 %v3081
      %v6374 = vpop.f32.mrf.mxu0
      %v6375 = vadd.f32 %v6286, %v6374
      %v6376 = vpop.f32.mrf.mxu0
      %v6377 = vadd.f32 %v6288, %v6376
      %6378 = vmatmul.bf16.gmra.mxu0 %v3099
      %v6379 = vpop.f32.mrf.mxu0
      %v6380 = vadd.f32 %v6291, %v6379
      %v6381 = vpop.f32.mrf.mxu0
      %v6382 = vadd.f32 %v6293, %v6381
      %6383 = vmatmul.bf16.gmra.mxu0 %v3117
      %v6384 = vpop.f32.mrf.mxu0
      %v6385 = vadd.f32 %v6296, %v6384
      %v6386 = vpop.f32.mrf.mxu0
      %v6387 = vadd.f32 %v6298, %v6386
      %6388 = vmatmul.bf16.gmra.mxu0 %v3135
      %v6389 = vpop.f32.mrf.mxu0
      %v6390 = vadd.f32 %v6301, %v6389
      %v6391 = vpop.f32.mrf.mxu0
      %v6392 = vadd.f32 %v6303, %v6391
      %6393 = vmatmul.bf16.gmra.mxu0 %v3153
      %v6394 = vpop.f32.mrf.mxu0
      %v6395 = vadd.f32 %v6306, %v6394
      %v6396 = vpop.f32.mrf.mxu0
      %v6397 = vadd.f32 %v6308, %v6396
      %6398 = vmatmul.bf16.gmra.mxu0 %v3171
      %v6399 = vpop.f32.mrf.mxu0
      %v6400 = vadd.f32 %v6311, %v6399
      %v6401 = vpop.f32.mrf.mxu0
      %v6402 = vadd.f32 %v6313, %v6401
      %6403 = vmatmul.bf16.gmra.mxu0 %v3189
      %v6404 = vpop.f32.mrf.mxu0
      %v6405 = vadd.f32 %v6316, %v6404
      %v6406 = vpop.f32.mrf.mxu0
      %v6407 = vadd.f32 %v6318, %v6406
      %6408 = vmatmul.bf16.gmra.mxu0 %v3207
      %v6409 = vpop.f32.mrf.mxu0
      %v6410 = vadd.f32 %v6321, %v6409
      %v6411 = vpop.f32.mrf.mxu0
      %v6412 = vadd.f32 %v6323, %v6411
      %6413 = vmatmul.bf16.gmra.mxu0 %v3225
      %v6414 = vpop.f32.mrf.mxu0
      %v6415 = vadd.f32 %v6326, %v6414
      %v6416 = vpop.f32.mrf.mxu0
      %v6417 = vadd.f32 %v6328, %v6416
      %6418 = vmatmul.bf16.gmra.mxu0 %v3243
      %v6419 = vpop.f32.mrf.mxu0
      %v6420 = vadd.f32 %v6331, %v6419
      %v6421 = vpop.f32.mrf.mxu0
      %v6422 = vadd.f32 %v6333, %v6421
      %6423 = vmatmul.bf16.gmra.mxu0 %v3261
      %v6424 = vpop.f32.mrf.mxu0
      %v6425 = vadd.f32 %v6336, %v6424
      %v6426 = vpop.f32.mrf.mxu0
      %v6427 = vadd.f32 %v6338, %v6426
      %6428 = vmatmul.bf16.gmra.mxu0 %v3279
      %v6429 = vpop.f32.mrf.mxu0
      %v6430 = vadd.f32 %v6341, %v6429
      %v6431 = vpop.f32.mrf.mxu0
      %v6432 = vadd.f32 %v6343, %v6431
      %6433 = vdwg.mxu0
      %6434 = vmatpush.bf16.msra.mxu0 %v4704
      %6435 = vmatpush.bf16.msra.mxu0 %v4702
      %6436 = vmatpush.bf16.msra.mxu0 %v4700
      %6437 = vmatpush.bf16.msra.mxu0 %v4698
      %6438 = vmatpush.bf16.msra.mxu0 %v4696
      %6439 = vmatpush.bf16.msra.mxu0 %v4694
      %6440 = vmatpush.bf16.msra.mxu0 %v4692
      %6441 = vmatpush.bf16.msra.mxu0 %v4690
      %6442 = vmatmul.bf16.gmra.mxu0 %v3010
      %v6443 = vpop.f32.mrf.mxu0
      %v6444 = vadd.f32 %v6355, %v6443
      %v6445 = vpop.f32.mrf.mxu0
      %v6446 = vadd.f32 %v6357, %v6445
      %6447 = vmatmul.bf16.gmra.mxu0 %v3028
      %v6448 = vpop.f32.mrf.mxu0
      %v6449 = vadd.f32 %v6360, %v6448
      %v6450 = vpop.f32.mrf.mxu0
      %v6451 = vadd.f32 %v6362, %v6450
      %6452 = vmatmul.bf16.gmra.mxu0 %v3046
      %v6453 = vpop.f32.mrf.mxu0
      %v6454 = vadd.f32 %v6365, %v6453
      %v6455 = vpop.f32.mrf.mxu0
      %v6456 = vadd.f32 %v6367, %v6455
      %6457 = vmatmul.bf16.gmra.mxu0 %v3064
      %v6458 = vpop.f32.mrf.mxu0
      %v6459 = vadd.f32 %v6370, %v6458
      %v6460 = vpop.f32.mrf.mxu0
      %v6461 = vadd.f32 %v6372, %v6460
      %6462 = vmatmul.bf16.gmra.mxu0 %v3082
      %v6463 = vpop.f32.mrf.mxu0
      %v6464 = vadd.f32 %v6375, %v6463
      %v6465 = vpop.f32.mrf.mxu0
      %v6466 = vadd.f32 %v6377, %v6465
      %6467 = vmatmul.bf16.gmra.mxu0 %v3100
      %v6468 = vpop.f32.mrf.mxu0
      %v6469 = vadd.f32 %v6380, %v6468
      %v6470 = vpop.f32.mrf.mxu0
      %v6471 = vadd.f32 %v6382, %v6470
      %6472 = vmatmul.bf16.gmra.mxu0 %v3118
      %v6473 = vpop.f32.mrf.mxu0
      %v6474 = vadd.f32 %v6385, %v6473
      %v6475 = vpop.f32.mrf.mxu0
      %v6476 = vadd.f32 %v6387, %v6475
      %6477 = vmatmul.bf16.gmra.mxu0 %v3136
      %v6478 = vpop.f32.mrf.mxu0
      %v6479 = vadd.f32 %v6390, %v6478
      %v6480 = vpop.f32.mrf.mxu0
      %v6481 = vadd.f32 %v6392, %v6480
      %6482 = vmatmul.bf16.gmra.mxu0 %v3154
      %v6483 = vpop.f32.mrf.mxu0
      %v6484 = vadd.f32 %v6395, %v6483
      %v6485 = vpop.f32.mrf.mxu0
      %v6486 = vadd.f32 %v6397, %v6485
      %6487 = vmatmul.bf16.gmra.mxu0 %v3172
      %v6488 = vpop.f32.mrf.mxu0
      %v6489 = vadd.f32 %v6400, %v6488
      %v6490 = vpop.f32.mrf.mxu0
      %v6491 = vadd.f32 %v6402, %v6490
      %6492 = vmatmul.bf16.gmra.mxu0 %v3190
      %v6493 = vpop.f32.mrf.mxu0
      %v6494 = vadd.f32 %v6405, %v6493
      %v6495 = vpop.f32.mrf.mxu0
      %v6496 = vadd.f32 %v6407, %v6495
      %6497 = vmatmul.bf16.gmra.mxu0 %v3208
      %v6498 = vpop.f32.mrf.mxu0
      %v6499 = vadd.f32 %v6410, %v6498
      %v6500 = vpop.f32.mrf.mxu0
      %v6501 = vadd.f32 %v6412, %v6500
      %6502 = vmatmul.bf16.gmra.mxu0 %v3226
      %v6503 = vpop.f32.mrf.mxu0
      %v6504 = vadd.f32 %v6415, %v6503
      %v6505 = vpop.f32.mrf.mxu0
      %v6506 = vadd.f32 %v6417, %v6505
      %6507 = vmatmul.bf16.gmra.mxu0 %v3244
      %v6508 = vpop.f32.mrf.mxu0
      %v6509 = vadd.f32 %v6420, %v6508
      %v6510 = vpop.f32.mrf.mxu0
      %v6511 = vadd.f32 %v6422, %v6510
      %6512 = vmatmul.bf16.gmra.mxu0 %v3262
      %v6513 = vpop.f32.mrf.mxu0
      %v6514 = vadd.f32 %v6425, %v6513
      %v6515 = vpop.f32.mrf.mxu0
      %v6516 = vadd.f32 %v6427, %v6515
      %6517 = vmatmul.bf16.gmra.mxu0 %v3280
      %v6518 = vpop.f32.mrf.mxu0
      %v6519 = vadd.f32 %v6430, %v6518
      %v6520 = vpop.f32.mrf.mxu0
      %v6521 = vadd.f32 %v6432, %v6520
      %6522 = vdwg.mxu0
      %6523 = vmatpush.bf16.msra.mxu0 %v4720
      %6524 = vmatpush.bf16.msra.mxu0 %v4718
      %6525 = vmatpush.bf16.msra.mxu0 %v4716
      %6526 = vmatpush.bf16.msra.mxu0 %v4714
      %6527 = vmatpush.bf16.msra.mxu0 %v4712
      %6528 = vmatpush.bf16.msra.mxu0 %v4710
      %6529 = vmatpush.bf16.msra.mxu0 %v4708
      %6530 = vmatpush.bf16.msra.mxu0 %v4706
      %6531 = vmatmul.bf16.gmra.mxu0 %v3011
      %v6532 = vpop.f32.mrf.mxu0
      %v6533 = vadd.f32 %v6444, %v6532
      %v6534 = vpop.f32.mrf.mxu0
      %v6535 = vadd.f32 %v6446, %v6534
      %6536 = vmatmul.bf16.gmra.mxu0 %v3029
      %v6537 = vpop.f32.mrf.mxu0
      %v6538 = vadd.f32 %v6449, %v6537
      %v6539 = vpop.f32.mrf.mxu0
      %v6540 = vadd.f32 %v6451, %v6539
      %6541 = vmatmul.bf16.gmra.mxu0 %v3047
      %v6542 = vpop.f32.mrf.mxu0
      %v6543 = vadd.f32 %v6454, %v6542
      %v6544 = vpop.f32.mrf.mxu0
      %v6545 = vadd.f32 %v6456, %v6544
      %6546 = vmatmul.bf16.gmra.mxu0 %v3065
      %v6547 = vpop.f32.mrf.mxu0
      %v6548 = vadd.f32 %v6459, %v6547
      %v6549 = vpop.f32.mrf.mxu0
      %v6550 = vadd.f32 %v6461, %v6549
      %6551 = vmatmul.bf16.gmra.mxu0 %v3083
      %v6552 = vpop.f32.mrf.mxu0
      %v6553 = vadd.f32 %v6464, %v6552
      %v6554 = vpop.f32.mrf.mxu0
      %v6555 = vadd.f32 %v6466, %v6554
      %6556 = vmatmul.bf16.gmra.mxu0 %v3101
      %v6557 = vpop.f32.mrf.mxu0
      %v6558 = vadd.f32 %v6469, %v6557
      %v6559 = vpop.f32.mrf.mxu0
      %v6560 = vadd.f32 %v6471, %v6559
      %6561 = vmatmul.bf16.gmra.mxu0 %v3119
      %v6562 = vpop.f32.mrf.mxu0
      %v6563 = vadd.f32 %v6474, %v6562
      %v6564 = vpop.f32.mrf.mxu0
      %v6565 = vadd.f32 %v6476, %v6564
      %6566 = vmatmul.bf16.gmra.mxu0 %v3137
      %v6567 = vpop.f32.mrf.mxu0
      %v6568 = vadd.f32 %v6479, %v6567
      %v6569 = vpop.f32.mrf.mxu0
      %v6570 = vadd.f32 %v6481, %v6569
      %6571 = vmatmul.bf16.gmra.mxu0 %v3155
      %v6572 = vpop.f32.mrf.mxu0
      %v6573 = vadd.f32 %v6484, %v6572
      %v6574 = vpop.f32.mrf.mxu0
      %v6575 = vadd.f32 %v6486, %v6574
      %6576 = vmatmul.bf16.gmra.mxu0 %v3173
      %v6577 = vpop.f32.mrf.mxu0
      %v6578 = vadd.f32 %v6489, %v6577
      %v6579 = vpop.f32.mrf.mxu0
      %v6580 = vadd.f32 %v6491, %v6579
      %6581 = vmatmul.bf16.gmra.mxu0 %v3191
      %v6582 = vpop.f32.mrf.mxu0
      %v6583 = vadd.f32 %v6494, %v6582
      %v6584 = vpop.f32.mrf.mxu0
      %v6585 = vadd.f32 %v6496, %v6584
      %6586 = vmatmul.bf16.gmra.mxu0 %v3209
      %v6587 = vpop.f32.mrf.mxu0
      %v6588 = vadd.f32 %v6499, %v6587
      %v6589 = vpop.f32.mrf.mxu0
      %v6590 = vadd.f32 %v6501, %v6589
      %6591 = vmatmul.bf16.gmra.mxu0 %v3227
      %v6592 = vpop.f32.mrf.mxu0
      %v6593 = vadd.f32 %v6504, %v6592
      %v6594 = vpop.f32.mrf.mxu0
      %v6595 = vadd.f32 %v6506, %v6594
      %6596 = vmatmul.bf16.gmra.mxu0 %v3245
      %v6597 = vpop.f32.mrf.mxu0
      %v6598 = vadd.f32 %v6509, %v6597
      %v6599 = vpop.f32.mrf.mxu0
      %v6600 = vadd.f32 %v6511, %v6599
      %6601 = vmatmul.bf16.gmra.mxu0 %v3263
      %v6602 = vpop.f32.mrf.mxu0
      %v6603 = vadd.f32 %v6514, %v6602
      %v6604 = vpop.f32.mrf.mxu0
      %v6605 = vadd.f32 %v6516, %v6604
      %6606 = vmatmul.bf16.gmra.mxu0 %v3281
      %v6607 = vpop.f32.mrf.mxu0
      %v6608 = vadd.f32 %v6519, %v6607
      %v6609 = vpop.f32.mrf.mxu0
      %v6610 = vadd.f32 %v6521, %v6609
      %6611 = vdwg.mxu0
      %6612 = vmatpush.bf16.msra.mxu0 %v4449
      %6613 = vmatpush.bf16.msra.mxu0 %v4447
      %6614 = vmatpush.bf16.msra.mxu0 %v4445
      %6615 = vmatpush.bf16.msra.mxu0 %v4443
      %6616 = vmatpush.bf16.msra.mxu0 %v4441
      %6617 = vmatpush.bf16.msra.mxu0 %v4439
      %6618 = vmatpush.bf16.msra.mxu0 %v4437
      %6619 = vmatpush.bf16.msra.mxu0 %v4435
      %6620 = vmatmul.bf16.gmra.mxu0 %v2994
      %v6621 = vpop.f32.mrf.mxu0
      %v6622 = vadd.f32 %v2127, %v6621
      %v6623 = vpop.f32.mrf.mxu0
      %v6624 = vadd.f32 %v2127, %v6623
      %6625 = vmatmul.bf16.gmra.mxu0 %v3012
      %v6626 = vpop.f32.mrf.mxu0
      %v6627 = vadd.f32 %v2127, %v6626
      %v6628 = vpop.f32.mrf.mxu0
      %v6629 = vadd.f32 %v2127, %v6628
      %6630 = vmatmul.bf16.gmra.mxu0 %v3030
      %v6631 = vpop.f32.mrf.mxu0
      %v6632 = vadd.f32 %v2127, %v6631
      %v6633 = vpop.f32.mrf.mxu0
      %v6634 = vadd.f32 %v2127, %v6633
      %6635 = vmatmul.bf16.gmra.mxu0 %v3048
      %v6636 = vpop.f32.mrf.mxu0
      %v6637 = vadd.f32 %v2127, %v6636
      %v6638 = vpop.f32.mrf.mxu0
      %v6639 = vadd.f32 %v2127, %v6638
      %6640 = vmatmul.bf16.gmra.mxu0 %v3066
      %v6641 = vpop.f32.mrf.mxu0
      %v6642 = vadd.f32 %v2127, %v6641
      %v6643 = vpop.f32.mrf.mxu0
      %v6644 = vadd.f32 %v2127, %v6643
      %6645 = vmatmul.bf16.gmra.mxu0 %v3084
      %v6646 = vpop.f32.mrf.mxu0
      %v6647 = vadd.f32 %v2127, %v6646
      %v6648 = vpop.f32.mrf.mxu0
      %v6649 = vadd.f32 %v2127, %v6648
      %6650 = vmatmul.bf16.gmra.mxu0 %v3102
      %v6651 = vpop.f32.mrf.mxu0
      %v6652 = vadd.f32 %v2127, %v6651
      %v6653 = vpop.f32.mrf.mxu0
      %v6654 = vadd.f32 %v2127, %v6653
      %6655 = vmatmul.bf16.gmra.mxu0 %v3120
      %v6656 = vpop.f32.mrf.mxu0
      %v6657 = vadd.f32 %v2127, %v6656
      %v6658 = vpop.f32.mrf.mxu0
      %v6659 = vadd.f32 %v2127, %v6658
      %6660 = vmatmul.bf16.gmra.mxu0 %v3138
      %v6661 = vpop.f32.mrf.mxu0
      %v6662 = vadd.f32 %v2127, %v6661
      %v6663 = vpop.f32.mrf.mxu0
      %v6664 = vadd.f32 %v2127, %v6663
      %6665 = vmatmul.bf16.gmra.mxu0 %v3156
      %v6666 = vpop.f32.mrf.mxu0
      %v6667 = vadd.f32 %v2127, %v6666
      %v6668 = vpop.f32.mrf.mxu0
      %v6669 = vadd.f32 %v2127, %v6668
      %6670 = vmatmul.bf16.gmra.mxu0 %v3174
      %v6671 = vpop.f32.mrf.mxu0
      %v6672 = vadd.f32 %v2127, %v6671
      %v6673 = vpop.f32.mrf.mxu0
      %v6674 = vadd.f32 %v2127, %v6673
      %6675 = vmatmul.bf16.gmra.mxu0 %v3192
      %v6676 = vpop.f32.mrf.mxu0
      %v6677 = vadd.f32 %v2127, %v6676
      %v6678 = vpop.f32.mrf.mxu0
      %v6679 = vadd.f32 %v2127, %v6678
      %6680 = vmatmul.bf16.gmra.mxu0 %v3210
      %v6681 = vpop.f32.mrf.mxu0
      %v6682 = vadd.f32 %v2127, %v6681
      %v6683 = vpop.f32.mrf.mxu0
      %v6684 = vadd.f32 %v2127, %v6683
      %6685 = vmatmul.bf16.gmra.mxu0 %v3228
      %v6686 = vpop.f32.mrf.mxu0
      %v6687 = vadd.f32 %v2127, %v6686
      %v6688 = vpop.f32.mrf.mxu0
      %v6689 = vadd.f32 %v2127, %v6688
      %6690 = vmatmul.bf16.gmra.mxu0 %v3246
      %v6691 = vpop.f32.mrf.mxu0
      %v6692 = vadd.f32 %v2127, %v6691
      %v6693 = vpop.f32.mrf.mxu0
      %v6694 = vadd.f32 %v2127, %v6693
      %6695 = vmatmul.bf16.gmra.mxu0 %v3264
      %v6696 = vpop.f32.mrf.mxu0
      %v6697 = vadd.f32 %v2127, %v6696
      %v6698 = vpop.f32.mrf.mxu0
      %v6699 = vadd.f32 %v2127, %v6698
      %6700 = vdwg.mxu0
      %6701 = vmatpush.bf16.msra.mxu0 %v4465
      %6702 = vmatpush.bf16.msra.mxu0 %v4463
      %6703 = vmatpush.bf16.msra.mxu0 %v4461
      %6704 = vmatpush.bf16.msra.mxu0 %v4459
      %6705 = vmatpush.bf16.msra.mxu0 %v4457
      %6706 = vmatpush.bf16.msra.mxu0 %v4455
      %6707 = vmatpush.bf16.msra.mxu0 %v4453
      %6708 = vmatpush.bf16.msra.mxu0 %v4451
      %6709 = vmatmul.bf16.gmra.mxu0 %v2995
      %v6710 = vpop.f32.mrf.mxu0
      %v6711 = vadd.f32 %v6622, %v6710
      %v6712 = vpop.f32.mrf.mxu0
      %v6713 = vadd.f32 %v6624, %v6712
      %6714 = vmatmul.bf16.gmra.mxu0 %v3013
      %v6715 = vpop.f32.mrf.mxu0
      %v6716 = vadd.f32 %v6627, %v6715
      %v6717 = vpop.f32.mrf.mxu0
      %v6718 = vadd.f32 %v6629, %v6717
      %6719 = vmatmul.bf16.gmra.mxu0 %v3031
      %v6720 = vpop.f32.mrf.mxu0
      %v6721 = vadd.f32 %v6632, %v6720
      %v6722 = vpop.f32.mrf.mxu0
      %v6723 = vadd.f32 %v6634, %v6722
      %6724 = vmatmul.bf16.gmra.mxu0 %v3049
      %v6725 = vpop.f32.mrf.mxu0
      %v6726 = vadd.f32 %v6637, %v6725
      %v6727 = vpop.f32.mrf.mxu0
      %v6728 = vadd.f32 %v6639, %v6727
      %6729 = vmatmul.bf16.gmra.mxu0 %v3067
      %v6730 = vpop.f32.mrf.mxu0
      %v6731 = vadd.f32 %v6642, %v6730
      %v6732 = vpop.f32.mrf.mxu0
      %v6733 = vadd.f32 %v6644, %v6732
      %6734 = vmatmul.bf16.gmra.mxu0 %v3085
      %v6735 = vpop.f32.mrf.mxu0
      %v6736 = vadd.f32 %v6647, %v6735
      %v6737 = vpop.f32.mrf.mxu0
      %v6738 = vadd.f32 %v6649, %v6737
      %6739 = vmatmul.bf16.gmra.mxu0 %v3103
      %v6740 = vpop.f32.mrf.mxu0
      %v6741 = vadd.f32 %v6652, %v6740
      %v6742 = vpop.f32.mrf.mxu0
      %v6743 = vadd.f32 %v6654, %v6742
      %6744 = vmatmul.bf16.gmra.mxu0 %v3121
      %v6745 = vpop.f32.mrf.mxu0
      %v6746 = vadd.f32 %v6657, %v6745
      %v6747 = vpop.f32.mrf.mxu0
      %v6748 = vadd.f32 %v6659, %v6747
      %6749 = vmatmul.bf16.gmra.mxu0 %v3139
      %v6750 = vpop.f32.mrf.mxu0
      %v6751 = vadd.f32 %v6662, %v6750
      %v6752 = vpop.f32.mrf.mxu0
      %v6753 = vadd.f32 %v6664, %v6752
      %6754 = vmatmul.bf16.gmra.mxu0 %v3157
      %v6755 = vpop.f32.mrf.mxu0
      %v6756 = vadd.f32 %v6667, %v6755
      %v6757 = vpop.f32.mrf.mxu0
      %v6758 = vadd.f32 %v6669, %v6757
      %6759 = vmatmul.bf16.gmra.mxu0 %v3175
      %v6760 = vpop.f32.mrf.mxu0
      %v6761 = vadd.f32 %v6672, %v6760
      %v6762 = vpop.f32.mrf.mxu0
      %v6763 = vadd.f32 %v6674, %v6762
      %6764 = vmatmul.bf16.gmra.mxu0 %v3193
      %v6765 = vpop.f32.mrf.mxu0
      %v6766 = vadd.f32 %v6677, %v6765
      %v6767 = vpop.f32.mrf.mxu0
      %v6768 = vadd.f32 %v6679, %v6767
      %6769 = vmatmul.bf16.gmra.mxu0 %v3211
      %v6770 = vpop.f32.mrf.mxu0
      %v6771 = vadd.f32 %v6682, %v6770
      %v6772 = vpop.f32.mrf.mxu0
      %v6773 = vadd.f32 %v6684, %v6772
      %6774 = vmatmul.bf16.gmra.mxu0 %v3229
      %v6775 = vpop.f32.mrf.mxu0
      %v6776 = vadd.f32 %v6687, %v6775
      %v6777 = vpop.f32.mrf.mxu0
      %v6778 = vadd.f32 %v6689, %v6777
      %6779 = vmatmul.bf16.gmra.mxu0 %v3247
      %v6780 = vpop.f32.mrf.mxu0
      %v6781 = vadd.f32 %v6692, %v6780
      %v6782 = vpop.f32.mrf.mxu0
      %v6783 = vadd.f32 %v6694, %v6782
      %6784 = vmatmul.bf16.gmra.mxu0 %v3265
      %v6785 = vpop.f32.mrf.mxu0
      %v6786 = vadd.f32 %v6697, %v6785
      %v6787 = vpop.f32.mrf.mxu0
      %v6788 = vadd.f32 %v6699, %v6787
      %6789 = vdwg.mxu0
      %6790 = vmatpush.bf16.msra.mxu0 %v4481
      %6791 = vmatpush.bf16.msra.mxu0 %v4479
      %6792 = vmatpush.bf16.msra.mxu0 %v4477
      %6793 = vmatpush.bf16.msra.mxu0 %v4475
      %6794 = vmatpush.bf16.msra.mxu0 %v4473
      %6795 = vmatpush.bf16.msra.mxu0 %v4471
      %6796 = vmatpush.bf16.msra.mxu0 %v4469
      %6797 = vmatpush.bf16.msra.mxu0 %v4467
      %6798 = vmatmul.bf16.gmra.mxu0 %v2996
      %v6799 = vpop.f32.mrf.mxu0
      %v6800 = vadd.f32 %v6711, %v6799
      %v6801 = vpop.f32.mrf.mxu0
      %v6802 = vadd.f32 %v6713, %v6801
      %6803 = vmatmul.bf16.gmra.mxu0 %v3014
      %v6804 = vpop.f32.mrf.mxu0
      %v6805 = vadd.f32 %v6716, %v6804
      %v6806 = vpop.f32.mrf.mxu0
      %v6807 = vadd.f32 %v6718, %v6806
      %6808 = vmatmul.bf16.gmra.mxu0 %v3032
      %v6809 = vpop.f32.mrf.mxu0
      %v6810 = vadd.f32 %v6721, %v6809
      %v6811 = vpop.f32.mrf.mxu0
      %v6812 = vadd.f32 %v6723, %v6811
      %6813 = vmatmul.bf16.gmra.mxu0 %v3050
      %v6814 = vpop.f32.mrf.mxu0
      %v6815 = vadd.f32 %v6726, %v6814
      %v6816 = vpop.f32.mrf.mxu0
      %v6817 = vadd.f32 %v6728, %v6816
      %6818 = vmatmul.bf16.gmra.mxu0 %v3068
      %v6819 = vpop.f32.mrf.mxu0
      %v6820 = vadd.f32 %v6731, %v6819
      %v6821 = vpop.f32.mrf.mxu0
      %v6822 = vadd.f32 %v6733, %v6821
      %6823 = vmatmul.bf16.gmra.mxu0 %v3086
      %v6824 = vpop.f32.mrf.mxu0
      %v6825 = vadd.f32 %v6736, %v6824
      %v6826 = vpop.f32.mrf.mxu0
      %v6827 = vadd.f32 %v6738, %v6826
      %6828 = vmatmul.bf16.gmra.mxu0 %v3104
      %v6829 = vpop.f32.mrf.mxu0
      %v6830 = vadd.f32 %v6741, %v6829
      %v6831 = vpop.f32.mrf.mxu0
      %v6832 = vadd.f32 %v6743, %v6831
      %6833 = vmatmul.bf16.gmra.mxu0 %v3122
      %v6834 = vpop.f32.mrf.mxu0
      %v6835 = vadd.f32 %v6746, %v6834
      %v6836 = vpop.f32.mrf.mxu0
      %v6837 = vadd.f32 %v6748, %v6836
      %6838 = vmatmul.bf16.gmra.mxu0 %v3140
      %v6839 = vpop.f32.mrf.mxu0
      %v6840 = vadd.f32 %v6751, %v6839
      %v6841 = vpop.f32.mrf.mxu0
      %v6842 = vadd.f32 %v6753, %v6841
      %6843 = vmatmul.bf16.gmra.mxu0 %v3158
      %v6844 = vpop.f32.mrf.mxu0
      %v6845 = vadd.f32 %v6756, %v6844
      %v6846 = vpop.f32.mrf.mxu0
      %v6847 = vadd.f32 %v6758, %v6846
      %6848 = vmatmul.bf16.gmra.mxu0 %v3176
      %v6849 = vpop.f32.mrf.mxu0
      %v6850 = vadd.f32 %v6761, %v6849
      %v6851 = vpop.f32.mrf.mxu0
      %v6852 = vadd.f32 %v6763, %v6851
      %6853 = vmatmul.bf16.gmra.mxu0 %v3194
      %v6854 = vpop.f32.mrf.mxu0
      %v6855 = vadd.f32 %v6766, %v6854
      %v6856 = vpop.f32.mrf.mxu0
      %v6857 = vadd.f32 %v6768, %v6856
      %6858 = vmatmul.bf16.gmra.mxu0 %v3212
      %v6859 = vpop.f32.mrf.mxu0
      %v6860 = vadd.f32 %v6771, %v6859
      %v6861 = vpop.f32.mrf.mxu0
      %v6862 = vadd.f32 %v6773, %v6861
      %6863 = vmatmul.bf16.gmra.mxu0 %v3230
      %v6864 = vpop.f32.mrf.mxu0
      %v6865 = vadd.f32 %v6776, %v6864
      %v6866 = vpop.f32.mrf.mxu0
      %v6867 = vadd.f32 %v6778, %v6866
      %6868 = vmatmul.bf16.gmra.mxu0 %v3248
      %v6869 = vpop.f32.mrf.mxu0
      %v6870 = vadd.f32 %v6781, %v6869
      %v6871 = vpop.f32.mrf.mxu0
      %v6872 = vadd.f32 %v6783, %v6871
      %6873 = vmatmul.bf16.gmra.mxu0 %v3266
      %v6874 = vpop.f32.mrf.mxu0
      %v6875 = vadd.f32 %v6786, %v6874
      %v6876 = vpop.f32.mrf.mxu0
      %v6877 = vadd.f32 %v6788, %v6876
      %6878 = vdwg.mxu0
      %6879 = vmatpush.bf16.msra.mxu0 %v4497
      %6880 = vmatpush.bf16.msra.mxu0 %v4495
      %6881 = vmatpush.bf16.msra.mxu0 %v4493
      %6882 = vmatpush.bf16.msra.mxu0 %v4491
      %6883 = vmatpush.bf16.msra.mxu0 %v4489
      %6884 = vmatpush.bf16.msra.mxu0 %v4487
      %6885 = vmatpush.bf16.msra.mxu0 %v4485
      %6886 = vmatpush.bf16.msra.mxu0 %v4483
      %6887 = vmatmul.bf16.gmra.mxu0 %v2997
      %v6888 = vpop.f32.mrf.mxu0
      %v6889 = vadd.f32 %v6800, %v6888
      %v6890 = vpop.f32.mrf.mxu0
      %v6891 = vadd.f32 %v6802, %v6890
      %6892 = vmatmul.bf16.gmra.mxu0 %v3015
      %v6893 = vpop.f32.mrf.mxu0
      %v6894 = vadd.f32 %v6805, %v6893
      %v6895 = vpop.f32.mrf.mxu0
      %v6896 = vadd.f32 %v6807, %v6895
      %6897 = vmatmul.bf16.gmra.mxu0 %v3033
      %v6898 = vpop.f32.mrf.mxu0
      %v6899 = vadd.f32 %v6810, %v6898
      %v6900 = vpop.f32.mrf.mxu0
      %v6901 = vadd.f32 %v6812, %v6900
      %6902 = vmatmul.bf16.gmra.mxu0 %v3051
      %v6903 = vpop.f32.mrf.mxu0
      %v6904 = vadd.f32 %v6815, %v6903
      %v6905 = vpop.f32.mrf.mxu0
      %v6906 = vadd.f32 %v6817, %v6905
      %6907 = vmatmul.bf16.gmra.mxu0 %v3069
      %v6908 = vpop.f32.mrf.mxu0
      %v6909 = vadd.f32 %v6820, %v6908
      %v6910 = vpop.f32.mrf.mxu0
      %v6911 = vadd.f32 %v6822, %v6910
      %6912 = vmatmul.bf16.gmra.mxu0 %v3087
      %v6913 = vpop.f32.mrf.mxu0
      %v6914 = vadd.f32 %v6825, %v6913
      %v6915 = vpop.f32.mrf.mxu0
      %v6916 = vadd.f32 %v6827, %v6915
      %6917 = vmatmul.bf16.gmra.mxu0 %v3105
      %v6918 = vpop.f32.mrf.mxu0
      %v6919 = vadd.f32 %v6830, %v6918
      %v6920 = vpop.f32.mrf.mxu0
      %v6921 = vadd.f32 %v6832, %v6920
      %6922 = vmatmul.bf16.gmra.mxu0 %v3123
      %v6923 = vpop.f32.mrf.mxu0
      %v6924 = vadd.f32 %v6835, %v6923
      %v6925 = vpop.f32.mrf.mxu0
      %v6926 = vadd.f32 %v6837, %v6925
      %6927 = vmatmul.bf16.gmra.mxu0 %v3141
      %v6928 = vpop.f32.mrf.mxu0
      %v6929 = vadd.f32 %v6840, %v6928
      %v6930 = vpop.f32.mrf.mxu0
      %v6931 = vadd.f32 %v6842, %v6930
      %6932 = vmatmul.bf16.gmra.mxu0 %v3159
      %v6933 = vpop.f32.mrf.mxu0
      %v6934 = vadd.f32 %v6845, %v6933
      %v6935 = vpop.f32.mrf.mxu0
      %v6936 = vadd.f32 %v6847, %v6935
      %6937 = vmatmul.bf16.gmra.mxu0 %v3177
      %v6938 = vpop.f32.mrf.mxu0
      %v6939 = vadd.f32 %v6850, %v6938
      %v6940 = vpop.f32.mrf.mxu0
      %v6941 = vadd.f32 %v6852, %v6940
      %6942 = vmatmul.bf16.gmra.mxu0 %v3195
      %v6943 = vpop.f32.mrf.mxu0
      %v6944 = vadd.f32 %v6855, %v6943
      %v6945 = vpop.f32.mrf.mxu0
      %v6946 = vadd.f32 %v6857, %v6945
      %6947 = vmatmul.bf16.gmra.mxu0 %v3213
      %v6948 = vpop.f32.mrf.mxu0
      %v6949 = vadd.f32 %v6860, %v6948
      %v6950 = vpop.f32.mrf.mxu0
      %v6951 = vadd.f32 %v6862, %v6950
      %6952 = vmatmul.bf16.gmra.mxu0 %v3231
      %v6953 = vpop.f32.mrf.mxu0
      %v6954 = vadd.f32 %v6865, %v6953
      %v6955 = vpop.f32.mrf.mxu0
      %v6956 = vadd.f32 %v6867, %v6955
      %6957 = vmatmul.bf16.gmra.mxu0 %v3249
      %v6958 = vpop.f32.mrf.mxu0
      %v6959 = vadd.f32 %v6870, %v6958
      %v6960 = vpop.f32.mrf.mxu0
      %v6961 = vadd.f32 %v6872, %v6960
      %6962 = vmatmul.bf16.gmra.mxu0 %v3267
      %v6963 = vpop.f32.mrf.mxu0
      %v6964 = vadd.f32 %v6875, %v6963
      %v6965 = vpop.f32.mrf.mxu0
      %v6966 = vadd.f32 %v6877, %v6965
      %6967 = vdwg.mxu0
      %6968 = vmatpush.bf16.msra.mxu0 %v4513
      %6969 = vmatpush.bf16.msra.mxu0 %v4511
      %6970 = vmatpush.bf16.msra.mxu0 %v4509
      %6971 = vmatpush.bf16.msra.mxu0 %v4507
      %6972 = vmatpush.bf16.msra.mxu0 %v4505
      %6973 = vmatpush.bf16.msra.mxu0 %v4503
      %6974 = vmatpush.bf16.msra.mxu0 %v4501
      %6975 = vmatpush.bf16.msra.mxu0 %v4499
      %6976 = vmatmul.bf16.gmra.mxu0 %v2998
      %v6977 = vpop.f32.mrf.mxu0
      %v6978 = vadd.f32 %v6889, %v6977
      %v6979 = vpop.f32.mrf.mxu0
      %v6980 = vadd.f32 %v6891, %v6979
      %6981 = vmatmul.bf16.gmra.mxu0 %v3016
      %v6982 = vpop.f32.mrf.mxu0
      %v6983 = vadd.f32 %v6894, %v6982
      %v6984 = vpop.f32.mrf.mxu0
      %v6985 = vadd.f32 %v6896, %v6984
      %6986 = vmatmul.bf16.gmra.mxu0 %v3034
      %v6987 = vpop.f32.mrf.mxu0
      %v6988 = vadd.f32 %v6899, %v6987
      %v6989 = vpop.f32.mrf.mxu0
      %v6990 = vadd.f32 %v6901, %v6989
      %6991 = vmatmul.bf16.gmra.mxu0 %v3052
      %v6992 = vpop.f32.mrf.mxu0
      %v6993 = vadd.f32 %v6904, %v6992
      %v6994 = vpop.f32.mrf.mxu0
      %v6995 = vadd.f32 %v6906, %v6994
      %6996 = vmatmul.bf16.gmra.mxu0 %v3070
      %v6997 = vpop.f32.mrf.mxu0
      %v6998 = vadd.f32 %v6909, %v6997
      %v6999 = vpop.f32.mrf.mxu0
      %v7000 = vadd.f32 %v6911, %v6999
      %7001 = vmatmul.bf16.gmra.mxu0 %v3088
      %v7002 = vpop.f32.mrf.mxu0
      %v7003 = vadd.f32 %v6914, %v7002
      %v7004 = vpop.f32.mrf.mxu0
      %v7005 = vadd.f32 %v6916, %v7004
      %7006 = vmatmul.bf16.gmra.mxu0 %v3106
      %v7007 = vpop.f32.mrf.mxu0
      %v7008 = vadd.f32 %v6919, %v7007
      %v7009 = vpop.f32.mrf.mxu0
      %v7010 = vadd.f32 %v6921, %v7009
      %7011 = vmatmul.bf16.gmra.mxu0 %v3124
      %v7012 = vpop.f32.mrf.mxu0
      %v7013 = vadd.f32 %v6924, %v7012
      %v7014 = vpop.f32.mrf.mxu0
      %v7015 = vadd.f32 %v6926, %v7014
      %7016 = vmatmul.bf16.gmra.mxu0 %v3142
      %v7017 = vpop.f32.mrf.mxu0
      %v7018 = vadd.f32 %v6929, %v7017
      %v7019 = vpop.f32.mrf.mxu0
      %v7020 = vadd.f32 %v6931, %v7019
      %7021 = vmatmul.bf16.gmra.mxu0 %v3160
      %v7022 = vpop.f32.mrf.mxu0
      %v7023 = vadd.f32 %v6934, %v7022
      %v7024 = vpop.f32.mrf.mxu0
      %v7025 = vadd.f32 %v6936, %v7024
      %7026 = vmatmul.bf16.gmra.mxu0 %v3178
      %v7027 = vpop.f32.mrf.mxu0
      %v7028 = vadd.f32 %v6939, %v7027
      %v7029 = vpop.f32.mrf.mxu0
      %v7030 = vadd.f32 %v6941, %v7029
      %7031 = vmatmul.bf16.gmra.mxu0 %v3196
      %v7032 = vpop.f32.mrf.mxu0
      %v7033 = vadd.f32 %v6944, %v7032
      %v7034 = vpop.f32.mrf.mxu0
      %v7035 = vadd.f32 %v6946, %v7034
      %7036 = vmatmul.bf16.gmra.mxu0 %v3214
      %v7037 = vpop.f32.mrf.mxu0
      %v7038 = vadd.f32 %v6949, %v7037
      %v7039 = vpop.f32.mrf.mxu0
      %v7040 = vadd.f32 %v6951, %v7039
      %7041 = vmatmul.bf16.gmra.mxu0 %v3232
      %v7042 = vpop.f32.mrf.mxu0
      %v7043 = vadd.f32 %v6954, %v7042
      %v7044 = vpop.f32.mrf.mxu0
      %v7045 = vadd.f32 %v6956, %v7044
      %7046 = vmatmul.bf16.gmra.mxu0 %v3250
      %v7047 = vpop.f32.mrf.mxu0
      %v7048 = vadd.f32 %v6959, %v7047
      %v7049 = vpop.f32.mrf.mxu0
      %v7050 = vadd.f32 %v6961, %v7049
      %7051 = vmatmul.bf16.gmra.mxu0 %v3268
      %v7052 = vpop.f32.mrf.mxu0
      %v7053 = vadd.f32 %v6964, %v7052
      %v7054 = vpop.f32.mrf.mxu0
      %v7055 = vadd.f32 %v6966, %v7054
      %7056 = vdwg.mxu0
      %7057 = vmatpush.bf16.msra.mxu0 %v4529
      %7058 = vmatpush.bf16.msra.mxu0 %v4527
      %7059 = vmatpush.bf16.msra.mxu0 %v4525
      %7060 = vmatpush.bf16.msra.mxu0 %v4523
      %7061 = vmatpush.bf16.msra.mxu0 %v4521
      %7062 = vmatpush.bf16.msra.mxu0 %v4519
      %7063 = vmatpush.bf16.msra.mxu0 %v4517
      %7064 = vmatpush.bf16.msra.mxu0 %v4515
      %7065 = vmatmul.bf16.gmra.mxu0 %v2999
      %v7066 = vpop.f32.mrf.mxu0
      %v7067 = vadd.f32 %v6978, %v7066
      %v7068 = vpop.f32.mrf.mxu0
      %v7069 = vadd.f32 %v6980, %v7068
      %7070 = vmatmul.bf16.gmra.mxu0 %v3017
      %v7071 = vpop.f32.mrf.mxu0
      %v7072 = vadd.f32 %v6983, %v7071
      %v7073 = vpop.f32.mrf.mxu0
      %v7074 = vadd.f32 %v6985, %v7073
      %7075 = vmatmul.bf16.gmra.mxu0 %v3035
      %v7076 = vpop.f32.mrf.mxu0
      %v7077 = vadd.f32 %v6988, %v7076
      %v7078 = vpop.f32.mrf.mxu0
      %v7079 = vadd.f32 %v6990, %v7078
      %7080 = vmatmul.bf16.gmra.mxu0 %v3053
      %v7081 = vpop.f32.mrf.mxu0
      %v7082 = vadd.f32 %v6993, %v7081
      %v7083 = vpop.f32.mrf.mxu0
      %v7084 = vadd.f32 %v6995, %v7083
      %7085 = vmatmul.bf16.gmra.mxu0 %v3071
      %v7086 = vpop.f32.mrf.mxu0
      %v7087 = vadd.f32 %v6998, %v7086
      %v7088 = vpop.f32.mrf.mxu0
      %v7089 = vadd.f32 %v7000, %v7088
      %7090 = vmatmul.bf16.gmra.mxu0 %v3089
      %v7091 = vpop.f32.mrf.mxu0
      %v7092 = vadd.f32 %v7003, %v7091
      %v7093 = vpop.f32.mrf.mxu0
      %v7094 = vadd.f32 %v7005, %v7093
      %7095 = vmatmul.bf16.gmra.mxu0 %v3107
      %v7096 = vpop.f32.mrf.mxu0
      %v7097 = vadd.f32 %v7008, %v7096
      %v7098 = vpop.f32.mrf.mxu0
      %v7099 = vadd.f32 %v7010, %v7098
      %7100 = vmatmul.bf16.gmra.mxu0 %v3125
      %v7101 = vpop.f32.mrf.mxu0
      %v7102 = vadd.f32 %v7013, %v7101
      %v7103 = vpop.f32.mrf.mxu0
      %v7104 = vadd.f32 %v7015, %v7103
      %7105 = vmatmul.bf16.gmra.mxu0 %v3143
      %v7106 = vpop.f32.mrf.mxu0
      %v7107 = vadd.f32 %v7018, %v7106
      %v7108 = vpop.f32.mrf.mxu0
      %v7109 = vadd.f32 %v7020, %v7108
      %7110 = vmatmul.bf16.gmra.mxu0 %v3161
      %v7111 = vpop.f32.mrf.mxu0
      %v7112 = vadd.f32 %v7023, %v7111
      %v7113 = vpop.f32.mrf.mxu0
      %v7114 = vadd.f32 %v7025, %v7113
      %7115 = vmatmul.bf16.gmra.mxu0 %v3179
      %v7116 = vpop.f32.mrf.mxu0
      %v7117 = vadd.f32 %v7028, %v7116
      %v7118 = vpop.f32.mrf.mxu0
      %v7119 = vadd.f32 %v7030, %v7118
      %7120 = vmatmul.bf16.gmra.mxu0 %v3197
      %v7121 = vpop.f32.mrf.mxu0
      %v7122 = vadd.f32 %v7033, %v7121
      %v7123 = vpop.f32.mrf.mxu0
      %v7124 = vadd.f32 %v7035, %v7123
      %7125 = vmatmul.bf16.gmra.mxu0 %v3215
      %v7126 = vpop.f32.mrf.mxu0
      %v7127 = vadd.f32 %v7038, %v7126
      %v7128 = vpop.f32.mrf.mxu0
      %v7129 = vadd.f32 %v7040, %v7128
      %7130 = vmatmul.bf16.gmra.mxu0 %v3233
      %v7131 = vpop.f32.mrf.mxu0
      %v7132 = vadd.f32 %v7043, %v7131
      %v7133 = vpop.f32.mrf.mxu0
      %v7134 = vadd.f32 %v7045, %v7133
      %7135 = vmatmul.bf16.gmra.mxu0 %v3251
      %v7136 = vpop.f32.mrf.mxu0
      %v7137 = vadd.f32 %v7048, %v7136
      %v7138 = vpop.f32.mrf.mxu0
      %v7139 = vadd.f32 %v7050, %v7138
      %7140 = vmatmul.bf16.gmra.mxu0 %v3269
      %v7141 = vpop.f32.mrf.mxu0
      %v7142 = vadd.f32 %v7053, %v7141
      %v7143 = vpop.f32.mrf.mxu0
      %v7144 = vadd.f32 %v7055, %v7143
      %7145 = vdwg.mxu0
      %7146 = vmatpush.bf16.msra.mxu0 %v4545
      %7147 = vmatpush.bf16.msra.mxu0 %v4543
      %7148 = vmatpush.bf16.msra.mxu0 %v4541
      %7149 = vmatpush.bf16.msra.mxu0 %v4539
      %7150 = vmatpush.bf16.msra.mxu0 %v4537
      %7151 = vmatpush.bf16.msra.mxu0 %v4535
      %7152 = vmatpush.bf16.msra.mxu0 %v4533
      %7153 = vmatpush.bf16.msra.mxu0 %v4531
      %7154 = vmatmul.bf16.gmra.mxu0 %v3000
      %v7155 = vpop.f32.mrf.mxu0
      %v7156 = vadd.f32 %v7067, %v7155
      %v7157 = vpop.f32.mrf.mxu0
      %v7158 = vadd.f32 %v7069, %v7157
      %7159 = vmatmul.bf16.gmra.mxu0 %v3018
      %v7160 = vpop.f32.mrf.mxu0
      %v7161 = vadd.f32 %v7072, %v7160
      %v7162 = vpop.f32.mrf.mxu0
      %v7163 = vadd.f32 %v7074, %v7162
      %7164 = vmatmul.bf16.gmra.mxu0 %v3036
      %v7165 = vpop.f32.mrf.mxu0
      %v7166 = vadd.f32 %v7077, %v7165
      %v7167 = vpop.f32.mrf.mxu0
      %v7168 = vadd.f32 %v7079, %v7167
      %7169 = vmatmul.bf16.gmra.mxu0 %v3054
      %v7170 = vpop.f32.mrf.mxu0
      %v7171 = vadd.f32 %v7082, %v7170
      %v7172 = vpop.f32.mrf.mxu0
      %v7173 = vadd.f32 %v7084, %v7172
      %7174 = vmatmul.bf16.gmra.mxu0 %v3072
      %v7175 = vpop.f32.mrf.mxu0
      %v7176 = vadd.f32 %v7087, %v7175
      %v7177 = vpop.f32.mrf.mxu0
      %v7178 = vadd.f32 %v7089, %v7177
      %7179 = vmatmul.bf16.gmra.mxu0 %v3090
      %v7180 = vpop.f32.mrf.mxu0
      %v7181 = vadd.f32 %v7092, %v7180
      %v7182 = vpop.f32.mrf.mxu0
      %v7183 = vadd.f32 %v7094, %v7182
      %7184 = vmatmul.bf16.gmra.mxu0 %v3108
      %v7185 = vpop.f32.mrf.mxu0
      %v7186 = vadd.f32 %v7097, %v7185
      %v7187 = vpop.f32.mrf.mxu0
      %v7188 = vadd.f32 %v7099, %v7187
      %7189 = vmatmul.bf16.gmra.mxu0 %v3126
      %v7190 = vpop.f32.mrf.mxu0
      %v7191 = vadd.f32 %v7102, %v7190
      %v7192 = vpop.f32.mrf.mxu0
      %v7193 = vadd.f32 %v7104, %v7192
      %7194 = vmatmul.bf16.gmra.mxu0 %v3144
      %v7195 = vpop.f32.mrf.mxu0
      %v7196 = vadd.f32 %v7107, %v7195
      %v7197 = vpop.f32.mrf.mxu0
      %v7198 = vadd.f32 %v7109, %v7197
      %7199 = vmatmul.bf16.gmra.mxu0 %v3162
      %v7200 = vpop.f32.mrf.mxu0
      %v7201 = vadd.f32 %v7112, %v7200
      %v7202 = vpop.f32.mrf.mxu0
      %v7203 = vadd.f32 %v7114, %v7202
      %7204 = vmatmul.bf16.gmra.mxu0 %v3180
      %v7205 = vpop.f32.mrf.mxu0
      %v7206 = vadd.f32 %v7117, %v7205
      %v7207 = vpop.f32.mrf.mxu0
      %v7208 = vadd.f32 %v7119, %v7207
      %7209 = vmatmul.bf16.gmra.mxu0 %v3198
      %v7210 = vpop.f32.mrf.mxu0
      %v7211 = vadd.f32 %v7122, %v7210
      %v7212 = vpop.f32.mrf.mxu0
      %v7213 = vadd.f32 %v7124, %v7212
      %7214 = vmatmul.bf16.gmra.mxu0 %v3216
      %v7215 = vpop.f32.mrf.mxu0
      %v7216 = vadd.f32 %v7127, %v7215
      %v7217 = vpop.f32.mrf.mxu0
      %v7218 = vadd.f32 %v7129, %v7217
      %7219 = vmatmul.bf16.gmra.mxu0 %v3234
      %v7220 = vpop.f32.mrf.mxu0
      %v7221 = vadd.f32 %v7132, %v7220
      %v7222 = vpop.f32.mrf.mxu0
      %v7223 = vadd.f32 %v7134, %v7222
      %7224 = vmatmul.bf16.gmra.mxu0 %v3252
      %v7225 = vpop.f32.mrf.mxu0
      %v7226 = vadd.f32 %v7137, %v7225
      %v7227 = vpop.f32.mrf.mxu0
      %v7228 = vadd.f32 %v7139, %v7227
      %7229 = vmatmul.bf16.gmra.mxu0 %v3270
      %v7230 = vpop.f32.mrf.mxu0
      %v7231 = vadd.f32 %v7142, %v7230
      %v7232 = vpop.f32.mrf.mxu0
      %v7233 = vadd.f32 %v7144, %v7232
      %7234 = vdwg.mxu0
      %7235 = vmatpush.bf16.msra.mxu0 %v4561
      %7236 = vmatpush.bf16.msra.mxu0 %v4559
      %7237 = vmatpush.bf16.msra.mxu0 %v4557
      %7238 = vmatpush.bf16.msra.mxu0 %v4555
      %7239 = vmatpush.bf16.msra.mxu0 %v4553
      %7240 = vmatpush.bf16.msra.mxu0 %v4551
      %7241 = vmatpush.bf16.msra.mxu0 %v4549
      %7242 = vmatpush.bf16.msra.mxu0 %v4547
      %7243 = vmatmul.bf16.gmra.mxu0 %v3001
      %v7244 = vpop.f32.mrf.mxu0
      %v7245 = vadd.f32 %v7156, %v7244
      %v7246 = vpop.f32.mrf.mxu0
      %v7247 = vadd.f32 %v7158, %v7246
      %7248 = vmatmul.bf16.gmra.mxu0 %v3019
      %v7249 = vpop.f32.mrf.mxu0
      %v7250 = vadd.f32 %v7161, %v7249
      %v7251 = vpop.f32.mrf.mxu0
      %v7252 = vadd.f32 %v7163, %v7251
      %7253 = vmatmul.bf16.gmra.mxu0 %v3037
      %v7254 = vpop.f32.mrf.mxu0
      %v7255 = vadd.f32 %v7166, %v7254
      %v7256 = vpop.f32.mrf.mxu0
      %v7257 = vadd.f32 %v7168, %v7256
      %7258 = vmatmul.bf16.gmra.mxu0 %v3055
      %v7259 = vpop.f32.mrf.mxu0
      %v7260 = vadd.f32 %v7171, %v7259
      %v7261 = vpop.f32.mrf.mxu0
      %v7262 = vadd.f32 %v7173, %v7261
      %7263 = vmatmul.bf16.gmra.mxu0 %v3073
      %v7264 = vpop.f32.mrf.mxu0
      %v7265 = vadd.f32 %v7176, %v7264
      %v7266 = vpop.f32.mrf.mxu0
      %v7267 = vadd.f32 %v7178, %v7266
      %7268 = vmatmul.bf16.gmra.mxu0 %v3091
      %v7269 = vpop.f32.mrf.mxu0
      %v7270 = vadd.f32 %v7181, %v7269
      %v7271 = vpop.f32.mrf.mxu0
      %v7272 = vadd.f32 %v7183, %v7271
      %7273 = vmatmul.bf16.gmra.mxu0 %v3109
      %v7274 = vpop.f32.mrf.mxu0
      %v7275 = vadd.f32 %v7186, %v7274
      %v7276 = vpop.f32.mrf.mxu0
      %v7277 = vadd.f32 %v7188, %v7276
      %7278 = vmatmul.bf16.gmra.mxu0 %v3127
      %v7279 = vpop.f32.mrf.mxu0
      %v7280 = vadd.f32 %v7191, %v7279
      %v7281 = vpop.f32.mrf.mxu0
      %v7282 = vadd.f32 %v7193, %v7281
      %7283 = vmatmul.bf16.gmra.mxu0 %v3145
      %v7284 = vpop.f32.mrf.mxu0
      %v7285 = vadd.f32 %v7196, %v7284
      %v7286 = vpop.f32.mrf.mxu0
      %v7287 = vadd.f32 %v7198, %v7286
      %7288 = vmatmul.bf16.gmra.mxu0 %v3163
      %v7289 = vpop.f32.mrf.mxu0
      %v7290 = vadd.f32 %v7201, %v7289
      %v7291 = vpop.f32.mrf.mxu0
      %v7292 = vadd.f32 %v7203, %v7291
      %7293 = vmatmul.bf16.gmra.mxu0 %v3181
      %v7294 = vpop.f32.mrf.mxu0
      %v7295 = vadd.f32 %v7206, %v7294
      %v7296 = vpop.f32.mrf.mxu0
      %v7297 = vadd.f32 %v7208, %v7296
      %7298 = vmatmul.bf16.gmra.mxu0 %v3199
      %v7299 = vpop.f32.mrf.mxu0
      %v7300 = vadd.f32 %v7211, %v7299
      %v7301 = vpop.f32.mrf.mxu0
      %v7302 = vadd.f32 %v7213, %v7301
      %7303 = vmatmul.bf16.gmra.mxu0 %v3217
      %v7304 = vpop.f32.mrf.mxu0
      %v7305 = vadd.f32 %v7216, %v7304
      %v7306 = vpop.f32.mrf.mxu0
      %v7307 = vadd.f32 %v7218, %v7306
      %7308 = vmatmul.bf16.gmra.mxu0 %v3235
      %v7309 = vpop.f32.mrf.mxu0
      %v7310 = vadd.f32 %v7221, %v7309
      %v7311 = vpop.f32.mrf.mxu0
      %v7312 = vadd.f32 %v7223, %v7311
      %7313 = vmatmul.bf16.gmra.mxu0 %v3253
      %v7314 = vpop.f32.mrf.mxu0
      %v7315 = vadd.f32 %v7226, %v7314
      %v7316 = vpop.f32.mrf.mxu0
      %v7317 = vadd.f32 %v7228, %v7316
      %7318 = vmatmul.bf16.gmra.mxu0 %v3271
      %v7319 = vpop.f32.mrf.mxu0
      %v7320 = vadd.f32 %v7231, %v7319
      %v7321 = vpop.f32.mrf.mxu0
      %v7322 = vadd.f32 %v7233, %v7321
      %7323 = vdwg.mxu0
      %7324 = vmatpush.bf16.msra.mxu0 %v4577
      %7325 = vmatpush.bf16.msra.mxu0 %v4575
      %7326 = vmatpush.bf16.msra.mxu0 %v4573
      %7327 = vmatpush.bf16.msra.mxu0 %v4571
      %7328 = vmatpush.bf16.msra.mxu0 %v4569
      %7329 = vmatpush.bf16.msra.mxu0 %v4567
      %7330 = vmatpush.bf16.msra.mxu0 %v4565
      %7331 = vmatpush.bf16.msra.mxu0 %v4563
      %7332 = vmatmul.bf16.gmra.mxu0 %v3002
      %v7333 = vpop.f32.mrf.mxu0
      %v7334 = vadd.f32 %v7245, %v7333
      %v7335 = vpop.f32.mrf.mxu0
      %v7336 = vadd.f32 %v7247, %v7335
      %7337 = vmatmul.bf16.gmra.mxu0 %v3020
      %v7338 = vpop.f32.mrf.mxu0
      %v7339 = vadd.f32 %v7250, %v7338
      %v7340 = vpop.f32.mrf.mxu0
      %v7341 = vadd.f32 %v7252, %v7340
      %7342 = vmatmul.bf16.gmra.mxu0 %v3038
      %v7343 = vpop.f32.mrf.mxu0
      %v7344 = vadd.f32 %v7255, %v7343
      %v7345 = vpop.f32.mrf.mxu0
      %v7346 = vadd.f32 %v7257, %v7345
      %7347 = vmatmul.bf16.gmra.mxu0 %v3056
      %v7348 = vpop.f32.mrf.mxu0
      %v7349 = vadd.f32 %v7260, %v7348
      %v7350 = vpop.f32.mrf.mxu0
      %v7351 = vadd.f32 %v7262, %v7350
      %7352 = vmatmul.bf16.gmra.mxu0 %v3074
      %v7353 = vpop.f32.mrf.mxu0
      %v7354 = vadd.f32 %v7265, %v7353
      %v7355 = vpop.f32.mrf.mxu0
      %v7356 = vadd.f32 %v7267, %v7355
      %7357 = vmatmul.bf16.gmra.mxu0 %v3092
      %v7358 = vpop.f32.mrf.mxu0
      %v7359 = vadd.f32 %v7270, %v7358
      %v7360 = vpop.f32.mrf.mxu0
      %v7361 = vadd.f32 %v7272, %v7360
      %7362 = vmatmul.bf16.gmra.mxu0 %v3110
      %v7363 = vpop.f32.mrf.mxu0
      %v7364 = vadd.f32 %v7275, %v7363
      %v7365 = vpop.f32.mrf.mxu0
      %v7366 = vadd.f32 %v7277, %v7365
      %7367 = vmatmul.bf16.gmra.mxu0 %v3128
      %v7368 = vpop.f32.mrf.mxu0
      %v7369 = vadd.f32 %v7280, %v7368
      %v7370 = vpop.f32.mrf.mxu0
      %v7371 = vadd.f32 %v7282, %v7370
      %7372 = vmatmul.bf16.gmra.mxu0 %v3146
      %v7373 = vpop.f32.mrf.mxu0
      %v7374 = vadd.f32 %v7285, %v7373
      %v7375 = vpop.f32.mrf.mxu0
      %v7376 = vadd.f32 %v7287, %v7375
      %7377 = vmatmul.bf16.gmra.mxu0 %v3164
      %v7378 = vpop.f32.mrf.mxu0
      %v7379 = vadd.f32 %v7290, %v7378
      %v7380 = vpop.f32.mrf.mxu0
      %v7381 = vadd.f32 %v7292, %v7380
      %7382 = vmatmul.bf16.gmra.mxu0 %v3182
      %v7383 = vpop.f32.mrf.mxu0
      %v7384 = vadd.f32 %v7295, %v7383
      %v7385 = vpop.f32.mrf.mxu0
      %v7386 = vadd.f32 %v7297, %v7385
      %7387 = vmatmul.bf16.gmra.mxu0 %v3200
      %v7388 = vpop.f32.mrf.mxu0
      %v7389 = vadd.f32 %v7300, %v7388
      %v7390 = vpop.f32.mrf.mxu0
      %v7391 = vadd.f32 %v7302, %v7390
      %7392 = vmatmul.bf16.gmra.mxu0 %v3218
      %v7393 = vpop.f32.mrf.mxu0
      %v7394 = vadd.f32 %v7305, %v7393
      %v7395 = vpop.f32.mrf.mxu0
      %v7396 = vadd.f32 %v7307, %v7395
      %7397 = vmatmul.bf16.gmra.mxu0 %v3236
      %v7398 = vpop.f32.mrf.mxu0
      %v7399 = vadd.f32 %v7310, %v7398
      %v7400 = vpop.f32.mrf.mxu0
      %v7401 = vadd.f32 %v7312, %v7400
      %7402 = vmatmul.bf16.gmra.mxu0 %v3254
      %v7403 = vpop.f32.mrf.mxu0
      %v7404 = vadd.f32 %v7315, %v7403
      %v7405 = vpop.f32.mrf.mxu0
      %v7406 = vadd.f32 %v7317, %v7405
      %7407 = vmatmul.bf16.gmra.mxu0 %v3272
      %v7408 = vpop.f32.mrf.mxu0
      %v7409 = vadd.f32 %v7320, %v7408
      %v7410 = vpop.f32.mrf.mxu0
      %v7411 = vadd.f32 %v7322, %v7410
      %7412 = vdwg.mxu0
      %7413 = vmatpush.bf16.msra.mxu0 %v4593
      %7414 = vmatpush.bf16.msra.mxu0 %v4591
      %7415 = vmatpush.bf16.msra.mxu0 %v4589
      %7416 = vmatpush.bf16.msra.mxu0 %v4587
      %7417 = vmatpush.bf16.msra.mxu0 %v4585
      %7418 = vmatpush.bf16.msra.mxu0 %v4583
      %7419 = vmatpush.bf16.msra.mxu0 %v4581
      %7420 = vmatpush.bf16.msra.mxu0 %v4579
      %7421 = vmatmul.bf16.gmra.mxu0 %v3003
      %v7422 = vpop.f32.mrf.mxu0
      %v7423 = vadd.f32 %v7334, %v7422
      %v7424 = vpop.f32.mrf.mxu0
      %v7425 = vadd.f32 %v7336, %v7424
      %7426 = vmatmul.bf16.gmra.mxu0 %v3021
      %v7427 = vpop.f32.mrf.mxu0
      %v7428 = vadd.f32 %v7339, %v7427
      %v7429 = vpop.f32.mrf.mxu0
      %v7430 = vadd.f32 %v7341, %v7429
      %7431 = vmatmul.bf16.gmra.mxu0 %v3039
      %v7432 = vpop.f32.mrf.mxu0
      %v7433 = vadd.f32 %v7344, %v7432
      %v7434 = vpop.f32.mrf.mxu0
      %v7435 = vadd.f32 %v7346, %v7434
      %7436 = vmatmul.bf16.gmra.mxu0 %v3057
      %v7437 = vpop.f32.mrf.mxu0
      %v7438 = vadd.f32 %v7349, %v7437
      %v7439 = vpop.f32.mrf.mxu0
      %v7440 = vadd.f32 %v7351, %v7439
      %7441 = vmatmul.bf16.gmra.mxu0 %v3075
      %v7442 = vpop.f32.mrf.mxu0
      %v7443 = vadd.f32 %v7354, %v7442
      %v7444 = vpop.f32.mrf.mxu0
      %v7445 = vadd.f32 %v7356, %v7444
      %7446 = vmatmul.bf16.gmra.mxu0 %v3093
      %v7447 = vpop.f32.mrf.mxu0
      %v7448 = vadd.f32 %v7359, %v7447
      %v7449 = vpop.f32.mrf.mxu0
      %v7450 = vadd.f32 %v7361, %v7449
      %7451 = vmatmul.bf16.gmra.mxu0 %v3111
      %v7452 = vpop.f32.mrf.mxu0
      %v7453 = vadd.f32 %v7364, %v7452
      %v7454 = vpop.f32.mrf.mxu0
      %v7455 = vadd.f32 %v7366, %v7454
      %7456 = vmatmul.bf16.gmra.mxu0 %v3129
      %v7457 = vpop.f32.mrf.mxu0
      %v7458 = vadd.f32 %v7369, %v7457
      %v7459 = vpop.f32.mrf.mxu0
      %v7460 = vadd.f32 %v7371, %v7459
      %7461 = vmatmul.bf16.gmra.mxu0 %v3147
      %v7462 = vpop.f32.mrf.mxu0
      %v7463 = vadd.f32 %v7374, %v7462
      %v7464 = vpop.f32.mrf.mxu0
      %v7465 = vadd.f32 %v7376, %v7464
      %7466 = vmatmul.bf16.gmra.mxu0 %v3165
      %v7467 = vpop.f32.mrf.mxu0
      %v7468 = vadd.f32 %v7379, %v7467
      %v7469 = vpop.f32.mrf.mxu0
      %v7470 = vadd.f32 %v7381, %v7469
      %7471 = vmatmul.bf16.gmra.mxu0 %v3183
      %v7472 = vpop.f32.mrf.mxu0
      %v7473 = vadd.f32 %v7384, %v7472
      %v7474 = vpop.f32.mrf.mxu0
      %v7475 = vadd.f32 %v7386, %v7474
      %7476 = vmatmul.bf16.gmra.mxu0 %v3201
      %v7477 = vpop.f32.mrf.mxu0
      %v7478 = vadd.f32 %v7389, %v7477
      %v7479 = vpop.f32.mrf.mxu0
      %v7480 = vadd.f32 %v7391, %v7479
      %7481 = vmatmul.bf16.gmra.mxu0 %v3219
      %v7482 = vpop.f32.mrf.mxu0
      %v7483 = vadd.f32 %v7394, %v7482
      %v7484 = vpop.f32.mrf.mxu0
      %v7485 = vadd.f32 %v7396, %v7484
      %7486 = vmatmul.bf16.gmra.mxu0 %v3237
      %v7487 = vpop.f32.mrf.mxu0
      %v7488 = vadd.f32 %v7399, %v7487
      %v7489 = vpop.f32.mrf.mxu0
      %v7490 = vadd.f32 %v7401, %v7489
      %7491 = vmatmul.bf16.gmra.mxu0 %v3255
      %v7492 = vpop.f32.mrf.mxu0
      %v7493 = vadd.f32 %v7404, %v7492
      %v7494 = vpop.f32.mrf.mxu0
      %v7495 = vadd.f32 %v7406, %v7494
      %7496 = vmatmul.bf16.gmra.mxu0 %v3273
      %v7497 = vpop.f32.mrf.mxu0
      %v7498 = vadd.f32 %v7409, %v7497
      %v7499 = vpop.f32.mrf.mxu0
      %v7500 = vadd.f32 %v7411, %v7499
      %7501 = vdwg.mxu0
      %7502 = vmatpush.bf16.msra.mxu0 %v4609
      %7503 = vmatpush.bf16.msra.mxu0 %v4607
      %7504 = vmatpush.bf16.msra.mxu0 %v4605
      %7505 = vmatpush.bf16.msra.mxu0 %v4603
      %7506 = vmatpush.bf16.msra.mxu0 %v4601
      %7507 = vmatpush.bf16.msra.mxu0 %v4599
      %7508 = vmatpush.bf16.msra.mxu0 %v4597
      %7509 = vmatpush.bf16.msra.mxu0 %v4595
      %7510 = vmatmul.bf16.gmra.mxu0 %v3004
      %v7511 = vpop.f32.mrf.mxu0
      %v7512 = vadd.f32 %v7423, %v7511
      %v7513 = vpop.f32.mrf.mxu0
      %v7514 = vadd.f32 %v7425, %v7513
      %7515 = vmatmul.bf16.gmra.mxu0 %v3022
      %v7516 = vpop.f32.mrf.mxu0
      %v7517 = vadd.f32 %v7428, %v7516
      %v7518 = vpop.f32.mrf.mxu0
      %v7519 = vadd.f32 %v7430, %v7518
      %7520 = vmatmul.bf16.gmra.mxu0 %v3040
      %v7521 = vpop.f32.mrf.mxu0
      %v7522 = vadd.f32 %v7433, %v7521
      %v7523 = vpop.f32.mrf.mxu0
      %v7524 = vadd.f32 %v7435, %v7523
      %7525 = vmatmul.bf16.gmra.mxu0 %v3058
      %v7526 = vpop.f32.mrf.mxu0
      %v7527 = vadd.f32 %v7438, %v7526
      %v7528 = vpop.f32.mrf.mxu0
      %v7529 = vadd.f32 %v7440, %v7528
      %7530 = vmatmul.bf16.gmra.mxu0 %v3076
      %v7531 = vpop.f32.mrf.mxu0
      %v7532 = vadd.f32 %v7443, %v7531
      %v7533 = vpop.f32.mrf.mxu0
      %v7534 = vadd.f32 %v7445, %v7533
      %7535 = vmatmul.bf16.gmra.mxu0 %v3094
      %v7536 = vpop.f32.mrf.mxu0
      %v7537 = vadd.f32 %v7448, %v7536
      %v7538 = vpop.f32.mrf.mxu0
      %v7539 = vadd.f32 %v7450, %v7538
      %7540 = vmatmul.bf16.gmra.mxu0 %v3112
      %v7541 = vpop.f32.mrf.mxu0
      %v7542 = vadd.f32 %v7453, %v7541
      %v7543 = vpop.f32.mrf.mxu0
      %v7544 = vadd.f32 %v7455, %v7543
      %7545 = vmatmul.bf16.gmra.mxu0 %v3130
      %v7546 = vpop.f32.mrf.mxu0
      %v7547 = vadd.f32 %v7458, %v7546
      %v7548 = vpop.f32.mrf.mxu0
      %v7549 = vadd.f32 %v7460, %v7548
      %7550 = vmatmul.bf16.gmra.mxu0 %v3148
      %v7551 = vpop.f32.mrf.mxu0
      %v7552 = vadd.f32 %v7463, %v7551
      %v7553 = vpop.f32.mrf.mxu0
      %v7554 = vadd.f32 %v7465, %v7553
      %7555 = vmatmul.bf16.gmra.mxu0 %v3166
      %v7556 = vpop.f32.mrf.mxu0
      %v7557 = vadd.f32 %v7468, %v7556
      %v7558 = vpop.f32.mrf.mxu0
      %v7559 = vadd.f32 %v7470, %v7558
      %7560 = vmatmul.bf16.gmra.mxu0 %v3184
      %v7561 = vpop.f32.mrf.mxu0
      %v7562 = vadd.f32 %v7473, %v7561
      %v7563 = vpop.f32.mrf.mxu0
      %v7564 = vadd.f32 %v7475, %v7563
      %7565 = vmatmul.bf16.gmra.mxu0 %v3202
      %v7566 = vpop.f32.mrf.mxu0
      %v7567 = vadd.f32 %v7478, %v7566
      %v7568 = vpop.f32.mrf.mxu0
      %v7569 = vadd.f32 %v7480, %v7568
      %7570 = vmatmul.bf16.gmra.mxu0 %v3220
      %v7571 = vpop.f32.mrf.mxu0
      %v7572 = vadd.f32 %v7483, %v7571
      %v7573 = vpop.f32.mrf.mxu0
      %v7574 = vadd.f32 %v7485, %v7573
      %7575 = vmatmul.bf16.gmra.mxu0 %v3238
      %v7576 = vpop.f32.mrf.mxu0
      %v7577 = vadd.f32 %v7488, %v7576
      %v7578 = vpop.f32.mrf.mxu0
      %v7579 = vadd.f32 %v7490, %v7578
      %7580 = vmatmul.bf16.gmra.mxu0 %v3256
      %v7581 = vpop.f32.mrf.mxu0
      %v7582 = vadd.f32 %v7493, %v7581
      %v7583 = vpop.f32.mrf.mxu0
      %v7584 = vadd.f32 %v7495, %v7583
      %7585 = vmatmul.bf16.gmra.mxu0 %v3274
      %v7586 = vpop.f32.mrf.mxu0
      %v7587 = vadd.f32 %v7498, %v7586
      %v7588 = vpop.f32.mrf.mxu0
      %v7589 = vadd.f32 %v7500, %v7588
      %7590 = vdwg.mxu0
      %7591 = vmatpush.bf16.msra.mxu0 %v4625
      %7592 = vmatpush.bf16.msra.mxu0 %v4623
      %7593 = vmatpush.bf16.msra.mxu0 %v4621
      %7594 = vmatpush.bf16.msra.mxu0 %v4619
      %7595 = vmatpush.bf16.msra.mxu0 %v4617
      %7596 = vmatpush.bf16.msra.mxu0 %v4615
      %7597 = vmatpush.bf16.msra.mxu0 %v4613
      %7598 = vmatpush.bf16.msra.mxu0 %v4611
      %7599 = vmatmul.bf16.gmra.mxu0 %v3005
      %v7600 = vpop.f32.mrf.mxu0
      %v7601 = vadd.f32 %v7512, %v7600
      %v7602 = vpop.f32.mrf.mxu0
      %v7603 = vadd.f32 %v7514, %v7602
      %7604 = vmatmul.bf16.gmra.mxu0 %v3023
      %v7605 = vpop.f32.mrf.mxu0
      %v7606 = vadd.f32 %v7517, %v7605
      %v7607 = vpop.f32.mrf.mxu0
      %v7608 = vadd.f32 %v7519, %v7607
      %7609 = vmatmul.bf16.gmra.mxu0 %v3041
      %v7610 = vpop.f32.mrf.mxu0
      %v7611 = vadd.f32 %v7522, %v7610
      %v7612 = vpop.f32.mrf.mxu0
      %v7613 = vadd.f32 %v7524, %v7612
      %7614 = vmatmul.bf16.gmra.mxu0 %v3059
      %v7615 = vpop.f32.mrf.mxu0
      %v7616 = vadd.f32 %v7527, %v7615
      %v7617 = vpop.f32.mrf.mxu0
      %v7618 = vadd.f32 %v7529, %v7617
      %7619 = vmatmul.bf16.gmra.mxu0 %v3077
      %v7620 = vpop.f32.mrf.mxu0
      %v7621 = vadd.f32 %v7532, %v7620
      %v7622 = vpop.f32.mrf.mxu0
      %v7623 = vadd.f32 %v7534, %v7622
      %7624 = vmatmul.bf16.gmra.mxu0 %v3095
      %v7625 = vpop.f32.mrf.mxu0
      %v7626 = vadd.f32 %v7537, %v7625
      %v7627 = vpop.f32.mrf.mxu0
      %v7628 = vadd.f32 %v7539, %v7627
      %7629 = vmatmul.bf16.gmra.mxu0 %v3113
      %v7630 = vpop.f32.mrf.mxu0
      %v7631 = vadd.f32 %v7542, %v7630
      %v7632 = vpop.f32.mrf.mxu0
      %v7633 = vadd.f32 %v7544, %v7632
      %7634 = vmatmul.bf16.gmra.mxu0 %v3131
      %v7635 = vpop.f32.mrf.mxu0
      %v7636 = vadd.f32 %v7547, %v7635
      %v7637 = vpop.f32.mrf.mxu0
      %v7638 = vadd.f32 %v7549, %v7637
      %7639 = vmatmul.bf16.gmra.mxu0 %v3149
      %v7640 = vpop.f32.mrf.mxu0
      %v7641 = vadd.f32 %v7552, %v7640
      %v7642 = vpop.f32.mrf.mxu0
      %v7643 = vadd.f32 %v7554, %v7642
      %7644 = vmatmul.bf16.gmra.mxu0 %v3167
      %v7645 = vpop.f32.mrf.mxu0
      %v7646 = vadd.f32 %v7557, %v7645
      %v7647 = vpop.f32.mrf.mxu0
      %v7648 = vadd.f32 %v7559, %v7647
      %7649 = vmatmul.bf16.gmra.mxu0 %v3185
      %v7650 = vpop.f32.mrf.mxu0
      %v7651 = vadd.f32 %v7562, %v7650
      %v7652 = vpop.f32.mrf.mxu0
      %v7653 = vadd.f32 %v7564, %v7652
      %7654 = vmatmul.bf16.gmra.mxu0 %v3203
      %v7655 = vpop.f32.mrf.mxu0
      %v7656 = vadd.f32 %v7567, %v7655
      %v7657 = vpop.f32.mrf.mxu0
      %v7658 = vadd.f32 %v7569, %v7657
      %7659 = vmatmul.bf16.gmra.mxu0 %v3221
      %v7660 = vpop.f32.mrf.mxu0
      %v7661 = vadd.f32 %v7572, %v7660
      %v7662 = vpop.f32.mrf.mxu0
      %v7663 = vadd.f32 %v7574, %v7662
      %7664 = vmatmul.bf16.gmra.mxu0 %v3239
      %v7665 = vpop.f32.mrf.mxu0
      %v7666 = vadd.f32 %v7577, %v7665
      %v7667 = vpop.f32.mrf.mxu0
      %v7668 = vadd.f32 %v7579, %v7667
      %7669 = vmatmul.bf16.gmra.mxu0 %v3257
      %v7670 = vpop.f32.mrf.mxu0
      %v7671 = vadd.f32 %v7582, %v7670
      %v7672 = vpop.f32.mrf.mxu0
      %v7673 = vadd.f32 %v7584, %v7672
      %7674 = vmatmul.bf16.gmra.mxu0 %v3275
      %v7675 = vpop.f32.mrf.mxu0
      %v7676 = vadd.f32 %v7587, %v7675
      %v7677 = vpop.f32.mrf.mxu0
      %v7678 = vadd.f32 %v7589, %v7677
      %7679 = vdwg.mxu0
      %7680 = vmatpush.bf16.msra.mxu0 %v4641
      %7681 = vmatpush.bf16.msra.mxu0 %v4639
      %7682 = vmatpush.bf16.msra.mxu0 %v4637
      %7683 = vmatpush.bf16.msra.mxu0 %v4635
      %7684 = vmatpush.bf16.msra.mxu0 %v4633
      %7685 = vmatpush.bf16.msra.mxu0 %v4631
      %7686 = vmatpush.bf16.msra.mxu0 %v4629
      %7687 = vmatpush.bf16.msra.mxu0 %v4627
      %7688 = vmatmul.bf16.gmra.mxu0 %v3006
      %v7689 = vpop.f32.mrf.mxu0
      %v7690 = vadd.f32 %v7601, %v7689
      %v7691 = vpop.f32.mrf.mxu0
      %v7692 = vadd.f32 %v7603, %v7691
      %7693 = vmatmul.bf16.gmra.mxu0 %v3024
      %v7694 = vpop.f32.mrf.mxu0
      %v7695 = vadd.f32 %v7606, %v7694
      %v7696 = vpop.f32.mrf.mxu0
      %v7697 = vadd.f32 %v7608, %v7696
      %7698 = vmatmul.bf16.gmra.mxu0 %v3042
      %v7699 = vpop.f32.mrf.mxu0
      %v7700 = vadd.f32 %v7611, %v7699
      %v7701 = vpop.f32.mrf.mxu0
      %v7702 = vadd.f32 %v7613, %v7701
      %7703 = vmatmul.bf16.gmra.mxu0 %v3060
      %v7704 = vpop.f32.mrf.mxu0
      %v7705 = vadd.f32 %v7616, %v7704
      %v7706 = vpop.f32.mrf.mxu0
      %v7707 = vadd.f32 %v7618, %v7706
      %7708 = vmatmul.bf16.gmra.mxu0 %v3078
      %v7709 = vpop.f32.mrf.mxu0
      %v7710 = vadd.f32 %v7621, %v7709
      %v7711 = vpop.f32.mrf.mxu0
      %v7712 = vadd.f32 %v7623, %v7711
      %7713 = vmatmul.bf16.gmra.mxu0 %v3096
      %v7714 = vpop.f32.mrf.mxu0
      %v7715 = vadd.f32 %v7626, %v7714
      %v7716 = vpop.f32.mrf.mxu0
      %v7717 = vadd.f32 %v7628, %v7716
      %7718 = vmatmul.bf16.gmra.mxu0 %v3114
      %v7719 = vpop.f32.mrf.mxu0
      %v7720 = vadd.f32 %v7631, %v7719
      %v7721 = vpop.f32.mrf.mxu0
      %v7722 = vadd.f32 %v7633, %v7721
      %7723 = vmatmul.bf16.gmra.mxu0 %v3132
      %v7724 = vpop.f32.mrf.mxu0
      %v7725 = vadd.f32 %v7636, %v7724
      %v7726 = vpop.f32.mrf.mxu0
      %v7727 = vadd.f32 %v7638, %v7726
      %7728 = vmatmul.bf16.gmra.mxu0 %v3150
      %v7729 = vpop.f32.mrf.mxu0
      %v7730 = vadd.f32 %v7641, %v7729
      %v7731 = vpop.f32.mrf.mxu0
      %v7732 = vadd.f32 %v7643, %v7731
      %7733 = vmatmul.bf16.gmra.mxu0 %v3168
      %v7734 = vpop.f32.mrf.mxu0
      %v7735 = vadd.f32 %v7646, %v7734
      %v7736 = vpop.f32.mrf.mxu0
      %v7737 = vadd.f32 %v7648, %v7736
      %7738 = vmatmul.bf16.gmra.mxu0 %v3186
      %v7739 = vpop.f32.mrf.mxu0
      %v7740 = vadd.f32 %v7651, %v7739
      %v7741 = vpop.f32.mrf.mxu0
      %v7742 = vadd.f32 %v7653, %v7741
      %7743 = vmatmul.bf16.gmra.mxu0 %v3204
      %v7744 = vpop.f32.mrf.mxu0
      %v7745 = vadd.f32 %v7656, %v7744
      %v7746 = vpop.f32.mrf.mxu0
      %v7747 = vadd.f32 %v7658, %v7746
      %7748 = vmatmul.bf16.gmra.mxu0 %v3222
      %v7749 = vpop.f32.mrf.mxu0
      %v7750 = vadd.f32 %v7661, %v7749
      %v7751 = vpop.f32.mrf.mxu0
      %v7752 = vadd.f32 %v7663, %v7751
      %7753 = vmatmul.bf16.gmra.mxu0 %v3240
      %v7754 = vpop.f32.mrf.mxu0
      %v7755 = vadd.f32 %v7666, %v7754
      %v7756 = vpop.f32.mrf.mxu0
      %v7757 = vadd.f32 %v7668, %v7756
      %7758 = vmatmul.bf16.gmra.mxu0 %v3258
      %v7759 = vpop.f32.mrf.mxu0
      %v7760 = vadd.f32 %v7671, %v7759
      %v7761 = vpop.f32.mrf.mxu0
      %v7762 = vadd.f32 %v7673, %v7761
      %7763 = vmatmul.bf16.gmra.mxu0 %v3276
      %v7764 = vpop.f32.mrf.mxu0
      %v7765 = vadd.f32 %v7676, %v7764
      %v7766 = vpop.f32.mrf.mxu0
      %v7767 = vadd.f32 %v7678, %v7766
      %7768 = vdwg.mxu0
      %7769 = vmatpush.bf16.msra.mxu0 %v4657
      %7770 = vmatpush.bf16.msra.mxu0 %v4655
      %7771 = vmatpush.bf16.msra.mxu0 %v4653
      %7772 = vmatpush.bf16.msra.mxu0 %v4651
      %7773 = vmatpush.bf16.msra.mxu0 %v4649
      %7774 = vmatpush.bf16.msra.mxu0 %v4647
      %7775 = vmatpush.bf16.msra.mxu0 %v4645
      %7776 = vmatpush.bf16.msra.mxu0 %v4643
      %7777 = vmatmul.bf16.gmra.mxu0 %v3007
      %v7778 = vpop.f32.mrf.mxu0
      %v7779 = vadd.f32 %v7690, %v7778
      %v7780 = vpop.f32.mrf.mxu0
      %v7781 = vadd.f32 %v7692, %v7780
      %7782 = vmatmul.bf16.gmra.mxu0 %v3025
      %v7783 = vpop.f32.mrf.mxu0
      %v7784 = vadd.f32 %v7695, %v7783
      %v7785 = vpop.f32.mrf.mxu0
      %v7786 = vadd.f32 %v7697, %v7785
      %7787 = vmatmul.bf16.gmra.mxu0 %v3043
      %v7788 = vpop.f32.mrf.mxu0
      %v7789 = vadd.f32 %v7700, %v7788
      %v7790 = vpop.f32.mrf.mxu0
      %v7791 = vadd.f32 %v7702, %v7790
      %7792 = vmatmul.bf16.gmra.mxu0 %v3061
      %v7793 = vpop.f32.mrf.mxu0
      %v7794 = vadd.f32 %v7705, %v7793
      %v7795 = vpop.f32.mrf.mxu0
      %v7796 = vadd.f32 %v7707, %v7795
      %7797 = vmatmul.bf16.gmra.mxu0 %v3079
      %v7798 = vpop.f32.mrf.mxu0
      %v7799 = vadd.f32 %v7710, %v7798
      %v7800 = vpop.f32.mrf.mxu0
      %v7801 = vadd.f32 %v7712, %v7800
      %7802 = vmatmul.bf16.gmra.mxu0 %v3097
      %v7803 = vpop.f32.mrf.mxu0
      %v7804 = vadd.f32 %v7715, %v7803
      %v7805 = vpop.f32.mrf.mxu0
      %v7806 = vadd.f32 %v7717, %v7805
      %7807 = vmatmul.bf16.gmra.mxu0 %v3115
      %v7808 = vpop.f32.mrf.mxu0
      %v7809 = vadd.f32 %v7720, %v7808
      %v7810 = vpop.f32.mrf.mxu0
      %v7811 = vadd.f32 %v7722, %v7810
      %7812 = vmatmul.bf16.gmra.mxu0 %v3133
      %v7813 = vpop.f32.mrf.mxu0
      %v7814 = vadd.f32 %v7725, %v7813
      %v7815 = vpop.f32.mrf.mxu0
      %v7816 = vadd.f32 %v7727, %v7815
      %7817 = vmatmul.bf16.gmra.mxu0 %v3151
      %v7818 = vpop.f32.mrf.mxu0
      %v7819 = vadd.f32 %v7730, %v7818
      %v7820 = vpop.f32.mrf.mxu0
      %v7821 = vadd.f32 %v7732, %v7820
      %7822 = vmatmul.bf16.gmra.mxu0 %v3169
      %v7823 = vpop.f32.mrf.mxu0
      %v7824 = vadd.f32 %v7735, %v7823
      %v7825 = vpop.f32.mrf.mxu0
      %v7826 = vadd.f32 %v7737, %v7825
      %7827 = vmatmul.bf16.gmra.mxu0 %v3187
      %v7828 = vpop.f32.mrf.mxu0
      %v7829 = vadd.f32 %v7740, %v7828
      %v7830 = vpop.f32.mrf.mxu0
      %v7831 = vadd.f32 %v7742, %v7830
      %7832 = vmatmul.bf16.gmra.mxu0 %v3205
      %v7833 = vpop.f32.mrf.mxu0
      %v7834 = vadd.f32 %v7745, %v7833
      %v7835 = vpop.f32.mrf.mxu0
      %v7836 = vadd.f32 %v7747, %v7835
      %7837 = vmatmul.bf16.gmra.mxu0 %v3223
      %v7838 = vpop.f32.mrf.mxu0
      %v7839 = vadd.f32 %v7750, %v7838
      %v7840 = vpop.f32.mrf.mxu0
      %v7841 = vadd.f32 %v7752, %v7840
      %7842 = vmatmul.bf16.gmra.mxu0 %v3241
      %v7843 = vpop.f32.mrf.mxu0
      %v7844 = vadd.f32 %v7755, %v7843
      %v7845 = vpop.f32.mrf.mxu0
      %v7846 = vadd.f32 %v7757, %v7845
      %7847 = vmatmul.bf16.gmra.mxu0 %v3259
      %v7848 = vpop.f32.mrf.mxu0
      %v7849 = vadd.f32 %v7760, %v7848
      %v7850 = vpop.f32.mrf.mxu0
      %v7851 = vadd.f32 %v7762, %v7850
      %7852 = vmatmul.bf16.gmra.mxu0 %v3277
      %v7853 = vpop.f32.mrf.mxu0
      %v7854 = vadd.f32 %v7765, %v7853
      %v7855 = vpop.f32.mrf.mxu0
      %v7856 = vadd.f32 %v7767, %v7855
      %7857 = vdwg.mxu0
      %7858 = vmatpush.bf16.msra.mxu0 %v4673
      %7859 = vmatpush.bf16.msra.mxu0 %v4671
      %7860 = vmatpush.bf16.msra.mxu0 %v4669
      %7861 = vmatpush.bf16.msra.mxu0 %v4667
      %7862 = vmatpush.bf16.msra.mxu0 %v4665
      %7863 = vmatpush.bf16.msra.mxu0 %v4663
      %7864 = vmatpush.bf16.msra.mxu0 %v4661
      %7865 = vmatpush.bf16.msra.mxu0 %v4659
      %7866 = vmatmul.bf16.gmra.mxu0 %v3008
      %v7867 = vpop.f32.mrf.mxu0
      %v7868 = vadd.f32 %v7779, %v7867
      %v7869 = vpop.f32.mrf.mxu0
      %v7870 = vadd.f32 %v7781, %v7869
      %7871 = vmatmul.bf16.gmra.mxu0 %v3026
      %v7872 = vpop.f32.mrf.mxu0
      %v7873 = vadd.f32 %v7784, %v7872
      %v7874 = vpop.f32.mrf.mxu0
      %v7875 = vadd.f32 %v7786, %v7874
      %7876 = vmatmul.bf16.gmra.mxu0 %v3044
      %v7877 = vpop.f32.mrf.mxu0
      %v7878 = vadd.f32 %v7789, %v7877
      %v7879 = vpop.f32.mrf.mxu0
      %v7880 = vadd.f32 %v7791, %v7879
      %7881 = vmatmul.bf16.gmra.mxu0 %v3062
      %v7882 = vpop.f32.mrf.mxu0
      %v7883 = vadd.f32 %v7794, %v7882
      %v7884 = vpop.f32.mrf.mxu0
      %v7885 = vadd.f32 %v7796, %v7884
      %7886 = vmatmul.bf16.gmra.mxu0 %v3080
      %v7887 = vpop.f32.mrf.mxu0
      %v7888 = vadd.f32 %v7799, %v7887
      %v7889 = vpop.f32.mrf.mxu0
      %v7890 = vadd.f32 %v7801, %v7889
      %7891 = vmatmul.bf16.gmra.mxu0 %v3098
      %v7892 = vpop.f32.mrf.mxu0
      %v7893 = vadd.f32 %v7804, %v7892
      %v7894 = vpop.f32.mrf.mxu0
      %v7895 = vadd.f32 %v7806, %v7894
      %7896 = vmatmul.bf16.gmra.mxu0 %v3116
      %v7897 = vpop.f32.mrf.mxu0
      %v7898 = vadd.f32 %v7809, %v7897
      %v7899 = vpop.f32.mrf.mxu0
      %v7900 = vadd.f32 %v7811, %v7899
      %7901 = vmatmul.bf16.gmra.mxu0 %v3134
      %v7902 = vpop.f32.mrf.mxu0
      %v7903 = vadd.f32 %v7814, %v7902
      %v7904 = vpop.f32.mrf.mxu0
      %v7905 = vadd.f32 %v7816, %v7904
      %7906 = vmatmul.bf16.gmra.mxu0 %v3152
      %v7907 = vpop.f32.mrf.mxu0
      %v7908 = vadd.f32 %v7819, %v7907
      %v7909 = vpop.f32.mrf.mxu0
      %v7910 = vadd.f32 %v7821, %v7909
      %7911 = vmatmul.bf16.gmra.mxu0 %v3170
      %v7912 = vpop.f32.mrf.mxu0
      %v7913 = vadd.f32 %v7824, %v7912
      %v7914 = vpop.f32.mrf.mxu0
      %v7915 = vadd.f32 %v7826, %v7914
      %7916 = vmatmul.bf16.gmra.mxu0 %v3188
      %v7917 = vpop.f32.mrf.mxu0
      %v7918 = vadd.f32 %v7829, %v7917
      %v7919 = vpop.f32.mrf.mxu0
      %v7920 = vadd.f32 %v7831, %v7919
      %7921 = vmatmul.bf16.gmra.mxu0 %v3206
      %v7922 = vpop.f32.mrf.mxu0
      %v7923 = vadd.f32 %v7834, %v7922
      %v7924 = vpop.f32.mrf.mxu0
      %v7925 = vadd.f32 %v7836, %v7924
      %7926 = vmatmul.bf16.gmra.mxu0 %v3224
      %v7927 = vpop.f32.mrf.mxu0
      %v7928 = vadd.f32 %v7839, %v7927
      %v7929 = vpop.f32.mrf.mxu0
      %v7930 = vadd.f32 %v7841, %v7929
      %7931 = vmatmul.bf16.gmra.mxu0 %v3242
      %v7932 = vpop.f32.mrf.mxu0
      %v7933 = vadd.f32 %v7844, %v7932
      %v7934 = vpop.f32.mrf.mxu0
      %v7935 = vadd.f32 %v7846, %v7934
      %7936 = vmatmul.bf16.gmra.mxu0 %v3260
      %v7937 = vpop.f32.mrf.mxu0
      %v7938 = vadd.f32 %v7849, %v7937
      %v7939 = vpop.f32.mrf.mxu0
      %v7940 = vadd.f32 %v7851, %v7939
      %7941 = vmatmul.bf16.gmra.mxu0 %v3278
      %v7942 = vpop.f32.mrf.mxu0
      %v7943 = vadd.f32 %v7854, %v7942
      %v7944 = vpop.f32.mrf.mxu0
      %v7945 = vadd.f32 %v7856, %v7944
      %7946 = vdwg.mxu0
      %7947 = vmatpush.bf16.msra.mxu0 %v4689
      %7948 = vmatpush.bf16.msra.mxu0 %v4687
      %7949 = vmatpush.bf16.msra.mxu0 %v4685
      %7950 = vmatpush.bf16.msra.mxu0 %v4683
      %7951 = vmatpush.bf16.msra.mxu0 %v4681
      %7952 = vmatpush.bf16.msra.mxu0 %v4679
      %7953 = vmatpush.bf16.msra.mxu0 %v4677
      %7954 = vmatpush.bf16.msra.mxu0 %v4675
      %7955 = vmatmul.bf16.gmra.mxu0 %v3009
      %v7956 = vpop.f32.mrf.mxu0
      %v7957 = vadd.f32 %v7868, %v7956
      %v7958 = vpop.f32.mrf.mxu0
      %v7959 = vadd.f32 %v7870, %v7958
      %7960 = vmatmul.bf16.gmra.mxu0 %v3027
      %v7961 = vpop.f32.mrf.mxu0
      %v7962 = vadd.f32 %v7873, %v7961
      %v7963 = vpop.f32.mrf.mxu0
      %v7964 = vadd.f32 %v7875, %v7963
      %7965 = vmatmul.bf16.gmra.mxu0 %v3045
      %v7966 = vpop.f32.mrf.mxu0
      %v7967 = vadd.f32 %v7878, %v7966
      %v7968 = vpop.f32.mrf.mxu0
      %v7969 = vadd.f32 %v7880, %v7968
      %7970 = vmatmul.bf16.gmra.mxu0 %v3063
      %v7971 = vpop.f32.mrf.mxu0
      %v7972 = vadd.f32 %v7883, %v7971
      %v7973 = vpop.f32.mrf.mxu0
      %v7974 = vadd.f32 %v7885, %v7973
      %7975 = vmatmul.bf16.gmra.mxu0 %v3081
      %v7976 = vpop.f32.mrf.mxu0
      %v7977 = vadd.f32 %v7888, %v7976
      %v7978 = vpop.f32.mrf.mxu0
      %v7979 = vadd.f32 %v7890, %v7978
      %7980 = vmatmul.bf16.gmra.mxu0 %v3099
      %v7981 = vpop.f32.mrf.mxu0
      %v7982 = vadd.f32 %v7893, %v7981
      %v7983 = vpop.f32.mrf.mxu0
      %v7984 = vadd.f32 %v7895, %v7983
      %7985 = vmatmul.bf16.gmra.mxu0 %v3117
      %v7986 = vpop.f32.mrf.mxu0
      %v7987 = vadd.f32 %v7898, %v7986
      %v7988 = vpop.f32.mrf.mxu0
      %v7989 = vadd.f32 %v7900, %v7988
      %7990 = vmatmul.bf16.gmra.mxu0 %v3135
      %v7991 = vpop.f32.mrf.mxu0
      %v7992 = vadd.f32 %v7903, %v7991
      %v7993 = vpop.f32.mrf.mxu0
      %v7994 = vadd.f32 %v7905, %v7993
      %7995 = vmatmul.bf16.gmra.mxu0 %v3153
      %v7996 = vpop.f32.mrf.mxu0
      %v7997 = vadd.f32 %v7908, %v7996
      %v7998 = vpop.f32.mrf.mxu0
      %v7999 = vadd.f32 %v7910, %v7998
      %8000 = vmatmul.bf16.gmra.mxu0 %v3171
      %v8001 = vpop.f32.mrf.mxu0
      %v8002 = vadd.f32 %v7913, %v8001
      %v8003 = vpop.f32.mrf.mxu0
      %v8004 = vadd.f32 %v7915, %v8003
      %8005 = vmatmul.bf16.gmra.mxu0 %v3189
      %v8006 = vpop.f32.mrf.mxu0
      %v8007 = vadd.f32 %v7918, %v8006
      %v8008 = vpop.f32.mrf.mxu0
      %v8009 = vadd.f32 %v7920, %v8008
      %8010 = vmatmul.bf16.gmra.mxu0 %v3207
      %v8011 = vpop.f32.mrf.mxu0
      %v8012 = vadd.f32 %v7923, %v8011
      %v8013 = vpop.f32.mrf.mxu0
      %v8014 = vadd.f32 %v7925, %v8013
      %8015 = vmatmul.bf16.gmra.mxu0 %v3225
      %v8016 = vpop.f32.mrf.mxu0
      %v8017 = vadd.f32 %v7928, %v8016
      %v8018 = vpop.f32.mrf.mxu0
      %v8019 = vadd.f32 %v7930, %v8018
      %8020 = vmatmul.bf16.gmra.mxu0 %v3243
      %v8021 = vpop.f32.mrf.mxu0
      %v8022 = vadd.f32 %v7933, %v8021
      %v8023 = vpop.f32.mrf.mxu0
      %v8024 = vadd.f32 %v7935, %v8023
      %8025 = vmatmul.bf16.gmra.mxu0 %v3261
      %v8026 = vpop.f32.mrf.mxu0
      %v8027 = vadd.f32 %v7938, %v8026
      %v8028 = vpop.f32.mrf.mxu0
      %v8029 = vadd.f32 %v7940, %v8028
      %8030 = vmatmul.bf16.gmra.mxu0 %v3279
      %v8031 = vpop.f32.mrf.mxu0
      %v8032 = vadd.f32 %v7943, %v8031
      %v8033 = vpop.f32.mrf.mxu0
      %v8034 = vadd.f32 %v7945, %v8033
      %8035 = vdwg.mxu0
      %8036 = vmatpush.bf16.msra.mxu0 %v4705
      %8037 = vmatpush.bf16.msra.mxu0 %v4703
      %8038 = vmatpush.bf16.msra.mxu0 %v4701
      %8039 = vmatpush.bf16.msra.mxu0 %v4699
      %8040 = vmatpush.bf16.msra.mxu0 %v4697
      %8041 = vmatpush.bf16.msra.mxu0 %v4695
      %8042 = vmatpush.bf16.msra.mxu0 %v4693
      %8043 = vmatpush.bf16.msra.mxu0 %v4691
      %8044 = vmatmul.bf16.gmra.mxu0 %v3010
      %v8045 = vpop.f32.mrf.mxu0
      %v8046 = vadd.f32 %v7957, %v8045
      %v8047 = vpop.f32.mrf.mxu0
      %v8048 = vadd.f32 %v7959, %v8047
      %8049 = vmatmul.bf16.gmra.mxu0 %v3028
      %v8050 = vpop.f32.mrf.mxu0
      %v8051 = vadd.f32 %v7962, %v8050
      %v8052 = vpop.f32.mrf.mxu0
      %v8053 = vadd.f32 %v7964, %v8052
      %8054 = vmatmul.bf16.gmra.mxu0 %v3046
      %v8055 = vpop.f32.mrf.mxu0
      %v8056 = vadd.f32 %v7967, %v8055
      %v8057 = vpop.f32.mrf.mxu0
      %v8058 = vadd.f32 %v7969, %v8057
      %8059 = vmatmul.bf16.gmra.mxu0 %v3064
      %v8060 = vpop.f32.mrf.mxu0
      %v8061 = vadd.f32 %v7972, %v8060
      %v8062 = vpop.f32.mrf.mxu0
      %v8063 = vadd.f32 %v7974, %v8062
      %8064 = vmatmul.bf16.gmra.mxu0 %v3082
      %v8065 = vpop.f32.mrf.mxu0
      %v8066 = vadd.f32 %v7977, %v8065
      %v8067 = vpop.f32.mrf.mxu0
      %v8068 = vadd.f32 %v7979, %v8067
      %8069 = vmatmul.bf16.gmra.mxu0 %v3100
      %v8070 = vpop.f32.mrf.mxu0
      %v8071 = vadd.f32 %v7982, %v8070
      %v8072 = vpop.f32.mrf.mxu0
      %v8073 = vadd.f32 %v7984, %v8072
      %8074 = vmatmul.bf16.gmra.mxu0 %v3118
      %v8075 = vpop.f32.mrf.mxu0
      %v8076 = vadd.f32 %v7987, %v8075
      %v8077 = vpop.f32.mrf.mxu0
      %v8078 = vadd.f32 %v7989, %v8077
      %8079 = vmatmul.bf16.gmra.mxu0 %v3136
      %v8080 = vpop.f32.mrf.mxu0
      %v8081 = vadd.f32 %v7992, %v8080
      %v8082 = vpop.f32.mrf.mxu0
      %v8083 = vadd.f32 %v7994, %v8082
      %8084 = vmatmul.bf16.gmra.mxu0 %v3154
      %v8085 = vpop.f32.mrf.mxu0
      %v8086 = vadd.f32 %v7997, %v8085
      %v8087 = vpop.f32.mrf.mxu0
      %v8088 = vadd.f32 %v7999, %v8087
      %8089 = vmatmul.bf16.gmra.mxu0 %v3172
      %v8090 = vpop.f32.mrf.mxu0
      %v8091 = vadd.f32 %v8002, %v8090
      %v8092 = vpop.f32.mrf.mxu0
      %v8093 = vadd.f32 %v8004, %v8092
      %8094 = vmatmul.bf16.gmra.mxu0 %v3190
      %v8095 = vpop.f32.mrf.mxu0
      %v8096 = vadd.f32 %v8007, %v8095
      %v8097 = vpop.f32.mrf.mxu0
      %v8098 = vadd.f32 %v8009, %v8097
      %8099 = vmatmul.bf16.gmra.mxu0 %v3208
      %v8100 = vpop.f32.mrf.mxu0
      %v8101 = vadd.f32 %v8012, %v8100
      %v8102 = vpop.f32.mrf.mxu0
      %v8103 = vadd.f32 %v8014, %v8102
      %8104 = vmatmul.bf16.gmra.mxu0 %v3226
      %v8105 = vpop.f32.mrf.mxu0
      %v8106 = vadd.f32 %v8017, %v8105
      %v8107 = vpop.f32.mrf.mxu0
      %v8108 = vadd.f32 %v8019, %v8107
      %8109 = vmatmul.bf16.gmra.mxu0 %v3244
      %v8110 = vpop.f32.mrf.mxu0
      %v8111 = vadd.f32 %v8022, %v8110
      %v8112 = vpop.f32.mrf.mxu0
      %v8113 = vadd.f32 %v8024, %v8112
      %8114 = vmatmul.bf16.gmra.mxu0 %v3262
      %v8115 = vpop.f32.mrf.mxu0
      %v8116 = vadd.f32 %v8027, %v8115
      %v8117 = vpop.f32.mrf.mxu0
      %v8118 = vadd.f32 %v8029, %v8117
      %8119 = vmatmul.bf16.gmra.mxu0 %v3280
      %v8120 = vpop.f32.mrf.mxu0
      %v8121 = vadd.f32 %v8032, %v8120
      %v8122 = vpop.f32.mrf.mxu0
      %v8123 = vadd.f32 %v8034, %v8122
      %8124 = vdwg.mxu0
      %8125 = vmatpush.bf16.msra.mxu0 %v4721
      %8126 = vmatpush.bf16.msra.mxu0 %v4719
      %8127 = vmatpush.bf16.msra.mxu0 %v4717
      %8128 = vmatpush.bf16.msra.mxu0 %v4715
      %8129 = vmatpush.bf16.msra.mxu0 %v4713
      %8130 = vmatpush.bf16.msra.mxu0 %v4711
      %8131 = vmatpush.bf16.msra.mxu0 %v4709
      %8132 = vmatpush.bf16.msra.mxu0 %v4707
      %8133 = vmatmul.bf16.gmra.mxu0 %v3011
      %v8134 = vpop.f32.mrf.mxu0
      %v8135 = vadd.f32 %v8046, %v8134
      %v8136 = vpop.f32.mrf.mxu0
      %v8137 = vadd.f32 %v8048, %v8136
      %8138 = vmatmul.bf16.gmra.mxu0 %v3029
      %v8139 = vpop.f32.mrf.mxu0
      %v8140 = vadd.f32 %v8051, %v8139
      %v8141 = vpop.f32.mrf.mxu0
      %v8142 = vadd.f32 %v8053, %v8141
      %8143 = vmatmul.bf16.gmra.mxu0 %v3047
      %v8144 = vpop.f32.mrf.mxu0
      %v8145 = vadd.f32 %v8056, %v8144
      %v8146 = vpop.f32.mrf.mxu0
      %v8147 = vadd.f32 %v8058, %v8146
      %8148 = vmatmul.bf16.gmra.mxu0 %v3065
      %v8149 = vpop.f32.mrf.mxu0
      %v8150 = vadd.f32 %v8061, %v8149
      %v8151 = vpop.f32.mrf.mxu0
      %v8152 = vadd.f32 %v8063, %v8151
      %8153 = vmatmul.bf16.gmra.mxu0 %v3083
      %v8154 = vpop.f32.mrf.mxu0
      %v8155 = vadd.f32 %v8066, %v8154
      %v8156 = vpop.f32.mrf.mxu0
      %v8157 = vadd.f32 %v8068, %v8156
      %8158 = vmatmul.bf16.gmra.mxu0 %v3101
      %v8159 = vpop.f32.mrf.mxu0
      %v8160 = vadd.f32 %v8071, %v8159
      %v8161 = vpop.f32.mrf.mxu0
      %v8162 = vadd.f32 %v8073, %v8161
      %8163 = vmatmul.bf16.gmra.mxu0 %v3119
      %v8164 = vpop.f32.mrf.mxu0
      %v8165 = vadd.f32 %v8076, %v8164
      %v8166 = vpop.f32.mrf.mxu0
      %v8167 = vadd.f32 %v8078, %v8166
      %8168 = vmatmul.bf16.gmra.mxu0 %v3137
      %v8169 = vpop.f32.mrf.mxu0
      %v8170 = vadd.f32 %v8081, %v8169
      %v8171 = vpop.f32.mrf.mxu0
      %v8172 = vadd.f32 %v8083, %v8171
      %8173 = vmatmul.bf16.gmra.mxu0 %v3155
      %v8174 = vpop.f32.mrf.mxu0
      %v8175 = vadd.f32 %v8086, %v8174
      %v8176 = vpop.f32.mrf.mxu0
      %v8177 = vadd.f32 %v8088, %v8176
      %8178 = vmatmul.bf16.gmra.mxu0 %v3173
      %v8179 = vpop.f32.mrf.mxu0
      %v8180 = vadd.f32 %v8091, %v8179
      %v8181 = vpop.f32.mrf.mxu0
      %v8182 = vadd.f32 %v8093, %v8181
      %8183 = vmatmul.bf16.gmra.mxu0 %v3191
      %v8184 = vpop.f32.mrf.mxu0
      %v8185 = vadd.f32 %v8096, %v8184
      %v8186 = vpop.f32.mrf.mxu0
      %v8187 = vadd.f32 %v8098, %v8186
      %8188 = vmatmul.bf16.gmra.mxu0 %v3209
      %v8189 = vpop.f32.mrf.mxu0
      %v8190 = vadd.f32 %v8101, %v8189
      %v8191 = vpop.f32.mrf.mxu0
      %v8192 = vadd.f32 %v8103, %v8191
      %8193 = vmatmul.bf16.gmra.mxu0 %v3227
      %v8194 = vpop.f32.mrf.mxu0
      %v8195 = vadd.f32 %v8106, %v8194
      %v8196 = vpop.f32.mrf.mxu0
      %v8197 = vadd.f32 %v8108, %v8196
      %8198 = vmatmul.bf16.gmra.mxu0 %v3245
      %v8199 = vpop.f32.mrf.mxu0
      %v8200 = vadd.f32 %v8111, %v8199
      %v8201 = vpop.f32.mrf.mxu0
      %v8202 = vadd.f32 %v8113, %v8201
      %8203 = vmatmul.bf16.gmra.mxu0 %v3263
      %v8204 = vpop.f32.mrf.mxu0
      %v8205 = vadd.f32 %v8116, %v8204
      %v8206 = vpop.f32.mrf.mxu0
      %v8207 = vadd.f32 %v8118, %v8206
      %8208 = vmatmul.bf16.gmra.mxu0 %v3281
      %v8209 = vpop.f32.mrf.mxu0
      %v8210 = vadd.f32 %v8121, %v8209
      %v8211 = vpop.f32.mrf.mxu0
      %v8212 = vadd.f32 %v8123, %v8211
      %8213 = vdwg.mxu0
      %v8214 = vpack.c.bf16 %v8135, %v6533
      %v8215 = vpack.c.bf16 %v8137, %v6535
      %v8216 = vpack.c.bf16 %v8140, %v6538
      %v8217 = vpack.c.bf16 %v8142, %v6540
      %v8218 = vpack.c.bf16 %v8145, %v6543
      %v8219 = vpack.c.bf16 %v8147, %v6545
      %v8220 = vpack.c.bf16 %v8150, %v6548
      %v8221 = vpack.c.bf16 %v8152, %v6550
      %v8222 = vpack.c.bf16 %v8155, %v6553
      %v8223 = vpack.c.bf16 %v8157, %v6555
      %v8224 = vpack.c.bf16 %v8160, %v6558
      %v8225 = vpack.c.bf16 %v8162, %v6560
      %v8226 = vpack.c.bf16 %v8165, %v6563
      %v8227 = vpack.c.bf16 %v8167, %v6565
      %v8228 = vpack.c.bf16 %v8170, %v6568
      %v8229 = vpack.c.bf16 %v8172, %v6570
      %v8230 = vpack.c.bf16 %v8175, %v6573
      %v8231 = vpack.c.bf16 %v8177, %v6575
      %v8232 = vpack.c.bf16 %v8180, %v6578
      %v8233 = vpack.c.bf16 %v8182, %v6580
      %v8234 = vpack.c.bf16 %v8185, %v6583
      %v8235 = vpack.c.bf16 %v8187, %v6585
      %v8236 = vpack.c.bf16 %v8190, %v6588
      %v8237 = vpack.c.bf16 %v8192, %v6590
      %v8238 = vpack.c.bf16 %v8195, %v6593
      %v8239 = vpack.c.bf16 %v8197, %v6595
      %v8240 = vpack.c.bf16 %v8200, %v6598
      %v8241 = vpack.c.bf16 %v8202, %v6600
      %v8242 = vpack.c.bf16 %v8205, %v6603
      %v8243 = vpack.c.bf16 %v8207, %v6605
      %v8244 = vpack.c.bf16 %v8210, %v6608
      %v8245 = vpack.c.bf16 %v8212, %v6610
      %8246 = vst [vmem:[%s237] sm:$0xff] %v8214
      %8247 = vst [vmem:[%s237 + $0x8] sm:$0xff] %v8215
      %8248 = vst [vmem:[%s237 + $0x10] sm:$0xff] %v8216
      %8249 = vst [vmem:[%s237 + $0x18] sm:$0xff] %v8217
      %8250 = vst [vmem:[%s237 + $0x20] sm:$0xff] %v8218
      %8251 = vst [vmem:[%s237 + $0x28] sm:$0xff] %v8219
      %8252 = vst [vmem:[%s237 + $0x30] sm:$0xff] %v8220
      %8253 = vst [vmem:[%s237 + $0x38] sm:$0xff] %v8221
      %8254 = vst [vmem:[%s237 + $0x40] sm:$0xff] %v8222
      %8255 = vst [vmem:[%s237 + $0x48] sm:$0xff] %v8223
      %8256 = vst [vmem:[%s237 + $0x50] sm:$0xff] %v8224
      %8257 = vst [vmem:[%s237 + $0x58] sm:$0xff] %v8225
      %8258 = vst [vmem:[%s237 + $0x60] sm:$0xff] %v8226
      %8259 = vst [vmem:[%s237 + $0x68] sm:$0xff] %v8227
      %8260 = vst [vmem:[%s237 + $0x70] sm:$0xff] %v8228
      %8261 = vst [vmem:[%s237 + $0x78] sm:$0xff] %v8229
      %8262 = vst [vmem:[%s237 + $0x80] sm:$0xff] %v8230
      %8263 = vst [vmem:[%s237 + $0x88] sm:$0xff] %v8231
      %8264 = vst [vmem:[%s237 + $0x90] sm:$0xff] %v8232
      %8265 = vst [vmem:[%s237 + $0x98] sm:$0xff] %v8233
      %8266 = vst [vmem:[%s237 + $0xa0] sm:$0xff] %v8234
      %8267 = vst [vmem:[%s237 + $0xa8] sm:$0xff] %v8235
      %8268 = vst [vmem:[%s237 + $0xb0] sm:$0xff] %v8236
      %8269 = vst [vmem:[%s237 + $0xb8] sm:$0xff] %v8237
      %8270 = vst [vmem:[%s237 + $0xc0] sm:$0xff] %v8238
      %8271 = vst [vmem:[%s237 + $0xc8] sm:$0xff] %v8239
      %8272 = vst [vmem:[%s237 + $0xd0] sm:$0xff] %v8240
      %8273 = vst [vmem:[%s237 + $0xd8] sm:$0xff] %v8241
      %8274 = vst [vmem:[%s237 + $0xe0] sm:$0xff] %v8242
      %8275 = vst [vmem:[%s237 + $0xe8] sm:$0xff] %v8243
      %8276 = vst [vmem:[%s237 + $0xf0] sm:$0xff] %v8244
      %8277 = vst [vmem:[%s237 + $0xf8] sm:$0xff] %v8245
      %v8278 = vadd.f32 %v6533, %v6535
      %v8279 = vadd.f32 %v8278, %v6538
      %v8280 = vadd.f32 %v8279, %v6540
      %v8281 = vadd.f32 %v8280, %v6543
      %v8282 = vadd.f32 %v8281, %v6545
      %v8283 = vadd.f32 %v8282, %v6548
      %v8284 = vadd.f32 %v8283, %v6550
      %v8285 = vadd.f32 %v8284, %v6553
      %v8286 = vadd.f32 %v8285, %v6555
      %v8287 = vadd.f32 %v8286, %v6558
      %v8288 = vadd.f32 %v8287, %v6560
      %v8289 = vadd.f32 %v8288, %v6563
      %v8290 = vadd.f32 %v8289, %v6565
      %v8291 = vadd.f32 %v8290, %v6568
      %v8292 = vadd.f32 %v8291, %v6570
      %v8293 = vadd.f32 %v8292, %v6573
      %v8294 = vadd.f32 %v8293, %v6575
      %v8295 = vadd.f32 %v8294, %v6578
      %v8296 = vadd.f32 %v8295, %v6580
      %v8297 = vadd.f32 %v8296, %v6583
      %v8298 = vadd.f32 %v8297, %v6585
      %v8299 = vadd.f32 %v8298, %v6588
      %v8300 = vadd.f32 %v8299, %v6590
      %v8301 = vadd.f32 %v8300, %v6593
      %v8302 = vadd.f32 %v8301, %v6595
      %v8303 = vadd.f32 %v8302, %v6598
      %v8304 = vadd.f32 %v8303, %v6600
      %v8305 = vadd.f32 %v8304, %v6603
      %v8306 = vadd.f32 %v8305, %v6605
      %v8307 = vadd.f32 %v8306, %v6608
      %v8308 = vadd.f32 %v8307, %v6610
      %v8309 = vrot.slane %v8308, 4
      %v8310 = vadd.f32 %v8308, %v8309
      %v8311 = vrot.slane %v8310, 2
      %v8312 = vadd.f32 %v8310, %v8311
      %v8313 = vrot.slane %v8312, 1
      %v8314 = vadd.f32 %v8312, %v8313
      %v8315 = vadd.f32 %v8135, %v8137
      %v8316 = vadd.f32 %v8315, %v8140
      %v8317 = vadd.f32 %v8316, %v8142
      %v8318 = vadd.f32 %v8317, %v8145
      %v8319 = vadd.f32 %v8318, %v8147
      %v8320 = vadd.f32 %v8319, %v8150
      %v8321 = vadd.f32 %v8320, %v8152
      %v8322 = vadd.f32 %v8321, %v8155
      %v8323 = vadd.f32 %v8322, %v8157
      %v8324 = vadd.f32 %v8323, %v8160
      %v8325 = vadd.f32 %v8324, %v8162
      %v8326 = vadd.f32 %v8325, %v8165
      %v8327 = vadd.f32 %v8326, %v8167
      %v8328 = vadd.f32 %v8327, %v8170
      %v8329 = vadd.f32 %v8328, %v8172
      %v8330 = vadd.f32 %v8329, %v8175
      %v8331 = vadd.f32 %v8330, %v8177
      %v8332 = vadd.f32 %v8331, %v8180
      %v8333 = vadd.f32 %v8332, %v8182
      %v8334 = vadd.f32 %v8333, %v8185
      %v8335 = vadd.f32 %v8334, %v8187
      %v8336 = vadd.f32 %v8335, %v8190
      %v8337 = vadd.f32 %v8336, %v8192
      %v8338 = vadd.f32 %v8337, %v8195
      %v8339 = vadd.f32 %v8338, %v8197
      %v8340 = vadd.f32 %v8339, %v8200
      %v8341 = vadd.f32 %v8340, %v8202
      %v8342 = vadd.f32 %v8341, %v8205
      %v8343 = vadd.f32 %v8342, %v8207
      %v8344 = vadd.f32 %v8343, %v8210
      %v8345 = vadd.f32 %v8344, %v8212
      %v8346 = vrot.slane %v8345, 4
      %v8347 = vadd.f32 %v8345, %v8346
      %v8348 = vrot.slane %v8347, 2
      %v8349 = vadd.f32 %v8347, %v8348
      %v8350 = vrot.slane %v8349, 1
      %v8351 = vadd.f32 %v8349, %v8350
      %v8354 = vrot.slane %v8351, 7
      %vm8355 = vcmask 1040384
      %v8356 = vsel %vm8355, %v8314, %v8354
      %v8358 = vlaneseq
      %vm8359 = vcmp.ge.s32.totalorder %v8358, 0
      %vm8360 = vcmp.lt.s32.totalorder %v8358, 256
      %vm8361 = vmand %vm8359, %vm8360
      %8362 = vst.msk [vmem:[%s241] sm:$0x3] %vm8361, %v8356
      %v8363 = vmul.f32 %v6533, %v6533
      %v8364 = vmul.f32 %v8135, %v8135
      %v8365 = vmul.f32 %v6535, %v6535
      %v8366 = vmul.f32 %v8137, %v8137
      %v8367 = vmul.f32 %v6538, %v6538
      %v8368 = vmul.f32 %v8140, %v8140
      %v8369 = vmul.f32 %v6540, %v6540
      %v8370 = vmul.f32 %v8142, %v8142
      %v8371 = vmul.f32 %v6543, %v6543
      %v8372 = vmul.f32 %v8145, %v8145
      %v8373 = vmul.f32 %v6545, %v6545
      %v8374 = vmul.f32 %v8147, %v8147
      %v8375 = vmul.f32 %v6548, %v6548
      %v8376 = vmul.f32 %v8150, %v8150
      %v8377 = vmul.f32 %v6550, %v6550
      %v8378 = vmul.f32 %v8152, %v8152
      %v8379 = vmul.f32 %v6553, %v6553
      %v8380 = vmul.f32 %v8155, %v8155
      %v8381 = vmul.f32 %v6555, %v6555
      %v8382 = vmul.f32 %v8157, %v8157
      %v8383 = vmul.f32 %v6558, %v6558
      %v8384 = vmul.f32 %v8160, %v8160
      %v8385 = vmul.f32 %v6560, %v6560
      %v8386 = vmul.f32 %v8162, %v8162
      %v8387 = vmul.f32 %v6563, %v6563
      %v8388 = vmul.f32 %v8165, %v8165
      %v8389 = vmul.f32 %v6565, %v6565
      %v8390 = vmul.f32 %v8167, %v8167
      %v8391 = vmul.f32 %v6568, %v6568
      %v8392 = vmul.f32 %v8170, %v8170
      %v8393 = vmul.f32 %v6570, %v6570
      %v8394 = vmul.f32 %v8172, %v8172
      %v8395 = vmul.f32 %v6573, %v6573
      %v8396 = vmul.f32 %v8175, %v8175
      %v8397 = vmul.f32 %v6575, %v6575
      %v8398 = vmul.f32 %v8177, %v8177
      %v8399 = vmul.f32 %v6578, %v6578
      %v8400 = vmul.f32 %v8180, %v8180
      %v8401 = vmul.f32 %v6580, %v6580
      %v8402 = vmul.f32 %v8182, %v8182
      %v8403 = vmul.f32 %v6583, %v6583
      %v8404 = vmul.f32 %v8185, %v8185
      %v8405 = vmul.f32 %v6585, %v6585
      %v8406 = vmul.f32 %v8187, %v8187
      %v8407 = vmul.f32 %v6588, %v6588
      %v8408 = vmul.f32 %v8190, %v8190
      %v8409 = vmul.f32 %v6590, %v6590
      %v8410 = vmul.f32 %v8192, %v8192
      %v8411 = vmul.f32 %v6593, %v6593
      %v8412 = vmul.f32 %v8195, %v8195
      %v8413 = vmul.f32 %v6595, %v6595
      %v8414 = vmul.f32 %v8197, %v8197
      %v8415 = vmul.f32 %v6598, %v6598
      %v8416 = vmul.f32 %v8200, %v8200
      %v8417 = vmul.f32 %v6600, %v6600
      %v8418 = vmul.f32 %v8202, %v8202
      %v8419 = vmul.f32 %v6603, %v6603
      %v8420 = vmul.f32 %v8205, %v8205
      %v8421 = vmul.f32 %v6605, %v6605
      %v8422 = vmul.f32 %v8207, %v8207
      %v8423 = vmul.f32 %v6608, %v6608
      %v8424 = vmul.f32 %v8210, %v8210
      %v8425 = vmul.f32 %v6610, %v6610
      %v8426 = vmul.f32 %v8212, %v8212
      %v8427 = vadd.f32 %v8363, %v8365
      %v8428 = vadd.f32 %v8427, %v8367
      %v8429 = vadd.f32 %v8428, %v8369
      %v8430 = vadd.f32 %v8429, %v8371
      %v8431 = vadd.f32 %v8430, %v8373
      %v8432 = vadd.f32 %v8431, %v8375
      %v8433 = vadd.f32 %v8432, %v8377
      %v8434 = vadd.f32 %v8433, %v8379
      %v8435 = vadd.f32 %v8434, %v8381
      %v8436 = vadd.f32 %v8435, %v8383
      %v8437 = vadd.f32 %v8436, %v8385
      %v8438 = vadd.f32 %v8437, %v8387
      %v8439 = vadd.f32 %v8438, %v8389
      %v8440 = vadd.f32 %v8439, %v8391
      %v8441 = vadd.f32 %v8440, %v8393
      %v8442 = vadd.f32 %v8441, %v8395
      %v8443 = vadd.f32 %v8442, %v8397
      %v8444 = vadd.f32 %v8443, %v8399
      %v8445 = vadd.f32 %v8444, %v8401
      %v8446 = vadd.f32 %v8445, %v8403
      %v8447 = vadd.f32 %v8446, %v8405
      %v8448 = vadd.f32 %v8447, %v8407
      %v8449 = vadd.f32 %v8448, %v8409
      %v8450 = vadd.f32 %v8449, %v8411
      %v8451 = vadd.f32 %v8450, %v8413
      %v8452 = vadd.f32 %v8451, %v8415
      %v8453 = vadd.f32 %v8452, %v8417
      %v8454 = vadd.f32 %v8453, %v8419
      %v8455 = vadd.f32 %v8454, %v8421
      %v8456 = vadd.f32 %v8455, %v8423
      %v8457 = vadd.f32 %v8456, %v8425
      %v8458 = vrot.slane %v8457, 4
      %v8459 = vadd.f32 %v8457, %v8458
      %v8460 = vrot.slane %v8459, 2
      %v8461 = vadd.f32 %v8459, %v8460
      %v8462 = vrot.slane %v8461, 1
      %v8463 = vadd.f32 %v8461, %v8462
      %v8464 = vadd.f32 %v8364, %v8366
      %v8465 = vadd.f32 %v8464, %v8368
      %v8466 = vadd.f32 %v8465, %v8370
      %v8467 = vadd.f32 %v8466, %v8372
      %v8468 = vadd.f32 %v8467, %v8374
      %v8469 = vadd.f32 %v8468, %v8376
      %v8470 = vadd.f32 %v8469, %v8378
      %v8471 = vadd.f32 %v8470, %v8380
      %v8472 = vadd.f32 %v8471, %v8382
      %v8473 = vadd.f32 %v8472, %v8384
      %v8474 = vadd.f32 %v8473, %v8386
      %v8475 = vadd.f32 %v8474, %v8388
      %v8476 = vadd.f32 %v8475, %v8390
      %v8477 = vadd.f32 %v8476, %v8392
      %v8478 = vadd.f32 %v8477, %v8394
      %v8479 = vadd.f32 %v8478, %v8396
      %v8480 = vadd.f32 %v8479, %v8398
      %v8481 = vadd.f32 %v8480, %v8400
      %v8482 = vadd.f32 %v8481, %v8402
      %v8483 = vadd.f32 %v8482, %v8404
      %v8484 = vadd.f32 %v8483, %v8406
      %v8485 = vadd.f32 %v8484, %v8408
      %v8486 = vadd.f32 %v8485, %v8410
      %v8487 = vadd.f32 %v8486, %v8412
      %v8488 = vadd.f32 %v8487, %v8414
      %v8489 = vadd.f32 %v8488, %v8416
      %v8490 = vadd.f32 %v8489, %v8418
      %v8491 = vadd.f32 %v8490, %v8420
      %v8492 = vadd.f32 %v8491, %v8422
      %v8493 = vadd.f32 %v8492, %v8424
      %v8494 = vadd.f32 %v8493, %v8426
      %v8495 = vrot.slane %v8494, 4
      %v8496 = vadd.f32 %v8494, %v8495
      %v8497 = vrot.slane %v8496, 2
      %v8498 = vadd.f32 %v8496, %v8497
      %v8499 = vrot.slane %v8498, 1
      %v8500 = vadd.f32 %v8498, %v8499
      %v8503 = vrot.slane %v8500, 7
      %v8504 = vsel %vm8355, %v8463, %v8503
      %8506 = vst.msk [vmem:[%s245] sm:$0x3] %vm8361, %v8504
      %p8507 = scmp.lt.s32.totalorder %s17, 1
      %s8508 = scalar_select %p8507, %s17, 1
      %s8509 = smul.addr %s8508, 64
      %s8510 = smul.addr %s8509, 4
      %s8511 = scalar_lea.vmem %s3, %s8510
      %p8512 = scmp.lt.s32.totalorder %s17, 1
      %s8513 = scalar_select %p8512, %s17, 1
      %s8514 = smul.addr %s8513, 2
      %s8515 = scalar_lea.vmem %s4, %s8514
      %p8516 = scmp.lt.s32.totalorder %s17, 1
      %s8517 = scalar_select %p8516, %s17, 1
      %s8518 = smul.addr %s8517, 2
      %s8519 = scalar_lea.vmem %s5, %s8518
      // Predicated region
      $region33: #{relu_conv_bn.2} parent=31 // pred_check
        %p8520 = pneg %p103
      $region34: #{relu_conv_bn.2} parent=31 // pred_check_branch
        %8522 = sbr.rel (%p8520) target = $region36
      $region35: #{relu_conv_bn.2} parent=31 // pred_region
        _
      $region36: #{relu_conv_bn.2} parent=31 // pred_fallthru
        _
      // Predicated region
      $region37: #{relu_conv_bn.2} parent=31 // pred_check
        %p8523 = pneg %p129
      $region38: #{relu_conv_bn.2} parent=31 // pred_check_branch
        %8525 = sbr.rel (%p8523) target = $region40
      $region39: #{relu_conv_bn.2} parent=31 // pred_region
        _
      $region40: #{relu_conv_bn.2} parent=31 // pred_fallthru
        _
      // Predicated region
      $region41: #{relu_conv_bn.2} parent=31 // pred_check
        %p8526 = pneg %p155
      $region42: #{relu_conv_bn.2} parent=31 // pred_check_branch
        %8528 = sbr.rel (%p8526) target = $region44
      $region43: #{relu_conv_bn.2} parent=31 // pred_region
        _
      $region44: #{relu_conv_bn.2} parent=31 // pred_fallthru
        _
    $region32: #{relu_conv_bn.2} parent=5 // pred_fallthru
      _
    %p8529 = scmp.le.s32.totalorder 2, %s12
    // Predicated region
    $region45: #{relu_conv_bn.2} parent=5 // pred_check
      %p8530 = pneg %p8529
    $region46: #{relu_conv_bn.2} parent=5 // pred_check_branch
      %8532 = sbr.rel (%p8530) target = $region48
    $region47: #{relu_conv_bn.2} parent=5 // pred_region
      %s8533 = ssub.s32 %s12, 2
      // Predicated region
      $region49: #{relu_conv_bn.2} parent=47 // pred_check
        %p8534 = pneg %p109
      $region50: #{relu_conv_bn.2} parent=47 // pred_check_branch
        %8536 = sbr.rel (%p8534) target = $region52
      $region51: #{relu_conv_bn.2} parent=47 // pred_region
        %p8537 = scmp.lt.s32.totalorder %s18, 1
        %s8538 = scalar_select %p8537, %s18, 1
        %s8539 = smul.addr %s8538, 64
        %s8540 = smul.addr %s8539, 4
        %s8541 = scalar_lea.vmem %s3, %s8540
      $region52: #{relu_conv_bn.2} parent=47 // pred_fallthru
        _
      // Predicated region
      $region53: #{relu_conv_bn.2} parent=47 // pred_check
        %p8542 = pneg %p135
      $region54: #{relu_conv_bn.2} parent=47 // pred_check_branch
        %8544 = sbr.rel (%p8542) target = $region56
      $region55: #{relu_conv_bn.2} parent=47 // pred_region
        %p8545 = scmp.lt.s32.totalorder %s18, 1
        %s8546 = scalar_select %p8545, %s18, 1
        %s8547 = smul.addr %s8546, 2
        %s8548 = scalar_lea.vmem %s4, %s8547
      $region56: #{relu_conv_bn.2} parent=47 // pred_fallthru
        _
      // Predicated region
      $region57: #{relu_conv_bn.2} parent=47 // pred_check
        %p8549 = pneg %p161
      $region58: #{relu_conv_bn.2} parent=47 // pred_check_branch
        %8551 = sbr.rel (%p8549) target = $region60
      $region59: #{relu_conv_bn.2} parent=47 // pred_region
        %p8552 = scmp.lt.s32.totalorder %s18, 1
        %s8553 = scalar_select %p8552, %s18, 1
        %s8554 = smul.addr %s8553, 2
        %s8555 = scalar_lea.vmem %s5, %s8554
      $region60: #{relu_conv_bn.2} parent=47 // pred_fallthru
        _
    $region48: #{relu_conv_bn.2} parent=5 // pred_fallthru
      _
  $region6: #{relu_conv_bn.2} parent=0 // loop_footer
    %s16 = sadd.s32 1, %s12
  $region7: #{relu_conv_bn.2} parent=0 // loop_footer_branch
    %11 = sbr.rel target = $region3
  $region8: #{relu_conv_bn.2} parent=0 // loop_exit
    _

</llo_original>
